<compile_context>
chip_gen: v6e
topology: v6e:2x2x1
jax: 0.10.0
libtpu: 0.0.40
codegen_flags: <defaults>
</compile_context>

<pallas_src>
import jax
import jax.numpy as jnp
from jax import lax
from jax.experimental import pallas as pl
from jax.experimental.pallas import tpu as pltpu

FC1_PAD = 640      # 625 rounded up to a multiple of 128
LANE = 128


def _round_up(x, m):
    return (x + m - 1) // m * m


def _tpu_tuning():
    """Generation-aware (batch_tile, vmem_limit_bytes)."""
    try:
        vmem_cap = pltpu.get_tpu_info().vmem_capacity_bytes
    except Exception:
        vmem_cap = 64 * 1024 * 1024                 # conservative (v7x-sized)
    if vmem_cap <= 64 * 1024 * 1024:                # v7x-class: 64 MiB / TC
        return 64, 48 * 1024 * 1024
    return 128, 96 * 1024 * 1024                    # v5e / v6e: 128 MiB physical


# ----------------------------------------------------------------------------
# In-kernel helper: fused conv3x3(valid) + bias + ReLU + maxpool(2,2) stage
# ----------------------------------------------------------------------------
def _conv3x3_relu_pool2(x, t_ref, bias):
    """x: (TB, H, Win) bf16 activations, lane = pixel*Cin + ci (zero-padded to Win).
    t_ref: (3*Win, 2*half) bf16 folded banded conv matrix; output column
           (j%2)*half + (j//2)*Cout + co, i.e. 2x2-pool width partners live in
           the two 128-aligned lane halves.
    bias : (1, 2*half) f32, same column layout (zeros in pad columns).
    Returns (TB, Hp, half) bf16 pooled output (real data in leading Wp*Cout lanes).
    """
    TB, H, Win = x.shape
    Hc, N = H - 2, t_ref.shape[1]
    Hp, half = Hc // 2, N // 2

    # im2col: three row bands concatenated along K (one copy), then one matmul.
    cols = jnp.concatenate([x[:, k:k + Hc, :] for k in range(3)], axis=-1)
    cols = cols.reshape(TB * Hc, 3 * Win)
    acc = jnp.dot(cols, t_ref[...], preferred_element_type=jnp.float32)
    acc = jnp.maximum(acc + bias, 0.0)                       # bias + ReLU, (TB*Hc, N)

    # 2x2 / stride-2 max-pool (floor mode), fully lane-dense.
    r = acc.reshape(TB, Hc, N)[:, :2 * Hp, :].reshape(TB * Hp, 2, N)
    r = jnp.maximum(r[:, 0], r[:, 1])                        # pool rows -> (TB*Hp, N)
    r = jnp.maximum(r[:, :half], r[:, half:])                # pool cols -> (TB*Hp, half)
    return r.reshape(TB, Hp, half).astype(jnp.bfloat16)      # single bf16 cast / stage


# ----------------------------------------------------------------------------
# Fused kernel: conv1 -> conv2 -> conv3 -> fc1 -> ReLU -> fc2
# ----------------------------------------------------------------------------
def _cnn_fused_kernel(x_ref, t1_ref, b1_ref, t2_ref, b2_ref, t3_ref, b3_ref,
                      wf1_ref, bf1_ref, wf2_ref, bf2_ref, o_ref):
    TB = x_ref.shape[0]

    h = _conv3x3_relu_pool2(x_ref[...], t1_ref, b1_ref[...])   # (TB, 13, 512)
    h = _conv3x3_relu_pool2(h, t2_ref, b2_ref[...])            # (TB,  5, 384)
    h = _conv3x3_relu_pool2(h, t3_ref, b3_ref[...])            # (TB,  1, 128)

    feat = h.reshape(TB, 128)                                  # bf16, channel order
    hid = jnp.dot(feat, wf1_ref[...],
                  preferred_element_type=jnp.float32) + bf1_ref[...]
    hid = jnp.maximum(hid, 0.0)
    # TODO(synk): nn.Dropout(p=0.5) is identity in eval mode; training-mode dropout
    # would draw a mask here via pltpu.prng_seed / pltpu.prng_random_bits.
    o_ref[...] = jnp.dot(hid.astype(jnp.bfloat16), wf2_ref[...],
                         preferred_element_type=jnp.float32) + bf2_ref[...]


# ----------------------------------------------------------------------------
# Wrapper: one pallas_call, gridded over the batch
# ----------------------------------------------------------------------------
def cnn_forward(x_nchw, kp):
    B = x_nchw.shape[0]
    x = x_nchw.reshape(B, 28, 28).astype(jnp.bfloat16)      # NCHW (C=1) -> (B,28,28) bf16
    batch_tile, vmem_limit = _tpu_tuning()
    TB = min(B, batch_tile)
    grid = (pl.cdiv(B, TB),)

    weights = (kp["t1"], kp["b1"], kp["t2"], kp["b2"], kp["t3"], kp["b3"],
               kp["wf1"], kp["bf1"], kp["wf2"], kp["bf2"])

    def _resident(a):      # full array, constant block index -> resident in VMEM
        zeros = (0,) * a.ndim
        return pl.BlockSpec(a.shape, lambda b, _z=zeros: _z)

    flops = 2 * B * (26 * 26 * 9 * 1 * 32 + 11 * 11 * 9 * 32 * 64
                     + 3 * 3 * 9 * 64 * 128 + 128 * 625 + 625 * 10)
    bytes_accessed = (x.size * 2
                      + sum(int(a.size) * a.dtype.itemsize for a in weights)
                      + B * LANE * 4)

    logits_pad = pl.pallas_call(
        _cnn_fused_kernel,
        out_shape=jax.ShapeDtypeStruct((B, LANE), jnp.float32),
        grid=grid,
        in_specs=[pl.BlockSpec((TB, 28, 28), lambda b: (b, 0, 0))]
                 + [_resident(a) for a in weights],
        out_specs=pl.BlockSpec((TB, LANE), lambda b: (b, 0)),
        compiler_params=pltpu.CompilerParams(
            dimension_semantics=("parallel",),
            vmem_limit_bytes=vmem_limit,
        ),
        cost_estimate=pl.CostEstimate(flops=flops, transcendentals=0,
                                      bytes_accessed=bytes_accessed),
    )(x, *weights)
    return logits_pad[:, :10]


# ----------------------------------------------------------------------------
# Parameter preparation (plain JAX glue, done once outside the kernel)
# ----------------------------------------------------------------------------
def prepare_params(p):
    """PyTorch-layout params -> kernel layout.

    Each conv stage becomes one folded banded matrix T (K = 3 row bands of the
    lane-padded input width) with the output columns interleaved so 2x2-pool
    width partners occupy the two 128-aligned lane halves; unused last columns
    (odd Wc) and all pad columns/rows are zero. fc1/fc2 are zero-padded to
    640 / 128; logits are unchanged after the wrapper slice.
    """
    def conv_stage(w_oihw, b, w_pix, lanes_in):
        Cout, Cin, _, _ = w_oihw.shape
        Wc = w_pix - 2
        Wp = Wc // 2
        half = _round_up(Wp * Cout, LANE)
        wk = jnp.transpose(w_oihw, (2, 3, 1, 0))               # (ki, kj, Cin, Cout)
        # sel[kj, p, j] = 1 iff p == j + kj, keeping only the 2*Wp pooled columns.
        sel = jnp.stack([jnp.eye(w_pix, 2 * Wp, k=-kj, dtype=jnp.float32)
                         for kj in range(3)])
        t = jnp.einsum("kpj,akco->apcjo", sel, wk)             # (ki, p, Cin, j, Cout)
        t = t.reshape(3, w_pix, Cin, Wp, 2, Cout)              # j -> (j//2, j%2)
        t = jnp.transpose(t, (0, 1, 2, 4, 3, 5))               # (ki, p, Cin, parity, j//2, Cout)
        t = t.reshape(3, w_pix * Cin, 2, Wp * Cout)
        t = jnp.pad(t, ((0, 0), (0, lanes_in - w_pix * Cin),
                        (0, 0), (0, half - Wp * Cout)))
        t = t.reshape(3 * lanes_in, 2 * half).astype(jnp.bfloat16)
        bias_half = jnp.pad(jnp.tile(b, Wp), (0, half - Wp * Cout))
        bias = jnp.concatenate([bias_half, bias_half]).reshape(1, 2 * half)
        return t, bias.astype(jnp.float32), half

    t1, b1, half1 = conv_stage(p["conv1_w"], p["conv1_b"], 28, 28)      # -> 512
    t2, b2, half2 = conv_stage(p["conv2_w"], p["conv2_b"], 13, half1)   # -> 384
    t3, b3, half3 = conv_stage(p["conv3_w"], p["conv3_b"], 5,  half2)   # -> 128
    assert half3 == 128

    wf1 = jnp.pad(jnp.transpose(p["fc1_w"]),
                  ((0, 0), (0, FC1_PAD - 625))).astype(jnp.bfloat16)    # (128, 640)
    bf1 = jnp.pad(p["fc1_b"], (0, FC1_PAD - 625)).reshape(1, FC1_PAD).astype(jnp.float32)
    wf2 = jnp.pad(jnp.transpose(p["fc2_w"]),
                  ((0, FC1_PAD - 625), (0, LANE - 10))).astype(jnp.bfloat16)  # (640, 128)
    bf2 = jnp.pad(p["fc2_b"], (0, LANE - 10)).reshape(1, LANE).astype(jnp.float32)

    return dict(t1=t1, b1=b1, t2=t2, b2=b2, t3=t3, b3=b3,
                wf1=wf1, bf1=bf1, wf2=wf2, bf2=bf2)


# ----------------------------------------------------------------------------
# Deterministic synthetic init (mirrors the nn.Module shapes, PyTorch layout)
# ----------------------------------------------------------------------------
def init_params(key):
    ks = jax.random.split(key, 10)

    def conv(kw, kb, cin, cout):
        bound = 1.0 / (cin * 9) ** 0.5
        w = jax.random.uniform(kw, (cout, cin, 3, 3), jnp.float32, -bound, bound)
        b = jax.random.uniform(kb, (cout,), jnp.float32, -bound, bound)
        return w, b

    def linear_xavier(kw, kb, fin, fout):
        wb = (6.0 / (fin + fout)) ** 0.5
        w = jax.random.uniform(kw, (fout, fin), jnp.float32, -wb, wb)
        bb = 1.0 / fin ** 0.5
        b = jax.random.uniform(kb, (fout,), jnp.float32, -bb, bb)
        return w, b

    c1w, c1b = conv(ks[0], ks[1], 1, 32)
    c2w, c2b = conv(ks[2], ks[3], 32, 64)
    c3w, c3b = conv(ks[4], ks[5], 64, 128)
    f1w, f1b = linear_xavier(ks[6], ks[7], 128, 625)
    f2w, f2b = linear_xavier(ks[8], ks[9], 625, 10)
    return dict(conv1_w=c1w, conv1_b=c1b, conv2_w=c2w, conv2_b=c2b,
                conv3_w=c3w, conv3_b=c3b, fc1_w=f1w, fc1_b=f1b,
                fc2_w=f2w, fc2_b=f2b)


# ----------------------------------------------------------------------------
# Pure-JAX reference (XLA, f32) for a numerical sanity check
# ----------------------------------------------------------------------------
def reference_forward(x, p):
    def conv_block(h, w, b):
        h = lax.conv_general_dilated(h, w, (1, 1), "VALID",
                                     dimension_numbers=("NCHW", "OIHW", "NCHW"))
        h = jax.nn.relu(h + b.reshape(1, -1, 1, 1))
        return lax.reduce_window(h, -jnp.inf, lax.max,
                                 (1, 1, 2, 2), (1, 1, 2, 2), "VALID")
    h = conv_block(x, p["conv1_w"], p["conv1_b"])
    h = conv_block(h, p["conv2_w"], p["conv2_b"])
    h = conv_block(h, p["conv3_w"], p["conv3_b"])
    h = h.reshape(h.shape[0], -1)
    h = jax.nn.relu(h @ p["fc1_w"].T + p["fc1_b"])
    return h @ p["fc2_w"].T + p["fc2_b"]


if __name__ == "__main__":
    key = jax.random.PRNGKey(0)
    pkey, xkey = jax.random.split(key)
    raw_params = init_params(pkey)
    kernel_params = prepare_params(raw_params)

    # MNIST-shaped input (the view(B,-1) -> fc1(128) path requires 1x28x28)
    x = jax.random.normal(xkey, (2, 1, 28, 28), jnp.float32)   # NCHW like PyTorch

    logits = jax.jit(cnn_forward)(x, kernel_params)
    jax.block_until_ready(logits)
    assert logits.shape == (2, 10) and logits.dtype == jnp.float32

    ref = reference_forward(x, raw_params)
    rel_err = float(jnp.linalg.norm(logits - ref) / (jnp.linalg.norm(ref) + 1e-6))
    assert rel_err < 3e-2, f"numerical mismatch: rel L2 err = {rel_err}"

    print("KERNEL_OK")
</pallas_src>

<mosaic_0001>
module attributes {stable_mosaic.version = 11 : i64} {
  func.func @_cnn_fused_kernel(%arg0: i32, %arg1: memref<2x28x28xbf16, #tpu.memory_space<vmem>>, %arg2: memref<84x1024xbf16, #tpu.memory_space<vmem>>, %arg3: memref<1x1024xf32, #tpu.memory_space<vmem>>, %arg4: memref<1536x768xbf16, #tpu.memory_space<vmem>>, %arg5: memref<1x768xf32, #tpu.memory_space<vmem>>, %arg6: memref<1152x256xbf16, #tpu.memory_space<vmem>>, %arg7: memref<1x256xf32, #tpu.memory_space<vmem>>, %arg8: memref<128x640xbf16, #tpu.memory_space<vmem>>, %arg9: memref<1x640xf32, #tpu.memory_space<vmem>>, %arg10: memref<640x128xbf16, #tpu.memory_space<vmem>>, %arg11: memref<1x128xf32, #tpu.memory_space<vmem>>, %arg12: memref<2x128xf32, #tpu.memory_space<vmem>>) attributes {dimension_semantics = [#tpu.dimension_semantics<parallel>], iteration_bounds = array<i64: 1>, scalar_prefetch = 0 : i64, scratch_operands = 0 : i64, tpu.core_type = #tpu.core_type<tc>, window_params = [{transform_indices = @transform_0, window_bounds = array<i64: 2, 28, 28>}, {pipeline_mode = #tpu.pipeline_mode<synchronous>, transform_indices = @transform_1, window_bounds = array<i64: 84, 1024>}, {pipeline_mode = #tpu.pipeline_mode<synchronous>, transform_indices = @transform_2, window_bounds = array<i64: 1, 1024>}, {pipeline_mode = #tpu.pipeline_mode<synchronous>, transform_indices = @transform_3, window_bounds = array<i64: 1536, 768>}, {pipeline_mode = #tpu.pipeline_mode<synchronous>, transform_indices = @transform_4, window_bounds = array<i64: 1, 768>}, {pipeline_mode = #tpu.pipeline_mode<synchronous>, transform_indices = @transform_5, window_bounds = array<i64: 1152, 256>}, {pipeline_mode = #tpu.pipeline_mode<synchronous>, transform_indices = @transform_6, window_bounds = array<i64: 1, 256>}, {pipeline_mode = #tpu.pipeline_mode<synchronous>, transform_indices = @transform_7, window_bounds = array<i64: 128, 640>}, {pipeline_mode = #tpu.pipeline_mode<synchronous>, transform_indices = @transform_8, window_bounds = array<i64: 1, 640>}, {pipeline_mode = #tpu.pipeline_mode<synchronous>, transform_indices = @transform_9, window_bounds = array<i64: 640, 128>}, {pipeline_mode = #tpu.pipeline_mode<synchronous>, transform_indices = @transform_10, window_bounds = array<i64: 1, 128>}, {transform_indices = @transform_11, window_bounds = array<i64: 2, 128>}]} {
    %c0 = arith.constant 0 : index
    %c0_0 = arith.constant 0 : index
    %c0_1 = arith.constant 0 : index
    %0 = vector.load %arg1[%c0, %c0_0, %c0_1] : memref<2x28x28xbf16, #tpu.memory_space<vmem>>, vector<2x28x28xbf16>
    %c0_2 = arith.constant 0 : index
    %c0_3 = arith.constant 0 : index
    %1 = vector.load %arg3[%c0_2, %c0_3] : memref<1x1024xf32, #tpu.memory_space<vmem>>, vector<1x1024xf32>
    %2 = vector.extract_strided_slice %0 {offsets = [0, 0, 0], sizes = [2, 26, 28], strides = [1, 1, 1]} : vector<2x28x28xbf16> to vector<2x26x28xbf16>
    %3 = vector.extract_strided_slice %0 {offsets = [0, 1, 0], sizes = [2, 26, 28], strides = [1, 1, 1]} : vector<2x28x28xbf16> to vector<2x26x28xbf16>
    %4 = vector.extract_strided_slice %0 {offsets = [0, 2, 0], sizes = [2, 26, 28], strides = [1, 1, 1]} : vector<2x28x28xbf16> to vector<2x26x28xbf16>
    %5 = tpu.concatenate %2, %3, %4 in 2 : vector<2x26x28xbf16>, vector<2x26x28xbf16>, vector<2x26x28xbf16> -> vector<2x26x84xbf16>
    %6 = vector.shape_cast %5 : vector<2x26x84xbf16> to vector<52x84xbf16>
    %c0_4 = arith.constant 0 : index
    %c0_5 = arith.constant 0 : index
    %7 = vector.load %arg2[%c0_4, %c0_5] : memref<84x1024xbf16, #tpu.memory_space<vmem>>, vector<84x1024xbf16>
    %cst = arith.constant dense<0.000000e+00> : vector<52x1024xf32>
    %8 = tpu.matmul %6, %7, %cst {dimension_numbers = #tpu.dot_dimension_numbers<[1], [0], [0], [1], [0, 0, 1, 1], [], []>} : vector<52x84xbf16>, vector<84x1024xbf16>, vector<52x1024xf32> -> vector<52x1024xf32>
    %9 = vector.broadcast %1 : vector<1x1024xf32> to vector<52x1024xf32>
    %10 = arith.addf %8, %9 : vector<52x1024xf32>
    %cst_6 = arith.constant 0.000000e+00 : f32
    %11 = vector.broadcast %cst_6 : f32 to vector<52x1024xf32>
    %12 = arith.maximumf %10, %11 : vector<52x1024xf32>
    %13 = vector.shape_cast %12 : vector<52x1024xf32> to vector<2x26x1024xf32>
    %14 = vector.shape_cast %13 : vector<2x26x1024xf32> to vector<26x2x1024xf32>
    %15 = vector.extract_strided_slice %14 {offsets = [0, 0, 0], sizes = [26, 1, 1024], strides = [1, 1, 1]} : vector<26x2x1024xf32> to vector<26x1x1024xf32>
    %16 = vector.shape_cast %15 : vector<26x1x1024xf32> to vector<26x1024xf32>
    %17 = vector.extract_strided_slice %14 {offsets = [0, 1, 0], sizes = [26, 1, 1024], strides = [1, 1, 1]} : vector<26x2x1024xf32> to vector<26x1x1024xf32>
    %18 = vector.shape_cast %17 : vector<26x1x1024xf32> to vector<26x1024xf32>
    %19 = arith.maximumf %16, %18 : vector<26x1024xf32>
    %20 = vector.extract_strided_slice %19 {offsets = [0, 0], sizes = [26, 512], strides = [1, 1]} : vector<26x1024xf32> to vector<26x512xf32>
    %21 = vector.extract_strided_slice %19 {offsets = [0, 512], sizes = [26, 512], strides = [1, 1]} : vector<26x1024xf32> to vector<26x512xf32>
    %22 = arith.maximumf %20, %21 : vector<26x512xf32>
    %23 = vector.shape_cast %22 : vector<26x512xf32> to vector<2x13x512xf32>
    %24 = arith.truncf %23 : vector<2x13x512xf32> to vector<2x13x512xbf16>
    %c0_7 = arith.constant 0 : index
    %c0_8 = arith.constant 0 : index
    %25 = vector.load %arg5[%c0_7, %c0_8] : memref<1x768xf32, #tpu.memory_space<vmem>>, vector<1x768xf32>
    %26 = vector.extract_strided_slice %24 {offsets = [0, 0, 0], sizes = [2, 11, 512], strides = [1, 1, 1]} : vector<2x13x512xbf16> to vector<2x11x512xbf16>
    %27 = vector.extract_strided_slice %24 {offsets = [0, 1, 0], sizes = [2, 11, 512], strides = [1, 1, 1]} : vector<2x13x512xbf16> to vector<2x11x512xbf16>
    %28 = vector.extract_strided_slice %24 {offsets = [0, 2, 0], sizes = [2, 11, 512], strides = [1, 1, 1]} : vector<2x13x512xbf16> to vector<2x11x512xbf16>
    %29 = tpu.concatenate %26, %27, %28 in 2 : vector<2x11x512xbf16>, vector<2x11x512xbf16>, vector<2x11x512xbf16> -> vector<2x11x1536xbf16>
    %30 = vector.shape_cast %29 : vector<2x11x1536xbf16> to vector<22x1536xbf16>
    %c0_9 = arith.constant 0 : index
    %c0_10 = arith.constant 0 : index
    %31 = vector.load %arg4[%c0_9, %c0_10] : memref<1536x768xbf16, #tpu.memory_space<vmem>>, vector<1536x768xbf16>
    %cst_11 = arith.constant dense<0.000000e+00> : vector<22x768xf32>
    %32 = tpu.matmul %30, %31, %cst_11 {dimension_numbers = #tpu.dot_dimension_numbers<[1], [0], [0], [1], [0, 0, 1, 1], [], []>} : vector<22x1536xbf16>, vector<1536x768xbf16>, vector<22x768xf32> -> vector<22x768xf32>
    %33 = vector.broadcast %25 : vector<1x768xf32> to vector<22x768xf32>
    %34 = arith.addf %32, %33 : vector<22x768xf32>
    %cst_12 = arith.constant 0.000000e+00 : f32
    %35 = vector.broadcast %cst_12 : f32 to vector<22x768xf32>
    %36 = arith.maximumf %34, %35 : vector<22x768xf32>
    %37 = vector.shape_cast %36 : vector<22x768xf32> to vector<2x11x768xf32>
    %38 = vector.extract_strided_slice %37 {offsets = [0, 0, 0], sizes = [2, 10, 768], strides = [1, 1, 1]} : vector<2x11x768xf32> to vector<2x10x768xf32>
    %39 = vector.shape_cast %38 : vector<2x10x768xf32> to vector<10x2x768xf32>
    %40 = vector.extract_strided_slice %39 {offsets = [0, 0, 0], sizes = [10, 1, 768], strides = [1, 1, 1]} : vector<10x2x768xf32> to vector<10x1x768xf32>
    %41 = vector.shape_cast %40 : vector<10x1x768xf32> to vector<10x768xf32>
    %42 = vector.extract_strided_slice %39 {offsets = [0, 1, 0], sizes = [10, 1, 768], strides = [1, 1, 1]} : vector<10x2x768xf32> to vector<10x1x768xf32>
    %43 = vector.shape_cast %42 : vector<10x1x768xf32> to vector<10x768xf32>
    %44 = arith.maximumf %41, %43 : vector<10x768xf32>
    %45 = vector.extract_strided_slice %44 {offsets = [0, 0], sizes = [10, 384], strides = [1, 1]} : vector<10x768xf32> to vector<10x384xf32>
    %46 = vector.extract_strided_slice %44 {offsets = [0, 384], sizes = [10, 384], strides = [1, 1]} : vector<10x768xf32> to vector<10x384xf32>
    %47 = arith.maximumf %45, %46 : vector<10x384xf32>
    %48 = vector.shape_cast %47 : vector<10x384xf32> to vector<2x5x384xf32>
    %49 = arith.truncf %48 : vector<2x5x384xf32> to vector<2x5x384xbf16>
    %c0_13 = arith.constant 0 : index
    %c0_14 = arith.constant 0 : index
    %50 = vector.load %arg7[%c0_13, %c0_14] : memref<1x256xf32, #tpu.memory_space<vmem>>, vector<1x256xf32>
    %51 = vector.extract_strided_slice %49 {offsets = [0, 0, 0], sizes = [2, 3, 384], strides = [1, 1, 1]} : vector<2x5x384xbf16> to vector<2x3x384xbf16>
    %52 = vector.extract_strided_slice %49 {offsets = [0, 1, 0], sizes = [2, 3, 384], strides = [1, 1, 1]} : vector<2x5x384xbf16> to vector<2x3x384xbf16>
    %53 = vector.extract_strided_slice %49 {offsets = [0, 2, 0], sizes = [2, 3, 384], strides = [1, 1, 1]} : vector<2x5x384xbf16> to vector<2x3x384xbf16>
    %54 = tpu.concatenate %51, %52, %53 in 2 : vector<2x3x384xbf16>, vector<2x3x384xbf16>, vector<2x3x384xbf16> -> vector<2x3x1152xbf16>
    %55 = vector.shape_cast %54 : vector<2x3x1152xbf16> to vector<6x1152xbf16>
    %c0_15 = arith.constant 0 : index
    %c0_16 = arith.constant 0 : index
    %56 = vector.load %arg6[%c0_15, %c0_16] : memref<1152x256xbf16, #tpu.memory_space<vmem>>, vector<1152x256xbf16>
    %cst_17 = arith.constant dense<0.000000e+00> : vector<6x256xf32>
    %57 = tpu.matmul %55, %56, %cst_17 {dimension_numbers = #tpu.dot_dimension_numbers<[1], [0], [0], [1], [0, 0, 1, 1], [], []>} : vector<6x1152xbf16>, vector<1152x256xbf16>, vector<6x256xf32> -> vector<6x256xf32>
    %58 = vector.broadcast %50 : vector<1x256xf32> to vector<6x256xf32>
    %59 = arith.addf %57, %58 : vector<6x256xf32>
    %cst_18 = arith.constant 0.000000e+00 : f32
    %60 = vector.broadcast %cst_18 : f32 to vector<6x256xf32>
    %61 = arith.maximumf %59, %60 : vector<6x256xf32>
    %62 = vector.shape_cast %61 : vector<6x256xf32> to vector<2x3x256xf32>
    %63 = vector.extract_strided_slice %62 {offsets = [0, 0, 0], sizes = [2, 2, 256], strides = [1, 1, 1]} : vector<2x3x256xf32> to vector<2x2x256xf32>
    %64 = vector.extract_strided_slice %63 {offsets = [0, 0, 0], sizes = [2, 1, 256], strides = [1, 1, 1]} : vector<2x2x256xf32> to vector<2x1x256xf32>
    %65 = vector.shape_cast %64 : vector<2x1x256xf32> to vector<2x256xf32>
    %66 = vector.extract_strided_slice %63 {offsets = [0, 1, 0], sizes = [2, 1, 256], strides = [1, 1, 1]} : vector<2x2x256xf32> to vector<2x1x256xf32>
    %67 = vector.shape_cast %66 : vector<2x1x256xf32> to vector<2x256xf32>
    %68 = arith.maximumf %65, %67 : vector<2x256xf32>
    %69 = vector.extract_strided_slice %68 {offsets = [0, 0], sizes = [2, 128], strides = [1, 1]} : vector<2x256xf32> to vector<2x128xf32>
    %70 = vector.extract_strided_slice %68 {offsets = [0, 128], sizes = [2, 128], strides = [1, 1]} : vector<2x256xf32> to vector<2x128xf32>
    %71 = arith.maximumf %69, %70 : vector<2x128xf32>
    %72 = vector.shape_cast %71 : vector<2x128xf32> to vector<2x1x128xf32>
    %73 = arith.truncf %72 : vector<2x1x128xf32> to vector<2x1x128xbf16>
    %74 = vector.shape_cast %73 : vector<2x1x128xbf16> to vector<2x128xbf16>
    %c0_19 = arith.constant 0 : index
    %c0_20 = arith.constant 0 : index
    %75 = vector.load %arg8[%c0_19, %c0_20] : memref<128x640xbf16, #tpu.memory_space<vmem>>, vector<128x640xbf16>
    %cst_21 = arith.constant dense<0.000000e+00> : vector<2x640xf32>
    %76 = tpu.matmul %74, %75, %cst_21 {dimension_numbers = #tpu.dot_dimension_numbers<[1], [0], [0], [1], [0, 0, 1, 1], [], []>} : vector<2x128xbf16>, vector<128x640xbf16>, vector<2x640xf32> -> vector<2x640xf32>
    %c0_22 = arith.constant 0 : index
    %c0_23 = arith.constant 0 : index
    %77 = vector.load %arg9[%c0_22, %c0_23] : memref<1x640xf32, #tpu.memory_space<vmem>>, vector<1x640xf32>
    %78 = vector.broadcast %77 : vector<1x640xf32> to vector<2x640xf32>
    %79 = arith.addf %76, %78 : vector<2x640xf32>
    %cst_24 = arith.constant 0.000000e+00 : f32
    %80 = vector.broadcast %cst_24 : f32 to vector<2x640xf32>
    %81 = arith.maximumf %79, %80 : vector<2x640xf32>
    %82 = arith.truncf %81 : vector<2x640xf32> to vector<2x640xbf16>
    %c0_25 = arith.constant 0 : index
    %c0_26 = arith.constant 0 : index
    %83 = vector.load %arg10[%c0_25, %c0_26] : memref<640x128xbf16, #tpu.memory_space<vmem>>, vector<640x128xbf16>
    %cst_27 = arith.constant dense<0.000000e+00> : vector<2x128xf32>
    %84 = tpu.matmul %82, %83, %cst_27 {dimension_numbers = #tpu.dot_dimension_numbers<[1], [0], [0], [1], [0, 0, 1, 1], [], []>} : vector<2x640xbf16>, vector<640x128xbf16>, vector<2x128xf32> -> vector<2x128xf32>
    %c0_28 = arith.constant 0 : index
    %c0_29 = arith.constant 0 : index
    %85 = vector.load %arg11[%c0_28, %c0_29] : memref<1x128xf32, #tpu.memory_space<vmem>>, vector<1x128xf32>
    %86 = vector.broadcast %85 : vector<1x128xf32> to vector<2x128xf32>
    %87 = arith.addf %84, %86 : vector<2x128xf32>
    %c0_30 = arith.constant 0 : index
    %c0_31 = arith.constant 0 : index
    %88 = vector.load %arg12[%c0_30, %c0_31] : memref<2x128xf32, #tpu.memory_space<vmem>>, vector<2x128xf32>
    tpu.vector_store %arg12[%c0_30, %c0_31], %87 {strides = array<i32>} : memref<2x128xf32, #tpu.memory_space<vmem>>, vector<2x128xf32>,
    return
  }
  func.func @transform_0(%arg0: i32) -> (i32, i32, i32) {
    %c0_i32 = arith.constant 0 : i32
    %c0_i32_0 = arith.constant 0 : i32
    %c0_i32_1 = arith.constant 0 : i32
    return %arg0, %c0_i32, %c0_i32_0 : i32, i32, i32
  }
  func.func @transform_1(%arg0: i32) -> (i32, i32) {
    %c0_i32 = arith.constant 0 : i32
    %c0_i32_0 = arith.constant 0 : i32
    %c0_i32_1 = arith.constant 0 : i32
    return %c0_i32, %c0_i32_0 : i32, i32
  }
  func.func @transform_2(%arg0: i32) -> (i32, i32) {
    %c0_i32 = arith.constant 0 : i32
    %c0_i32_0 = arith.constant 0 : i32
    %c0_i32_1 = arith.constant 0 : i32
    return %c0_i32, %c0_i32_0 : i32, i32
  }
  func.func @transform_3(%arg0: i32) -> (i32, i32) {
    %c0_i32 = arith.constant 0 : i32
    %c0_i32_0 = arith.constant 0 : i32
    %c0_i32_1 = arith.constant 0 : i32
    return %c0_i32, %c0_i32_0 : i32, i32
  }
  func.func @transform_4(%arg0: i32) -> (i32, i32) {
    %c0_i32 = arith.constant 0 : i32
    %c0_i32_0 = arith.constant 0 : i32
    %c0_i32_1 = arith.constant 0 : i32
    return %c0_i32, %c0_i32_0 : i32, i32
  }
  func.func @transform_5(%arg0: i32) -> (i32, i32) {
    %c0_i32 = arith.constant 0 : i32
    %c0_i32_0 = arith.constant 0 : i32
    %c0_i32_1 = arith.constant 0 : i32
    return %c0_i32, %c0_i32_0 : i32, i32
  }
  func.func @transform_6(%arg0: i32) -> (i32, i32) {
    %c0_i32 = arith.constant 0 : i32
    %c0_i32_0 = arith.constant 0 : i32
    %c0_i32_1 = arith.constant 0 : i32
    return %c0_i32, %c0_i32_0 : i32, i32
  }
  func.func @transform_7(%arg0: i32) -> (i32, i32) {
    %c0_i32 = arith.constant 0 : i32
    %c0_i32_0 = arith.constant 0 : i32
    %c0_i32_1 = arith.constant 0 : i32
    return %c0_i32, %c0_i32_0 : i32, i32
  }
  func.func @transform_8(%arg0: i32) -> (i32, i32) {
    %c0_i32 = arith.constant 0 : i32
    %c0_i32_0 = arith.constant 0 : i32
    %c0_i32_1 = arith.constant 0 : i32
    return %c0_i32, %c0_i32_0 : i32, i32
  }
  func.func @transform_9(%arg0: i32) -> (i32, i32) {
    %c0_i32 = arith.constant 0 : i32
    %c0_i32_0 = arith.constant 0 : i32
    %c0_i32_1 = arith.constant 0 : i32
    return %c0_i32, %c0_i32_0 : i32, i32
  }
  func.func @transform_10(%arg0: i32) -> (i32, i32) {
    %c0_i32 = arith.constant 0 : i32
    %c0_i32_0 = arith.constant 0 : i32
    %c0_i32_1 = arith.constant 0 : i32
    return %c0_i32, %c0_i32_0 : i32, i32
  }
  func.func @transform_11(%arg0: i32) -> (i32, i32) {
    %c0_i32 = arith.constant 0 : i32
    %c0_i32_0 = arith.constant 0 : i32
    return %arg0, %c0_i32 : i32, i32
  }
}

</mosaic_0001>

<llo_original>
// kernel: cnn_forward.1
$region0: #{cnn_forward.1}
  #allocation0 [shape = 'u32[]', space=smem, size = 0x4, offset = 0x4, fixed_abs, tag = 'smem constant byte address 0x4 - core index']
  #allocation1 [shape = 'u32[144,128]{1,0:T(1,128)}', space=vmem, size = 0x12000, scoped, tag = 'internal scratch']
  %s0 = inlined_call_operand.vmem [shape: bf16[2,28,28], index: 0, kind: input, shape index: {}]
  %s1 = inlined_call_operand.hbm [shape: bf16[84,1024], index: 1, kind: input, shape index: {}]
  %s2 = inlined_call_operand.hbm [shape: f32[1,1024], index: 2, kind: input, shape index: {}]
  %s3 = inlined_call_operand.hbm [shape: bf16[1536,768], index: 3, kind: input, shape index: {}]
  %s4 = inlined_call_operand.hbm [shape: f32[1,768], index: 4, kind: input, shape index: {}]
  %s5 = inlined_call_operand.hbm [shape: bf16[1152,256], index: 5, kind: input, shape index: {}]
  %s6 = inlined_call_operand.hbm [shape: f32[1,256], index: 6, kind: input, shape index: {}]
  %s7 = inlined_call_operand.hbm [shape: bf16[128,640], index: 7, kind: input, shape index: {}]
  %s8 = inlined_call_operand.hbm [shape: f32[1,640], index: 8, kind: input, shape index: {}]
  %s9 = inlined_call_operand.hbm [shape: bf16[640,128], index: 9, kind: input, shape index: {}]
  %s10 = inlined_call_operand.hbm [shape: f32[1,128], index: 10, kind: input, shape index: {}]
  %s11 = inlined_call_operand.hbm [shape: f32[2,128], index: 11, kind: output, shape index: {}]
  %s12 = sld [smem:[#allocation0]]
  $region94: #{cnn_forward.1} parent=0
    _
  %s14 = ssub.s32 1, %s12
  %s15 = scalar_select 0, %s14, %s12
  $region1: #{cnn_forward.1} parent=0
    #allocation2 [shape = 'u8[180224]{0}', space=vmem, size = 0x2c000, scoped, tag = 'input window, operand 1, single buffered']
    #allocation3 [shape = 's32[1]{0}', space=sflag, size = 0x4, scoped, tag = 'scoped memory for cnn_forward.1']
    #allocation4 [shape = 's32[1]{0}', space=sflag, size = 0x4, scoped, tag = 'scoped memory for cnn_forward.1']
    #allocation5 [shape = 'u8[4096]{0}', space=vmem, size = 0x1000, scoped, tag = 'input window, operand 2, single buffered']
    #allocation6 [shape = 's32[1]{0}', space=sflag, size = 0x4, scoped, tag = 'scoped memory for cnn_forward.1']
    #allocation7 [shape = 'u8[2359296]{0}', space=vmem, size = 0x240000, scoped, tag = 'input window, operand 3, single buffered']
    #allocation8 [shape = 'u8[3072]{0}', space=vmem, size = 0xc00, scoped, tag = 'input window, operand 4, single buffered']
    #allocation9 [shape = 's32[1]{0}', space=sflag, size = 0x4, scoped, tag = 'scoped memory for cnn_forward.1']
    #allocation10 [shape = 'u8[589824]{0}', space=vmem, size = 0x90000, scoped, tag = 'input window, operand 5, single buffered']
    #allocation11 [shape = 'u8[1024]{0}', space=vmem, size = 0x400, scoped, tag = 'input window, operand 6, single buffered']
    #allocation12 [shape = 's32[1]{0}', space=sflag, size = 0x4, scoped, tag = 'scoped memory for cnn_forward.1']
    #allocation13 [shape = 'u8[163840]{0}', space=vmem, size = 0x28000, scoped, tag = 'input window, operand 7, single buffered']
    #allocation14 [shape = 'u8[2560]{0}', space=vmem, size = 0xc00, scoped, tag = 'input window, operand 8, single buffered']
    #allocation15 [shape = 's32[1]{0}', space=sflag, size = 0x4, scoped, tag = 'scoped memory for cnn_forward.1']
    #allocation16 [shape = 'u8[163840]{0}', space=vmem, size = 0x28000, scoped, tag = 'input window, operand 9, single buffered']
    #allocation17 [shape = 'u8[512]{0}', space=vmem, size = 0x400, scoped, tag = 'input window, operand 10, single buffered']
    #allocation18 [shape = 's32[1]{0}', space=sflag, size = 0x4, scoped, tag = 'scoped memory for cnn_forward.1']
    #allocation19 [shape = 'u8[1024]{0}', space=vmem, size = 0x400, scoped, tag = 'output window, operand 0, single buffered']
    %16 = vsyncpa [#allocation3], 0
    %17 = vsyncpa [#allocation6], 0
    %18 = vsyncpa [#allocation9], 0
    %19 = vsyncpa [#allocation12], 0
    %20 = vsyncpa [#allocation15], 0
    %21 = vsyncpa [#allocation18], 0
    %22 = vsyncpa [#allocation4], 0
    // Predicated region
    $region2: #{cnn_forward.1} parent=1 // pred_check
      _
    $region3: #{cnn_forward.1} parent=1 // pred_check_branch
      %24 = sbr.rel (0) target = $region5
    $region4: #{cnn_forward.1} parent=1 // pred_region
      _
    $region5: #{cnn_forward.1} parent=1 // pred_fallthru
      _
    // Predicated region
    $region6: #{cnn_forward.1} parent=1 // pred_check
      _
    $region7: #{cnn_forward.1} parent=1 // pred_check_branch
      %26 = sbr.rel (0) target = $region9
    $region8: #{cnn_forward.1} parent=1 // pred_region
      %s28 = ssub.s32 5632, 5632
      %29 = vsyncadd [#allocation3], %s28
      %s30 = sshll.u32 [#allocation2], 4
      %s31 = int_to_ptr.vmem [resolvable:$true] %s30
      %36 = dma.hbm_to_vmem [thread:$0]  %s1, 5632, %s31, [#allocation3], 512, 512, 32
    $region9: #{cnn_forward.1} parent=1 // pred_fallthru
      _
    // Predicated region
    $region10: #{cnn_forward.1} parent=1 // pred_check
      _
    $region11: #{cnn_forward.1} parent=1 // pred_check_branch
      %38 = sbr.rel (0) target = $region13
    $region12: #{cnn_forward.1} parent=1 // pred_region
      %s40 = ssub.s32 128, 128
      %41 = vsyncadd [#allocation6], %s40
      %s43 = sshll.u32 [#allocation5], 4
      %s44 = int_to_ptr.vmem [resolvable:$true] %s43
      %46 = dma.hbm_to_vmem [thread:$0]  %s2, 128, %s44, [#allocation6]
    $region13: #{cnn_forward.1} parent=1 // pred_fallthru
      _
    // Predicated region
    $region14: #{cnn_forward.1} parent=1 // pred_check
      _
    $region15: #{cnn_forward.1} parent=1 // pred_check_branch
      %48 = sbr.rel (0) target = $region17
    $region16: #{cnn_forward.1} parent=1 // pred_region
      %s50 = ssub.s32 73728, 73728
      %51 = vsyncadd [#allocation6], %s50
      %s52 = sshll.u32 [#allocation7], 4
      %s53 = int_to_ptr.vmem [resolvable:$true] %s52
      %58 = dma.hbm_to_vmem [thread:$0]  %s3, 73728, %s53, [#allocation6], 384, 384, 24
    $region17: #{cnn_forward.1} parent=1 // pred_fallthru
      _
    // Predicated region
    $region18: #{cnn_forward.1} parent=1 // pred_check
      _
    $region19: #{cnn_forward.1} parent=1 // pred_check_branch
      %60 = sbr.rel (0) target = $region21
    $region20: #{cnn_forward.1} parent=1 // pred_region
      %s62 = ssub.s32 96, 96
      %63 = vsyncadd [#allocation9], %s62
      %s65 = sshll.u32 [#allocation8], 4
      %s66 = int_to_ptr.vmem [resolvable:$true] %s65
      %68 = dma.hbm_to_vmem [thread:$0]  %s4, 96, %s66, [#allocation9]
    $region21: #{cnn_forward.1} parent=1 // pred_fallthru
      _
    // Predicated region
    $region22: #{cnn_forward.1} parent=1 // pred_check
      _
    $region23: #{cnn_forward.1} parent=1 // pred_check_branch
      %70 = sbr.rel (0) target = $region25
    $region24: #{cnn_forward.1} parent=1 // pred_region
      %s72 = ssub.s32 18432, 18432
      %73 = vsyncadd [#allocation9], %s72
      %s74 = sshll.u32 [#allocation10], 4
      %s75 = int_to_ptr.vmem [resolvable:$true] %s74
      %80 = dma.hbm_to_vmem [thread:$0]  %s5, 18432, %s75, [#allocation9], 128, 128, 8
    $region25: #{cnn_forward.1} parent=1 // pred_fallthru
      _
    // Predicated region
    $region26: #{cnn_forward.1} parent=1 // pred_check
      _
    $region27: #{cnn_forward.1} parent=1 // pred_check_branch
      %82 = sbr.rel (0) target = $region29
    $region28: #{cnn_forward.1} parent=1 // pred_region
      %s84 = ssub.s32 32, 32
      %85 = vsyncadd [#allocation12], %s84
      %s87 = sshll.u32 [#allocation11], 4
      %s88 = int_to_ptr.vmem [resolvable:$true] %s87
      %90 = dma.hbm_to_vmem [thread:$0]  %s6, 32, %s88, [#allocation12]
    $region29: #{cnn_forward.1} parent=1 // pred_fallthru
      _
    // Predicated region
    $region30: #{cnn_forward.1} parent=1 // pred_check
      _
    $region31: #{cnn_forward.1} parent=1 // pred_check_branch
      %92 = sbr.rel (0) target = $region33
    $region32: #{cnn_forward.1} parent=1 // pred_region
      %s94 = ssub.s32 5120, 5120
      %95 = vsyncadd [#allocation12], %s94
      %s96 = sshll.u32 [#allocation13], 4
      %s97 = int_to_ptr.vmem [resolvable:$true] %s96
      %102 = dma.hbm_to_vmem [thread:$0]  %s7, 5120, %s97, [#allocation12], 320, 320, 20
    $region33: #{cnn_forward.1} parent=1 // pred_fallthru
      _
    // Predicated region
    $region34: #{cnn_forward.1} parent=1 // pred_check
      _
    $region35: #{cnn_forward.1} parent=1 // pred_check_branch
      %104 = sbr.rel (0) target = $region37
    $region36: #{cnn_forward.1} parent=1 // pred_region
      %s106 = ssub.s32 80, 80
      %107 = vsyncadd [#allocation15], %s106
      %s109 = sshll.u32 [#allocation14], 4
      %s110 = int_to_ptr.vmem [resolvable:$true] %s109
      %112 = dma.hbm_to_vmem [thread:$0]  %s8, 80, %s110, [#allocation15]
    $region37: #{cnn_forward.1} parent=1 // pred_fallthru
      _
    // Predicated region
    $region38: #{cnn_forward.1} parent=1 // pred_check
      _
    $region39: #{cnn_forward.1} parent=1 // pred_check_branch
      %114 = sbr.rel (0) target = $region41
    $region40: #{cnn_forward.1} parent=1 // pred_region
      %s116 = ssub.s32 5120, 5120
      %117 = vsyncadd [#allocation15], %s116
      %s118 = sshll.u32 [#allocation16], 4
      %s119 = int_to_ptr.vmem [resolvable:$true] %s118
      %124 = dma.hbm_to_vmem [thread:$0]  %s9, 5120, %s119, [#allocation15], 64, 64, 4
    $region41: #{cnn_forward.1} parent=1 // pred_fallthru
      _
    // Predicated region
    $region42: #{cnn_forward.1} parent=1 // pred_check
      _
    $region43: #{cnn_forward.1} parent=1 // pred_check_branch
      %126 = sbr.rel (0) target = $region45
    $region44: #{cnn_forward.1} parent=1 // pred_region
      %s128 = ssub.s32 16, 16
      %129 = vsyncadd [#allocation18], %s128
      %s131 = sshll.u32 [#allocation17], 4
      %s132 = int_to_ptr.vmem [resolvable:$true] %s131
      %134 = dma.hbm_to_vmem [thread:$0]  %s10, 16, %s132, [#allocation18]
    $region45: #{cnn_forward.1} parent=1 // pred_fallthru
      _
    // Predicated region
    $region46: #{cnn_forward.1} parent=1 // pred_check
      _
    $region47: #{cnn_forward.1} parent=1 // pred_check_branch
      %136 = sbr.rel (0) target = $region49
    $region48: #{cnn_forward.1} parent=1 // pred_region
      %137 = dma.done [#allocation3], 5632
    $region49: #{cnn_forward.1} parent=1 // pred_fallthru
      _
    // Predicated region
    $region50: #{cnn_forward.1} parent=1 // pred_check
      _
    $region51: #{cnn_forward.1} parent=1 // pred_check_branch
      %139 = sbr.rel (0) target = $region53
    $region52: #{cnn_forward.1} parent=1 // pred_region
      %140 = dma.done [#allocation6], 128
    $region53: #{cnn_forward.1} parent=1 // pred_fallthru
      _
    // Predicated region
    $region54: #{cnn_forward.1} parent=1 // pred_check
      _
    $region55: #{cnn_forward.1} parent=1 // pred_check_branch
      %142 = sbr.rel (0) target = $region57
    $region56: #{cnn_forward.1} parent=1 // pred_region
      %143 = dma.done [#allocation6], 73728
    $region57: #{cnn_forward.1} parent=1 // pred_fallthru
      _
    // Predicated region
    $region58: #{cnn_forward.1} parent=1 // pred_check
      _
    $region59: #{cnn_forward.1} parent=1 // pred_check_branch
      %145 = sbr.rel (0) target = $region61
    $region60: #{cnn_forward.1} parent=1 // pred_region
      %146 = dma.done [#allocation9], 96
    $region61: #{cnn_forward.1} parent=1 // pred_fallthru
      _
    // Predicated region
    $region62: #{cnn_forward.1} parent=1 // pred_check
      _
    $region63: #{cnn_forward.1} parent=1 // pred_check_branch
      %148 = sbr.rel (0) target = $region65
    $region64: #{cnn_forward.1} parent=1 // pred_region
      %149 = dma.done [#allocation9], 18432
    $region65: #{cnn_forward.1} parent=1 // pred_fallthru
      _
    // Predicated region
    $region66: #{cnn_forward.1} parent=1 // pred_check
      _
    $region67: #{cnn_forward.1} parent=1 // pred_check_branch
      %151 = sbr.rel (0) target = $region69
    $region68: #{cnn_forward.1} parent=1 // pred_region
      %152 = dma.done [#allocation12], 32
    $region69: #{cnn_forward.1} parent=1 // pred_fallthru
      _
    // Predicated region
    $region70: #{cnn_forward.1} parent=1 // pred_check
      _
    $region71: #{cnn_forward.1} parent=1 // pred_check_branch
      %154 = sbr.rel (0) target = $region73
    $region72: #{cnn_forward.1} parent=1 // pred_region
      %155 = dma.done [#allocation12], 5120
    $region73: #{cnn_forward.1} parent=1 // pred_fallthru
      _
    // Predicated region
    $region74: #{cnn_forward.1} parent=1 // pred_check
      _
    $region75: #{cnn_forward.1} parent=1 // pred_check_branch
      %157 = sbr.rel (0) target = $region77
    $region76: #{cnn_forward.1} parent=1 // pred_region
      %158 = dma.done [#allocation15], 80
    $region77: #{cnn_forward.1} parent=1 // pred_fallthru
      _
    // Predicated region
    $region78: #{cnn_forward.1} parent=1 // pred_check
      _
    $region79: #{cnn_forward.1} parent=1 // pred_check_branch
      %160 = sbr.rel (0) target = $region81
    $region80: #{cnn_forward.1} parent=1 // pred_region
      %161 = dma.done [#allocation15], 5120
    $region81: #{cnn_forward.1} parent=1 // pred_fallthru
      _
    // Predicated region
    $region82: #{cnn_forward.1} parent=1 // pred_check
      _
    $region83: #{cnn_forward.1} parent=1 // pred_check_branch
      %163 = sbr.rel (0) target = $region85
    $region84: #{cnn_forward.1} parent=1 // pred_region
      %164 = dma.done [#allocation18], 16
    $region85: #{cnn_forward.1} parent=1 // pred_fallthru
      _
    %v166 = vld [vmem:[%s0] sm:$0xf]
    %v167 = vld [vmem:[%s0 + $0x4] sm:$0xf]
    %v168 = vld [vmem:[%s0 + $0x8] sm:$0xf]
    %v169 = vld [vmem:[%s0 + $0xc] sm:$0x3]
    %v170 = vld [vmem:[%s0 + $0x10] sm:$0xf]
    %v171 = vld [vmem:[%s0 + $0x14] sm:$0xf]
    %v172 = vld [vmem:[%s0 + $0x18] sm:$0xf]
    %v173 = vld [vmem:[%s0 + $0x1c] sm:$0x3]
    %v174 = vld [vmem:[#allocation5] sm:$0xff]
    %v183 = vunpack.c.l.b16 %v166
    %v184 = vunpack.c.l.b16 %v167
    %v185 = vunpack.c.l.b16 %v168
    %v186 = vunpack.c.l.b16 %v169
    %v187 = vunpack.c.l.b16 %v170
    %v188 = vunpack.c.l.b16 %v171
    %v189 = vunpack.c.l.b16 %v172
    %v190 = vunpack.c.l.b16 %v173
    %v191 = vpack.c.b16 %v184, %v183
    %v192 = vpack.c.b16 %v186, %v185
    %v193 = vpack.c.b16 %v188, %v187
    %v194 = vpack.c.b16 %v190, %v189
    %vm195 = vsmask.f32 7424
    %v197 = vshrl.u32 %v191, 16
    %v199 = vshll.u32 %v191, 16
    %v201 = vrot.slane %v199, 1
    %v202 = vor.u32 %v197, %v201
    %v204 = vshll.u32 %v192, 16
    %v206 = vrot.slane %v204, 1
    %v207 = vsel %vm195, %v202, %v206
    %v208 = vshrl.u32 %v192, 16
    %v210 = vor.u32 %v208, %v206
    %v212 = vshrl.u32 %v193, 16
    %v214 = vshll.u32 %v193, 16
    %v216 = vrot.slane %v214, 1
    %v217 = vor.u32 %v212, %v216
    %v219 = vshll.u32 %v194, 16
    %v221 = vrot.slane %v219, 1
    %v222 = vsel %vm195, %v217, %v221
    %v223 = vshrl.u32 %v194, 16
    %v225 = vor.u32 %v223, %v221
    %226 = vrot.lane.b32.xlu0 %v207, 28
    %v227 = vpop.permute.xlu0 %226
    %228 = vrot.lane.b32.xlu0 %v210, 28
    %v229 = vpop.permute.xlu0 %228
    %230 = vrot.lane.b32.xlu0 %v222, 28
    %v231 = vpop.permute.xlu0 %230
    %232 = vrot.lane.b32.xlu0 %v225, 28
    %v233 = vpop.permute.xlu0 %232
    %vm234 = vcmask 1046528
    %v235 = vrot.slane %v191, 1
    %v236 = vrot.slane %v192, 1
    %v237 = vsel %vm234, %v235, %v236
    %v238 = vrot.slane %v193, 1
    %v239 = vrot.slane %v194, 1
    %v240 = vsel %vm234, %v238, %v239
    %241 = vrot.lane.b32.xlu0 %v237, 56
    %v242 = vpop.permute.xlu0 %241
    %243 = vrot.lane.b32.xlu0 %v236, 56
    %v244 = vpop.permute.xlu0 %243
    %245 = vrot.lane.b32.xlu0 %v240, 56
    %v246 = vpop.permute.xlu0 %245
    %247 = vrot.lane.b32.xlu0 %v239, 56
    %v248 = vpop.permute.xlu0 %247
    %vm249 = vcmask 228352
    %v251 = vsel %vm249, %v191, %v227
    %v253 = vsel %vm249, %v192, %v229
    %v255 = vsel %vm249, %v193, %v231
    %v257 = vsel %vm249, %v194, %v233
    %vm258 = vcmask 457728
    %v260 = vsel %vm258, %v251, %v242
    %v262 = vsel %vm258, %v253, %v244
    %v264 = vsel %vm258, %v255, %v246
    %v266 = vsel %vm258, %v257, %v248
    %v271 = vcombine.high %v260, %v260
    %v273 = vunpack.c.l.s4 1966171168
    %v274 = vunpack.c.0.s8 %v273
    %v275 = vlaneseq
    %v276 = vshrl.u32 %v275, 7
    %v277 = vsub.s32 %v274, %v276
    %v278 = vrot.slane %v260, %v277
    %v280 = vunpack.c.l.s4 1966171168
    %v281 = vunpack.c.0.s8 %v280
    %v282 = vlaneseq
    %v283 = vshrl.u32 %v282, 7
    %v284 = vsub.s32 %v281, %v283
    %v285 = vrot.slane %v271, %v284
    %v286 = vcombine.high %v278, %v278
    %v287 = vcombine.high %v285, %v285
    %v289 = vunpack.c.l.s4 1966171168
    %v290 = vunpack.c.0.s8 %v289
    %v291 = vlaneseq
    %v292 = vshrl.u32 %v291, 7
    %v293 = vsub.s32 %v290, %v292
    %v294 = vrot.slane %v278, %v293
    %v296 = vunpack.c.l.s4 1966171168
    %v297 = vunpack.c.0.s8 %v296
    %v298 = vlaneseq
    %v299 = vshrl.u32 %v298, 7
    %v300 = vsub.s32 %v297, %v299
    %v301 = vrot.slane %v285, %v300
    %v303 = vunpack.c.l.s4 1966171168
    %v304 = vunpack.c.0.s8 %v303
    %v305 = vlaneseq
    %v306 = vshrl.u32 %v305, 7
    %v307 = vsub.s32 %v304, %v306
    %v308 = vrot.slane %v286, %v307
    %v310 = vunpack.c.l.s4 1966171168
    %v311 = vunpack.c.0.s8 %v310
    %v312 = vlaneseq
    %v313 = vshrl.u32 %v312, 7
    %v314 = vsub.s32 %v311, %v313
    %v315 = vrot.slane %v287, %v314
    %v316 = vcombine.high %v294, %v294
    %v317 = vcombine.high %v301, %v301
    %v318 = vcombine.high %v308, %v308
    %v319 = vcombine.high %v315, %v315
    %v320 = vcombine.high %v262, %v262
    %v322 = vunpack.c.l.s4 1966171168
    %v323 = vunpack.c.0.s8 %v322
    %v324 = vlaneseq
    %v325 = vshrl.u32 %v324, 7
    %v326 = vsub.s32 %v323, %v325
    %v327 = vrot.slane %v262, %v326
    %v329 = vunpack.c.l.s4 1966171168
    %v330 = vunpack.c.0.s8 %v329
    %v331 = vlaneseq
    %v332 = vshrl.u32 %v331, 7
    %v333 = vsub.s32 %v330, %v332
    %v334 = vrot.slane %v320, %v333
    %v335 = vcombine.high %v327, %v327
    %v337 = vunpack.c.l.s4 1966171168
    %v338 = vunpack.c.0.s8 %v337
    %v339 = vlaneseq
    %v340 = vshrl.u32 %v339, 7
    %v341 = vsub.s32 %v338, %v340
    %v342 = vrot.slane %v327, %v341
    %v344 = vunpack.c.l.s4 1966171168
    %v345 = vunpack.c.0.s8 %v344
    %v346 = vlaneseq
    %v347 = vshrl.u32 %v346, 7
    %v348 = vsub.s32 %v345, %v347
    %v349 = vrot.slane %v334, %v348
    %v351 = vunpack.c.l.s4 1966171168
    %v352 = vunpack.c.0.s8 %v351
    %v353 = vlaneseq
    %v354 = vshrl.u32 %v353, 7
    %v355 = vsub.s32 %v352, %v354
    %v356 = vrot.slane %v335, %v355
    %v357 = vcombine.high %v342, %v342
    %v358 = vcombine.high %v356, %v356
    %v359 = vcombine.high %v264, %v264
    %v361 = vunpack.c.l.s4 1966171168
    %v362 = vunpack.c.0.s8 %v361
    %v363 = vlaneseq
    %v364 = vshrl.u32 %v363, 7
    %v365 = vsub.s32 %v362, %v364
    %v366 = vrot.slane %v264, %v365
    %v368 = vunpack.c.l.s4 1966171168
    %v369 = vunpack.c.0.s8 %v368
    %v370 = vlaneseq
    %v371 = vshrl.u32 %v370, 7
    %v372 = vsub.s32 %v369, %v371
    %v373 = vrot.slane %v359, %v372
    %v374 = vcombine.high %v366, %v366
    %v375 = vcombine.high %v373, %v373
    %v377 = vunpack.c.l.s4 1966171168
    %v378 = vunpack.c.0.s8 %v377
    %v379 = vlaneseq
    %v380 = vshrl.u32 %v379, 7
    %v381 = vsub.s32 %v378, %v380
    %v382 = vrot.slane %v366, %v381
    %v384 = vunpack.c.l.s4 1966171168
    %v385 = vunpack.c.0.s8 %v384
    %v386 = vlaneseq
    %v387 = vshrl.u32 %v386, 7
    %v388 = vsub.s32 %v385, %v387
    %v389 = vrot.slane %v373, %v388
    %v391 = vunpack.c.l.s4 1966171168
    %v392 = vunpack.c.0.s8 %v391
    %v393 = vlaneseq
    %v394 = vshrl.u32 %v393, 7
    %v395 = vsub.s32 %v392, %v394
    %v396 = vrot.slane %v374, %v395
    %v398 = vunpack.c.l.s4 1966171168
    %v399 = vunpack.c.0.s8 %v398
    %v400 = vlaneseq
    %v401 = vshrl.u32 %v400, 7
    %v402 = vsub.s32 %v399, %v401
    %v403 = vrot.slane %v375, %v402
    %v404 = vcombine.high %v382, %v382
    %v405 = vcombine.high %v389, %v389
    %v406 = vcombine.high %v396, %v396
    %v407 = vcombine.high %v403, %v403
    %v408 = vcombine.high %v266, %v266
    %v410 = vunpack.c.l.s4 1966171168
    %v411 = vunpack.c.0.s8 %v410
    %v412 = vlaneseq
    %v413 = vshrl.u32 %v412, 7
    %v414 = vsub.s32 %v411, %v413
    %v415 = vrot.slane %v266, %v414
    %v417 = vunpack.c.l.s4 1966171168
    %v418 = vunpack.c.0.s8 %v417
    %v419 = vlaneseq
    %v420 = vshrl.u32 %v419, 7
    %v421 = vsub.s32 %v418, %v420
    %v422 = vrot.slane %v408, %v421
    %v423 = vcombine.high %v415, %v415
    %v425 = vunpack.c.l.s4 1966171168
    %v426 = vunpack.c.0.s8 %v425
    %v427 = vlaneseq
    %v428 = vshrl.u32 %v427, 7
    %v429 = vsub.s32 %v426, %v428
    %v430 = vrot.slane %v415, %v429
    %v432 = vunpack.c.l.s4 1966171168
    %v433 = vunpack.c.0.s8 %v432
    %v434 = vlaneseq
    %v435 = vshrl.u32 %v434, 7
    %v436 = vsub.s32 %v433, %v435
    %v437 = vrot.slane %v422, %v436
    %v439 = vunpack.c.l.s4 1966171168
    %v440 = vunpack.c.0.s8 %v439
    %v441 = vlaneseq
    %v442 = vshrl.u32 %v441, 7
    %v443 = vsub.s32 %v440, %v442
    %v444 = vrot.slane %v423, %v443
    %v445 = vcombine.high %v430, %v430
    %v446 = vcombine.high %v444, %v444
    %v447 = vld [vmem:[#allocation2] sm:$0xff]
    %v448 = vld [vmem:[#allocation2 + $0x8] sm:$0xff]
    %v449 = vld [vmem:[#allocation2 + $0x10] sm:$0xff]
    %v450 = vld [vmem:[#allocation2 + $0x18] sm:$0xff]
    %v451 = vld [vmem:[#allocation2 + $0x20] sm:$0xff]
    %v452 = vld [vmem:[#allocation2 + $0x28] sm:$0xff]
    %v453 = vld [vmem:[#allocation2 + $0x30] sm:$0xff]
    %v454 = vld [vmem:[#allocation2 + $0x38] sm:$0xff]
    %v455 = vld [vmem:[#allocation2 + $0x40] sm:$0xff]
    %v456 = vld [vmem:[#allocation2 + $0x48] sm:$0xff]
    %v457 = vld [vmem:[#allocation2 + $0x50] sm:$0xff]
    %v458 = vld [vmem:[#allocation2 + $0x58] sm:$0xff]
    %v459 = vld [vmem:[#allocation2 + $0x60] sm:$0xff]
    %v460 = vld [vmem:[#allocation2 + $0x68] sm:$0xff]
    %v461 = vld [vmem:[#allocation2 + $0x70] sm:$0xff]
    %v462 = vld [vmem:[#allocation2 + $0x78] sm:$0xff]
    %v463 = vld [vmem:[#allocation2 + $0x80] sm:$0xff]
    %v464 = vld [vmem:[#allocation2 + $0x88] sm:$0xff]
    %v465 = vld [vmem:[#allocation2 + $0x90] sm:$0xff]
    %v466 = vld [vmem:[#allocation2 + $0x98] sm:$0xff]
    %v467 = vld [vmem:[#allocation2 + $0xa0] sm:$0xff]
    %v468 = vld [vmem:[#allocation2 + $0xa8] sm:$0xff]
    %v469 = vld [vmem:[#allocation2 + $0xb0] sm:$0xff]
    %v470 = vld [vmem:[#allocation2 + $0xb8] sm:$0xff]
    %v471 = vld [vmem:[#allocation2 + $0xc0] sm:$0xff]
    %v472 = vld [vmem:[#allocation2 + $0xc8] sm:$0xff]
    %v473 = vld [vmem:[#allocation2 + $0xd0] sm:$0xff]
    %v474 = vld [vmem:[#allocation2 + $0xd8] sm:$0xff]
    %v475 = vld [vmem:[#allocation2 + $0xe0] sm:$0xff]
    %v476 = vld [vmem:[#allocation2 + $0xe8] sm:$0xff]
    %v477 = vld [vmem:[#allocation2 + $0xf0] sm:$0xff]
    %v478 = vld [vmem:[#allocation2 + $0xf8] sm:$0xff]
    %v479 = vld [vmem:[#allocation2 + $0x100] sm:$0xff]
    %v480 = vld [vmem:[#allocation2 + $0x108] sm:$0xff]
    %v481 = vld [vmem:[#allocation2 + $0x110] sm:$0xff]
    %v482 = vld [vmem:[#allocation2 + $0x118] sm:$0xff]
    %v483 = vld [vmem:[#allocation2 + $0x120] sm:$0xff]
    %v484 = vld [vmem:[#allocation2 + $0x128] sm:$0xff]
    %v485 = vld [vmem:[#allocation2 + $0x130] sm:$0xff]
    %v486 = vld [vmem:[#allocation2 + $0x138] sm:$0xff]
    %v487 = vld [vmem:[#allocation2 + $0x140] sm:$0x33]
    %v488 = vld [vmem:[#allocation2 + $0x148] sm:$0x33]
    %v489 = vld [vmem:[#allocation2 + $0x150] sm:$0x33]
    %v490 = vld [vmem:[#allocation2 + $0x158] sm:$0x33]
    %v492 = vlaneseq
    %v493 = vshrl.u32 %v492, 7
    %v494 = vsub.s32 0, %v493
    %v495 = vrot.slane %v174, %v494
    %v496 = vlaneseq
    %v497 = vshrl.u32 %v496, 7
    %v498 = vsub.s32 1, %v497
    %v499 = vrot.slane %v174, %v498
    %v500 = vlaneseq
    %v501 = vshrl.u32 %v500, 7
    %v502 = vsub.s32 2, %v501
    %v503 = vrot.slane %v174, %v502
    %v504 = vlaneseq
    %v505 = vshrl.u32 %v504, 7
    %v506 = vsub.s32 3, %v505
    %v507 = vrot.slane %v174, %v506
    %v508 = vlaneseq
    %v509 = vshrl.u32 %v508, 7
    %v510 = vsub.s32 4, %v509
    %v511 = vrot.slane %v174, %v510
    %v512 = vlaneseq
    %v513 = vshrl.u32 %v512, 7
    %v514 = vsub.s32 5, %v513
    %v515 = vrot.slane %v174, %v514
    %v516 = vlaneseq
    %v517 = vshrl.u32 %v516, 7
    %v518 = vsub.s32 6, %v517
    %v519 = vrot.slane %v174, %v518
    %v520 = vlaneseq
    %v521 = vshrl.u32 %v520, 7
    %v522 = vsub.s32 7, %v521
    %v523 = vrot.slane %v174, %v522
    %v532 = vcombine.low %v294, %v308
    %v533 = vcombine.low %v316, %v318
    %v534 = vcombine.low %v301, %v315
    %v535 = vcombine.low %v317, %v319
    %v537 = vunpack.c.l.s4 1966171168
    %v538 = vunpack.c.0.s8 %v537
    %v539 = vlaneseq
    %v540 = vshrl.u32 %v539, 7
    %v541 = vsub.s32 %v538, %v540
    %v542 = vrot.slane %v532, %v541
    %v544 = vunpack.c.l.s4 1966171168
    %v545 = vunpack.c.0.s8 %v544
    %v546 = vlaneseq
    %v547 = vshrl.u32 %v546, 7
    %v548 = vsub.s32 %v545, %v547
    %v549 = vrot.slane %v533, %v548
    %v551 = vunpack.c.l.s4 1966171168
    %v552 = vunpack.c.0.s8 %v551
    %v553 = vlaneseq
    %v554 = vshrl.u32 %v553, 7
    %v555 = vsub.s32 %v552, %v554
    %v556 = vrot.slane %v534, %v555
    %v558 = vunpack.c.l.s4 1966171168
    %v559 = vunpack.c.0.s8 %v558
    %v560 = vlaneseq
    %v561 = vshrl.u32 %v560, 7
    %v562 = vsub.s32 %v559, %v561
    %v563 = vrot.slane %v535, %v562
    %v564 = vcombine.low %v542, %v549
    %v565 = vcombine.low %v556, %v563
    %v567 = vunpack.c.l.s4 1966171168
    %v568 = vunpack.c.0.s8 %v567
    %v569 = vlaneseq
    %v570 = vshrl.u32 %v569, 7
    %v571 = vsub.s32 %v568, %v570
    %v572 = vrot.slane %v564, %v571
    %v574 = vunpack.c.l.s4 1966171168
    %v575 = vunpack.c.0.s8 %v574
    %v576 = vlaneseq
    %v577 = vshrl.u32 %v576, 7
    %v578 = vsub.s32 %v575, %v577
    %v579 = vrot.slane %v565, %v578
    %v580 = vcombine.low %v572, %v579
    %v581 = vcombine.low %v342, %v356
    %v582 = vcombine.low %v357, %v358
    %v583 = vcombine.low %v349, %v382
    %v584 = vcombine.low %v396, %v404
    %v586 = vunpack.c.l.s4 1966171168
    %v587 = vunpack.c.0.s8 %v586
    %v588 = vlaneseq
    %v589 = vshrl.u32 %v588, 7
    %v590 = vsub.s32 %v587, %v589
    %v591 = vrot.slane %v581, %v590
    %v593 = vunpack.c.l.s4 1966171168
    %v594 = vunpack.c.0.s8 %v593
    %v595 = vlaneseq
    %v596 = vshrl.u32 %v595, 7
    %v597 = vsub.s32 %v594, %v596
    %v598 = vrot.slane %v582, %v597
    %v600 = vunpack.c.l.s4 1966171168
    %v601 = vunpack.c.0.s8 %v600
    %v602 = vlaneseq
    %v603 = vshrl.u32 %v602, 7
    %v604 = vsub.s32 %v601, %v603
    %v605 = vrot.slane %v583, %v604
    %v607 = vunpack.c.l.s4 1966171168
    %v608 = vunpack.c.0.s8 %v607
    %v609 = vlaneseq
    %v610 = vshrl.u32 %v609, 7
    %v611 = vsub.s32 %v608, %v610
    %v612 = vrot.slane %v584, %v611
    %v613 = vcombine.low %v591, %v598
    %v614 = vcombine.low %v605, %v612
    %v616 = vunpack.c.l.s4 1966171168
    %v617 = vunpack.c.0.s8 %v616
    %v618 = vlaneseq
    %v619 = vshrl.u32 %v618, 7
    %v620 = vsub.s32 %v617, %v619
    %v621 = vrot.slane %v613, %v620
    %v623 = vunpack.c.l.s4 1966171168
    %v624 = vunpack.c.0.s8 %v623
    %v625 = vlaneseq
    %v626 = vshrl.u32 %v625, 7
    %v627 = vsub.s32 %v624, %v626
    %v628 = vrot.slane %v614, %v627
    %v629 = vcombine.low %v621, %v628
    %v630 = vcombine.low %v406, %v389
    %v631 = vcombine.low %v403, %v405
    %v632 = vcombine.low %v407, %v430
    %v633 = vcombine.low %v444, %v445
    %v635 = vunpack.c.l.s4 1966171168
    %v636 = vunpack.c.0.s8 %v635
    %v637 = vlaneseq
    %v638 = vshrl.u32 %v637, 7
    %v639 = vsub.s32 %v636, %v638
    %v640 = vrot.slane %v630, %v639
    %v642 = vunpack.c.l.s4 1966171168
    %v643 = vunpack.c.0.s8 %v642
    %v644 = vlaneseq
    %v645 = vshrl.u32 %v644, 7
    %v646 = vsub.s32 %v643, %v645
    %v647 = vrot.slane %v631, %v646
    %v649 = vunpack.c.l.s4 1966171168
    %v650 = vunpack.c.0.s8 %v649
    %v651 = vlaneseq
    %v652 = vshrl.u32 %v651, 7
    %v653 = vsub.s32 %v650, %v652
    %v654 = vrot.slane %v632, %v653
    %v656 = vunpack.c.l.s4 1966171168
    %v657 = vunpack.c.0.s8 %v656
    %v658 = vlaneseq
    %v659 = vshrl.u32 %v658, 7
    %v660 = vsub.s32 %v657, %v659
    %v661 = vrot.slane %v633, %v660
    %v662 = vcombine.low %v640, %v647
    %v663 = vcombine.low %v654, %v661
    %v665 = vunpack.c.l.s4 1966171168
    %v666 = vunpack.c.0.s8 %v665
    %v667 = vlaneseq
    %v668 = vshrl.u32 %v667, 7
    %v669 = vsub.s32 %v666, %v668
    %v670 = vrot.slane %v662, %v669
    %v672 = vunpack.c.l.s4 1966171168
    %v673 = vunpack.c.0.s8 %v672
    %v674 = vlaneseq
    %v675 = vshrl.u32 %v674, 7
    %v676 = vsub.s32 %v673, %v675
    %v677 = vrot.slane %v663, %v676
    %v678 = vcombine.low %v670, %v677
    %v679 = vcombine.low %v446, %v437
    %v681 = vunpack.c.l.s4 1966171168
    %v682 = vunpack.c.0.s8 %v681
    %v683 = vlaneseq
    %v684 = vshrl.u32 %v683, 7
    %v685 = vsub.s32 %v682, %v684
    %v686 = vrot.slane %v679, %v685
    %v688 = vunpack.c.l.s4 1966171168
    %v689 = vunpack.c.0.s8 %v688
    %v690 = vlaneseq
    %v691 = vshrl.u32 %v690, 7
    %v692 = vsub.s32 %v689, %v691
    %v693 = vrot.slane %v686, %v692
    %v738 = vunpack.c.l.b16 %v447
    %v739 = vunpack.c.h.b16 %v447
    %v740 = vunpack.c.l.b16 %v448
    %v741 = vunpack.c.h.b16 %v448
    %v742 = vunpack.c.l.b16 %v449
    %v743 = vunpack.c.h.b16 %v449
    %v744 = vunpack.c.l.b16 %v450
    %v745 = vunpack.c.h.b16 %v450
    %v746 = vunpack.c.l.b16 %v451
    %v747 = vunpack.c.h.b16 %v451
    %v748 = vunpack.c.l.b16 %v452
    %v749 = vunpack.c.h.b16 %v452
    %v750 = vunpack.c.l.b16 %v453
    %v751 = vunpack.c.h.b16 %v453
    %v752 = vunpack.c.l.b16 %v454
    %v753 = vunpack.c.h.b16 %v454
    %v754 = vunpack.c.l.b16 %v455
    %v755 = vunpack.c.h.b16 %v455
    %v756 = vunpack.c.l.b16 %v456
    %v757 = vunpack.c.h.b16 %v456
    %v758 = vunpack.c.l.b16 %v457
    %v759 = vunpack.c.h.b16 %v457
    %v760 = vunpack.c.l.b16 %v458
    %v761 = vunpack.c.h.b16 %v458
    %v762 = vunpack.c.l.b16 %v459
    %v763 = vunpack.c.h.b16 %v459
    %v764 = vunpack.c.l.b16 %v460
    %v765 = vunpack.c.h.b16 %v460
    %v766 = vunpack.c.l.b16 %v461
    %v767 = vunpack.c.h.b16 %v461
    %v768 = vunpack.c.l.b16 %v462
    %v769 = vunpack.c.h.b16 %v462
    %v770 = vunpack.c.l.b16 %v463
    %v771 = vunpack.c.h.b16 %v463
    %v772 = vunpack.c.l.b16 %v464
    %v773 = vunpack.c.h.b16 %v464
    %v774 = vunpack.c.l.b16 %v465
    %v775 = vunpack.c.h.b16 %v465
    %v776 = vunpack.c.l.b16 %v466
    %v777 = vunpack.c.h.b16 %v466
    %v778 = vunpack.c.l.b16 %v467
    %v779 = vunpack.c.h.b16 %v467
    %v780 = vunpack.c.l.b16 %v468
    %v781 = vunpack.c.h.b16 %v468
    %v782 = vunpack.c.l.b16 %v469
    %v783 = vunpack.c.h.b16 %v469
    %v784 = vunpack.c.l.b16 %v470
    %v785 = vunpack.c.h.b16 %v470
    %v786 = vunpack.c.l.b16 %v471
    %v787 = vunpack.c.h.b16 %v471
    %v788 = vunpack.c.l.b16 %v472
    %v789 = vunpack.c.h.b16 %v472
    %v790 = vunpack.c.l.b16 %v473
    %v791 = vunpack.c.h.b16 %v473
    %v792 = vunpack.c.l.b16 %v474
    %v793 = vunpack.c.h.b16 %v474
    %v794 = vunpack.c.l.b16 %v475
    %v795 = vunpack.c.h.b16 %v475
    %v796 = vunpack.c.l.b16 %v476
    %v797 = vunpack.c.h.b16 %v476
    %v798 = vunpack.c.l.b16 %v477
    %v799 = vunpack.c.h.b16 %v477
    %v800 = vunpack.c.l.b16 %v478
    %v801 = vunpack.c.h.b16 %v478
    %v802 = vunpack.c.l.b16 %v479
    %v803 = vunpack.c.h.b16 %v479
    %v804 = vunpack.c.l.b16 %v480
    %v805 = vunpack.c.h.b16 %v480
    %v806 = vunpack.c.l.b16 %v481
    %v807 = vunpack.c.h.b16 %v481
    %v808 = vunpack.c.l.b16 %v482
    %v809 = vunpack.c.h.b16 %v482
    %v810 = vunpack.c.l.b16 %v483
    %v811 = vunpack.c.h.b16 %v483
    %v812 = vunpack.c.l.b16 %v484
    %v813 = vunpack.c.h.b16 %v484
    %v814 = vunpack.c.l.b16 %v485
    %v815 = vunpack.c.h.b16 %v485
    %v816 = vunpack.c.l.b16 %v486
    %v817 = vunpack.c.h.b16 %v486
    %v818 = vunpack.c.l.b16 %v487
    %v819 = vunpack.c.h.b16 %v487
    %v820 = vunpack.c.l.b16 %v488
    %v821 = vunpack.c.h.b16 %v488
    %v822 = vunpack.c.l.b16 %v489
    %v823 = vunpack.c.h.b16 %v489
    %v824 = vunpack.c.l.b16 %v490
    %v825 = vunpack.c.h.b16 %v490
    %v826 = vpack.c.b16 %v746, %v738
    %v827 = vpack.c.b16 %v747, %v739
    %v828 = vpack.c.b16 %v748, %v740
    %v829 = vpack.c.b16 %v749, %v741
    %v830 = vpack.c.b16 %v750, %v742
    %v831 = vpack.c.b16 %v751, %v743
    %v832 = vpack.c.b16 %v752, %v744
    %v833 = vpack.c.b16 %v753, %v745
    %v834 = vpack.c.b16 %v762, %v754
    %v835 = vpack.c.b16 %v763, %v755
    %v836 = vpack.c.b16 %v764, %v756
    %v837 = vpack.c.b16 %v765, %v757
    %v838 = vpack.c.b16 %v766, %v758
    %v839 = vpack.c.b16 %v767, %v759
    %v840 = vpack.c.b16 %v768, %v760
    %v841 = vpack.c.b16 %v769, %v761
    %v842 = vpack.c.b16 %v778, %v770
    %v843 = vpack.c.b16 %v779, %v771
    %v844 = vpack.c.b16 %v780, %v772
    %v845 = vpack.c.b16 %v781, %v773
    %v846 = vpack.c.b16 %v782, %v774
    %v847 = vpack.c.b16 %v783, %v775
    %v848 = vpack.c.b16 %v784, %v776
    %v849 = vpack.c.b16 %v785, %v777
    %v850 = vpack.c.b16 %v794, %v786
    %v851 = vpack.c.b16 %v795, %v787
    %v852 = vpack.c.b16 %v796, %v788
    %v853 = vpack.c.b16 %v797, %v789
    %v854 = vpack.c.b16 %v798, %v790
    %v855 = vpack.c.b16 %v799, %v791
    %v856 = vpack.c.b16 %v800, %v792
    %v857 = vpack.c.b16 %v801, %v793
    %v858 = vpack.c.b16 %v810, %v802
    %v859 = vpack.c.b16 %v811, %v803
    %v860 = vpack.c.b16 %v812, %v804
    %v861 = vpack.c.b16 %v813, %v805
    %v862 = vpack.c.b16 %v814, %v806
    %v863 = vpack.c.b16 %v815, %v807
    %v864 = vpack.c.b16 %v816, %v808
    %v865 = vpack.c.b16 %v817, %v809
    %v866 = vpack.c.b16 %v818, %v818
    %v867 = vpack.c.b16 %v819, %v819
    %v868 = vpack.c.b16 %v820, %v820
    %v869 = vpack.c.b16 %v821, %v821
    %v870 = vpack.c.b16 %v822, %v822
    %v871 = vpack.c.b16 %v823, %v823
    %v872 = vpack.c.b16 %v824, %v824
    %v873 = vpack.c.b16 %v825, %v825
    %vm914 = vcmask 687104
    %v916 = vsel %vm914, %v580, 0
    %v919 = vsel %vm914, %v629, 0
    %v922 = vsel %vm914, %v678, 0
    %v925 = vsel %vm914, %v693, 0
    %vm927 = vcmask 1041408
    %v929 = vsel %vm927, %v866, 0
    %v932 = vsel %vm927, %v867, 0
    %v935 = vsel %vm927, %v868, 0
    %v938 = vsel %vm927, %v869, 0
    %v941 = vsel %vm927, %v870, 0
    %v944 = vsel %vm927, %v871, 0
    %v947 = vsel %vm927, %v872, 0
    %v950 = vsel %vm927, %v873, 0
    %952 = vmatprep.subr.bf16.mxu0 0
    %953 = vmatpush1.bf16.msra.mxu0 0
    %954 = vmatprep.subr.bf16.mxu0 0
    %955 = vmatpush1.bf16.msra.mxu0 0
    %956 = vmatprep.subr.bf16.mxu0 %v932
    %957 = vmatpush1.bf16.msra.mxu0 %v929
    %958 = vmatprep.subr.bf16.mxu0 %v859
    %959 = vmatpush1.bf16.msra.mxu0 %v858
    %960 = vmatprep.subr.bf16.mxu0 %v851
    %961 = vmatpush1.bf16.msra.mxu0 %v850
    %962 = vmatprep.subr.bf16.mxu0 %v843
    %963 = vmatpush1.bf16.msra.mxu0 %v842
    %964 = vmatprep.subr.bf16.mxu0 %v835
    %965 = vmatpush1.bf16.msra.mxu0 %v834
    %966 = vmatprep.subr.bf16.mxu0 %v827
    %967 = vmatpush1.bf16.msra.mxu0 %v826
    %968 = vmatprep.subr.bf16.mxu0 0
    %969 = vmatpush2.bf16.msra.mxu0 0
    %970 = vmatprep.subr.bf16.mxu0 0
    %971 = vmatpush2.bf16.msra.mxu0 0
    %972 = vmatprep.subr.bf16.mxu0 0
    %973 = vmatpush2.bf16.msra.mxu0 0
    %974 = vmatprep.subr.bf16.mxu0 0
    %975 = vmatpush2.bf16.msra.mxu0 0
    %976 = vmatprep.subr.bf16.mxu0 0
    %977 = vmatpush2.bf16.msra.mxu0 0
    %978 = vmatprep.subr.bf16.mxu0 0
    %979 = vmatpush2.bf16.msra.mxu0 0
    %980 = vmatprep.subr.bf16.mxu0 0
    %981 = vmatpush2.bf16.msra.mxu0 0
    %982 = vmatprep.subr.bf16.mxu0 0
    %983 = vmatpush2.bf16.msra.mxu0 0
    %984 = vmatprep.mubr.bf16.mxu0 0
    %985 = vmatmul.mubr.bf16.gmra.mxu0 %v916
    %v986 = vpop.f32.mrf.mxu0
    %v987 = vadd.f32 %v495, %v986
    %v988 = vpop.f32.mrf.mxu0
    %v989 = vadd.f32 %v499, %v988
    %v990 = vpop.f32.mrf.mxu0
    %v991 = vadd.f32 %v495, %v990
    %v992 = vpop.f32.mrf.mxu0
    %v993 = vadd.f32 %v499, %v992
    %994 = vmatprep.mubr.bf16.mxu0 0
    %995 = vmatmul.mubr.bf16.gmra.mxu0 %v919
    %v996 = vpop.f32.mrf.mxu0
    %v997 = vadd.f32 %v495, %v996
    %v998 = vpop.f32.mrf.mxu0
    %v999 = vadd.f32 %v499, %v998
    %v1000 = vpop.f32.mrf.mxu0
    %v1001 = vadd.f32 %v495, %v1000
    %v1002 = vpop.f32.mrf.mxu0
    %v1003 = vadd.f32 %v499, %v1002
    %1004 = vmatprep.mubr.bf16.mxu0 0
    %1005 = vmatmul.mubr.bf16.gmra.mxu0 %v922
    %v1006 = vpop.f32.mrf.mxu0
    %v1007 = vadd.f32 %v495, %v1006
    %v1008 = vpop.f32.mrf.mxu0
    %v1009 = vadd.f32 %v499, %v1008
    %v1010 = vpop.f32.mrf.mxu0
    %v1011 = vadd.f32 %v495, %v1010
    %v1012 = vpop.f32.mrf.mxu0
    %v1013 = vadd.f32 %v499, %v1012
    %1014 = vmatprep.mubr.bf16.mxu0 0
    %1015 = vmatmul.mubr.bf16.gmra.mxu0 %v925
    %v1016 = vpop.f32.mrf.mxu0
    %v1017 = vadd.f32 %v495, %v1016
    %v1018 = vpop.f32.mrf.mxu0
    %v1019 = vadd.f32 %v499, %v1018
    %v1020 = vpop.f32.mrf.mxu0
    %v1021 = vpop.f32.mrf.mxu0
    %1022 = vdwg.mxu0
    %1023 = vmatprep.subr.bf16.mxu0 0
    %1024 = vmatpush1.bf16.msra.mxu0 0
    %1025 = vmatprep.subr.bf16.mxu0 0
    %1026 = vmatpush1.bf16.msra.mxu0 0
    %1027 = vmatprep.subr.bf16.mxu0 %v938
    %1028 = vmatpush1.bf16.msra.mxu0 %v935
    %1029 = vmatprep.subr.bf16.mxu0 %v861
    %1030 = vmatpush1.bf16.msra.mxu0 %v860
    %1031 = vmatprep.subr.bf16.mxu0 %v853
    %1032 = vmatpush1.bf16.msra.mxu0 %v852
    %1033 = vmatprep.subr.bf16.mxu0 %v845
    %1034 = vmatpush1.bf16.msra.mxu0 %v844
    %1035 = vmatprep.subr.bf16.mxu0 %v837
    %1036 = vmatpush1.bf16.msra.mxu0 %v836
    %1037 = vmatprep.subr.bf16.mxu0 %v829
    %1038 = vmatpush1.bf16.msra.mxu0 %v828
    %1039 = vmatprep.subr.bf16.mxu0 0
    %1040 = vmatpush2.bf16.msra.mxu0 0
    %1041 = vmatprep.subr.bf16.mxu0 0
    %1042 = vmatpush2.bf16.msra.mxu0 0
    %1043 = vmatprep.subr.bf16.mxu0 0
    %1044 = vmatpush2.bf16.msra.mxu0 0
    %1045 = vmatprep.subr.bf16.mxu0 0
    %1046 = vmatpush2.bf16.msra.mxu0 0
    %1047 = vmatprep.subr.bf16.mxu0 0
    %1048 = vmatpush2.bf16.msra.mxu0 0
    %1049 = vmatprep.subr.bf16.mxu0 0
    %1050 = vmatpush2.bf16.msra.mxu0 0
    %1051 = vmatprep.subr.bf16.mxu0 0
    %1052 = vmatpush2.bf16.msra.mxu0 0
    %1053 = vmatprep.subr.bf16.mxu0 0
    %1054 = vmatpush2.bf16.msra.mxu0 0
    %1055 = vmatprep.mubr.bf16.mxu0 0
    %1056 = vmatmul.mubr.bf16.gmra.mxu0 %v916
    %v1057 = vpop.f32.mrf.mxu0
    %v1058 = vadd.f32 %v503, %v1057
    %v1059 = vpop.f32.mrf.mxu0
    %v1060 = vadd.f32 %v507, %v1059
    %v1061 = vpop.f32.mrf.mxu0
    %v1062 = vadd.f32 %v503, %v1061
    %v1063 = vpop.f32.mrf.mxu0
    %v1064 = vadd.f32 %v507, %v1063
    %1065 = vmatprep.mubr.bf16.mxu0 0
    %1066 = vmatmul.mubr.bf16.gmra.mxu0 %v919
    %v1067 = vpop.f32.mrf.mxu0
    %v1068 = vadd.f32 %v503, %v1067
    %v1069 = vpop.f32.mrf.mxu0
    %v1070 = vadd.f32 %v507, %v1069
    %v1071 = vpop.f32.mrf.mxu0
    %v1072 = vadd.f32 %v503, %v1071
    %v1073 = vpop.f32.mrf.mxu0
    %v1074 = vadd.f32 %v507, %v1073
    %1075 = vmatprep.mubr.bf16.mxu0 0
    %1076 = vmatmul.mubr.bf16.gmra.mxu0 %v922
    %v1077 = vpop.f32.mrf.mxu0
    %v1078 = vadd.f32 %v503, %v1077
    %v1079 = vpop.f32.mrf.mxu0
    %v1080 = vadd.f32 %v507, %v1079
    %v1081 = vpop.f32.mrf.mxu0
    %v1082 = vadd.f32 %v503, %v1081
    %v1083 = vpop.f32.mrf.mxu0
    %v1084 = vadd.f32 %v507, %v1083
    %1085 = vmatprep.mubr.bf16.mxu0 0
    %1086 = vmatmul.mubr.bf16.gmra.mxu0 %v925
    %v1087 = vpop.f32.mrf.mxu0
    %v1088 = vadd.f32 %v503, %v1087
    %v1089 = vpop.f32.mrf.mxu0
    %v1090 = vadd.f32 %v507, %v1089
    %v1091 = vpop.f32.mrf.mxu0
    %v1092 = vpop.f32.mrf.mxu0
    %1093 = vdwg.mxu0
    %1094 = vmatprep.subr.bf16.mxu0 0
    %1095 = vmatpush1.bf16.msra.mxu0 0
    %1096 = vmatprep.subr.bf16.mxu0 0
    %1097 = vmatpush1.bf16.msra.mxu0 0
    %1098 = vmatprep.subr.bf16.mxu0 %v944
    %1099 = vmatpush1.bf16.msra.mxu0 %v941
    %1100 = vmatprep.subr.bf16.mxu0 %v863
    %1101 = vmatpush1.bf16.msra.mxu0 %v862
    %1102 = vmatprep.subr.bf16.mxu0 %v855
    %1103 = vmatpush1.bf16.msra.mxu0 %v854
    %1104 = vmatprep.subr.bf16.mxu0 %v847
    %1105 = vmatpush1.bf16.msra.mxu0 %v846
    %1106 = vmatprep.subr.bf16.mxu0 %v839
    %1107 = vmatpush1.bf16.msra.mxu0 %v838
    %1108 = vmatprep.subr.bf16.mxu0 %v831
    %1109 = vmatpush1.bf16.msra.mxu0 %v830
    %1110 = vmatprep.subr.bf16.mxu0 0
    %1111 = vmatpush2.bf16.msra.mxu0 0
    %1112 = vmatprep.subr.bf16.mxu0 0
    %1113 = vmatpush2.bf16.msra.mxu0 0
    %1114 = vmatprep.subr.bf16.mxu0 0
    %1115 = vmatpush2.bf16.msra.mxu0 0
    %1116 = vmatprep.subr.bf16.mxu0 0
    %1117 = vmatpush2.bf16.msra.mxu0 0
    %1118 = vmatprep.subr.bf16.mxu0 0
    %1119 = vmatpush2.bf16.msra.mxu0 0
    %1120 = vmatprep.subr.bf16.mxu0 0
    %1121 = vmatpush2.bf16.msra.mxu0 0
    %1122 = vmatprep.subr.bf16.mxu0 0
    %1123 = vmatpush2.bf16.msra.mxu0 0
    %1124 = vmatprep.subr.bf16.mxu0 0
    %1125 = vmatpush2.bf16.msra.mxu0 0
    %1126 = vmatprep.mubr.bf16.mxu0 0
    %1127 = vmatmul.mubr.bf16.gmra.mxu0 %v916
    %v1128 = vpop.f32.mrf.mxu0
    %v1129 = vadd.f32 %v511, %v1128
    %v1130 = vpop.f32.mrf.mxu0
    %v1131 = vadd.f32 %v515, %v1130
    %v1132 = vpop.f32.mrf.mxu0
    %v1133 = vadd.f32 %v511, %v1132
    %v1134 = vpop.f32.mrf.mxu0
    %v1135 = vadd.f32 %v515, %v1134
    %1136 = vmatprep.mubr.bf16.mxu0 0
    %1137 = vmatmul.mubr.bf16.gmra.mxu0 %v919
    %v1138 = vpop.f32.mrf.mxu0
    %v1139 = vadd.f32 %v511, %v1138
    %v1140 = vpop.f32.mrf.mxu0
    %v1141 = vadd.f32 %v515, %v1140
    %v1142 = vpop.f32.mrf.mxu0
    %v1143 = vadd.f32 %v511, %v1142
    %v1144 = vpop.f32.mrf.mxu0
    %v1145 = vadd.f32 %v515, %v1144
    %1146 = vmatprep.mubr.bf16.mxu0 0
    %1147 = vmatmul.mubr.bf16.gmra.mxu0 %v922
    %v1148 = vpop.f32.mrf.mxu0
    %v1149 = vadd.f32 %v511, %v1148
    %v1150 = vpop.f32.mrf.mxu0
    %v1151 = vadd.f32 %v515, %v1150
    %v1152 = vpop.f32.mrf.mxu0
    %v1153 = vadd.f32 %v511, %v1152
    %v1154 = vpop.f32.mrf.mxu0
    %v1155 = vadd.f32 %v515, %v1154
    %1156 = vmatprep.mubr.bf16.mxu0 0
    %1157 = vmatmul.mubr.bf16.gmra.mxu0 %v925
    %v1158 = vpop.f32.mrf.mxu0
    %v1159 = vadd.f32 %v511, %v1158
    %v1160 = vpop.f32.mrf.mxu0
    %v1161 = vadd.f32 %v515, %v1160
    %v1162 = vpop.f32.mrf.mxu0
    %v1163 = vpop.f32.mrf.mxu0
    %1164 = vdwg.mxu0
    %1165 = vmatprep.subr.bf16.mxu0 0
    %1166 = vmatpush1.bf16.msra.mxu0 0
    %1167 = vmatprep.subr.bf16.mxu0 0
    %1168 = vmatpush1.bf16.msra.mxu0 0
    %1169 = vmatprep.subr.bf16.mxu0 %v950
    %1170 = vmatpush1.bf16.msra.mxu0 %v947
    %1171 = vmatprep.subr.bf16.mxu0 %v865
    %1172 = vmatpush1.bf16.msra.mxu0 %v864
    %1173 = vmatprep.subr.bf16.mxu0 %v857
    %1174 = vmatpush1.bf16.msra.mxu0 %v856
    %1175 = vmatprep.subr.bf16.mxu0 %v849
    %1176 = vmatpush1.bf16.msra.mxu0 %v848
    %1177 = vmatprep.subr.bf16.mxu0 %v841
    %1178 = vmatpush1.bf16.msra.mxu0 %v840
    %1179 = vmatprep.subr.bf16.mxu0 %v833
    %1180 = vmatpush1.bf16.msra.mxu0 %v832
    %1181 = vmatprep.subr.bf16.mxu0 0
    %1182 = vmatpush2.bf16.msra.mxu0 0
    %1183 = vmatprep.subr.bf16.mxu0 0
    %1184 = vmatpush2.bf16.msra.mxu0 0
    %1185 = vmatprep.subr.bf16.mxu0 0
    %1186 = vmatpush2.bf16.msra.mxu0 0
    %1187 = vmatprep.subr.bf16.mxu0 0
    %1188 = vmatpush2.bf16.msra.mxu0 0
    %1189 = vmatprep.subr.bf16.mxu0 0
    %1190 = vmatpush2.bf16.msra.mxu0 0
    %1191 = vmatprep.subr.bf16.mxu0 0
    %1192 = vmatpush2.bf16.msra.mxu0 0
    %1193 = vmatprep.subr.bf16.mxu0 0
    %1194 = vmatpush2.bf16.msra.mxu0 0
    %1195 = vmatprep.subr.bf16.mxu0 0
    %1196 = vmatpush2.bf16.msra.mxu0 0
    %1197 = vmatprep.mubr.bf16.mxu0 0
    %1198 = vmatmul.mubr.bf16.gmra.mxu0 %v916
    %v1199 = vpop.f32.mrf.mxu0
    %v1200 = vadd.f32 %v519, %v1199
    %v1201 = vpop.f32.mrf.mxu0
    %v1202 = vadd.f32 %v523, %v1201
    %v1203 = vpop.f32.mrf.mxu0
    %v1204 = vadd.f32 %v519, %v1203
    %v1205 = vpop.f32.mrf.mxu0
    %v1206 = vadd.f32 %v523, %v1205
    %1207 = vmatprep.mubr.bf16.mxu0 0
    %1208 = vmatmul.mubr.bf16.gmra.mxu0 %v919
    %v1209 = vpop.f32.mrf.mxu0
    %v1210 = vadd.f32 %v519, %v1209
    %v1211 = vpop.f32.mrf.mxu0
    %v1212 = vadd.f32 %v523, %v1211
    %v1213 = vpop.f32.mrf.mxu0
    %v1214 = vadd.f32 %v519, %v1213
    %v1215 = vpop.f32.mrf.mxu0
    %v1216 = vadd.f32 %v523, %v1215
    %1217 = vmatprep.mubr.bf16.mxu0 0
    %1218 = vmatmul.mubr.bf16.gmra.mxu0 %v922
    %v1219 = vpop.f32.mrf.mxu0
    %v1220 = vadd.f32 %v519, %v1219
    %v1221 = vpop.f32.mrf.mxu0
    %v1222 = vadd.f32 %v523, %v1221
    %v1223 = vpop.f32.mrf.mxu0
    %v1224 = vadd.f32 %v519, %v1223
    %v1225 = vpop.f32.mrf.mxu0
    %v1226 = vadd.f32 %v523, %v1225
    %1227 = vmatprep.mubr.bf16.mxu0 0
    %1228 = vmatmul.mubr.bf16.gmra.mxu0 %v925
    %v1229 = vpop.f32.mrf.mxu0
    %v1230 = vadd.f32 %v519, %v1229
    %v1231 = vpop.f32.mrf.mxu0
    %v1232 = vadd.f32 %v523, %v1231
    %v1233 = vpop.f32.mrf.mxu0
    %v1234 = vpop.f32.mrf.mxu0
    %1235 = vdwg.mxu0
    %v1236 = vmax.f32 %v987, 0.0
    %v1237 = vmax.f32 %v989, 0.0
    %v1238 = vmax.f32 %v1058, 0.0
    %v1239 = vmax.f32 %v1060, 0.0
    %v1240 = vmax.f32 %v1129, 0.0
    %v1241 = vmax.f32 %v1131, 0.0
    %v1242 = vmax.f32 %v1200, 0.0
    %v1243 = vmax.f32 %v1202, 0.0
    %v1244 = vmax.f32 %v991, 0.0
    %v1245 = vmax.f32 %v993, 0.0
    %v1246 = vmax.f32 %v1062, 0.0
    %v1247 = vmax.f32 %v1064, 0.0
    %v1248 = vmax.f32 %v1133, 0.0
    %v1249 = vmax.f32 %v1135, 0.0
    %v1250 = vmax.f32 %v1204, 0.0
    %v1251 = vmax.f32 %v1206, 0.0
    %v1252 = vmax.f32 %v997, 0.0
    %v1253 = vmax.f32 %v999, 0.0
    %v1254 = vmax.f32 %v1068, 0.0
    %v1255 = vmax.f32 %v1070, 0.0
    %v1256 = vmax.f32 %v1139, 0.0
    %v1257 = vmax.f32 %v1141, 0.0
    %v1258 = vmax.f32 %v1210, 0.0
    %v1259 = vmax.f32 %v1212, 0.0
    %v1260 = vmax.f32 %v1001, 0.0
    %v1261 = vmax.f32 %v1003, 0.0
    %v1262 = vmax.f32 %v1072, 0.0
    %v1263 = vmax.f32 %v1074, 0.0
    %v1264 = vmax.f32 %v1143, 0.0
    %v1265 = vmax.f32 %v1145, 0.0
    %v1266 = vmax.f32 %v1214, 0.0
    %v1267 = vmax.f32 %v1216, 0.0
    %v1268 = vmax.f32 %v1007, 0.0
    %v1269 = vmax.f32 %v1009, 0.0
    %v1270 = vmax.f32 %v1078, 0.0
    %v1271 = vmax.f32 %v1080, 0.0
    %v1272 = vmax.f32 %v1149, 0.0
    %v1273 = vmax.f32 %v1151, 0.0
    %v1274 = vmax.f32 %v1220, 0.0
    %v1275 = vmax.f32 %v1222, 0.0
    %v1276 = vmax.f32 %v1011, 0.0
    %v1277 = vmax.f32 %v1013, 0.0
    %v1278 = vmax.f32 %v1082, 0.0
    %v1279 = vmax.f32 %v1084, 0.0
    %v1280 = vmax.f32 %v1153, 0.0
    %v1281 = vmax.f32 %v1155, 0.0
    %v1282 = vmax.f32 %v1224, 0.0
    %v1283 = vmax.f32 %v1226, 0.0
    %v1284 = vmax.f32 %v1017, 0.0
    %v1285 = vmax.f32 %v1019, 0.0
    %v1286 = vmax.f32 %v1088, 0.0
    %v1287 = vmax.f32 %v1090, 0.0
    %v1288 = vmax.f32 %v1159, 0.0
    %v1289 = vmax.f32 %v1161, 0.0
    %v1290 = vmax.f32 %v1230, 0.0
    %v1291 = vmax.f32 %v1232, 0.0
    %v1348 = vcombine.low %v1236, %v1237
    %v1349 = vcombine.high %v1236, %v1237
    %v1350 = vcombine.low %v1238, %v1239
    %v1351 = vcombine.high %v1238, %v1239
    %v1353 = vunpack.c.l.s4 1983009808
    %v1354 = vunpack.c.0.s8 %v1353
    %v1355 = vlaneseq
    %v1356 = vshrl.u32 %v1355, 7
    %v1357 = vsub.s32 %v1354, %v1356
    %v1358 = vrot.slane %v1348, %v1357
    %v1360 = vunpack.c.l.s4 1983009808
    %v1361 = vunpack.c.0.s8 %v1360
    %v1362 = vlaneseq
    %v1363 = vshrl.u32 %v1362, 7
    %v1364 = vsub.s32 %v1361, %v1363
    %v1365 = vrot.slane %v1349, %v1364
    %v1367 = vunpack.c.l.s4 1983009808
    %v1368 = vunpack.c.0.s8 %v1367
    %v1369 = vlaneseq
    %v1370 = vshrl.u32 %v1369, 7
    %v1371 = vsub.s32 %v1368, %v1370
    %v1372 = vrot.slane %v1350, %v1371
    %v1374 = vunpack.c.l.s4 1983009808
    %v1375 = vunpack.c.0.s8 %v1374
    %v1376 = vlaneseq
    %v1377 = vshrl.u32 %v1376, 7
    %v1378 = vsub.s32 %v1375, %v1377
    %v1379 = vrot.slane %v1351, %v1378
    %v1380 = vcombine.low %v1358, %v1372
    %v1381 = vcombine.high %v1358, %v1372
    %v1382 = vcombine.low %v1365, %v1379
    %v1383 = vcombine.high %v1365, %v1379
    %v1384 = vcombine.low %v1240, %v1241
    %v1385 = vcombine.high %v1240, %v1241
    %v1386 = vcombine.low %v1242, %v1243
    %v1387 = vcombine.high %v1242, %v1243
    %v1389 = vunpack.c.l.s4 1983009808
    %v1390 = vunpack.c.0.s8 %v1389
    %v1391 = vlaneseq
    %v1392 = vshrl.u32 %v1391, 7
    %v1393 = vsub.s32 %v1390, %v1392
    %v1394 = vrot.slane %v1384, %v1393
    %v1396 = vunpack.c.l.s4 1983009808
    %v1397 = vunpack.c.0.s8 %v1396
    %v1398 = vlaneseq
    %v1399 = vshrl.u32 %v1398, 7
    %v1400 = vsub.s32 %v1397, %v1399
    %v1401 = vrot.slane %v1385, %v1400
    %v1403 = vunpack.c.l.s4 1983009808
    %v1404 = vunpack.c.0.s8 %v1403
    %v1405 = vlaneseq
    %v1406 = vshrl.u32 %v1405, 7
    %v1407 = vsub.s32 %v1404, %v1406
    %v1408 = vrot.slane %v1386, %v1407
    %v1410 = vunpack.c.l.s4 1983009808
    %v1411 = vunpack.c.0.s8 %v1410
    %v1412 = vlaneseq
    %v1413 = vshrl.u32 %v1412, 7
    %v1414 = vsub.s32 %v1411, %v1413
    %v1415 = vrot.slane %v1387, %v1414
    %v1416 = vcombine.low %v1394, %v1408
    %v1417 = vcombine.high %v1394, %v1408
    %v1418 = vcombine.low %v1401, %v1415
    %v1419 = vcombine.high %v1401, %v1415
    %v1420 = vcombine.low %v1244, %v1245
    %v1421 = vcombine.high %v1244, %v1245
    %v1422 = vcombine.low %v1246, %v1247
    %v1423 = vcombine.high %v1246, %v1247
    %v1425 = vunpack.c.l.s4 1983009808
    %v1426 = vunpack.c.0.s8 %v1425
    %v1427 = vlaneseq
    %v1428 = vshrl.u32 %v1427, 7
    %v1429 = vsub.s32 %v1426, %v1428
    %v1430 = vrot.slane %v1420, %v1429
    %v1432 = vunpack.c.l.s4 1983009808
    %v1433 = vunpack.c.0.s8 %v1432
    %v1434 = vlaneseq
    %v1435 = vshrl.u32 %v1434, 7
    %v1436 = vsub.s32 %v1433, %v1435
    %v1437 = vrot.slane %v1421, %v1436
    %v1439 = vunpack.c.l.s4 1983009808
    %v1440 = vunpack.c.0.s8 %v1439
    %v1441 = vlaneseq
    %v1442 = vshrl.u32 %v1441, 7
    %v1443 = vsub.s32 %v1440, %v1442
    %v1444 = vrot.slane %v1422, %v1443
    %v1446 = vunpack.c.l.s4 1983009808
    %v1447 = vunpack.c.0.s8 %v1446
    %v1448 = vlaneseq
    %v1449 = vshrl.u32 %v1448, 7
    %v1450 = vsub.s32 %v1447, %v1449
    %v1451 = vrot.slane %v1423, %v1450
    %v1452 = vcombine.low %v1430, %v1444
    %v1453 = vcombine.high %v1430, %v1444
    %v1454 = vcombine.low %v1437, %v1451
    %v1455 = vcombine.high %v1437, %v1451
    %v1456 = vcombine.low %v1248, %v1249
    %v1457 = vcombine.high %v1248, %v1249
    %v1458 = vcombine.low %v1250, %v1251
    %v1459 = vcombine.high %v1250, %v1251
    %v1461 = vunpack.c.l.s4 1983009808
    %v1462 = vunpack.c.0.s8 %v1461
    %v1463 = vlaneseq
    %v1464 = vshrl.u32 %v1463, 7
    %v1465 = vsub.s32 %v1462, %v1464
    %v1466 = vrot.slane %v1456, %v1465
    %v1468 = vunpack.c.l.s4 1983009808
    %v1469 = vunpack.c.0.s8 %v1468
    %v1470 = vlaneseq
    %v1471 = vshrl.u32 %v1470, 7
    %v1472 = vsub.s32 %v1469, %v1471
    %v1473 = vrot.slane %v1457, %v1472
    %v1475 = vunpack.c.l.s4 1983009808
    %v1476 = vunpack.c.0.s8 %v1475
    %v1477 = vlaneseq
    %v1478 = vshrl.u32 %v1477, 7
    %v1479 = vsub.s32 %v1476, %v1478
    %v1480 = vrot.slane %v1458, %v1479
    %v1482 = vunpack.c.l.s4 1983009808
    %v1483 = vunpack.c.0.s8 %v1482
    %v1484 = vlaneseq
    %v1485 = vshrl.u32 %v1484, 7
    %v1486 = vsub.s32 %v1483, %v1485
    %v1487 = vrot.slane %v1459, %v1486
    %v1488 = vcombine.low %v1466, %v1480
    %v1489 = vcombine.high %v1466, %v1480
    %v1490 = vcombine.low %v1473, %v1487
    %v1491 = vcombine.high %v1473, %v1487
    %v1492 = vcombine.low %v1252, %v1253
    %v1493 = vcombine.high %v1252, %v1253
    %v1494 = vcombine.low %v1254, %v1255
    %v1495 = vcombine.high %v1254, %v1255
    %v1497 = vunpack.c.l.s4 1983009808
    %v1498 = vunpack.c.0.s8 %v1497
    %v1499 = vlaneseq
    %v1500 = vshrl.u32 %v1499, 7
    %v1501 = vsub.s32 %v1498, %v1500
    %v1502 = vrot.slane %v1492, %v1501
    %v1504 = vunpack.c.l.s4 1983009808
    %v1505 = vunpack.c.0.s8 %v1504
    %v1506 = vlaneseq
    %v1507 = vshrl.u32 %v1506, 7
    %v1508 = vsub.s32 %v1505, %v1507
    %v1509 = vrot.slane %v1493, %v1508
    %v1511 = vunpack.c.l.s4 1983009808
    %v1512 = vunpack.c.0.s8 %v1511
    %v1513 = vlaneseq
    %v1514 = vshrl.u32 %v1513, 7
    %v1515 = vsub.s32 %v1512, %v1514
    %v1516 = vrot.slane %v1494, %v1515
    %v1518 = vunpack.c.l.s4 1983009808
    %v1519 = vunpack.c.0.s8 %v1518
    %v1520 = vlaneseq
    %v1521 = vshrl.u32 %v1520, 7
    %v1522 = vsub.s32 %v1519, %v1521
    %v1523 = vrot.slane %v1495, %v1522
    %v1524 = vcombine.low %v1502, %v1516
    %v1525 = vcombine.high %v1502, %v1516
    %v1526 = vcombine.low %v1509, %v1523
    %v1527 = vcombine.high %v1509, %v1523
    %v1528 = vcombine.low %v1256, %v1257
    %v1529 = vcombine.high %v1256, %v1257
    %v1530 = vcombine.low %v1258, %v1259
    %v1531 = vcombine.high %v1258, %v1259
    %v1533 = vunpack.c.l.s4 1983009808
    %v1534 = vunpack.c.0.s8 %v1533
    %v1535 = vlaneseq
    %v1536 = vshrl.u32 %v1535, 7
    %v1537 = vsub.s32 %v1534, %v1536
    %v1538 = vrot.slane %v1528, %v1537
    %v1540 = vunpack.c.l.s4 1983009808
    %v1541 = vunpack.c.0.s8 %v1540
    %v1542 = vlaneseq
    %v1543 = vshrl.u32 %v1542, 7
    %v1544 = vsub.s32 %v1541, %v1543
    %v1545 = vrot.slane %v1529, %v1544
    %v1547 = vunpack.c.l.s4 1983009808
    %v1548 = vunpack.c.0.s8 %v1547
    %v1549 = vlaneseq
    %v1550 = vshrl.u32 %v1549, 7
    %v1551 = vsub.s32 %v1548, %v1550
    %v1552 = vrot.slane %v1530, %v1551
    %v1554 = vunpack.c.l.s4 1983009808
    %v1555 = vunpack.c.0.s8 %v1554
    %v1556 = vlaneseq
    %v1557 = vshrl.u32 %v1556, 7
    %v1558 = vsub.s32 %v1555, %v1557
    %v1559 = vrot.slane %v1531, %v1558
    %v1560 = vcombine.low %v1538, %v1552
    %v1561 = vcombine.high %v1538, %v1552
    %v1562 = vcombine.low %v1545, %v1559
    %v1563 = vcombine.high %v1545, %v1559
    %v1564 = vcombine.low %v1260, %v1261
    %v1565 = vcombine.high %v1260, %v1261
    %v1566 = vcombine.low %v1262, %v1263
    %v1567 = vcombine.high %v1262, %v1263
    %v1569 = vunpack.c.l.s4 1983009808
    %v1570 = vunpack.c.0.s8 %v1569
    %v1571 = vlaneseq
    %v1572 = vshrl.u32 %v1571, 7
    %v1573 = vsub.s32 %v1570, %v1572
    %v1574 = vrot.slane %v1564, %v1573
    %v1576 = vunpack.c.l.s4 1983009808
    %v1577 = vunpack.c.0.s8 %v1576
    %v1578 = vlaneseq
    %v1579 = vshrl.u32 %v1578, 7
    %v1580 = vsub.s32 %v1577, %v1579
    %v1581 = vrot.slane %v1565, %v1580
    %v1583 = vunpack.c.l.s4 1983009808
    %v1584 = vunpack.c.0.s8 %v1583
    %v1585 = vlaneseq
    %v1586 = vshrl.u32 %v1585, 7
    %v1587 = vsub.s32 %v1584, %v1586
    %v1588 = vrot.slane %v1566, %v1587
    %v1590 = vunpack.c.l.s4 1983009808
    %v1591 = vunpack.c.0.s8 %v1590
    %v1592 = vlaneseq
    %v1593 = vshrl.u32 %v1592, 7
    %v1594 = vsub.s32 %v1591, %v1593
    %v1595 = vrot.slane %v1567, %v1594
    %v1596 = vcombine.low %v1574, %v1588
    %v1597 = vcombine.high %v1574, %v1588
    %v1598 = vcombine.low %v1581, %v1595
    %v1599 = vcombine.high %v1581, %v1595
    %v1600 = vcombine.low %v1264, %v1265
    %v1601 = vcombine.high %v1264, %v1265
    %v1602 = vcombine.low %v1266, %v1267
    %v1603 = vcombine.high %v1266, %v1267
    %v1605 = vunpack.c.l.s4 1983009808
    %v1606 = vunpack.c.0.s8 %v1605
    %v1607 = vlaneseq
    %v1608 = vshrl.u32 %v1607, 7
    %v1609 = vsub.s32 %v1606, %v1608
    %v1610 = vrot.slane %v1600, %v1609
    %v1612 = vunpack.c.l.s4 1983009808
    %v1613 = vunpack.c.0.s8 %v1612
    %v1614 = vlaneseq
    %v1615 = vshrl.u32 %v1614, 7
    %v1616 = vsub.s32 %v1613, %v1615
    %v1617 = vrot.slane %v1601, %v1616
    %v1619 = vunpack.c.l.s4 1983009808
    %v1620 = vunpack.c.0.s8 %v1619
    %v1621 = vlaneseq
    %v1622 = vshrl.u32 %v1621, 7
    %v1623 = vsub.s32 %v1620, %v1622
    %v1624 = vrot.slane %v1602, %v1623
    %v1626 = vunpack.c.l.s4 1983009808
    %v1627 = vunpack.c.0.s8 %v1626
    %v1628 = vlaneseq
    %v1629 = vshrl.u32 %v1628, 7
    %v1630 = vsub.s32 %v1627, %v1629
    %v1631 = vrot.slane %v1603, %v1630
    %v1632 = vcombine.low %v1610, %v1624
    %v1633 = vcombine.high %v1610, %v1624
    %v1634 = vcombine.low %v1617, %v1631
    %v1635 = vcombine.high %v1617, %v1631
    %v1636 = vcombine.low %v1268, %v1269
    %v1637 = vcombine.high %v1268, %v1269
    %v1638 = vcombine.low %v1270, %v1271
    %v1639 = vcombine.high %v1270, %v1271
    %v1641 = vunpack.c.l.s4 1983009808
    %v1642 = vunpack.c.0.s8 %v1641
    %v1643 = vlaneseq
    %v1644 = vshrl.u32 %v1643, 7
    %v1645 = vsub.s32 %v1642, %v1644
    %v1646 = vrot.slane %v1636, %v1645
    %v1648 = vunpack.c.l.s4 1983009808
    %v1649 = vunpack.c.0.s8 %v1648
    %v1650 = vlaneseq
    %v1651 = vshrl.u32 %v1650, 7
    %v1652 = vsub.s32 %v1649, %v1651
    %v1653 = vrot.slane %v1637, %v1652
    %v1655 = vunpack.c.l.s4 1983009808
    %v1656 = vunpack.c.0.s8 %v1655
    %v1657 = vlaneseq
    %v1658 = vshrl.u32 %v1657, 7
    %v1659 = vsub.s32 %v1656, %v1658
    %v1660 = vrot.slane %v1638, %v1659
    %v1662 = vunpack.c.l.s4 1983009808
    %v1663 = vunpack.c.0.s8 %v1662
    %v1664 = vlaneseq
    %v1665 = vshrl.u32 %v1664, 7
    %v1666 = vsub.s32 %v1663, %v1665
    %v1667 = vrot.slane %v1639, %v1666
    %v1668 = vcombine.low %v1646, %v1660
    %v1669 = vcombine.high %v1646, %v1660
    %v1670 = vcombine.low %v1653, %v1667
    %v1671 = vcombine.high %v1653, %v1667
    %v1672 = vcombine.low %v1272, %v1273
    %v1673 = vcombine.high %v1272, %v1273
    %v1674 = vcombine.low %v1274, %v1275
    %v1675 = vcombine.high %v1274, %v1275
    %v1677 = vunpack.c.l.s4 1983009808
    %v1678 = vunpack.c.0.s8 %v1677
    %v1679 = vlaneseq
    %v1680 = vshrl.u32 %v1679, 7
    %v1681 = vsub.s32 %v1678, %v1680
    %v1682 = vrot.slane %v1672, %v1681
    %v1684 = vunpack.c.l.s4 1983009808
    %v1685 = vunpack.c.0.s8 %v1684
    %v1686 = vlaneseq
    %v1687 = vshrl.u32 %v1686, 7
    %v1688 = vsub.s32 %v1685, %v1687
    %v1689 = vrot.slane %v1673, %v1688
    %v1691 = vunpack.c.l.s4 1983009808
    %v1692 = vunpack.c.0.s8 %v1691
    %v1693 = vlaneseq
    %v1694 = vshrl.u32 %v1693, 7
    %v1695 = vsub.s32 %v1692, %v1694
    %v1696 = vrot.slane %v1674, %v1695
    %v1698 = vunpack.c.l.s4 1983009808
    %v1699 = vunpack.c.0.s8 %v1698
    %v1700 = vlaneseq
    %v1701 = vshrl.u32 %v1700, 7
    %v1702 = vsub.s32 %v1699, %v1701
    %v1703 = vrot.slane %v1675, %v1702
    %v1704 = vcombine.low %v1682, %v1696
    %v1705 = vcombine.high %v1682, %v1696
    %v1706 = vcombine.low %v1689, %v1703
    %v1707 = vcombine.high %v1689, %v1703
    %v1708 = vcombine.low %v1276, %v1277
    %v1709 = vcombine.high %v1276, %v1277
    %v1710 = vcombine.low %v1278, %v1279
    %v1711 = vcombine.high %v1278, %v1279
    %v1713 = vunpack.c.l.s4 1983009808
    %v1714 = vunpack.c.0.s8 %v1713
    %v1715 = vlaneseq
    %v1716 = vshrl.u32 %v1715, 7
    %v1717 = vsub.s32 %v1714, %v1716
    %v1718 = vrot.slane %v1708, %v1717
    %v1720 = vunpack.c.l.s4 1983009808
    %v1721 = vunpack.c.0.s8 %v1720
    %v1722 = vlaneseq
    %v1723 = vshrl.u32 %v1722, 7
    %v1724 = vsub.s32 %v1721, %v1723
    %v1725 = vrot.slane %v1709, %v1724
    %v1727 = vunpack.c.l.s4 1983009808
    %v1728 = vunpack.c.0.s8 %v1727
    %v1729 = vlaneseq
    %v1730 = vshrl.u32 %v1729, 7
    %v1731 = vsub.s32 %v1728, %v1730
    %v1732 = vrot.slane %v1710, %v1731
    %v1734 = vunpack.c.l.s4 1983009808
    %v1735 = vunpack.c.0.s8 %v1734
    %v1736 = vlaneseq
    %v1737 = vshrl.u32 %v1736, 7
    %v1738 = vsub.s32 %v1735, %v1737
    %v1739 = vrot.slane %v1711, %v1738
    %v1740 = vcombine.low %v1718, %v1732
    %v1741 = vcombine.high %v1718, %v1732
    %v1742 = vcombine.low %v1725, %v1739
    %v1743 = vcombine.high %v1725, %v1739
    %v1744 = vcombine.low %v1280, %v1281
    %v1745 = vcombine.high %v1280, %v1281
    %v1746 = vcombine.low %v1282, %v1283
    %v1747 = vcombine.high %v1282, %v1283
    %v1749 = vunpack.c.l.s4 1983009808
    %v1750 = vunpack.c.0.s8 %v1749
    %v1751 = vlaneseq
    %v1752 = vshrl.u32 %v1751, 7
    %v1753 = vsub.s32 %v1750, %v1752
    %v1754 = vrot.slane %v1744, %v1753
    %v1756 = vunpack.c.l.s4 1983009808
    %v1757 = vunpack.c.0.s8 %v1756
    %v1758 = vlaneseq
    %v1759 = vshrl.u32 %v1758, 7
    %v1760 = vsub.s32 %v1757, %v1759
    %v1761 = vrot.slane %v1745, %v1760
    %v1763 = vunpack.c.l.s4 1983009808
    %v1764 = vunpack.c.0.s8 %v1763
    %v1765 = vlaneseq
    %v1766 = vshrl.u32 %v1765, 7
    %v1767 = vsub.s32 %v1764, %v1766
    %v1768 = vrot.slane %v1746, %v1767
    %v1770 = vunpack.c.l.s4 1983009808
    %v1771 = vunpack.c.0.s8 %v1770
    %v1772 = vlaneseq
    %v1773 = vshrl.u32 %v1772, 7
    %v1774 = vsub.s32 %v1771, %v1773
    %v1775 = vrot.slane %v1747, %v1774
    %v1776 = vcombine.low %v1754, %v1768
    %v1777 = vcombine.high %v1754, %v1768
    %v1778 = vcombine.low %v1761, %v1775
    %v1779 = vcombine.high %v1761, %v1775
    %v1780 = vcombine.low %v1284, %v1285
    %v1781 = vcombine.low %v1286, %v1287
    %v1783 = vunpack.c.l.s4 1983009808
    %v1784 = vunpack.c.0.s8 %v1783
    %v1785 = vlaneseq
    %v1786 = vshrl.u32 %v1785, 7
    %v1787 = vsub.s32 %v1784, %v1786
    %v1788 = vrot.slane %v1780, %v1787
    %v1790 = vunpack.c.l.s4 1983009808
    %v1791 = vunpack.c.0.s8 %v1790
    %v1792 = vlaneseq
    %v1793 = vshrl.u32 %v1792, 7
    %v1794 = vsub.s32 %v1791, %v1793
    %v1795 = vrot.slane %v1781, %v1794
    %v1796 = vcombine.low %v1788, %v1795
    %v1797 = vcombine.high %v1788, %v1795
    %v1798 = vcombine.low %v1288, %v1289
    %v1799 = vcombine.low %v1290, %v1291
    %v1801 = vunpack.c.l.s4 1983009808
    %v1802 = vunpack.c.0.s8 %v1801
    %v1803 = vlaneseq
    %v1804 = vshrl.u32 %v1803, 7
    %v1805 = vsub.s32 %v1802, %v1804
    %v1806 = vrot.slane %v1798, %v1805
    %v1808 = vunpack.c.l.s4 1983009808
    %v1809 = vunpack.c.0.s8 %v1808
    %v1810 = vlaneseq
    %v1811 = vshrl.u32 %v1810, 7
    %v1812 = vsub.s32 %v1809, %v1811
    %v1813 = vrot.slane %v1799, %v1812
    %v1814 = vcombine.low %v1806, %v1813
    %v1815 = vcombine.high %v1806, %v1813
    %v1868 = vrot.slane %v1380, 7
    %v1869 = vrot.slane %v1868, 2
    %v1870 = vrot.slane %v1416, 7
    %v1871 = vrot.slane %v1870, 2
    %v1872 = vrot.slane %v1381, 7
    %v1873 = vrot.slane %v1872, 2
    %v1874 = vrot.slane %v1417, 7
    %v1875 = vrot.slane %v1874, 2
    %v1876 = vrot.slane %v1382, 7
    %v1877 = vrot.slane %v1876, 2
    %v1878 = vrot.slane %v1418, 7
    %v1879 = vrot.slane %v1878, 2
    %v1880 = vrot.slane %v1383, 7
    %v1881 = vrot.slane %v1880, 2
    %v1882 = vrot.slane %v1419, 7
    %v1883 = vrot.slane %v1882, 2
    %v1884 = vrot.slane %v1452, 7
    %v1885 = vrot.slane %v1884, 2
    %v1886 = vrot.slane %v1488, 7
    %v1887 = vrot.slane %v1886, 2
    %v1888 = vrot.slane %v1453, 7
    %v1889 = vrot.slane %v1888, 2
    %v1890 = vrot.slane %v1489, 7
    %v1891 = vrot.slane %v1890, 2
    %v1892 = vrot.slane %v1454, 7
    %v1893 = vrot.slane %v1892, 2
    %v1894 = vrot.slane %v1490, 7
    %v1895 = vrot.slane %v1894, 2
    %v1896 = vrot.slane %v1455, 7
    %v1897 = vrot.slane %v1896, 2
    %v1898 = vrot.slane %v1491, 7
    %v1899 = vrot.slane %v1898, 2
    %v1900 = vrot.slane %v1524, 7
    %v1901 = vrot.slane %v1900, 2
    %v1902 = vrot.slane %v1560, 7
    %v1903 = vrot.slane %v1902, 2
    %v1904 = vrot.slane %v1525, 7
    %v1905 = vrot.slane %v1904, 2
    %v1906 = vrot.slane %v1561, 7
    %v1907 = vrot.slane %v1906, 2
    %v1908 = vrot.slane %v1526, 7
    %v1909 = vrot.slane %v1908, 2
    %v1910 = vrot.slane %v1562, 7
    %v1911 = vrot.slane %v1910, 2
    %v1912 = vrot.slane %v1527, 7
    %v1913 = vrot.slane %v1912, 2
    %v1914 = vrot.slane %v1563, 7
    %v1915 = vrot.slane %v1914, 2
    %v1916 = vrot.slane %v1596, 7
    %v1917 = vrot.slane %v1916, 2
    %v1918 = vrot.slane %v1632, 7
    %v1919 = vrot.slane %v1918, 2
    %v1920 = vrot.slane %v1597, 7
    %v1921 = vrot.slane %v1920, 2
    %v1922 = vrot.slane %v1633, 7
    %v1923 = vrot.slane %v1922, 2
    %v1924 = vrot.slane %v1598, 7
    %v1925 = vrot.slane %v1924, 2
    %v1926 = vrot.slane %v1634, 7
    %v1927 = vrot.slane %v1926, 2
    %v1928 = vrot.slane %v1599, 7
    %v1929 = vrot.slane %v1928, 2
    %v1930 = vrot.slane %v1635, 7
    %v1931 = vrot.slane %v1930, 2
    %v1932 = vrot.slane %v1668, 7
    %v1933 = vrot.slane %v1932, 2
    %v1934 = vrot.slane %v1704, 7
    %v1935 = vrot.slane %v1934, 2
    %v1936 = vrot.slane %v1669, 7
    %v1937 = vrot.slane %v1936, 2
    %v1938 = vrot.slane %v1705, 7
    %v1939 = vrot.slane %v1938, 2
    %v1940 = vrot.slane %v1670, 7
    %v1941 = vrot.slane %v1940, 2
    %v1942 = vrot.slane %v1706, 7
    %v1943 = vrot.slane %v1942, 2
    %v1944 = vrot.slane %v1671, 7
    %v1945 = vrot.slane %v1944, 2
    %v1946 = vrot.slane %v1707, 7
    %v1947 = vrot.slane %v1946, 2
    %v1948 = vrot.slane %v1740, 7
    %v1949 = vrot.slane %v1948, 2
    %v1950 = vrot.slane %v1776, 7
    %v1951 = vrot.slane %v1950, 2
    %v1952 = vrot.slane %v1741, 7
    %v1953 = vrot.slane %v1952, 2
    %v1954 = vrot.slane %v1777, 7
    %v1955 = vrot.slane %v1954, 2
    %v1956 = vrot.slane %v1742, 7
    %v1957 = vrot.slane %v1956, 2
    %v1958 = vrot.slane %v1778, 7
    %v1959 = vrot.slane %v1958, 2
    %v1960 = vrot.slane %v1743, 7
    %v1961 = vrot.slane %v1960, 2
    %v1962 = vrot.slane %v1779, 7
    %v1963 = vrot.slane %v1962, 2
    %v1964 = vrot.slane %v1796, 7
    %v1965 = vrot.slane %v1964, 2
    %v1966 = vrot.slane %v1814, 7
    %v1967 = vrot.slane %v1966, 2
    %v1968 = vrot.slane %v1797, 7
    %v1969 = vrot.slane %v1968, 2
    %v1970 = vrot.slane %v1815, 7
    %v1971 = vrot.slane %v1970, 2
    %v2024 = vmax.f32 %v1380, %v1869
    %v2025 = vmax.f32 %v1416, %v1871
    %v2026 = vmax.f32 %v1381, %v1873
    %v2027 = vmax.f32 %v1417, %v1875
    %v2028 = vmax.f32 %v1382, %v1877
    %v2029 = vmax.f32 %v1418, %v1879
    %v2030 = vmax.f32 %v1383, %v1881
    %v2031 = vmax.f32 %v1419, %v1883
    %v2032 = vmax.f32 %v1452, %v1885
    %v2033 = vmax.f32 %v1488, %v1887
    %v2034 = vmax.f32 %v1453, %v1889
    %v2035 = vmax.f32 %v1489, %v1891
    %v2036 = vmax.f32 %v1454, %v1893
    %v2037 = vmax.f32 %v1490, %v1895
    %v2038 = vmax.f32 %v1455, %v1897
    %v2039 = vmax.f32 %v1491, %v1899
    %v2040 = vmax.f32 %v1524, %v1901
    %v2041 = vmax.f32 %v1560, %v1903
    %v2042 = vmax.f32 %v1525, %v1905
    %v2043 = vmax.f32 %v1561, %v1907
    %v2044 = vmax.f32 %v1526, %v1909
    %v2045 = vmax.f32 %v1562, %v1911
    %v2046 = vmax.f32 %v1527, %v1913
    %v2047 = vmax.f32 %v1563, %v1915
    %v2048 = vmax.f32 %v1596, %v1917
    %v2049 = vmax.f32 %v1632, %v1919
    %v2050 = vmax.f32 %v1597, %v1921
    %v2051 = vmax.f32 %v1633, %v1923
    %v2052 = vmax.f32 %v1598, %v1925
    %v2053 = vmax.f32 %v1634, %v1927
    %v2054 = vmax.f32 %v1599, %v1929
    %v2055 = vmax.f32 %v1635, %v1931
    %v2056 = vmax.f32 %v1668, %v1933
    %v2057 = vmax.f32 %v1704, %v1935
    %v2058 = vmax.f32 %v1669, %v1937
    %v2059 = vmax.f32 %v1705, %v1939
    %v2060 = vmax.f32 %v1670, %v1941
    %v2061 = vmax.f32 %v1706, %v1943
    %v2062 = vmax.f32 %v1671, %v1945
    %v2063 = vmax.f32 %v1707, %v1947
    %v2064 = vmax.f32 %v1740, %v1949
    %v2065 = vmax.f32 %v1776, %v1951
    %v2066 = vmax.f32 %v1741, %v1953
    %v2067 = vmax.f32 %v1777, %v1955
    %v2068 = vmax.f32 %v1742, %v1957
    %v2069 = vmax.f32 %v1778, %v1959
    %v2070 = vmax.f32 %v1743, %v1961
    %v2071 = vmax.f32 %v1779, %v1963
    %v2072 = vmax.f32 %v1796, %v1965
    %v2073 = vmax.f32 %v1814, %v1967
    %v2074 = vmax.f32 %v1797, %v1969
    %v2075 = vmax.f32 %v1815, %v1971
    %v2076 = vmax.f32 %v2024, %v2025
    %v2077 = vmax.f32 %v2026, %v2027
    %v2078 = vmax.f32 %v2028, %v2029
    %v2079 = vmax.f32 %v2030, %v2031
    %v2080 = vmax.f32 %v2032, %v2033
    %v2081 = vmax.f32 %v2034, %v2035
    %v2082 = vmax.f32 %v2036, %v2037
    %v2083 = vmax.f32 %v2038, %v2039
    %v2084 = vmax.f32 %v2040, %v2041
    %v2085 = vmax.f32 %v2042, %v2043
    %v2086 = vmax.f32 %v2044, %v2045
    %v2087 = vmax.f32 %v2046, %v2047
    %v2088 = vmax.f32 %v2048, %v2049
    %v2089 = vmax.f32 %v2050, %v2051
    %v2090 = vmax.f32 %v2052, %v2053
    %v2091 = vmax.f32 %v2054, %v2055
    %v2092 = vmax.f32 %v2056, %v2057
    %v2093 = vmax.f32 %v2058, %v2059
    %v2094 = vmax.f32 %v2060, %v2061
    %v2095 = vmax.f32 %v2062, %v2063
    %v2096 = vmax.f32 %v2064, %v2065
    %v2097 = vmax.f32 %v2066, %v2067
    %v2098 = vmax.f32 %v2068, %v2069
    %v2099 = vmax.f32 %v2070, %v2071
    %v2100 = vmax.f32 %v2072, %v2073
    %v2101 = vmax.f32 %v2074, %v2075
    %v2128 = vlaneseq
    %v2129 = vshrl.u32 %v2128, 7
    %v2130 = vsub.s32 0, %v2129
    %v2131 = vrot.slane %v2076, %v2130
    %v2132 = vlaneseq
    %v2133 = vshrl.u32 %v2132, 7
    %v2134 = vsub.s32 2, %v2133
    %v2135 = vrot.slane %v2076, %v2134
    %v2136 = vlaneseq
    %v2137 = vshrl.u32 %v2136, 7
    %v2138 = vsub.s32 4, %v2137
    %v2139 = vrot.slane %v2076, %v2138
    %v2140 = vlaneseq
    %v2141 = vshrl.u32 %v2140, 7
    %v2142 = vsub.s32 6, %v2141
    %v2143 = vrot.slane %v2076, %v2142
    %v2144 = vlaneseq
    %v2145 = vshrl.u32 %v2144, 7
    %v2146 = vsub.s32 0, %v2145
    %v2147 = vrot.slane %v2077, %v2146
    %v2148 = vlaneseq
    %v2149 = vshrl.u32 %v2148, 7
    %v2150 = vsub.s32 2, %v2149
    %v2151 = vrot.slane %v2077, %v2150
    %v2152 = vlaneseq
    %v2153 = vshrl.u32 %v2152, 7
    %v2154 = vsub.s32 4, %v2153
    %v2155 = vrot.slane %v2077, %v2154
    %v2156 = vlaneseq
    %v2157 = vshrl.u32 %v2156, 7
    %v2158 = vsub.s32 6, %v2157
    %v2159 = vrot.slane %v2077, %v2158
    %v2160 = vlaneseq
    %v2161 = vshrl.u32 %v2160, 7
    %v2162 = vsub.s32 0, %v2161
    %v2163 = vrot.slane %v2078, %v2162
    %v2164 = vlaneseq
    %v2165 = vshrl.u32 %v2164, 7
    %v2166 = vsub.s32 2, %v2165
    %v2167 = vrot.slane %v2078, %v2166
    %v2168 = vlaneseq
    %v2169 = vshrl.u32 %v2168, 7
    %v2170 = vsub.s32 4, %v2169
    %v2171 = vrot.slane %v2078, %v2170
    %v2172 = vlaneseq
    %v2173 = vshrl.u32 %v2172, 7
    %v2174 = vsub.s32 6, %v2173
    %v2175 = vrot.slane %v2078, %v2174
    %v2176 = vlaneseq
    %v2177 = vshrl.u32 %v2176, 7
    %v2178 = vsub.s32 0, %v2177
    %v2179 = vrot.slane %v2079, %v2178
    %v2180 = vlaneseq
    %v2181 = vshrl.u32 %v2180, 7
    %v2182 = vsub.s32 2, %v2181
    %v2183 = vrot.slane %v2079, %v2182
    %v2184 = vlaneseq
    %v2185 = vshrl.u32 %v2184, 7
    %v2186 = vsub.s32 4, %v2185
    %v2187 = vrot.slane %v2079, %v2186
    %v2188 = vlaneseq
    %v2189 = vshrl.u32 %v2188, 7
    %v2190 = vsub.s32 6, %v2189
    %v2191 = vrot.slane %v2079, %v2190
    %v2192 = vlaneseq
    %v2193 = vshrl.u32 %v2192, 7
    %v2194 = vsub.s32 0, %v2193
    %v2195 = vrot.slane %v2080, %v2194
    %v2196 = vlaneseq
    %v2197 = vshrl.u32 %v2196, 7
    %v2198 = vsub.s32 2, %v2197
    %v2199 = vrot.slane %v2080, %v2198
    %v2200 = vlaneseq
    %v2201 = vshrl.u32 %v2200, 7
    %v2202 = vsub.s32 4, %v2201
    %v2203 = vrot.slane %v2080, %v2202
    %v2204 = vlaneseq
    %v2205 = vshrl.u32 %v2204, 7
    %v2206 = vsub.s32 6, %v2205
    %v2207 = vrot.slane %v2080, %v2206
    %v2208 = vlaneseq
    %v2209 = vshrl.u32 %v2208, 7
    %v2210 = vsub.s32 0, %v2209
    %v2211 = vrot.slane %v2081, %v2210
    %v2212 = vlaneseq
    %v2213 = vshrl.u32 %v2212, 7
    %v2214 = vsub.s32 2, %v2213
    %v2215 = vrot.slane %v2081, %v2214
    %v2216 = vlaneseq
    %v2217 = vshrl.u32 %v2216, 7
    %v2218 = vsub.s32 4, %v2217
    %v2219 = vrot.slane %v2081, %v2218
    %v2220 = vlaneseq
    %v2221 = vshrl.u32 %v2220, 7
    %v2222 = vsub.s32 6, %v2221
    %v2223 = vrot.slane %v2081, %v2222
    %v2224 = vlaneseq
    %v2225 = vshrl.u32 %v2224, 7
    %v2226 = vsub.s32 0, %v2225
    %v2227 = vrot.slane %v2082, %v2226
    %v2228 = vlaneseq
    %v2229 = vshrl.u32 %v2228, 7
    %v2230 = vsub.s32 2, %v2229
    %v2231 = vrot.slane %v2082, %v2230
    %v2232 = vlaneseq
    %v2233 = vshrl.u32 %v2232, 7
    %v2234 = vsub.s32 4, %v2233
    %v2235 = vrot.slane %v2082, %v2234
    %v2236 = vlaneseq
    %v2237 = vshrl.u32 %v2236, 7
    %v2238 = vsub.s32 6, %v2237
    %v2239 = vrot.slane %v2082, %v2238
    %v2240 = vlaneseq
    %v2241 = vshrl.u32 %v2240, 7
    %v2242 = vsub.s32 0, %v2241
    %v2243 = vrot.slane %v2083, %v2242
    %v2244 = vlaneseq
    %v2245 = vshrl.u32 %v2244, 7
    %v2246 = vsub.s32 2, %v2245
    %v2247 = vrot.slane %v2083, %v2246
    %v2248 = vlaneseq
    %v2249 = vshrl.u32 %v2248, 7
    %v2250 = vsub.s32 4, %v2249
    %v2251 = vrot.slane %v2083, %v2250
    %v2252 = vlaneseq
    %v2253 = vshrl.u32 %v2252, 7
    %v2254 = vsub.s32 6, %v2253
    %v2255 = vrot.slane %v2083, %v2254
    %v2256 = vlaneseq
    %v2257 = vshrl.u32 %v2256, 7
    %v2258 = vsub.s32 0, %v2257
    %v2259 = vrot.slane %v2084, %v2258
    %v2260 = vlaneseq
    %v2261 = vshrl.u32 %v2260, 7
    %v2262 = vsub.s32 2, %v2261
    %v2263 = vrot.slane %v2084, %v2262
    %v2264 = vlaneseq
    %v2265 = vshrl.u32 %v2264, 7
    %v2266 = vsub.s32 4, %v2265
    %v2267 = vrot.slane %v2084, %v2266
    %v2268 = vlaneseq
    %v2269 = vshrl.u32 %v2268, 7
    %v2270 = vsub.s32 6, %v2269
    %v2271 = vrot.slane %v2084, %v2270
    %v2272 = vlaneseq
    %v2273 = vshrl.u32 %v2272, 7
    %v2274 = vsub.s32 0, %v2273
    %v2275 = vrot.slane %v2085, %v2274
    %v2276 = vlaneseq
    %v2277 = vshrl.u32 %v2276, 7
    %v2278 = vsub.s32 2, %v2277
    %v2279 = vrot.slane %v2085, %v2278
    %v2280 = vlaneseq
    %v2281 = vshrl.u32 %v2280, 7
    %v2282 = vsub.s32 4, %v2281
    %v2283 = vrot.slane %v2085, %v2282
    %v2284 = vlaneseq
    %v2285 = vshrl.u32 %v2284, 7
    %v2286 = vsub.s32 6, %v2285
    %v2287 = vrot.slane %v2085, %v2286
    %v2288 = vlaneseq
    %v2289 = vshrl.u32 %v2288, 7
    %v2290 = vsub.s32 0, %v2289
    %v2291 = vrot.slane %v2086, %v2290
    %v2292 = vlaneseq
    %v2293 = vshrl.u32 %v2292, 7
    %v2294 = vsub.s32 2, %v2293
    %v2295 = vrot.slane %v2086, %v2294
    %v2296 = vlaneseq
    %v2297 = vshrl.u32 %v2296, 7
    %v2298 = vsub.s32 4, %v2297
    %v2299 = vrot.slane %v2086, %v2298
    %v2300 = vlaneseq
    %v2301 = vshrl.u32 %v2300, 7
    %v2302 = vsub.s32 6, %v2301
    %v2303 = vrot.slane %v2086, %v2302
    %v2304 = vlaneseq
    %v2305 = vshrl.u32 %v2304, 7
    %v2306 = vsub.s32 0, %v2305
    %v2307 = vrot.slane %v2087, %v2306
    %v2308 = vlaneseq
    %v2309 = vshrl.u32 %v2308, 7
    %v2310 = vsub.s32 2, %v2309
    %v2311 = vrot.slane %v2087, %v2310
    %v2312 = vlaneseq
    %v2313 = vshrl.u32 %v2312, 7
    %v2314 = vsub.s32 4, %v2313
    %v2315 = vrot.slane %v2087, %v2314
    %v2316 = vlaneseq
    %v2317 = vshrl.u32 %v2316, 7
    %v2318 = vsub.s32 6, %v2317
    %v2319 = vrot.slane %v2087, %v2318
    %v2320 = vlaneseq
    %v2321 = vshrl.u32 %v2320, 7
    %v2322 = vsub.s32 0, %v2321
    %v2323 = vrot.slane %v2088, %v2322
    %v2324 = vlaneseq
    %v2325 = vshrl.u32 %v2324, 7
    %v2326 = vsub.s32 2, %v2325
    %v2327 = vrot.slane %v2088, %v2326
    %v2328 = vlaneseq
    %v2329 = vshrl.u32 %v2328, 7
    %v2330 = vsub.s32 4, %v2329
    %v2331 = vrot.slane %v2088, %v2330
    %v2332 = vlaneseq
    %v2333 = vshrl.u32 %v2332, 7
    %v2334 = vsub.s32 6, %v2333
    %v2335 = vrot.slane %v2088, %v2334
    %v2336 = vlaneseq
    %v2337 = vshrl.u32 %v2336, 7
    %v2338 = vsub.s32 0, %v2337
    %v2339 = vrot.slane %v2089, %v2338
    %v2340 = vlaneseq
    %v2341 = vshrl.u32 %v2340, 7
    %v2342 = vsub.s32 2, %v2341
    %v2343 = vrot.slane %v2089, %v2342
    %v2344 = vlaneseq
    %v2345 = vshrl.u32 %v2344, 7
    %v2346 = vsub.s32 4, %v2345
    %v2347 = vrot.slane %v2089, %v2346
    %v2348 = vlaneseq
    %v2349 = vshrl.u32 %v2348, 7
    %v2350 = vsub.s32 6, %v2349
    %v2351 = vrot.slane %v2089, %v2350
    %v2352 = vlaneseq
    %v2353 = vshrl.u32 %v2352, 7
    %v2354 = vsub.s32 0, %v2353
    %v2355 = vrot.slane %v2090, %v2354
    %v2356 = vlaneseq
    %v2357 = vshrl.u32 %v2356, 7
    %v2358 = vsub.s32 2, %v2357
    %v2359 = vrot.slane %v2090, %v2358
    %v2360 = vlaneseq
    %v2361 = vshrl.u32 %v2360, 7
    %v2362 = vsub.s32 4, %v2361
    %v2363 = vrot.slane %v2090, %v2362
    %v2364 = vlaneseq
    %v2365 = vshrl.u32 %v2364, 7
    %v2366 = vsub.s32 6, %v2365
    %v2367 = vrot.slane %v2090, %v2366
    %v2368 = vlaneseq
    %v2369 = vshrl.u32 %v2368, 7
    %v2370 = vsub.s32 0, %v2369
    %v2371 = vrot.slane %v2091, %v2370
    %v2372 = vlaneseq
    %v2373 = vshrl.u32 %v2372, 7
    %v2374 = vsub.s32 2, %v2373
    %v2375 = vrot.slane %v2091, %v2374
    %v2376 = vlaneseq
    %v2377 = vshrl.u32 %v2376, 7
    %v2378 = vsub.s32 4, %v2377
    %v2379 = vrot.slane %v2091, %v2378
    %v2380 = vlaneseq
    %v2381 = vshrl.u32 %v2380, 7
    %v2382 = vsub.s32 6, %v2381
    %v2383 = vrot.slane %v2091, %v2382
    %v2384 = vlaneseq
    %v2385 = vshrl.u32 %v2384, 7
    %v2386 = vsub.s32 0, %v2385
    %v2387 = vrot.slane %v2092, %v2386
    %v2388 = vlaneseq
    %v2389 = vshrl.u32 %v2388, 7
    %v2390 = vsub.s32 2, %v2389
    %v2391 = vrot.slane %v2092, %v2390
    %v2392 = vlaneseq
    %v2393 = vshrl.u32 %v2392, 7
    %v2394 = vsub.s32 4, %v2393
    %v2395 = vrot.slane %v2092, %v2394
    %v2396 = vlaneseq
    %v2397 = vshrl.u32 %v2396, 7
    %v2398 = vsub.s32 6, %v2397
    %v2399 = vrot.slane %v2092, %v2398
    %v2400 = vlaneseq
    %v2401 = vshrl.u32 %v2400, 7
    %v2402 = vsub.s32 0, %v2401
    %v2403 = vrot.slane %v2093, %v2402
    %v2404 = vlaneseq
    %v2405 = vshrl.u32 %v2404, 7
    %v2406 = vsub.s32 2, %v2405
    %v2407 = vrot.slane %v2093, %v2406
    %v2408 = vlaneseq
    %v2409 = vshrl.u32 %v2408, 7
    %v2410 = vsub.s32 4, %v2409
    %v2411 = vrot.slane %v2093, %v2410
    %v2412 = vlaneseq
    %v2413 = vshrl.u32 %v2412, 7
    %v2414 = vsub.s32 6, %v2413
    %v2415 = vrot.slane %v2093, %v2414
    %v2416 = vlaneseq
    %v2417 = vshrl.u32 %v2416, 7
    %v2418 = vsub.s32 0, %v2417
    %v2419 = vrot.slane %v2094, %v2418
    %v2420 = vlaneseq
    %v2421 = vshrl.u32 %v2420, 7
    %v2422 = vsub.s32 2, %v2421
    %v2423 = vrot.slane %v2094, %v2422
    %v2424 = vlaneseq
    %v2425 = vshrl.u32 %v2424, 7
    %v2426 = vsub.s32 4, %v2425
    %v2427 = vrot.slane %v2094, %v2426
    %v2428 = vlaneseq
    %v2429 = vshrl.u32 %v2428, 7
    %v2430 = vsub.s32 6, %v2429
    %v2431 = vrot.slane %v2094, %v2430
    %v2432 = vlaneseq
    %v2433 = vshrl.u32 %v2432, 7
    %v2434 = vsub.s32 0, %v2433
    %v2435 = vrot.slane %v2095, %v2434
    %v2436 = vlaneseq
    %v2437 = vshrl.u32 %v2436, 7
    %v2438 = vsub.s32 2, %v2437
    %v2439 = vrot.slane %v2095, %v2438
    %v2440 = vlaneseq
    %v2441 = vshrl.u32 %v2440, 7
    %v2442 = vsub.s32 4, %v2441
    %v2443 = vrot.slane %v2095, %v2442
    %v2444 = vlaneseq
    %v2445 = vshrl.u32 %v2444, 7
    %v2446 = vsub.s32 6, %v2445
    %v2447 = vrot.slane %v2095, %v2446
    %v2448 = vlaneseq
    %v2449 = vshrl.u32 %v2448, 7
    %v2450 = vsub.s32 0, %v2449
    %v2451 = vrot.slane %v2096, %v2450
    %v2452 = vlaneseq
    %v2453 = vshrl.u32 %v2452, 7
    %v2454 = vsub.s32 2, %v2453
    %v2455 = vrot.slane %v2096, %v2454
    %v2456 = vlaneseq
    %v2457 = vshrl.u32 %v2456, 7
    %v2458 = vsub.s32 4, %v2457
    %v2459 = vrot.slane %v2096, %v2458
    %v2460 = vlaneseq
    %v2461 = vshrl.u32 %v2460, 7
    %v2462 = vsub.s32 6, %v2461
    %v2463 = vrot.slane %v2096, %v2462
    %v2464 = vlaneseq
    %v2465 = vshrl.u32 %v2464, 7
    %v2466 = vsub.s32 0, %v2465
    %v2467 = vrot.slane %v2097, %v2466
    %v2468 = vlaneseq
    %v2469 = vshrl.u32 %v2468, 7
    %v2470 = vsub.s32 2, %v2469
    %v2471 = vrot.slane %v2097, %v2470
    %v2472 = vlaneseq
    %v2473 = vshrl.u32 %v2472, 7
    %v2474 = vsub.s32 4, %v2473
    %v2475 = vrot.slane %v2097, %v2474
    %v2476 = vlaneseq
    %v2477 = vshrl.u32 %v2476, 7
    %v2478 = vsub.s32 6, %v2477
    %v2479 = vrot.slane %v2097, %v2478
    %v2480 = vlaneseq
    %v2481 = vshrl.u32 %v2480, 7
    %v2482 = vsub.s32 0, %v2481
    %v2483 = vrot.slane %v2098, %v2482
    %v2484 = vlaneseq
    %v2485 = vshrl.u32 %v2484, 7
    %v2486 = vsub.s32 2, %v2485
    %v2487 = vrot.slane %v2098, %v2486
    %v2488 = vlaneseq
    %v2489 = vshrl.u32 %v2488, 7
    %v2490 = vsub.s32 4, %v2489
    %v2491 = vrot.slane %v2098, %v2490
    %v2492 = vlaneseq
    %v2493 = vshrl.u32 %v2492, 7
    %v2494 = vsub.s32 6, %v2493
    %v2495 = vrot.slane %v2098, %v2494
    %v2496 = vlaneseq
    %v2497 = vshrl.u32 %v2496, 7
    %v2498 = vsub.s32 0, %v2497
    %v2499 = vrot.slane %v2099, %v2498
    %v2500 = vlaneseq
    %v2501 = vshrl.u32 %v2500, 7
    %v2502 = vsub.s32 2, %v2501
    %v2503 = vrot.slane %v2099, %v2502
    %v2504 = vlaneseq
    %v2505 = vshrl.u32 %v2504, 7
    %v2506 = vsub.s32 4, %v2505
    %v2507 = vrot.slane %v2099, %v2506
    %v2508 = vlaneseq
    %v2509 = vshrl.u32 %v2508, 7
    %v2510 = vsub.s32 6, %v2509
    %v2511 = vrot.slane %v2099, %v2510
    %v2512 = vlaneseq
    %v2513 = vshrl.u32 %v2512, 7
    %v2514 = vsub.s32 0, %v2513
    %v2515 = vrot.slane %v2100, %v2514
    %v2516 = vlaneseq
    %v2517 = vshrl.u32 %v2516, 7
    %v2518 = vsub.s32 2, %v2517
    %v2519 = vrot.slane %v2100, %v2518
    %v2520 = vlaneseq
    %v2521 = vshrl.u32 %v2520, 7
    %v2522 = vsub.s32 4, %v2521
    %v2523 = vrot.slane %v2100, %v2522
    %v2524 = vlaneseq
    %v2525 = vshrl.u32 %v2524, 7
    %v2526 = vsub.s32 6, %v2525
    %v2527 = vrot.slane %v2100, %v2526
    %v2528 = vlaneseq
    %v2529 = vshrl.u32 %v2528, 7
    %v2530 = vsub.s32 0, %v2529
    %v2531 = vrot.slane %v2101, %v2530
    %v2532 = vlaneseq
    %v2533 = vshrl.u32 %v2532, 7
    %v2534 = vsub.s32 2, %v2533
    %v2535 = vrot.slane %v2101, %v2534
    %v2536 = vlaneseq
    %v2537 = vshrl.u32 %v2536, 7
    %v2538 = vsub.s32 4, %v2537
    %v2539 = vrot.slane %v2101, %v2538
    %v2540 = vlaneseq
    %v2541 = vshrl.u32 %v2540, 7
    %v2542 = vsub.s32 6, %v2541
    %v2543 = vrot.slane %v2101, %v2542
    %v2648 = vpack.c.bf16 %v2131, %v2131
    %v2649 = vpack.c.bf16 %v2135, %v2135
    %v2650 = vpack.c.bf16 %v2139, %v2139
    %v2651 = vpack.c.bf16 %v2143, %v2143
    %v2652 = vpack.c.bf16 %v2147, %v2147
    %v2653 = vpack.c.bf16 %v2151, %v2151
    %v2654 = vpack.c.bf16 %v2155, %v2155
    %v2655 = vpack.c.bf16 %v2159, %v2159
    %v2656 = vpack.c.bf16 %v2163, %v2163
    %v2657 = vpack.c.bf16 %v2167, %v2167
    %v2658 = vpack.c.bf16 %v2171, %v2171
    %v2659 = vpack.c.bf16 %v2175, %v2175
    %v2660 = vpack.c.bf16 %v2179, %v2179
    %v2661 = vpack.c.bf16 %v2183, %v2183
    %v2662 = vpack.c.bf16 %v2187, %v2187
    %v2663 = vpack.c.bf16 %v2191, %v2191
    %v2664 = vpack.c.bf16 %v2195, %v2195
    %v2665 = vpack.c.bf16 %v2199, %v2199
    %v2666 = vpack.c.bf16 %v2203, %v2203
    %v2667 = vpack.c.bf16 %v2207, %v2207
    %v2668 = vpack.c.bf16 %v2211, %v2211
    %v2669 = vpack.c.bf16 %v2215, %v2215
    %v2670 = vpack.c.bf16 %v2219, %v2219
    %v2671 = vpack.c.bf16 %v2223, %v2223
    %v2672 = vpack.c.bf16 %v2227, %v2227
    %v2673 = vpack.c.bf16 %v2231, %v2231
    %v2674 = vpack.c.bf16 %v2235, %v2235
    %v2675 = vpack.c.bf16 %v2239, %v2239
    %v2676 = vpack.c.bf16 %v2243, %v2243
    %v2677 = vpack.c.bf16 %v2247, %v2247
    %v2678 = vpack.c.bf16 %v2251, %v2251
    %v2679 = vpack.c.bf16 %v2255, %v2255
    %v2680 = vpack.c.bf16 %v2259, %v2259
    %v2681 = vpack.c.bf16 %v2263, %v2263
    %v2682 = vpack.c.bf16 %v2267, %v2267
    %v2683 = vpack.c.bf16 %v2271, %v2271
    %v2684 = vpack.c.bf16 %v2275, %v2275
    %v2685 = vpack.c.bf16 %v2279, %v2279
    %v2686 = vpack.c.bf16 %v2283, %v2283
    %v2687 = vpack.c.bf16 %v2287, %v2287
    %v2688 = vpack.c.bf16 %v2291, %v2291
    %v2689 = vpack.c.bf16 %v2295, %v2295
    %v2690 = vpack.c.bf16 %v2299, %v2299
    %v2691 = vpack.c.bf16 %v2303, %v2303
    %v2692 = vpack.c.bf16 %v2307, %v2307
    %v2693 = vpack.c.bf16 %v2311, %v2311
    %v2694 = vpack.c.bf16 %v2315, %v2315
    %v2695 = vpack.c.bf16 %v2319, %v2319
    %v2696 = vpack.c.bf16 %v2323, %v2323
    %v2697 = vpack.c.bf16 %v2327, %v2327
    %v2698 = vpack.c.bf16 %v2331, %v2331
    %v2699 = vpack.c.bf16 %v2335, %v2335
    %v2700 = vpack.c.bf16 %v2339, %v2339
    %v2701 = vpack.c.bf16 %v2343, %v2343
    %v2702 = vpack.c.bf16 %v2347, %v2347
    %v2703 = vpack.c.bf16 %v2351, %v2351
    %v2704 = vpack.c.bf16 %v2355, %v2355
    %v2705 = vpack.c.bf16 %v2359, %v2359
    %v2706 = vpack.c.bf16 %v2363, %v2363
    %v2707 = vpack.c.bf16 %v2367, %v2367
    %v2708 = vpack.c.bf16 %v2371, %v2371
    %v2709 = vpack.c.bf16 %v2375, %v2375
    %v2710 = vpack.c.bf16 %v2379, %v2379
    %v2711 = vpack.c.bf16 %v2383, %v2383
    %v2712 = vpack.c.bf16 %v2387, %v2387
    %v2713 = vpack.c.bf16 %v2391, %v2391
    %v2714 = vpack.c.bf16 %v2395, %v2395
    %v2715 = vpack.c.bf16 %v2399, %v2399
    %v2716 = vpack.c.bf16 %v2403, %v2403
    %v2717 = vpack.c.bf16 %v2407, %v2407
    %v2718 = vpack.c.bf16 %v2411, %v2411
    %v2719 = vpack.c.bf16 %v2415, %v2415
    %v2720 = vpack.c.bf16 %v2419, %v2419
    %v2721 = vpack.c.bf16 %v2423, %v2423
    %v2722 = vpack.c.bf16 %v2427, %v2427
    %v2723 = vpack.c.bf16 %v2431, %v2431
    %v2724 = vpack.c.bf16 %v2435, %v2435
    %v2725 = vpack.c.bf16 %v2439, %v2439
    %v2726 = vpack.c.bf16 %v2443, %v2443
    %v2727 = vpack.c.bf16 %v2447, %v2447
    %v2728 = vpack.c.bf16 %v2451, %v2451
    %v2729 = vpack.c.bf16 %v2455, %v2455
    %v2730 = vpack.c.bf16 %v2459, %v2459
    %v2731 = vpack.c.bf16 %v2463, %v2463
    %v2732 = vpack.c.bf16 %v2467, %v2467
    %v2733 = vpack.c.bf16 %v2471, %v2471
    %v2734 = vpack.c.bf16 %v2475, %v2475
    %v2735 = vpack.c.bf16 %v2479, %v2479
    %v2736 = vpack.c.bf16 %v2483, %v2483
    %v2737 = vpack.c.bf16 %v2487, %v2487
    %v2738 = vpack.c.bf16 %v2491, %v2491
    %v2739 = vpack.c.bf16 %v2495, %v2495
    %v2740 = vpack.c.bf16 %v2499, %v2499
    %v2741 = vpack.c.bf16 %v2503, %v2503
    %v2742 = vpack.c.bf16 %v2507, %v2507
    %v2743 = vpack.c.bf16 %v2511, %v2511
    %v2744 = vpack.c.bf16 %v2515, %v2515
    %v2745 = vpack.c.bf16 %v2519, %v2519
    %v2746 = vpack.c.bf16 %v2523, %v2523
    %v2747 = vpack.c.bf16 %v2527, %v2527
    %v2748 = vpack.c.bf16 %v2531, %v2531
    %v2749 = vpack.c.bf16 %v2535, %v2535
    %v2750 = vpack.c.bf16 %v2539, %v2539
    %v2751 = vpack.c.bf16 %v2543, %v2543
    %v2752 = vld [vmem:[#allocation8] sm:$0x3f]
    %v2841 = vunpack.c.l.b16 %v2648
    %v2842 = vunpack.c.l.b16 %v2649
    %v2843 = vunpack.c.l.b16 %v2650
    %v2844 = vunpack.c.l.b16 %v2651
    %v2845 = vunpack.c.l.b16 %v2652
    %v2846 = vunpack.c.l.b16 %v2653
    %v2847 = vunpack.c.l.b16 %v2654
    %v2848 = vunpack.c.l.b16 %v2655
    %v2849 = vunpack.c.l.b16 %v2656
    %v2850 = vunpack.c.l.b16 %v2657
    %v2851 = vunpack.c.l.b16 %v2658
    %v2852 = vunpack.c.l.b16 %v2659
    %v2853 = vunpack.c.l.b16 %v2660
    %v2854 = vunpack.c.l.b16 %v2661
    %v2855 = vunpack.c.l.b16 %v2662
    %v2856 = vunpack.c.l.b16 %v2663
    %v2857 = vunpack.c.l.b16 %v2664
    %v2858 = vunpack.c.l.b16 %v2665
    %v2859 = vunpack.c.l.b16 %v2666
    %v2860 = vunpack.c.l.b16 %v2667
    %v2861 = vunpack.c.l.b16 %v2668
    %v2862 = vunpack.c.l.b16 %v2669
    %v2863 = vunpack.c.l.b16 %v2670
    %v2864 = vunpack.c.l.b16 %v2671
    %v2865 = vunpack.c.l.b16 %v2672
    %v2866 = vunpack.c.l.b16 %v2673
    %v2867 = vunpack.c.l.b16 %v2674
    %v2868 = vunpack.c.l.b16 %v2675
    %v2869 = vunpack.c.l.b16 %v2676
    %v2870 = vunpack.c.l.b16 %v2677
    %v2871 = vunpack.c.l.b16 %v2678
    %v2872 = vunpack.c.l.b16 %v2679
    %v2873 = vunpack.c.l.b16 %v2680
    %v2874 = vunpack.c.l.b16 %v2681
    %v2875 = vunpack.c.l.b16 %v2682
    %v2876 = vunpack.c.l.b16 %v2683
    %v2877 = vunpack.c.l.b16 %v2684
    %v2878 = vunpack.c.l.b16 %v2685
    %v2879 = vunpack.c.l.b16 %v2686
    %v2880 = vunpack.c.l.b16 %v2687
    %v2881 = vunpack.c.l.b16 %v2688
    %v2882 = vunpack.c.l.b16 %v2689
    %v2883 = vunpack.c.l.b16 %v2690
    %v2884 = vunpack.c.l.b16 %v2691
    %v2885 = vunpack.c.l.b16 %v2700
    %v2886 = vunpack.c.l.b16 %v2701
    %v2887 = vunpack.c.l.b16 %v2702
    %v2888 = vunpack.c.l.b16 %v2703
    %v2889 = vunpack.c.l.b16 %v2704
    %v2890 = vunpack.c.l.b16 %v2705
    %v2891 = vunpack.c.l.b16 %v2706
    %v2892 = vunpack.c.l.b16 %v2707
    %v2893 = vunpack.c.l.b16 %v2708
    %v2894 = vunpack.c.l.b16 %v2709
    %v2895 = vunpack.c.l.b16 %v2710
    %v2896 = vunpack.c.l.b16 %v2711
    %v2897 = vunpack.c.l.b16 %v2712
    %v2898 = vunpack.c.l.b16 %v2713
    %v2899 = vunpack.c.l.b16 %v2714
    %v2900 = vunpack.c.l.b16 %v2715
    %v2901 = vunpack.c.l.b16 %v2716
    %v2902 = vunpack.c.l.b16 %v2717
    %v2903 = vunpack.c.l.b16 %v2718
    %v2904 = vunpack.c.l.b16 %v2719
    %v2905 = vunpack.c.l.b16 %v2720
    %v2906 = vunpack.c.l.b16 %v2721
    %v2907 = vunpack.c.l.b16 %v2722
    %v2908 = vunpack.c.l.b16 %v2723
    %v2909 = vunpack.c.l.b16 %v2724
    %v2910 = vunpack.c.l.b16 %v2725
    %v2911 = vunpack.c.l.b16 %v2726
    %v2912 = vunpack.c.l.b16 %v2727
    %v2913 = vunpack.c.l.b16 %v2728
    %v2914 = vunpack.c.l.b16 %v2729
    %v2915 = vunpack.c.l.b16 %v2730
    %v2916 = vunpack.c.l.b16 %v2731
    %v2917 = vunpack.c.l.b16 %v2732
    %v2918 = vunpack.c.l.b16 %v2733
    %v2919 = vunpack.c.l.b16 %v2734
    %v2920 = vunpack.c.l.b16 %v2735
    %v2921 = vunpack.c.l.b16 %v2736
    %v2922 = vunpack.c.l.b16 %v2737
    %v2923 = vunpack.c.l.b16 %v2738
    %v2924 = vunpack.c.l.b16 %v2739
    %v2925 = vunpack.c.l.b16 %v2740
    %v2926 = vunpack.c.l.b16 %v2741
    %v2927 = vunpack.c.l.b16 %v2742
    %v2928 = vunpack.c.l.b16 %v2743
    %v2929 = vrot.slane %v2845, 7
    %vm2930 = vcmask 1041409
    %v2931 = vsel %vm2930, %v2929, %v2841
    %v2932 = vrot.slane %v2849, 6
    %vm2933 = vcmask 1042434
    %v2934 = vsel %vm2933, %v2932, %v2931
    %v2935 = vrot.slane %v2853, 5
    %vm2936 = vcmask 1043459
    %v2937 = vsel %vm2936, %v2935, %v2934
    %v2938 = vrot.slane %v2857, 4
    %vm2939 = vcmask 1044484
    %v2940 = vsel %vm2939, %v2938, %v2937
    %v2941 = vrot.slane %v2861, 3
    %vm2942 = vcmask 1045509
    %v2943 = vsel %vm2942, %v2941, %v2940
    %v2944 = vrot.slane %v2865, 2
    %vm2945 = vcmask 1046534
    %v2946 = vsel %vm2945, %v2944, %v2943
    %v2947 = vrot.slane %v2869, 1
    %vm2948 = vcmask 1047559
    %v2949 = vsel %vm2948, %v2947, %v2946
    %v2950 = vrot.slane %v2846, 7
    %v2951 = vsel %vm2930, %v2950, %v2842
    %v2952 = vrot.slane %v2850, 6
    %v2953 = vsel %vm2933, %v2952, %v2951
    %v2954 = vrot.slane %v2854, 5
    %v2955 = vsel %vm2936, %v2954, %v2953
    %v2956 = vrot.slane %v2858, 4
    %v2957 = vsel %vm2939, %v2956, %v2955
    %v2958 = vrot.slane %v2862, 3
    %v2959 = vsel %vm2942, %v2958, %v2957
    %v2960 = vrot.slane %v2866, 2
    %v2961 = vsel %vm2945, %v2960, %v2959
    %v2962 = vrot.slane %v2870, 1
    %v2963 = vsel %vm2948, %v2962, %v2961
    %v2964 = vrot.slane %v2847, 7
    %v2965 = vsel %vm2930, %v2964, %v2843
    %v2966 = vrot.slane %v2851, 6
    %v2967 = vsel %vm2933, %v2966, %v2965
    %v2968 = vrot.slane %v2855, 5
    %v2969 = vsel %vm2936, %v2968, %v2967
    %v2970 = vrot.slane %v2859, 4
    %v2971 = vsel %vm2939, %v2970, %v2969
    %v2972 = vrot.slane %v2863, 3
    %v2973 = vsel %vm2942, %v2972, %v2971
    %v2974 = vrot.slane %v2867, 2
    %v2975 = vsel %vm2945, %v2974, %v2973
    %v2976 = vrot.slane %v2871, 1
    %v2977 = vsel %vm2948, %v2976, %v2975
    %v2978 = vrot.slane %v2848, 7
    %v2979 = vsel %vm2930, %v2978, %v2844
    %v2980 = vrot.slane %v2852, 6
    %v2981 = vsel %vm2933, %v2980, %v2979
    %v2982 = vrot.slane %v2856, 5
    %v2983 = vsel %vm2936, %v2982, %v2981
    %v2984 = vrot.slane %v2860, 4
    %v2985 = vsel %vm2939, %v2984, %v2983
    %v2986 = vrot.slane %v2864, 3
    %v2987 = vsel %vm2942, %v2986, %v2985
    %v2988 = vrot.slane %v2868, 2
    %v2989 = vsel %vm2945, %v2988, %v2987
    %v2990 = vrot.slane %v2872, 1
    %v2991 = vsel %vm2948, %v2990, %v2989
    %v2992 = vrot.slane %v2877, 7
    %v2993 = vsel %vm2930, %v2992, %v2873
    %v2994 = vrot.slane %v2881, 6
    %v2995 = vsel %vm2933, %v2994, %v2993
    %v2996 = vrot.slane %v2878, 7
    %v2997 = vsel %vm2930, %v2996, %v2874
    %v2998 = vrot.slane %v2882, 6
    %v2999 = vsel %vm2933, %v2998, %v2997
    %v3000 = vrot.slane %v2879, 7
    %v3001 = vsel %vm2930, %v3000, %v2875
    %v3002 = vrot.slane %v2883, 6
    %v3003 = vsel %vm2933, %v3002, %v3001
    %v3004 = vrot.slane %v2880, 7
    %v3005 = vsel %vm2930, %v3004, %v2876
    %v3006 = vrot.slane %v2884, 6
    %v3007 = vsel %vm2933, %v3006, %v3005
    %v3008 = vrot.slane %v2889, 7
    %v3009 = vsel %vm2930, %v3008, %v2885
    %v3010 = vrot.slane %v2893, 6
    %v3011 = vsel %vm2933, %v3010, %v3009
    %v3012 = vrot.slane %v2897, 5
    %v3013 = vsel %vm2936, %v3012, %v3011
    %v3014 = vrot.slane %v2901, 4
    %v3015 = vsel %vm2939, %v3014, %v3013
    %v3016 = vrot.slane %v2905, 3
    %v3017 = vsel %vm2942, %v3016, %v3015
    %v3018 = vrot.slane %v2909, 2
    %v3019 = vsel %vm2945, %v3018, %v3017
    %v3020 = vrot.slane %v2913, 1
    %v3021 = vsel %vm2948, %v3020, %v3019
    %v3022 = vrot.slane %v2890, 7
    %v3023 = vsel %vm2930, %v3022, %v2886
    %v3024 = vrot.slane %v2894, 6
    %v3025 = vsel %vm2933, %v3024, %v3023
    %v3026 = vrot.slane %v2898, 5
    %v3027 = vsel %vm2936, %v3026, %v3025
    %v3028 = vrot.slane %v2902, 4
    %v3029 = vsel %vm2939, %v3028, %v3027
    %v3030 = vrot.slane %v2906, 3
    %v3031 = vsel %vm2942, %v3030, %v3029
    %v3032 = vrot.slane %v2910, 2
    %v3033 = vsel %vm2945, %v3032, %v3031
    %v3034 = vrot.slane %v2914, 1
    %v3035 = vsel %vm2948, %v3034, %v3033
    %v3036 = vrot.slane %v2891, 7
    %v3037 = vsel %vm2930, %v3036, %v2887
    %v3038 = vrot.slane %v2895, 6
    %v3039 = vsel %vm2933, %v3038, %v3037
    %v3040 = vrot.slane %v2899, 5
    %v3041 = vsel %vm2936, %v3040, %v3039
    %v3042 = vrot.slane %v2903, 4
    %v3043 = vsel %vm2939, %v3042, %v3041
    %v3044 = vrot.slane %v2907, 3
    %v3045 = vsel %vm2942, %v3044, %v3043
    %v3046 = vrot.slane %v2911, 2
    %v3047 = vsel %vm2945, %v3046, %v3045
    %v3048 = vrot.slane %v2915, 1
    %v3049 = vsel %vm2948, %v3048, %v3047
    %v3050 = vrot.slane %v2892, 7
    %v3051 = vsel %vm2930, %v3050, %v2888
    %v3052 = vrot.slane %v2896, 6
    %v3053 = vsel %vm2933, %v3052, %v3051
    %v3054 = vrot.slane %v2900, 5
    %v3055 = vsel %vm2936, %v3054, %v3053
    %v3056 = vrot.slane %v2904, 4
    %v3057 = vsel %vm2939, %v3056, %v3055
    %v3058 = vrot.slane %v2908, 3
    %v3059 = vsel %vm2942, %v3058, %v3057
    %v3060 = vrot.slane %v2912, 2
    %v3061 = vsel %vm2945, %v3060, %v3059
    %v3062 = vrot.slane %v2916, 1
    %v3063 = vsel %vm2948, %v3062, %v3061
    %v3064 = vrot.slane %v2921, 7
    %v3065 = vsel %vm2930, %v3064, %v2917
    %v3066 = vrot.slane %v2925, 6
    %v3067 = vsel %vm2933, %v3066, %v3065
    %v3068 = vrot.slane %v2922, 7
    %v3069 = vsel %vm2930, %v3068, %v2918
    %v3070 = vrot.slane %v2926, 6
    %v3071 = vsel %vm2933, %v3070, %v3069
    %v3072 = vrot.slane %v2923, 7
    %v3073 = vsel %vm2930, %v3072, %v2919
    %v3074 = vrot.slane %v2927, 6
    %v3075 = vsel %vm2933, %v3074, %v3073
    %v3076 = vrot.slane %v2924, 7
    %v3077 = vsel %vm2930, %v3076, %v2920
    %v3078 = vrot.slane %v2928, 6
    %v3079 = vsel %vm2933, %v3078, %v3077
    %v3080 = vpack.c.b16 %v2995, %v2949
    %v3081 = vpack.c.b16 %v2999, %v2963
    %v3082 = vpack.c.b16 %v3003, %v2977
    %v3083 = vpack.c.b16 %v3007, %v2991
    %v3084 = vpack.c.b16 %v3067, %v3021
    %v3085 = vpack.c.b16 %v3071, %v3035
    %v3086 = vpack.c.b16 %v3075, %v3049
    %v3087 = vpack.c.b16 %v3079, %v3063
    %v3096 = vunpack.c.l.b16 %v2692
    %v3097 = vunpack.c.l.b16 %v2693
    %v3098 = vunpack.c.l.b16 %v2694
    %v3099 = vunpack.c.l.b16 %v2695
    %v3100 = vunpack.c.l.b16 %v2744
    %v3101 = vunpack.c.l.b16 %v2745
    %v3102 = vunpack.c.l.b16 %v2746
    %v3103 = vunpack.c.l.b16 %v2747
    %v3104 = vrot.slane %v2849, 7
    %v3105 = vsel %vm2930, %v3104, %v2845
    %v3106 = vrot.slane %v2853, 6
    %v3107 = vsel %vm2933, %v3106, %v3105
    %v3108 = vrot.slane %v2857, 5
    %v3109 = vsel %vm2936, %v3108, %v3107
    %v3110 = vrot.slane %v2861, 4
    %v3111 = vsel %vm2939, %v3110, %v3109
    %v3112 = vrot.slane %v2865, 3
    %v3113 = vsel %vm2942, %v3112, %v3111
    %v3114 = vrot.slane %v2869, 2
    %v3115 = vsel %vm2945, %v3114, %v3113
    %v3116 = vrot.slane %v2873, 1
    %v3117 = vsel %vm2948, %v3116, %v3115
    %v3118 = vrot.slane %v2850, 7
    %v3119 = vsel %vm2930, %v3118, %v2846
    %v3120 = vrot.slane %v2854, 6
    %v3121 = vsel %vm2933, %v3120, %v3119
    %v3122 = vrot.slane %v2858, 5
    %v3123 = vsel %vm2936, %v3122, %v3121
    %v3124 = vrot.slane %v2862, 4
    %v3125 = vsel %vm2939, %v3124, %v3123
    %v3126 = vrot.slane %v2866, 3
    %v3127 = vsel %vm2942, %v3126, %v3125
    %v3128 = vrot.slane %v2870, 2
    %v3129 = vsel %vm2945, %v3128, %v3127
    %v3130 = vrot.slane %v2874, 1
    %v3131 = vsel %vm2948, %v3130, %v3129
    %v3132 = vrot.slane %v2851, 7
    %v3133 = vsel %vm2930, %v3132, %v2847
    %v3134 = vrot.slane %v2855, 6
    %v3135 = vsel %vm2933, %v3134, %v3133
    %v3136 = vrot.slane %v2859, 5
    %v3137 = vsel %vm2936, %v3136, %v3135
    %v3138 = vrot.slane %v2863, 4
    %v3139 = vsel %vm2939, %v3138, %v3137
    %v3140 = vrot.slane %v2867, 3
    %v3141 = vsel %vm2942, %v3140, %v3139
    %v3142 = vrot.slane %v2871, 2
    %v3143 = vsel %vm2945, %v3142, %v3141
    %v3144 = vrot.slane %v2875, 1
    %v3145 = vsel %vm2948, %v3144, %v3143
    %v3146 = vrot.slane %v2852, 7
    %v3147 = vsel %vm2930, %v3146, %v2848
    %v3148 = vrot.slane %v2856, 6
    %v3149 = vsel %vm2933, %v3148, %v3147
    %v3150 = vrot.slane %v2860, 5
    %v3151 = vsel %vm2936, %v3150, %v3149
    %v3152 = vrot.slane %v2864, 4
    %v3153 = vsel %vm2939, %v3152, %v3151
    %v3154 = vrot.slane %v2868, 3
    %v3155 = vsel %vm2942, %v3154, %v3153
    %v3156 = vrot.slane %v2872, 2
    %v3157 = vsel %vm2945, %v3156, %v3155
    %v3158 = vrot.slane %v2876, 1
    %v3159 = vsel %vm2948, %v3158, %v3157
    %v3160 = vrot.slane %v2881, 7
    %v3161 = vsel %vm2930, %v3160, %v2877
    %v3162 = vrot.slane %v3096, 6
    %v3163 = vsel %vm2933, %v3162, %v3161
    %v3164 = vrot.slane %v2882, 7
    %v3165 = vsel %vm2930, %v3164, %v2878
    %v3166 = vrot.slane %v3097, 6
    %v3167 = vsel %vm2933, %v3166, %v3165
    %v3168 = vrot.slane %v2883, 7
    %v3169 = vsel %vm2930, %v3168, %v2879
    %v3170 = vrot.slane %v3098, 6
    %v3171 = vsel %vm2933, %v3170, %v3169
    %v3172 = vrot.slane %v2884, 7
    %v3173 = vsel %vm2930, %v3172, %v2880
    %v3174 = vrot.slane %v3099, 6
    %v3175 = vsel %vm2933, %v3174, %v3173
    %v3176 = vrot.slane %v2893, 7
    %v3177 = vsel %vm2930, %v3176, %v2889
    %v3178 = vrot.slane %v2897, 6
    %v3179 = vsel %vm2933, %v3178, %v3177
    %v3180 = vrot.slane %v2901, 5
    %v3181 = vsel %vm2936, %v3180, %v3179
    %v3182 = vrot.slane %v2905, 4
    %v3183 = vsel %vm2939, %v3182, %v3181
    %v3184 = vrot.slane %v2909, 3
    %v3185 = vsel %vm2942, %v3184, %v3183
    %v3186 = vrot.slane %v2913, 2
    %v3187 = vsel %vm2945, %v3186, %v3185
    %v3188 = vrot.slane %v2917, 1
    %v3189 = vsel %vm2948, %v3188, %v3187
    %v3190 = vrot.slane %v2894, 7
    %v3191 = vsel %vm2930, %v3190, %v2890
    %v3192 = vrot.slane %v2898, 6
    %v3193 = vsel %vm2933, %v3192, %v3191
    %v3194 = vrot.slane %v2902, 5
    %v3195 = vsel %vm2936, %v3194, %v3193
    %v3196 = vrot.slane %v2906, 4
    %v3197 = vsel %vm2939, %v3196, %v3195
    %v3198 = vrot.slane %v2910, 3
    %v3199 = vsel %vm2942, %v3198, %v3197
    %v3200 = vrot.slane %v2914, 2
    %v3201 = vsel %vm2945, %v3200, %v3199
    %v3202 = vrot.slane %v2918, 1
    %v3203 = vsel %vm2948, %v3202, %v3201
    %v3204 = vrot.slane %v2895, 7
    %v3205 = vsel %vm2930, %v3204, %v2891
    %v3206 = vrot.slane %v2899, 6
    %v3207 = vsel %vm2933, %v3206, %v3205
    %v3208 = vrot.slane %v2903, 5
    %v3209 = vsel %vm2936, %v3208, %v3207
    %v3210 = vrot.slane %v2907, 4
    %v3211 = vsel %vm2939, %v3210, %v3209
    %v3212 = vrot.slane %v2911, 3
    %v3213 = vsel %vm2942, %v3212, %v3211
    %v3214 = vrot.slane %v2915, 2
    %v3215 = vsel %vm2945, %v3214, %v3213
    %v3216 = vrot.slane %v2919, 1
    %v3217 = vsel %vm2948, %v3216, %v3215
    %v3218 = vrot.slane %v2896, 7
    %v3219 = vsel %vm2930, %v3218, %v2892
    %v3220 = vrot.slane %v2900, 6
    %v3221 = vsel %vm2933, %v3220, %v3219
    %v3222 = vrot.slane %v2904, 5
    %v3223 = vsel %vm2936, %v3222, %v3221
    %v3224 = vrot.slane %v2908, 4
    %v3225 = vsel %vm2939, %v3224, %v3223
    %v3226 = vrot.slane %v2912, 3
    %v3227 = vsel %vm2942, %v3226, %v3225
    %v3228 = vrot.slane %v2916, 2
    %v3229 = vsel %vm2945, %v3228, %v3227
    %v3230 = vrot.slane %v2920, 1
    %v3231 = vsel %vm2948, %v3230, %v3229
    %v3232 = vrot.slane %v2925, 7
    %v3233 = vsel %vm2930, %v3232, %v2921
    %v3234 = vrot.slane %v3100, 6
    %v3235 = vsel %vm2933, %v3234, %v3233
    %v3236 = vrot.slane %v2926, 7
    %v3237 = vsel %vm2930, %v3236, %v2922
    %v3238 = vrot.slane %v3101, 6
    %v3239 = vsel %vm2933, %v3238, %v3237
    %v3240 = vrot.slane %v2927, 7
    %v3241 = vsel %vm2930, %v3240, %v2923
    %v3242 = vrot.slane %v3102, 6
    %v3243 = vsel %vm2933, %v3242, %v3241
    %v3244 = vrot.slane %v2928, 7
    %v3245 = vsel %vm2930, %v3244, %v2924
    %v3246 = vrot.slane %v3103, 6
    %v3247 = vsel %vm2933, %v3246, %v3245
    %v3248 = vpack.c.b16 %v3163, %v3117
    %v3249 = vpack.c.b16 %v3167, %v3131
    %v3250 = vpack.c.b16 %v3171, %v3145
    %v3251 = vpack.c.b16 %v3175, %v3159
    %v3252 = vpack.c.b16 %v3235, %v3189
    %v3253 = vpack.c.b16 %v3239, %v3203
    %v3254 = vpack.c.b16 %v3243, %v3217
    %v3255 = vpack.c.b16 %v3247, %v3231
    %v3264 = vunpack.c.l.b16 %v2696
    %v3265 = vunpack.c.l.b16 %v2697
    %v3266 = vunpack.c.l.b16 %v2698
    %v3267 = vunpack.c.l.b16 %v2699
    %v3268 = vunpack.c.l.b16 %v2748
    %v3269 = vunpack.c.l.b16 %v2749
    %v3270 = vunpack.c.l.b16 %v2750
    %v3271 = vunpack.c.l.b16 %v2751
    %v3272 = vrot.slane %v2853, 7
    %v3273 = vsel %vm2930, %v3272, %v2849
    %v3274 = vrot.slane %v2857, 6
    %v3275 = vsel %vm2933, %v3274, %v3273
    %v3276 = vrot.slane %v2861, 5
    %v3277 = vsel %vm2936, %v3276, %v3275
    %v3278 = vrot.slane %v2865, 4
    %v3279 = vsel %vm2939, %v3278, %v3277
    %v3280 = vrot.slane %v2869, 3
    %v3281 = vsel %vm2942, %v3280, %v3279
    %v3282 = vrot.slane %v2873, 2
    %v3283 = vsel %vm2945, %v3282, %v3281
    %v3284 = vrot.slane %v2877, 1
    %v3285 = vsel %vm2948, %v3284, %v3283
    %v3286 = vrot.slane %v2854, 7
    %v3287 = vsel %vm2930, %v3286, %v2850
    %v3288 = vrot.slane %v2858, 6
    %v3289 = vsel %vm2933, %v3288, %v3287
    %v3290 = vrot.slane %v2862, 5
    %v3291 = vsel %vm2936, %v3290, %v3289
    %v3292 = vrot.slane %v2866, 4
    %v3293 = vsel %vm2939, %v3292, %v3291
    %v3294 = vrot.slane %v2870, 3
    %v3295 = vsel %vm2942, %v3294, %v3293
    %v3296 = vrot.slane %v2874, 2
    %v3297 = vsel %vm2945, %v3296, %v3295
    %v3298 = vrot.slane %v2878, 1
    %v3299 = vsel %vm2948, %v3298, %v3297
    %v3300 = vrot.slane %v2855, 7
    %v3301 = vsel %vm2930, %v3300, %v2851
    %v3302 = vrot.slane %v2859, 6
    %v3303 = vsel %vm2933, %v3302, %v3301
    %v3304 = vrot.slane %v2863, 5
    %v3305 = vsel %vm2936, %v3304, %v3303
    %v3306 = vrot.slane %v2867, 4
    %v3307 = vsel %vm2939, %v3306, %v3305
    %v3308 = vrot.slane %v2871, 3
    %v3309 = vsel %vm2942, %v3308, %v3307
    %v3310 = vrot.slane %v2875, 2
    %v3311 = vsel %vm2945, %v3310, %v3309
    %v3312 = vrot.slane %v2879, 1
    %v3313 = vsel %vm2948, %v3312, %v3311
    %v3314 = vrot.slane %v2856, 7
    %v3315 = vsel %vm2930, %v3314, %v2852
    %v3316 = vrot.slane %v2860, 6
    %v3317 = vsel %vm2933, %v3316, %v3315
    %v3318 = vrot.slane %v2864, 5
    %v3319 = vsel %vm2936, %v3318, %v3317
    %v3320 = vrot.slane %v2868, 4
    %v3321 = vsel %vm2939, %v3320, %v3319
    %v3322 = vrot.slane %v2872, 3
    %v3323 = vsel %vm2942, %v3322, %v3321
    %v3324 = vrot.slane %v2876, 2
    %v3325 = vsel %vm2945, %v3324, %v3323
    %v3326 = vrot.slane %v2880, 1
    %v3327 = vsel %vm2948, %v3326, %v3325
    %v3328 = vrot.slane %v3096, 7
    %v3329 = vsel %vm2930, %v3328, %v2881
    %v3330 = vrot.slane %v3264, 6
    %v3331 = vsel %vm2933, %v3330, %v3329
    %v3332 = vrot.slane %v3097, 7
    %v3333 = vsel %vm2930, %v3332, %v2882
    %v3334 = vrot.slane %v3265, 6
    %v3335 = vsel %vm2933, %v3334, %v3333
    %v3336 = vrot.slane %v3098, 7
    %v3337 = vsel %vm2930, %v3336, %v2883
    %v3338 = vrot.slane %v3266, 6
    %v3339 = vsel %vm2933, %v3338, %v3337
    %v3340 = vrot.slane %v3099, 7
    %v3341 = vsel %vm2930, %v3340, %v2884
    %v3342 = vrot.slane %v3267, 6
    %v3343 = vsel %vm2933, %v3342, %v3341
    %v3344 = vrot.slane %v2897, 7
    %v3345 = vsel %vm2930, %v3344, %v2893
    %v3346 = vrot.slane %v2901, 6
    %v3347 = vsel %vm2933, %v3346, %v3345
    %v3348 = vrot.slane %v2905, 5
    %v3349 = vsel %vm2936, %v3348, %v3347
    %v3350 = vrot.slane %v2909, 4
    %v3351 = vsel %vm2939, %v3350, %v3349
    %v3352 = vrot.slane %v2913, 3
    %v3353 = vsel %vm2942, %v3352, %v3351
    %v3354 = vrot.slane %v2917, 2
    %v3355 = vsel %vm2945, %v3354, %v3353
    %v3356 = vrot.slane %v2921, 1
    %v3357 = vsel %vm2948, %v3356, %v3355
    %v3358 = vrot.slane %v2898, 7
    %v3359 = vsel %vm2930, %v3358, %v2894
    %v3360 = vrot.slane %v2902, 6
    %v3361 = vsel %vm2933, %v3360, %v3359
    %v3362 = vrot.slane %v2906, 5
    %v3363 = vsel %vm2936, %v3362, %v3361
    %v3364 = vrot.slane %v2910, 4
    %v3365 = vsel %vm2939, %v3364, %v3363
    %v3366 = vrot.slane %v2914, 3
    %v3367 = vsel %vm2942, %v3366, %v3365
    %v3368 = vrot.slane %v2918, 2
    %v3369 = vsel %vm2945, %v3368, %v3367
    %v3370 = vrot.slane %v2922, 1
    %v3371 = vsel %vm2948, %v3370, %v3369
    %v3372 = vrot.slane %v2899, 7
    %v3373 = vsel %vm2930, %v3372, %v2895
    %v3374 = vrot.slane %v2903, 6
    %v3375 = vsel %vm2933, %v3374, %v3373
    %v3376 = vrot.slane %v2907, 5
    %v3377 = vsel %vm2936, %v3376, %v3375
    %v3378 = vrot.slane %v2911, 4
    %v3379 = vsel %vm2939, %v3378, %v3377
    %v3380 = vrot.slane %v2915, 3
    %v3381 = vsel %vm2942, %v3380, %v3379
    %v3382 = vrot.slane %v2919, 2
    %v3383 = vsel %vm2945, %v3382, %v3381
    %v3384 = vrot.slane %v2923, 1
    %v3385 = vsel %vm2948, %v3384, %v3383
    %v3386 = vrot.slane %v2900, 7
    %v3387 = vsel %vm2930, %v3386, %v2896
    %v3388 = vrot.slane %v2904, 6
    %v3389 = vsel %vm2933, %v3388, %v3387
    %v3390 = vrot.slane %v2908, 5
    %v3391 = vsel %vm2936, %v3390, %v3389
    %v3392 = vrot.slane %v2912, 4
    %v3393 = vsel %vm2939, %v3392, %v3391
    %v3394 = vrot.slane %v2916, 3
    %v3395 = vsel %vm2942, %v3394, %v3393
    %v3396 = vrot.slane %v2920, 2
    %v3397 = vsel %vm2945, %v3396, %v3395
    %v3398 = vrot.slane %v2924, 1
    %v3399 = vsel %vm2948, %v3398, %v3397
    %v3400 = vrot.slane %v3100, 7
    %v3401 = vsel %vm2930, %v3400, %v2925
    %v3402 = vrot.slane %v3268, 6
    %v3403 = vsel %vm2933, %v3402, %v3401
    %v3404 = vrot.slane %v3101, 7
    %v3405 = vsel %vm2930, %v3404, %v2926
    %v3406 = vrot.slane %v3269, 6
    %v3407 = vsel %vm2933, %v3406, %v3405
    %v3408 = vrot.slane %v3102, 7
    %v3409 = vsel %vm2930, %v3408, %v2927
    %v3410 = vrot.slane %v3270, 6
    %v3411 = vsel %vm2933, %v3410, %v3409
    %v3412 = vrot.slane %v3103, 7
    %v3413 = vsel %vm2930, %v3412, %v2928
    %v3414 = vrot.slane %v3271, 6
    %v3415 = vsel %vm2933, %v3414, %v3413
    %v3416 = vpack.c.b16 %v3331, %v3285
    %v3417 = vpack.c.b16 %v3335, %v3299
    %v3418 = vpack.c.b16 %v3339, %v3313
    %v3419 = vpack.c.b16 %v3343, %v3327
    %v3420 = vpack.c.b16 %v3403, %v3357
    %v3421 = vpack.c.b16 %v3407, %v3371
    %v3422 = vpack.c.b16 %v3411, %v3385
    %v3423 = vpack.c.b16 %v3415, %v3399
    %v3424 = vcombine.low %v3080, %v3081
    %v3425 = vcombine.high %v3080, %v3081
    %v3426 = vcombine.low %v3082, %v3083
    %v3427 = vcombine.high %v3082, %v3083
    %v3428 = vcombine.low %v3248, %v3249
    %v3429 = vcombine.high %v3248, %v3249
    %v3430 = vcombine.low %v3250, %v3251
    %v3431 = vcombine.high %v3250, %v3251
    %v3433 = vunpack.c.l.s4 1966171168
    %v3434 = vunpack.c.0.s8 %v3433
    %v3435 = vlaneseq
    %v3436 = vshrl.u32 %v3435, 7
    %v3437 = vsub.s32 %v3434, %v3436
    %v3438 = vrot.slane %v3424, %v3437
    %v3440 = vunpack.c.l.s4 1966171168
    %v3441 = vunpack.c.0.s8 %v3440
    %v3442 = vlaneseq
    %v3443 = vshrl.u32 %v3442, 7
    %v3444 = vsub.s32 %v3441, %v3443
    %v3445 = vrot.slane %v3425, %v3444
    %v3447 = vunpack.c.l.s4 1966171168
    %v3448 = vunpack.c.0.s8 %v3447
    %v3449 = vlaneseq
    %v3450 = vshrl.u32 %v3449, 7
    %v3451 = vsub.s32 %v3448, %v3450
    %v3452 = vrot.slane %v3426, %v3451
    %v3454 = vunpack.c.l.s4 1966171168
    %v3455 = vunpack.c.0.s8 %v3454
    %v3456 = vlaneseq
    %v3457 = vshrl.u32 %v3456, 7
    %v3458 = vsub.s32 %v3455, %v3457
    %v3459 = vrot.slane %v3427, %v3458
    %v3461 = vunpack.c.l.s4 1966171168
    %v3462 = vunpack.c.0.s8 %v3461
    %v3463 = vlaneseq
    %v3464 = vshrl.u32 %v3463, 7
    %v3465 = vsub.s32 %v3462, %v3464
    %v3466 = vrot.slane %v3428, %v3465
    %v3468 = vunpack.c.l.s4 1966171168
    %v3469 = vunpack.c.0.s8 %v3468
    %v3470 = vlaneseq
    %v3471 = vshrl.u32 %v3470, 7
    %v3472 = vsub.s32 %v3469, %v3471
    %v3473 = vrot.slane %v3429, %v3472
    %v3475 = vunpack.c.l.s4 1966171168
    %v3476 = vunpack.c.0.s8 %v3475
    %v3477 = vlaneseq
    %v3478 = vshrl.u32 %v3477, 7
    %v3479 = vsub.s32 %v3476, %v3478
    %v3480 = vrot.slane %v3430, %v3479
    %v3482 = vunpack.c.l.s4 1966171168
    %v3483 = vunpack.c.0.s8 %v3482
    %v3484 = vlaneseq
    %v3485 = vshrl.u32 %v3484, 7
    %v3486 = vsub.s32 %v3483, %v3485
    %v3487 = vrot.slane %v3431, %v3486
    %v3488 = vcombine.low %v3438, %v3452
    %v3489 = vcombine.high %v3438, %v3452
    %v3490 = vcombine.low %v3445, %v3459
    %v3491 = vcombine.high %v3445, %v3459
    %v3492 = vcombine.low %v3466, %v3480
    %v3493 = vcombine.high %v3466, %v3480
    %v3494 = vcombine.low %v3473, %v3487
    %v3495 = vcombine.high %v3473, %v3487
    %v3497 = vunpack.c.l.s4 1966171168
    %v3498 = vunpack.c.0.s8 %v3497
    %v3499 = vlaneseq
    %v3500 = vshrl.u32 %v3499, 7
    %v3501 = vsub.s32 %v3498, %v3500
    %v3502 = vrot.slane %v3488, %v3501
    %v3504 = vunpack.c.l.s4 1966171168
    %v3505 = vunpack.c.0.s8 %v3504
    %v3506 = vlaneseq
    %v3507 = vshrl.u32 %v3506, 7
    %v3508 = vsub.s32 %v3505, %v3507
    %v3509 = vrot.slane %v3490, %v3508
    %v3511 = vunpack.c.l.s4 1966171168
    %v3512 = vunpack.c.0.s8 %v3511
    %v3513 = vlaneseq
    %v3514 = vshrl.u32 %v3513, 7
    %v3515 = vsub.s32 %v3512, %v3514
    %v3516 = vrot.slane %v3489, %v3515
    %v3518 = vunpack.c.l.s4 1966171168
    %v3519 = vunpack.c.0.s8 %v3518
    %v3520 = vlaneseq
    %v3521 = vshrl.u32 %v3520, 7
    %v3522 = vsub.s32 %v3519, %v3521
    %v3523 = vrot.slane %v3491, %v3522
    %v3525 = vunpack.c.l.s4 1966171168
    %v3526 = vunpack.c.0.s8 %v3525
    %v3527 = vlaneseq
    %v3528 = vshrl.u32 %v3527, 7
    %v3529 = vsub.s32 %v3526, %v3528
    %v3530 = vrot.slane %v3492, %v3529
    %v3532 = vunpack.c.l.s4 1966171168
    %v3533 = vunpack.c.0.s8 %v3532
    %v3534 = vlaneseq
    %v3535 = vshrl.u32 %v3534, 7
    %v3536 = vsub.s32 %v3533, %v3535
    %v3537 = vrot.slane %v3494, %v3536
    %v3539 = vunpack.c.l.s4 1966171168
    %v3540 = vunpack.c.0.s8 %v3539
    %v3541 = vlaneseq
    %v3542 = vshrl.u32 %v3541, 7
    %v3543 = vsub.s32 %v3540, %v3542
    %v3544 = vrot.slane %v3493, %v3543
    %v3546 = vunpack.c.l.s4 1966171168
    %v3547 = vunpack.c.0.s8 %v3546
    %v3548 = vlaneseq
    %v3549 = vshrl.u32 %v3548, 7
    %v3550 = vsub.s32 %v3547, %v3549
    %v3551 = vrot.slane %v3495, %v3550
    %v3552 = vcombine.low %v3502, %v3530
    %v3553 = vcombine.high %v3502, %v3530
    %v3554 = vcombine.low %v3509, %v3537
    %v3555 = vcombine.low %v3516, %v3544
    %v3556 = vcombine.high %v3516, %v3544
    %v3557 = vcombine.low %v3523, %v3551
    %v3558 = vcombine.low %v3416, %v3417
    %v3559 = vcombine.high %v3416, %v3417
    %v3560 = vcombine.low %v3418, %v3419
    %v3561 = vcombine.high %v3418, %v3419
    %v3563 = vunpack.c.l.s4 1966171168
    %v3564 = vunpack.c.0.s8 %v3563
    %v3565 = vlaneseq
    %v3566 = vshrl.u32 %v3565, 7
    %v3567 = vsub.s32 %v3564, %v3566
    %v3568 = vrot.slane %v3558, %v3567
    %v3570 = vunpack.c.l.s4 1966171168
    %v3571 = vunpack.c.0.s8 %v3570
    %v3572 = vlaneseq
    %v3573 = vshrl.u32 %v3572, 7
    %v3574 = vsub.s32 %v3571, %v3573
    %v3575 = vrot.slane %v3559, %v3574
    %v3577 = vunpack.c.l.s4 1966171168
    %v3578 = vunpack.c.0.s8 %v3577
    %v3579 = vlaneseq
    %v3580 = vshrl.u32 %v3579, 7
    %v3581 = vsub.s32 %v3578, %v3580
    %v3582 = vrot.slane %v3560, %v3581
    %v3584 = vunpack.c.l.s4 1966171168
    %v3585 = vunpack.c.0.s8 %v3584
    %v3586 = vlaneseq
    %v3587 = vshrl.u32 %v3586, 7
    %v3588 = vsub.s32 %v3585, %v3587
    %v3589 = vrot.slane %v3561, %v3588
    %v3590 = vcombine.low %v3568, %v3582
    %v3591 = vcombine.high %v3568, %v3582
    %v3592 = vcombine.low %v3575, %v3589
    %v3593 = vcombine.high %v3575, %v3589
    %v3595 = vunpack.c.l.s4 1966171168
    %v3596 = vunpack.c.0.s8 %v3595
    %v3597 = vlaneseq
    %v3598 = vshrl.u32 %v3597, 7
    %v3599 = vsub.s32 %v3596, %v3598
    %v3600 = vrot.slane %v3590, %v3599
    %v3602 = vunpack.c.l.s4 1966171168
    %v3603 = vunpack.c.0.s8 %v3602
    %v3604 = vlaneseq
    %v3605 = vshrl.u32 %v3604, 7
    %v3606 = vsub.s32 %v3603, %v3605
    %v3607 = vrot.slane %v3592, %v3606
    %v3609 = vunpack.c.l.s4 1966171168
    %v3610 = vunpack.c.0.s8 %v3609
    %v3611 = vlaneseq
    %v3612 = vshrl.u32 %v3611, 7
    %v3613 = vsub.s32 %v3610, %v3612
    %v3614 = vrot.slane %v3591, %v3613
    %v3616 = vunpack.c.l.s4 1966171168
    %v3617 = vunpack.c.0.s8 %v3616
    %v3618 = vlaneseq
    %v3619 = vshrl.u32 %v3618, 7
    %v3620 = vsub.s32 %v3617, %v3619
    %v3621 = vrot.slane %v3593, %v3620
    %v3622 = vcombine.high %v3600, %v3600
    %v3623 = vcombine.high %v3614, %v3614
    %v3624 = vcombine.low %v3084, %v3085
    %v3625 = vcombine.high %v3084, %v3085
    %v3626 = vcombine.low %v3086, %v3087
    %v3627 = vcombine.high %v3086, %v3087
    %v3628 = vcombine.low %v3252, %v3253
    %v3629 = vcombine.high %v3252, %v3253
    %v3630 = vcombine.low %v3254, %v3255
    %v3631 = vcombine.high %v3254, %v3255
    %v3633 = vunpack.c.l.s4 1966171168
    %v3634 = vunpack.c.0.s8 %v3633
    %v3635 = vlaneseq
    %v3636 = vshrl.u32 %v3635, 7
    %v3637 = vsub.s32 %v3634, %v3636
    %v3638 = vrot.slane %v3624, %v3637
    %v3640 = vunpack.c.l.s4 1966171168
    %v3641 = vunpack.c.0.s8 %v3640
    %v3642 = vlaneseq
    %v3643 = vshrl.u32 %v3642, 7
    %v3644 = vsub.s32 %v3641, %v3643
    %v3645 = vrot.slane %v3625, %v3644
    %v3647 = vunpack.c.l.s4 1966171168
    %v3648 = vunpack.c.0.s8 %v3647
    %v3649 = vlaneseq
    %v3650 = vshrl.u32 %v3649, 7
    %v3651 = vsub.s32 %v3648, %v3650
    %v3652 = vrot.slane %v3626, %v3651
    %v3654 = vunpack.c.l.s4 1966171168
    %v3655 = vunpack.c.0.s8 %v3654
    %v3656 = vlaneseq
    %v3657 = vshrl.u32 %v3656, 7
    %v3658 = vsub.s32 %v3655, %v3657
    %v3659 = vrot.slane %v3627, %v3658
    %v3661 = vunpack.c.l.s4 1966171168
    %v3662 = vunpack.c.0.s8 %v3661
    %v3663 = vlaneseq
    %v3664 = vshrl.u32 %v3663, 7
    %v3665 = vsub.s32 %v3662, %v3664
    %v3666 = vrot.slane %v3628, %v3665
    %v3668 = vunpack.c.l.s4 1966171168
    %v3669 = vunpack.c.0.s8 %v3668
    %v3670 = vlaneseq
    %v3671 = vshrl.u32 %v3670, 7
    %v3672 = vsub.s32 %v3669, %v3671
    %v3673 = vrot.slane %v3629, %v3672
    %v3675 = vunpack.c.l.s4 1966171168
    %v3676 = vunpack.c.0.s8 %v3675
    %v3677 = vlaneseq
    %v3678 = vshrl.u32 %v3677, 7
    %v3679 = vsub.s32 %v3676, %v3678
    %v3680 = vrot.slane %v3630, %v3679
    %v3682 = vunpack.c.l.s4 1966171168
    %v3683 = vunpack.c.0.s8 %v3682
    %v3684 = vlaneseq
    %v3685 = vshrl.u32 %v3684, 7
    %v3686 = vsub.s32 %v3683, %v3685
    %v3687 = vrot.slane %v3631, %v3686
    %v3688 = vcombine.low %v3638, %v3652
    %v3689 = vcombine.high %v3638, %v3652
    %v3690 = vcombine.low %v3645, %v3659
    %v3691 = vcombine.high %v3645, %v3659
    %v3692 = vcombine.low %v3666, %v3680
    %v3693 = vcombine.high %v3666, %v3680
    %v3694 = vcombine.low %v3673, %v3687
    %v3695 = vcombine.high %v3673, %v3687
    %v3697 = vunpack.c.l.s4 1966171168
    %v3698 = vunpack.c.0.s8 %v3697
    %v3699 = vlaneseq
    %v3700 = vshrl.u32 %v3699, 7
    %v3701 = vsub.s32 %v3698, %v3700
    %v3702 = vrot.slane %v3688, %v3701
    %v3704 = vunpack.c.l.s4 1966171168
    %v3705 = vunpack.c.0.s8 %v3704
    %v3706 = vlaneseq
    %v3707 = vshrl.u32 %v3706, 7
    %v3708 = vsub.s32 %v3705, %v3707
    %v3709 = vrot.slane %v3690, %v3708
    %v3711 = vunpack.c.l.s4 1966171168
    %v3712 = vunpack.c.0.s8 %v3711
    %v3713 = vlaneseq
    %v3714 = vshrl.u32 %v3713, 7
    %v3715 = vsub.s32 %v3712, %v3714
    %v3716 = vrot.slane %v3689, %v3715
    %v3718 = vunpack.c.l.s4 1966171168
    %v3719 = vunpack.c.0.s8 %v3718
    %v3720 = vlaneseq
    %v3721 = vshrl.u32 %v3720, 7
    %v3722 = vsub.s32 %v3719, %v3721
    %v3723 = vrot.slane %v3691, %v3722
    %v3725 = vunpack.c.l.s4 1966171168
    %v3726 = vunpack.c.0.s8 %v3725
    %v3727 = vlaneseq
    %v3728 = vshrl.u32 %v3727, 7
    %v3729 = vsub.s32 %v3726, %v3728
    %v3730 = vrot.slane %v3692, %v3729
    %v3732 = vunpack.c.l.s4 1966171168
    %v3733 = vunpack.c.0.s8 %v3732
    %v3734 = vlaneseq
    %v3735 = vshrl.u32 %v3734, 7
    %v3736 = vsub.s32 %v3733, %v3735
    %v3737 = vrot.slane %v3694, %v3736
    %v3739 = vunpack.c.l.s4 1966171168
    %v3740 = vunpack.c.0.s8 %v3739
    %v3741 = vlaneseq
    %v3742 = vshrl.u32 %v3741, 7
    %v3743 = vsub.s32 %v3740, %v3742
    %v3744 = vrot.slane %v3693, %v3743
    %v3746 = vunpack.c.l.s4 1966171168
    %v3747 = vunpack.c.0.s8 %v3746
    %v3748 = vlaneseq
    %v3749 = vshrl.u32 %v3748, 7
    %v3750 = vsub.s32 %v3747, %v3749
    %v3751 = vrot.slane %v3695, %v3750
    %v3752 = vcombine.low %v3702, %v3730
    %v3753 = vcombine.high %v3702, %v3730
    %v3754 = vcombine.low %v3709, %v3737
    %v3755 = vcombine.low %v3716, %v3744
    %v3756 = vcombine.high %v3716, %v3744
    %v3757 = vcombine.low %v3723, %v3751
    %v3758 = vcombine.low %v3420, %v3421
    %v3759 = vcombine.high %v3420, %v3421
    %v3760 = vcombine.low %v3422, %v3423
    %v3761 = vcombine.high %v3422, %v3423
    %v3763 = vunpack.c.l.s4 1966171168
    %v3764 = vunpack.c.0.s8 %v3763
    %v3765 = vlaneseq
    %v3766 = vshrl.u32 %v3765, 7
    %v3767 = vsub.s32 %v3764, %v3766
    %v3768 = vrot.slane %v3758, %v3767
    %v3770 = vunpack.c.l.s4 1966171168
    %v3771 = vunpack.c.0.s8 %v3770
    %v3772 = vlaneseq
    %v3773 = vshrl.u32 %v3772, 7
    %v3774 = vsub.s32 %v3771, %v3773
    %v3775 = vrot.slane %v3759, %v3774
    %v3777 = vunpack.c.l.s4 1966171168
    %v3778 = vunpack.c.0.s8 %v3777
    %v3779 = vlaneseq
    %v3780 = vshrl.u32 %v3779, 7
    %v3781 = vsub.s32 %v3778, %v3780
    %v3782 = vrot.slane %v3760, %v3781
    %v3784 = vunpack.c.l.s4 1966171168
    %v3785 = vunpack.c.0.s8 %v3784
    %v3786 = vlaneseq
    %v3787 = vshrl.u32 %v3786, 7
    %v3788 = vsub.s32 %v3785, %v3787
    %v3789 = vrot.slane %v3761, %v3788
    %v3790 = vcombine.low %v3768, %v3782
    %v3791 = vcombine.high %v3768, %v3782
    %v3792 = vcombine.low %v3775, %v3789
    %v3793 = vcombine.high %v3775, %v3789
    %v3795 = vunpack.c.l.s4 1966171168
    %v3796 = vunpack.c.0.s8 %v3795
    %v3797 = vlaneseq
    %v3798 = vshrl.u32 %v3797, 7
    %v3799 = vsub.s32 %v3796, %v3798
    %v3800 = vrot.slane %v3790, %v3799
    %v3802 = vunpack.c.l.s4 1966171168
    %v3803 = vunpack.c.0.s8 %v3802
    %v3804 = vlaneseq
    %v3805 = vshrl.u32 %v3804, 7
    %v3806 = vsub.s32 %v3803, %v3805
    %v3807 = vrot.slane %v3792, %v3806
    %v3809 = vunpack.c.l.s4 1966171168
    %v3810 = vunpack.c.0.s8 %v3809
    %v3811 = vlaneseq
    %v3812 = vshrl.u32 %v3811, 7
    %v3813 = vsub.s32 %v3810, %v3812
    %v3814 = vrot.slane %v3791, %v3813
    %v3816 = vunpack.c.l.s4 1966171168
    %v3817 = vunpack.c.0.s8 %v3816
    %v3818 = vlaneseq
    %v3819 = vshrl.u32 %v3818, 7
    %v3820 = vsub.s32 %v3817, %v3819
    %v3821 = vrot.slane %v3793, %v3820
    %v3822 = vcombine.high %v3800, %v3800
    %v3823 = vcombine.high %v3814, %v3814
    %v3824 = vunpack.i.l.s16 %v3552
    %v3825 = vunpack.i.l.s16 %v3600
    %v3826 = vunpack.i.h.s16 %v3552
    %v3827 = vunpack.i.h.s16 %v3600
    %v3828 = vunpack.i.l.s16 %v3555
    %v3829 = vunpack.i.l.s16 %v3614
    %v3830 = vunpack.i.h.s16 %v3555
    %v3831 = vunpack.i.h.s16 %v3614
    %v3832 = vunpack.i.l.s16 %v3553
    %v3833 = vunpack.i.l.s16 %v3622
    %v3834 = vunpack.i.h.s16 %v3553
    %v3835 = vunpack.i.h.s16 %v3622
    %v3836 = vunpack.i.l.s16 %v3556
    %v3837 = vunpack.i.l.s16 %v3623
    %v3838 = vunpack.i.h.s16 %v3556
    %v3839 = vunpack.i.h.s16 %v3623
    %v3840 = vunpack.i.l.s16 %v3554
    %v3841 = vunpack.i.l.s16 %v3607
    %v3842 = vunpack.i.h.s16 %v3554
    %v3843 = vunpack.i.h.s16 %v3607
    %v3844 = vunpack.i.l.s16 %v3557
    %v3845 = vunpack.i.l.s16 %v3621
    %v3846 = vunpack.i.l.s16 %v3752
    %v3847 = vunpack.i.l.s16 %v3800
    %v3848 = vunpack.i.h.s16 %v3752
    %v3849 = vunpack.i.h.s16 %v3800
    %v3850 = vunpack.i.l.s16 %v3755
    %v3851 = vunpack.i.l.s16 %v3814
    %v3852 = vunpack.i.h.s16 %v3755
    %v3853 = vunpack.i.h.s16 %v3814
    %v3854 = vunpack.i.l.s16 %v3753
    %v3855 = vunpack.i.l.s16 %v3822
    %v3856 = vunpack.i.h.s16 %v3753
    %v3857 = vunpack.i.h.s16 %v3822
    %v3858 = vunpack.i.l.s16 %v3756
    %v3859 = vunpack.i.l.s16 %v3823
    %v3860 = vunpack.i.h.s16 %v3756
    %v3861 = vunpack.i.h.s16 %v3823
    %v3862 = vunpack.i.l.s16 %v3754
    %v3863 = vunpack.i.l.s16 %v3807
    %v3864 = vunpack.i.h.s16 %v3754
    %v3865 = vunpack.i.h.s16 %v3807
    %v3866 = vunpack.i.l.s16 %v3757
    %v3867 = vunpack.i.l.s16 %v3821
    %v3868 = vld [vmem:[#allocation7] sm:$0xff]
    %v3869 = vld [vmem:[#allocation7 + $0x8] sm:$0xff]
    %v3870 = vld [vmem:[#allocation7 + $0x10] sm:$0xff]
    %v3871 = vld [vmem:[#allocation7 + $0x18] sm:$0xff]
    %v3872 = vld [vmem:[#allocation7 + $0x20] sm:$0xff]
    %v3873 = vld [vmem:[#allocation7 + $0x28] sm:$0xff]
    %v3874 = vld [vmem:[#allocation7 + $0x30] sm:$0xff]
    %v3875 = vld [vmem:[#allocation7 + $0x38] sm:$0xff]
    %v3876 = vld [vmem:[#allocation7 + $0x40] sm:$0xff]
    %v3877 = vld [vmem:[#allocation7 + $0x48] sm:$0xff]
    %v3878 = vld [vmem:[#allocation7 + $0x50] sm:$0xff]
    %v3879 = vld [vmem:[#allocation7 + $0x58] sm:$0xff]
    %v3880 = vld [vmem:[#allocation7 + $0x60] sm:$0xff]
    %v3881 = vld [vmem:[#allocation7 + $0x68] sm:$0xff]
    %v3882 = vld [vmem:[#allocation7 + $0x70] sm:$0xff]
    %v3883 = vld [vmem:[#allocation7 + $0x78] sm:$0xff]
    %v3884 = vld [vmem:[#allocation7 + $0x80] sm:$0xff]
    %v3885 = vld [vmem:[#allocation7 + $0x88] sm:$0xff]
    %v3886 = vld [vmem:[#allocation7 + $0x90] sm:$0xff]
    %v3887 = vld [vmem:[#allocation7 + $0x98] sm:$0xff]
    %v3888 = vld [vmem:[#allocation7 + $0xa0] sm:$0xff]
    %v3889 = vld [vmem:[#allocation7 + $0xa8] sm:$0xff]
    %v3890 = vld [vmem:[#allocation7 + $0xb0] sm:$0xff]
    %v3891 = vld [vmem:[#allocation7 + $0xb8] sm:$0xff]
    %v3892 = vld [vmem:[#allocation7 + $0xc0] sm:$0xff]
    %v3893 = vld [vmem:[#allocation7 + $0xc8] sm:$0xff]
    %v3894 = vld [vmem:[#allocation7 + $0xd0] sm:$0xff]
    %v3895 = vld [vmem:[#allocation7 + $0xd8] sm:$0xff]
    %v3896 = vld [vmem:[#allocation7 + $0xe0] sm:$0xff]
    %v3897 = vld [vmem:[#allocation7 + $0xe8] sm:$0xff]
    %v3898 = vld [vmem:[#allocation7 + $0xf0] sm:$0xff]
    %v3899 = vld [vmem:[#allocation7 + $0xf8] sm:$0xff]
    %v3900 = vld [vmem:[#allocation7 + $0x100] sm:$0xff]
    %v3901 = vld [vmem:[#allocation7 + $0x108] sm:$0xff]
    %v3902 = vld [vmem:[#allocation7 + $0x110] sm:$0xff]
    %v3903 = vld [vmem:[#allocation7 + $0x118] sm:$0xff]
    %v3904 = vld [vmem:[#allocation7 + $0x120] sm:$0xff]
    %v3905 = vld [vmem:[#allocation7 + $0x128] sm:$0xff]
    %v3906 = vld [vmem:[#allocation7 + $0x130] sm:$0xff]
    %v3907 = vld [vmem:[#allocation7 + $0x138] sm:$0xff]
    %v3908 = vld [vmem:[#allocation7 + $0x140] sm:$0xff]
    %v3909 = vld [vmem:[#allocation7 + $0x148] sm:$0xff]
    %v3910 = vld [vmem:[#allocation7 + $0x150] sm:$0xff]
    %v3911 = vld [vmem:[#allocation7 + $0x158] sm:$0xff]
    %v3912 = vld [vmem:[#allocation7 + $0x160] sm:$0xff]
    %v3913 = vld [vmem:[#allocation7 + $0x168] sm:$0xff]
    %v3914 = vld [vmem:[#allocation7 + $0x170] sm:$0xff]
    %v3915 = vld [vmem:[#allocation7 + $0x178] sm:$0xff]
    %v3916 = vld [vmem:[#allocation7 + $0x180] sm:$0xff]
    %v3917 = vld [vmem:[#allocation7 + $0x188] sm:$0xff]
    %v3918 = vld [vmem:[#allocation7 + $0x190] sm:$0xff]
    %v3919 = vld [vmem:[#allocation7 + $0x198] sm:$0xff]
    %v3920 = vld [vmem:[#allocation7 + $0x1a0] sm:$0xff]
    %v3921 = vld [vmem:[#allocation7 + $0x1a8] sm:$0xff]
    %v3922 = vld [vmem:[#allocation7 + $0x1b0] sm:$0xff]
    %v3923 = vld [vmem:[#allocation7 + $0x1b8] sm:$0xff]
    %v3924 = vld [vmem:[#allocation7 + $0x1c0] sm:$0xff]
    %v3925 = vld [vmem:[#allocation7 + $0x1c8] sm:$0xff]
    %v3926 = vld [vmem:[#allocation7 + $0x1d0] sm:$0xff]
    %v3927 = vld [vmem:[#allocation7 + $0x1d8] sm:$0xff]
    %v3928 = vld [vmem:[#allocation7 + $0x1e0] sm:$0xff]
    %v3929 = vld [vmem:[#allocation7 + $0x1e8] sm:$0xff]
    %v3930 = vld [vmem:[#allocation7 + $0x1f0] sm:$0xff]
    %v3931 = vld [vmem:[#allocation7 + $0x1f8] sm:$0xff]
    %v3932 = vld [vmem:[#allocation7 + $0x200] sm:$0xff]
    %v3933 = vld [vmem:[#allocation7 + $0x208] sm:$0xff]
    %v3934 = vld [vmem:[#allocation7 + $0x210] sm:$0xff]
    %v3935 = vld [vmem:[#allocation7 + $0x218] sm:$0xff]
    %v3936 = vld [vmem:[#allocation7 + $0x220] sm:$0xff]
    %v3937 = vld [vmem:[#allocation7 + $0x228] sm:$0xff]
    %v3938 = vld [vmem:[#allocation7 + $0x230] sm:$0xff]
    %v3939 = vld [vmem:[#allocation7 + $0x238] sm:$0xff]
    %v3940 = vld [vmem:[#allocation7 + $0x240] sm:$0xff]
    %v3941 = vld [vmem:[#allocation7 + $0x248] sm:$0xff]
    %v3942 = vld [vmem:[#allocation7 + $0x250] sm:$0xff]
    %v3943 = vld [vmem:[#allocation7 + $0x258] sm:$0xff]
    %v3944 = vld [vmem:[#allocation7 + $0x260] sm:$0xff]
    %v3945 = vld [vmem:[#allocation7 + $0x268] sm:$0xff]
    %v3946 = vld [vmem:[#allocation7 + $0x270] sm:$0xff]
    %v3947 = vld [vmem:[#allocation7 + $0x278] sm:$0xff]
    %v3948 = vld [vmem:[#allocation7 + $0x280] sm:$0xff]
    %v3949 = vld [vmem:[#allocation7 + $0x288] sm:$0xff]
    %v3950 = vld [vmem:[#allocation7 + $0x290] sm:$0xff]
    %v3951 = vld [vmem:[#allocation7 + $0x298] sm:$0xff]
    %v3952 = vld [vmem:[#allocation7 + $0x2a0] sm:$0xff]
    %v3953 = vld [vmem:[#allocation7 + $0x2a8] sm:$0xff]
    %v3954 = vld [vmem:[#allocation7 + $0x2b0] sm:$0xff]
    %v3955 = vld [vmem:[#allocation7 + $0x2b8] sm:$0xff]
    %v3956 = vld [vmem:[#allocation7 + $0x2c0] sm:$0xff]
    %v3957 = vld [vmem:[#allocation7 + $0x2c8] sm:$0xff]
    %v3958 = vld [vmem:[#allocation7 + $0x2d0] sm:$0xff]
    %v3959 = vld [vmem:[#allocation7 + $0x2d8] sm:$0xff]
    %v3960 = vld [vmem:[#allocation7 + $0x2e0] sm:$0xff]
    %v3961 = vld [vmem:[#allocation7 + $0x2e8] sm:$0xff]
    %v3962 = vld [vmem:[#allocation7 + $0x2f0] sm:$0xff]
    %v3963 = vld [vmem:[#allocation7 + $0x2f8] sm:$0xff]
    %v3964 = vld [vmem:[#allocation7 + $0x300] sm:$0xff]
    %v3965 = vld [vmem:[#allocation7 + $0x308] sm:$0xff]
    %v3966 = vld [vmem:[#allocation7 + $0x310] sm:$0xff]
    %v3967 = vld [vmem:[#allocation7 + $0x318] sm:$0xff]
    %v3968 = vld [vmem:[#allocation7 + $0x320] sm:$0xff]
    %v3969 = vld [vmem:[#allocation7 + $0x328] sm:$0xff]
    %v3970 = vld [vmem:[#allocation7 + $0x330] sm:$0xff]
    %v3971 = vld [vmem:[#allocation7 + $0x338] sm:$0xff]
    %v3972 = vld [vmem:[#allocation7 + $0x340] sm:$0xff]
    %v3973 = vld [vmem:[#allocation7 + $0x348] sm:$0xff]
    %v3974 = vld [vmem:[#allocation7 + $0x350] sm:$0xff]
    %v3975 = vld [vmem:[#allocation7 + $0x358] sm:$0xff]
    %v3976 = vld [vmem:[#allocation7 + $0x360] sm:$0xff]
    %v3977 = vld [vmem:[#allocation7 + $0x368] sm:$0xff]
    %v3978 = vld [vmem:[#allocation7 + $0x370] sm:$0xff]
    %v3979 = vld [vmem:[#allocation7 + $0x378] sm:$0xff]
    %v3980 = vld [vmem:[#allocation7 + $0x380] sm:$0xff]
    %v3981 = vld [vmem:[#allocation7 + $0x388] sm:$0xff]
    %v3982 = vld [vmem:[#allocation7 + $0x390] sm:$0xff]
    %v3983 = vld [vmem:[#allocation7 + $0x398] sm:$0xff]
    %v3984 = vld [vmem:[#allocation7 + $0x3a0] sm:$0xff]
    %v3985 = vld [vmem:[#allocation7 + $0x3a8] sm:$0xff]
    %v3986 = vld [vmem:[#allocation7 + $0x3b0] sm:$0xff]
    %v3987 = vld [vmem:[#allocation7 + $0x3b8] sm:$0xff]
    %v3988 = vld [vmem:[#allocation7 + $0x3c0] sm:$0xff]
    %v3989 = vld [vmem:[#allocation7 + $0x3c8] sm:$0xff]
    %v3990 = vld [vmem:[#allocation7 + $0x3d0] sm:$0xff]
    %v3991 = vld [vmem:[#allocation7 + $0x3d8] sm:$0xff]
    %v3992 = vld [vmem:[#allocation7 + $0x3e0] sm:$0xff]
    %v3993 = vld [vmem:[#allocation7 + $0x3e8] sm:$0xff]
    %v3994 = vld [vmem:[#allocation7 + $0x3f0] sm:$0xff]
    %v3995 = vld [vmem:[#allocation7 + $0x3f8] sm:$0xff]
    %v3996 = vld [vmem:[#allocation7 + $0x400] sm:$0xff]
    %v3997 = vld [vmem:[#allocation7 + $0x408] sm:$0xff]
    %v3998 = vld [vmem:[#allocation7 + $0x410] sm:$0xff]
    %v3999 = vld [vmem:[#allocation7 + $0x418] sm:$0xff]
    %v4000 = vld [vmem:[#allocation7 + $0x420] sm:$0xff]
    %v4001 = vld [vmem:[#allocation7 + $0x428] sm:$0xff]
    %v4002 = vld [vmem:[#allocation7 + $0x430] sm:$0xff]
    %v4003 = vld [vmem:[#allocation7 + $0x438] sm:$0xff]
    %v4004 = vld [vmem:[#allocation7 + $0x440] sm:$0xff]
    %v4005 = vld [vmem:[#allocation7 + $0x448] sm:$0xff]
    %v4006 = vld [vmem:[#allocation7 + $0x450] sm:$0xff]
    %v4007 = vld [vmem:[#allocation7 + $0x458] sm:$0xff]
    %v4008 = vld [vmem:[#allocation7 + $0x460] sm:$0xff]
    %v4009 = vld [vmem:[#allocation7 + $0x468] sm:$0xff]
    %v4010 = vld [vmem:[#allocation7 + $0x470] sm:$0xff]
    %v4011 = vld [vmem:[#allocation7 + $0x478] sm:$0xff]
    %v4012 = vld [vmem:[#allocation7 + $0x480] sm:$0xff]
    %v4013 = vld [vmem:[#allocation7 + $0x488] sm:$0xff]
    %v4014 = vld [vmem:[#allocation7 + $0x490] sm:$0xff]
    %v4015 = vld [vmem:[#allocation7 + $0x498] sm:$0xff]
    %v4016 = vld [vmem:[#allocation7 + $0x4a0] sm:$0xff]
    %v4017 = vld [vmem:[#allocation7 + $0x4a8] sm:$0xff]
    %v4018 = vld [vmem:[#allocation7 + $0x4b0] sm:$0xff]
    %v4019 = vld [vmem:[#allocation7 + $0x4b8] sm:$0xff]
    %v4020 = vld [vmem:[#allocation7 + $0x4c0] sm:$0xff]
    %v4021 = vld [vmem:[#allocation7 + $0x4c8] sm:$0xff]
    %v4022 = vld [vmem:[#allocation7 + $0x4d0] sm:$0xff]
    %v4023 = vld [vmem:[#allocation7 + $0x4d8] sm:$0xff]
    %v4024 = vld [vmem:[#allocation7 + $0x4e0] sm:$0xff]
    %v4025 = vld [vmem:[#allocation7 + $0x4e8] sm:$0xff]
    %v4026 = vld [vmem:[#allocation7 + $0x4f0] sm:$0xff]
    %v4027 = vld [vmem:[#allocation7 + $0x4f8] sm:$0xff]
    %v4028 = vld [vmem:[#allocation7 + $0x500] sm:$0xff]
    %v4029 = vld [vmem:[#allocation7 + $0x508] sm:$0xff]
    %v4030 = vld [vmem:[#allocation7 + $0x510] sm:$0xff]
    %v4031 = vld [vmem:[#allocation7 + $0x518] sm:$0xff]
    %v4032 = vld [vmem:[#allocation7 + $0x520] sm:$0xff]
    %v4033 = vld [vmem:[#allocation7 + $0x528] sm:$0xff]
    %v4034 = vld [vmem:[#allocation7 + $0x530] sm:$0xff]
    %v4035 = vld [vmem:[#allocation7 + $0x538] sm:$0xff]
    %v4036 = vld [vmem:[#allocation7 + $0x540] sm:$0xff]
    %v4037 = vld [vmem:[#allocation7 + $0x548] sm:$0xff]
    %v4038 = vld [vmem:[#allocation7 + $0x550] sm:$0xff]
    %v4039 = vld [vmem:[#allocation7 + $0x558] sm:$0xff]
    %v4040 = vld [vmem:[#allocation7 + $0x560] sm:$0xff]
    %v4041 = vld [vmem:[#allocation7 + $0x568] sm:$0xff]
    %v4042 = vld [vmem:[#allocation7 + $0x570] sm:$0xff]
    %v4043 = vld [vmem:[#allocation7 + $0x578] sm:$0xff]
    %v4044 = vld [vmem:[#allocation7 + $0x580] sm:$0xff]
    %v4045 = vld [vmem:[#allocation7 + $0x588] sm:$0xff]
    %v4046 = vld [vmem:[#allocation7 + $0x590] sm:$0xff]
    %v4047 = vld [vmem:[#allocation7 + $0x598] sm:$0xff]
    %v4048 = vld [vmem:[#allocation7 + $0x5a0] sm:$0xff]
    %v4049 = vld [vmem:[#allocation7 + $0x5a8] sm:$0xff]
    %v4050 = vld [vmem:[#allocation7 + $0x5b0] sm:$0xff]
    %v4051 = vld [vmem:[#allocation7 + $0x5b8] sm:$0xff]
    %v4052 = vld [vmem:[#allocation7 + $0x5c0] sm:$0xff]
    %v4053 = vld [vmem:[#allocation7 + $0x5c8] sm:$0xff]
    %v4054 = vld [vmem:[#allocation7 + $0x5d0] sm:$0xff]
    %v4055 = vld [vmem:[#allocation7 + $0x5d8] sm:$0xff]
    %v4056 = vld [vmem:[#allocation7 + $0x5e0] sm:$0xff]
    %v4057 = vld [vmem:[#allocation7 + $0x5e8] sm:$0xff]
    %v4058 = vld [vmem:[#allocation7 + $0x5f0] sm:$0xff]
    %v4059 = vld [vmem:[#allocation7 + $0x5f8] sm:$0xff]
    %v4060 = vld [vmem:[#allocation7 + $0x600] sm:$0xff]
    %v4061 = vld [vmem:[#allocation7 + $0x608] sm:$0xff]
    %v4062 = vld [vmem:[#allocation7 + $0x610] sm:$0xff]
    %v4063 = vld [vmem:[#allocation7 + $0x618] sm:$0xff]
    %v4064 = vld [vmem:[#allocation7 + $0x620] sm:$0xff]
    %v4065 = vld [vmem:[#allocation7 + $0x628] sm:$0xff]
    %v4066 = vld [vmem:[#allocation7 + $0x630] sm:$0xff]
    %v4067 = vld [vmem:[#allocation7 + $0x638] sm:$0xff]
    %v4068 = vld [vmem:[#allocation7 + $0x640] sm:$0xff]
    %v4069 = vld [vmem:[#allocation7 + $0x648] sm:$0xff]
    %v4070 = vld [vmem:[#allocation7 + $0x650] sm:$0xff]
    %v4071 = vld [vmem:[#allocation7 + $0x658] sm:$0xff]
    %v4072 = vld [vmem:[#allocation7 + $0x660] sm:$0xff]
    %v4073 = vld [vmem:[#allocation7 + $0x668] sm:$0xff]
    %v4074 = vld [vmem:[#allocation7 + $0x670] sm:$0xff]
    %v4075 = vld [vmem:[#allocation7 + $0x678] sm:$0xff]
    %v4076 = vld [vmem:[#allocation7 + $0x680] sm:$0xff]
    %v4077 = vld [vmem:[#allocation7 + $0x688] sm:$0xff]
    %v4078 = vld [vmem:[#allocation7 + $0x690] sm:$0xff]
    %v4079 = vld [vmem:[#allocation7 + $0x698] sm:$0xff]
    %v4080 = vld [vmem:[#allocation7 + $0x6a0] sm:$0xff]
    %v4081 = vld [vmem:[#allocation7 + $0x6a8] sm:$0xff]
    %v4082 = vld [vmem:[#allocation7 + $0x6b0] sm:$0xff]
    %v4083 = vld [vmem:[#allocation7 + $0x6b8] sm:$0xff]
    %v4084 = vld [vmem:[#allocation7 + $0x6c0] sm:$0xff]
    %v4085 = vld [vmem:[#allocation7 + $0x6c8] sm:$0xff]
    %v4086 = vld [vmem:[#allocation7 + $0x6d0] sm:$0xff]
    %v4087 = vld [vmem:[#allocation7 + $0x6d8] sm:$0xff]
    %v4088 = vld [vmem:[#allocation7 + $0x6e0] sm:$0xff]
    %v4089 = vld [vmem:[#allocation7 + $0x6e8] sm:$0xff]
    %v4090 = vld [vmem:[#allocation7 + $0x6f0] sm:$0xff]
    %v4091 = vld [vmem:[#allocation7 + $0x6f8] sm:$0xff]
    %v4092 = vld [vmem:[#allocation7 + $0x700] sm:$0xff]
    %v4093 = vld [vmem:[#allocation7 + $0x708] sm:$0xff]
    %v4094 = vld [vmem:[#allocation7 + $0x710] sm:$0xff]
    %v4095 = vld [vmem:[#allocation7 + $0x718] sm:$0xff]
    %v4096 = vld [vmem:[#allocation7 + $0x720] sm:$0xff]
    %v4097 = vld [vmem:[#allocation7 + $0x728] sm:$0xff]
    %v4098 = vld [vmem:[#allocation7 + $0x730] sm:$0xff]
    %v4099 = vld [vmem:[#allocation7 + $0x738] sm:$0xff]
    %v4100 = vld [vmem:[#allocation7 + $0x740] sm:$0xff]
    %v4101 = vld [vmem:[#allocation7 + $0x748] sm:$0xff]
    %v4102 = vld [vmem:[#allocation7 + $0x750] sm:$0xff]
    %v4103 = vld [vmem:[#allocation7 + $0x758] sm:$0xff]
    %v4104 = vld [vmem:[#allocation7 + $0x760] sm:$0xff]
    %v4105 = vld [vmem:[#allocation7 + $0x768] sm:$0xff]
    %v4106 = vld [vmem:[#allocation7 + $0x770] sm:$0xff]
    %v4107 = vld [vmem:[#allocation7 + $0x778] sm:$0xff]
    %v4108 = vld [vmem:[#allocation7 + $0x780] sm:$0xff]
    %v4109 = vld [vmem:[#allocation7 + $0x788] sm:$0xff]
    %v4110 = vld [vmem:[#allocation7 + $0x790] sm:$0xff]
    %v4111 = vld [vmem:[#allocation7 + $0x798] sm:$0xff]
    %v4112 = vld [vmem:[#allocation7 + $0x7a0] sm:$0xff]
    %v4113 = vld [vmem:[#allocation7 + $0x7a8] sm:$0xff]
    %v4114 = vld [vmem:[#allocation7 + $0x7b0] sm:$0xff]
    %v4115 = vld [vmem:[#allocation7 + $0x7b8] sm:$0xff]
    %v4116 = vld [vmem:[#allocation7 + $0x7c0] sm:$0xff]
    %v4117 = vld [vmem:[#allocation7 + $0x7c8] sm:$0xff]
    %v4118 = vld [vmem:[#allocation7 + $0x7d0] sm:$0xff]
    %v4119 = vld [vmem:[#allocation7 + $0x7d8] sm:$0xff]
    %v4120 = vld [vmem:[#allocation7 + $0x7e0] sm:$0xff]
    %v4121 = vld [vmem:[#allocation7 + $0x7e8] sm:$0xff]
    %v4122 = vld [vmem:[#allocation7 + $0x7f0] sm:$0xff]
    %v4123 = vld [vmem:[#allocation7 + $0x7f8] sm:$0xff]
    %v4124 = vld [vmem:[#allocation7 + $0x800] sm:$0xff]
    %v4125 = vld [vmem:[#allocation7 + $0x808] sm:$0xff]
    %v4126 = vld [vmem:[#allocation7 + $0x810] sm:$0xff]
    %v4127 = vld [vmem:[#allocation7 + $0x818] sm:$0xff]
    %v4128 = vld [vmem:[#allocation7 + $0x820] sm:$0xff]
    %v4129 = vld [vmem:[#allocation7 + $0x828] sm:$0xff]
    %v4130 = vld [vmem:[#allocation7 + $0x830] sm:$0xff]
    %v4131 = vld [vmem:[#allocation7 + $0x838] sm:$0xff]
    %v4132 = vld [vmem:[#allocation7 + $0x840] sm:$0xff]
    %v4133 = vld [vmem:[#allocation7 + $0x848] sm:$0xff]
    %v4134 = vld [vmem:[#allocation7 + $0x850] sm:$0xff]
    %v4135 = vld [vmem:[#allocation7 + $0x858] sm:$0xff]
    %v4136 = vld [vmem:[#allocation7 + $0x860] sm:$0xff]
    %v4137 = vld [vmem:[#allocation7 + $0x868] sm:$0xff]
    %v4138 = vld [vmem:[#allocation7 + $0x870] sm:$0xff]
    %v4139 = vld [vmem:[#allocation7 + $0x878] sm:$0xff]
    %v4140 = vld [vmem:[#allocation7 + $0x880] sm:$0xff]
    %v4141 = vld [vmem:[#allocation7 + $0x888] sm:$0xff]
    %v4142 = vld [vmem:[#allocation7 + $0x890] sm:$0xff]
    %v4143 = vld [vmem:[#allocation7 + $0x898] sm:$0xff]
    %v4144 = vld [vmem:[#allocation7 + $0x8a0] sm:$0xff]
    %v4145 = vld [vmem:[#allocation7 + $0x8a8] sm:$0xff]
    %v4146 = vld [vmem:[#allocation7 + $0x8b0] sm:$0xff]
    %v4147 = vld [vmem:[#allocation7 + $0x8b8] sm:$0xff]
    %v4148 = vld [vmem:[#allocation7 + $0x8c0] sm:$0xff]
    %v4149 = vld [vmem:[#allocation7 + $0x8c8] sm:$0xff]
    %v4150 = vld [vmem:[#allocation7 + $0x8d0] sm:$0xff]
    %v4151 = vld [vmem:[#allocation7 + $0x8d8] sm:$0xff]
    %v4152 = vld [vmem:[#allocation7 + $0x8e0] sm:$0xff]
    %v4153 = vld [vmem:[#allocation7 + $0x8e8] sm:$0xff]
    %v4154 = vld [vmem:[#allocation7 + $0x8f0] sm:$0xff]
    %v4155 = vld [vmem:[#allocation7 + $0x8f8] sm:$0xff]
    %v4156 = vld [vmem:[#allocation7 + $0x900] sm:$0xff]
    %v4157 = vld [vmem:[#allocation7 + $0x908] sm:$0xff]
    %v4158 = vld [vmem:[#allocation7 + $0x910] sm:$0xff]
    %v4159 = vld [vmem:[#allocation7 + $0x918] sm:$0xff]
    %v4160 = vld [vmem:[#allocation7 + $0x920] sm:$0xff]
    %v4161 = vld [vmem:[#allocation7 + $0x928] sm:$0xff]
    %v4162 = vld [vmem:[#allocation7 + $0x930] sm:$0xff]
    %v4163 = vld [vmem:[#allocation7 + $0x938] sm:$0xff]
    %v4164 = vld [vmem:[#allocation7 + $0x940] sm:$0xff]
    %v4165 = vld [vmem:[#allocation7 + $0x948] sm:$0xff]
    %v4166 = vld [vmem:[#allocation7 + $0x950] sm:$0xff]
    %v4167 = vld [vmem:[#allocation7 + $0x958] sm:$0xff]
    %v4168 = vld [vmem:[#allocation7 + $0x960] sm:$0xff]
    %v4169 = vld [vmem:[#allocation7 + $0x968] sm:$0xff]
    %v4170 = vld [vmem:[#allocation7 + $0x970] sm:$0xff]
    %v4171 = vld [vmem:[#allocation7 + $0x978] sm:$0xff]
    %v4172 = vld [vmem:[#allocation7 + $0x980] sm:$0xff]
    %v4173 = vld [vmem:[#allocation7 + $0x988] sm:$0xff]
    %v4174 = vld [vmem:[#allocation7 + $0x990] sm:$0xff]
    %v4175 = vld [vmem:[#allocation7 + $0x998] sm:$0xff]
    %v4176 = vld [vmem:[#allocation7 + $0x9a0] sm:$0xff]
    %v4177 = vld [vmem:[#allocation7 + $0x9a8] sm:$0xff]
    %v4178 = vld [vmem:[#allocation7 + $0x9b0] sm:$0xff]
    %v4179 = vld [vmem:[#allocation7 + $0x9b8] sm:$0xff]
    %v4180 = vld [vmem:[#allocation7 + $0x9c0] sm:$0xff]
    %v4181 = vld [vmem:[#allocation7 + $0x9c8] sm:$0xff]
    %v4182 = vld [vmem:[#allocation7 + $0x9d0] sm:$0xff]
    %v4183 = vld [vmem:[#allocation7 + $0x9d8] sm:$0xff]
    %v4184 = vld [vmem:[#allocation7 + $0x9e0] sm:$0xff]
    %v4185 = vld [vmem:[#allocation7 + $0x9e8] sm:$0xff]
    %v4186 = vld [vmem:[#allocation7 + $0x9f0] sm:$0xff]
    %v4187 = vld [vmem:[#allocation7 + $0x9f8] sm:$0xff]
    %v4188 = vld [vmem:[#allocation7 + $0xa00] sm:$0xff]
    %v4189 = vld [vmem:[#allocation7 + $0xa08] sm:$0xff]
    %v4190 = vld [vmem:[#allocation7 + $0xa10] sm:$0xff]
    %v4191 = vld [vmem:[#allocation7 + $0xa18] sm:$0xff]
    %v4192 = vld [vmem:[#allocation7 + $0xa20] sm:$0xff]
    %v4193 = vld [vmem:[#allocation7 + $0xa28] sm:$0xff]
    %v4194 = vld [vmem:[#allocation7 + $0xa30] sm:$0xff]
    %v4195 = vld [vmem:[#allocation7 + $0xa38] sm:$0xff]
    %v4196 = vld [vmem:[#allocation7 + $0xa40] sm:$0xff]
    %v4197 = vld [vmem:[#allocation7 + $0xa48] sm:$0xff]
    %v4198 = vld [vmem:[#allocation7 + $0xa50] sm:$0xff]
    %v4199 = vld [vmem:[#allocation7 + $0xa58] sm:$0xff]
    %v4200 = vld [vmem:[#allocation7 + $0xa60] sm:$0xff]
    %v4201 = vld [vmem:[#allocation7 + $0xa68] sm:$0xff]
    %v4202 = vld [vmem:[#allocation7 + $0xa70] sm:$0xff]
    %v4203 = vld [vmem:[#allocation7 + $0xa78] sm:$0xff]
    %v4204 = vld [vmem:[#allocation7 + $0xa80] sm:$0xff]
    %v4205 = vld [vmem:[#allocation7 + $0xa88] sm:$0xff]
    %v4206 = vld [vmem:[#allocation7 + $0xa90] sm:$0xff]
    %v4207 = vld [vmem:[#allocation7 + $0xa98] sm:$0xff]
    %v4208 = vld [vmem:[#allocation7 + $0xaa0] sm:$0xff]
    %v4209 = vld [vmem:[#allocation7 + $0xaa8] sm:$0xff]
    %v4210 = vld [vmem:[#allocation7 + $0xab0] sm:$0xff]
    %v4211 = vld [vmem:[#allocation7 + $0xab8] sm:$0xff]
    %v4212 = vld [vmem:[#allocation7 + $0xac0] sm:$0xff]
    %v4213 = vld [vmem:[#allocation7 + $0xac8] sm:$0xff]
    %v4214 = vld [vmem:[#allocation7 + $0xad0] sm:$0xff]
    %v4215 = vld [vmem:[#allocation7 + $0xad8] sm:$0xff]
    %v4216 = vld [vmem:[#allocation7 + $0xae0] sm:$0xff]
    %v4217 = vld [vmem:[#allocation7 + $0xae8] sm:$0xff]
    %v4218 = vld [vmem:[#allocation7 + $0xaf0] sm:$0xff]
    %v4219 = vld [vmem:[#allocation7 + $0xaf8] sm:$0xff]
    %v4220 = vld [vmem:[#allocation7 + $0xb00] sm:$0xff]
    %v4221 = vld [vmem:[#allocation7 + $0xb08] sm:$0xff]
    %v4222 = vld [vmem:[#allocation7 + $0xb10] sm:$0xff]
    %v4223 = vld [vmem:[#allocation7 + $0xb18] sm:$0xff]
    %v4224 = vld [vmem:[#allocation7 + $0xb20] sm:$0xff]
    %v4225 = vld [vmem:[#allocation7 + $0xb28] sm:$0xff]
    %v4226 = vld [vmem:[#allocation7 + $0xb30] sm:$0xff]
    %v4227 = vld [vmem:[#allocation7 + $0xb38] sm:$0xff]
    %v4228 = vld [vmem:[#allocation7 + $0xb40] sm:$0xff]
    %v4229 = vld [vmem:[#allocation7 + $0xb48] sm:$0xff]
    %v4230 = vld [vmem:[#allocation7 + $0xb50] sm:$0xff]
    %v4231 = vld [vmem:[#allocation7 + $0xb58] sm:$0xff]
    %v4232 = vld [vmem:[#allocation7 + $0xb60] sm:$0xff]
    %v4233 = vld [vmem:[#allocation7 + $0xb68] sm:$0xff]
    %v4234 = vld [vmem:[#allocation7 + $0xb70] sm:$0xff]
    %v4235 = vld [vmem:[#allocation7 + $0xb78] sm:$0xff]
    %v4236 = vld [vmem:[#allocation7 + $0xb80] sm:$0xff]
    %v4237 = vld [vmem:[#allocation7 + $0xb88] sm:$0xff]
    %v4238 = vld [vmem:[#allocation7 + $0xb90] sm:$0xff]
    %v4239 = vld [vmem:[#allocation7 + $0xb98] sm:$0xff]
    %v4240 = vld [vmem:[#allocation7 + $0xba0] sm:$0xff]
    %v4241 = vld [vmem:[#allocation7 + $0xba8] sm:$0xff]
    %v4242 = vld [vmem:[#allocation7 + $0xbb0] sm:$0xff]
    %v4243 = vld [vmem:[#allocation7 + $0xbb8] sm:$0xff]
    %v4244 = vld [vmem:[#allocation7 + $0xbc0] sm:$0xff]
    %v4245 = vld [vmem:[#allocation7 + $0xbc8] sm:$0xff]
    %v4246 = vld [vmem:[#allocation7 + $0xbd0] sm:$0xff]
    %v4247 = vld [vmem:[#allocation7 + $0xbd8] sm:$0xff]
    %v4248 = vld [vmem:[#allocation7 + $0xbe0] sm:$0xff]
    %v4249 = vld [vmem:[#allocation7 + $0xbe8] sm:$0xff]
    %v4250 = vld [vmem:[#allocation7 + $0xbf0] sm:$0xff]
    %v4251 = vld [vmem:[#allocation7 + $0xbf8] sm:$0xff]
    %v4252 = vld [vmem:[#allocation7 + $0xc00] sm:$0xff]
    %v4253 = vld [vmem:[#allocation7 + $0xc08] sm:$0xff]
    %v4254 = vld [vmem:[#allocation7 + $0xc10] sm:$0xff]
    %v4255 = vld [vmem:[#allocation7 + $0xc18] sm:$0xff]
    %v4256 = vld [vmem:[#allocation7 + $0xc20] sm:$0xff]
    %v4257 = vld [vmem:[#allocation7 + $0xc28] sm:$0xff]
    %v4258 = vld [vmem:[#allocation7 + $0xc30] sm:$0xff]
    %v4259 = vld [vmem:[#allocation7 + $0xc38] sm:$0xff]
    %v4260 = vld [vmem:[#allocation7 + $0xc40] sm:$0xff]
    %v4261 = vld [vmem:[#allocation7 + $0xc48] sm:$0xff]
    %v4262 = vld [vmem:[#allocation7 + $0xc50] sm:$0xff]
    %v4263 = vld [vmem:[#allocation7 + $0xc58] sm:$0xff]
    %v4264 = vld [vmem:[#allocation7 + $0xc60] sm:$0xff]
    %v4265 = vld [vmem:[#allocation7 + $0xc68] sm:$0xff]
    %v4266 = vld [vmem:[#allocation7 + $0xc70] sm:$0xff]
    %v4267 = vld [vmem:[#allocation7 + $0xc78] sm:$0xff]
    %v4268 = vld [vmem:[#allocation7 + $0xc80] sm:$0xff]
    %v4269 = vld [vmem:[#allocation7 + $0xc88] sm:$0xff]
    %v4270 = vld [vmem:[#allocation7 + $0xc90] sm:$0xff]
    %v4271 = vld [vmem:[#allocation7 + $0xc98] sm:$0xff]
    %v4272 = vld [vmem:[#allocation7 + $0xca0] sm:$0xff]
    %v4273 = vld [vmem:[#allocation7 + $0xca8] sm:$0xff]
    %v4274 = vld [vmem:[#allocation7 + $0xcb0] sm:$0xff]
    %v4275 = vld [vmem:[#allocation7 + $0xcb8] sm:$0xff]
    %v4276 = vld [vmem:[#allocation7 + $0xcc0] sm:$0xff]
    %v4277 = vld [vmem:[#allocation7 + $0xcc8] sm:$0xff]
    %v4278 = vld [vmem:[#allocation7 + $0xcd0] sm:$0xff]
    %v4279 = vld [vmem:[#allocation7 + $0xcd8] sm:$0xff]
    %v4280 = vld [vmem:[#allocation7 + $0xce0] sm:$0xff]
    %v4281 = vld [vmem:[#allocation7 + $0xce8] sm:$0xff]
    %v4282 = vld [vmem:[#allocation7 + $0xcf0] sm:$0xff]
    %v4283 = vld [vmem:[#allocation7 + $0xcf8] sm:$0xff]
    %v4284 = vld [vmem:[#allocation7 + $0xd00] sm:$0xff]
    %v4285 = vld [vmem:[#allocation7 + $0xd08] sm:$0xff]
    %v4286 = vld [vmem:[#allocation7 + $0xd10] sm:$0xff]
    %v4287 = vld [vmem:[#allocation7 + $0xd18] sm:$0xff]
    %v4288 = vld [vmem:[#allocation7 + $0xd20] sm:$0xff]
    %v4289 = vld [vmem:[#allocation7 + $0xd28] sm:$0xff]
    %v4290 = vld [vmem:[#allocation7 + $0xd30] sm:$0xff]
    %v4291 = vld [vmem:[#allocation7 + $0xd38] sm:$0xff]
    %v4292 = vld [vmem:[#allocation7 + $0xd40] sm:$0xff]
    %v4293 = vld [vmem:[#allocation7 + $0xd48] sm:$0xff]
    %v4294 = vld [vmem:[#allocation7 + $0xd50] sm:$0xff]
    %v4295 = vld [vmem:[#allocation7 + $0xd58] sm:$0xff]
    %v4296 = vld [vmem:[#allocation7 + $0xd60] sm:$0xff]
    %v4297 = vld [vmem:[#allocation7 + $0xd68] sm:$0xff]
    %v4298 = vld [vmem:[#allocation7 + $0xd70] sm:$0xff]
    %v4299 = vld [vmem:[#allocation7 + $0xd78] sm:$0xff]
    %v4300 = vld [vmem:[#allocation7 + $0xd80] sm:$0xff]
    %v4301 = vld [vmem:[#allocation7 + $0xd88] sm:$0xff]
    %v4302 = vld [vmem:[#allocation7 + $0xd90] sm:$0xff]
    %v4303 = vld [vmem:[#allocation7 + $0xd98] sm:$0xff]
    %v4304 = vld [vmem:[#allocation7 + $0xda0] sm:$0xff]
    %v4305 = vld [vmem:[#allocation7 + $0xda8] sm:$0xff]
    %v4306 = vld [vmem:[#allocation7 + $0xdb0] sm:$0xff]
    %v4307 = vld [vmem:[#allocation7 + $0xdb8] sm:$0xff]
    %v4308 = vld [vmem:[#allocation7 + $0xdc0] sm:$0xff]
    %v4309 = vld [vmem:[#allocation7 + $0xdc8] sm:$0xff]
    %v4310 = vld [vmem:[#allocation7 + $0xdd0] sm:$0xff]
    %v4311 = vld [vmem:[#allocation7 + $0xdd8] sm:$0xff]
    %v4312 = vld [vmem:[#allocation7 + $0xde0] sm:$0xff]
    %v4313 = vld [vmem:[#allocation7 + $0xde8] sm:$0xff]
    %v4314 = vld [vmem:[#allocation7 + $0xdf0] sm:$0xff]
    %v4315 = vld [vmem:[#allocation7 + $0xdf8] sm:$0xff]
    %v4316 = vld [vmem:[#allocation7 + $0xe00] sm:$0xff]
    %v4317 = vld [vmem:[#allocation7 + $0xe08] sm:$0xff]
    %v4318 = vld [vmem:[#allocation7 + $0xe10] sm:$0xff]
    %v4319 = vld [vmem:[#allocation7 + $0xe18] sm:$0xff]
    %v4320 = vld [vmem:[#allocation7 + $0xe20] sm:$0xff]
    %v4321 = vld [vmem:[#allocation7 + $0xe28] sm:$0xff]
    %v4322 = vld [vmem:[#allocation7 + $0xe30] sm:$0xff]
    %v4323 = vld [vmem:[#allocation7 + $0xe38] sm:$0xff]
    %v4324 = vld [vmem:[#allocation7 + $0xe40] sm:$0xff]
    %v4325 = vld [vmem:[#allocation7 + $0xe48] sm:$0xff]
    %v4326 = vld [vmem:[#allocation7 + $0xe50] sm:$0xff]
    %v4327 = vld [vmem:[#allocation7 + $0xe58] sm:$0xff]
    %v4328 = vld [vmem:[#allocation7 + $0xe60] sm:$0xff]
    %v4329 = vld [vmem:[#allocation7 + $0xe68] sm:$0xff]
    %v4330 = vld [vmem:[#allocation7 + $0xe70] sm:$0xff]
    %v4331 = vld [vmem:[#allocation7 + $0xe78] sm:$0xff]
    %v4332 = vld [vmem:[#allocation7 + $0xe80] sm:$0xff]
    %v4333 = vld [vmem:[#allocation7 + $0xe88] sm:$0xff]
    %v4334 = vld [vmem:[#allocation7 + $0xe90] sm:$0xff]
    %v4335 = vld [vmem:[#allocation7 + $0xe98] sm:$0xff]
    %v4336 = vld [vmem:[#allocation7 + $0xea0] sm:$0xff]
    %v4337 = vld [vmem:[#allocation7 + $0xea8] sm:$0xff]
    %v4338 = vld [vmem:[#allocation7 + $0xeb0] sm:$0xff]
    %v4339 = vld [vmem:[#allocation7 + $0xeb8] sm:$0xff]
    %v4340 = vld [vmem:[#allocation7 + $0xec0] sm:$0xff]
    %v4341 = vld [vmem:[#allocation7 + $0xec8] sm:$0xff]
    %v4342 = vld [vmem:[#allocation7 + $0xed0] sm:$0xff]
    %v4343 = vld [vmem:[#allocation7 + $0xed8] sm:$0xff]
    %v4344 = vld [vmem:[#allocation7 + $0xee0] sm:$0xff]
    %v4345 = vld [vmem:[#allocation7 + $0xee8] sm:$0xff]
    %v4346 = vld [vmem:[#allocation7 + $0xef0] sm:$0xff]
    %v4347 = vld [vmem:[#allocation7 + $0xef8] sm:$0xff]
    %v4348 = vld [vmem:[#allocation7 + $0xf00] sm:$0xff]
    %v4349 = vld [vmem:[#allocation7 + $0xf08] sm:$0xff]
    %v4350 = vld [vmem:[#allocation7 + $0xf10] sm:$0xff]
    %v4351 = vld [vmem:[#allocation7 + $0xf18] sm:$0xff]
    %v4352 = vld [vmem:[#allocation7 + $0xf20] sm:$0xff]
    %v4353 = vld [vmem:[#allocation7 + $0xf28] sm:$0xff]
    %v4354 = vld [vmem:[#allocation7 + $0xf30] sm:$0xff]
    %v4355 = vld [vmem:[#allocation7 + $0xf38] sm:$0xff]
    %v4356 = vld [vmem:[#allocation7 + $0xf40] sm:$0xff]
    %v4357 = vld [vmem:[#allocation7 + $0xf48] sm:$0xff]
    %v4358 = vld [vmem:[#allocation7 + $0xf50] sm:$0xff]
    %v4359 = vld [vmem:[#allocation7 + $0xf58] sm:$0xff]
    %v4360 = vld [vmem:[#allocation7 + $0xf60] sm:$0xff]
    %v4361 = vld [vmem:[#allocation7 + $0xf68] sm:$0xff]
    %v4362 = vld [vmem:[#allocation7 + $0xf70] sm:$0xff]
    %v4363 = vld [vmem:[#allocation7 + $0xf78] sm:$0xff]
    %v4364 = vld [vmem:[#allocation7 + $0xf80] sm:$0xff]
    %v4365 = vld [vmem:[#allocation7 + $0xf88] sm:$0xff]
    %v4366 = vld [vmem:[#allocation7 + $0xf90] sm:$0xff]
    %v4367 = vld [vmem:[#allocation7 + $0xf98] sm:$0xff]
    %v4368 = vld [vmem:[#allocation7 + $0xfa0] sm:$0xff]
    %v4369 = vld [vmem:[#allocation7 + $0xfa8] sm:$0xff]
    %v4370 = vld [vmem:[#allocation7 + $0xfb0] sm:$0xff]
    %v4371 = vld [vmem:[#allocation7 + $0xfb8] sm:$0xff]
    %v4372 = vld [vmem:[#allocation7 + $0xfc0] sm:$0xff]
    %v4373 = vld [vmem:[#allocation7 + $0xfc8] sm:$0xff]
    %v4374 = vld [vmem:[#allocation7 + $0xfd0] sm:$0xff]
    %v4375 = vld [vmem:[#allocation7 + $0xfd8] sm:$0xff]
    %v4376 = vld [vmem:[#allocation7 + $0xfe0] sm:$0xff]
    %v4377 = vld [vmem:[#allocation7 + $0xfe8] sm:$0xff]
    %v4378 = vld [vmem:[#allocation7 + $0xff0] sm:$0xff]
    %v4379 = vld [vmem:[#allocation7 + $0xff8] sm:$0xff]
    %v4380 = vld [vmem:[#allocation7 + $0x1000] sm:$0xff]
    %v4381 = vld [vmem:[#allocation7 + $0x1008] sm:$0xff]
    %v4382 = vld [vmem:[#allocation7 + $0x1010] sm:$0xff]
    %v4383 = vld [vmem:[#allocation7 + $0x1018] sm:$0xff]
    %v4384 = vld [vmem:[#allocation7 + $0x1020] sm:$0xff]
    %v4385 = vld [vmem:[#allocation7 + $0x1028] sm:$0xff]
    %v4386 = vld [vmem:[#allocation7 + $0x1030] sm:$0xff]
    %v4387 = vld [vmem:[#allocation7 + $0x1038] sm:$0xff]
    %v4388 = vld [vmem:[#allocation7 + $0x1040] sm:$0xff]
    %v4389 = vld [vmem:[#allocation7 + $0x1048] sm:$0xff]
    %v4390 = vld [vmem:[#allocation7 + $0x1050] sm:$0xff]
    %v4391 = vld [vmem:[#allocation7 + $0x1058] sm:$0xff]
    %v4392 = vld [vmem:[#allocation7 + $0x1060] sm:$0xff]
    %v4393 = vld [vmem:[#allocation7 + $0x1068] sm:$0xff]
    %v4394 = vld [vmem:[#allocation7 + $0x1070] sm:$0xff]
    %v4395 = vld [vmem:[#allocation7 + $0x1078] sm:$0xff]
    %v4396 = vld [vmem:[#allocation7 + $0x1080] sm:$0xff]
    %v4397 = vld [vmem:[#allocation7 + $0x1088] sm:$0xff]
    %v4398 = vld [vmem:[#allocation7 + $0x1090] sm:$0xff]
    %v4399 = vld [vmem:[#allocation7 + $0x1098] sm:$0xff]
    %v4400 = vld [vmem:[#allocation7 + $0x10a0] sm:$0xff]
    %v4401 = vld [vmem:[#allocation7 + $0x10a8] sm:$0xff]
    %v4402 = vld [vmem:[#allocation7 + $0x10b0] sm:$0xff]
    %v4403 = vld [vmem:[#allocation7 + $0x10b8] sm:$0xff]
    %v4404 = vld [vmem:[#allocation7 + $0x10c0] sm:$0xff]
    %v4405 = vld [vmem:[#allocation7 + $0x10c8] sm:$0xff]
    %v4406 = vld [vmem:[#allocation7 + $0x10d0] sm:$0xff]
    %v4407 = vld [vmem:[#allocation7 + $0x10d8] sm:$0xff]
    %v4408 = vld [vmem:[#allocation7 + $0x10e0] sm:$0xff]
    %v4409 = vld [vmem:[#allocation7 + $0x10e8] sm:$0xff]
    %v4410 = vld [vmem:[#allocation7 + $0x10f0] sm:$0xff]
    %v4411 = vld [vmem:[#allocation7 + $0x10f8] sm:$0xff]
    %v4412 = vld [vmem:[#allocation7 + $0x1100] sm:$0xff]
    %v4413 = vld [vmem:[#allocation7 + $0x1108] sm:$0xff]
    %v4414 = vld [vmem:[#allocation7 + $0x1110] sm:$0xff]
    %v4415 = vld [vmem:[#allocation7 + $0x1118] sm:$0xff]
    %v4416 = vld [vmem:[#allocation7 + $0x1120] sm:$0xff]
    %v4417 = vld [vmem:[#allocation7 + $0x1128] sm:$0xff]
    %v4418 = vld [vmem:[#allocation7 + $0x1130] sm:$0xff]
    %v4419 = vld [vmem:[#allocation7 + $0x1138] sm:$0xff]
    %v4420 = vld [vmem:[#allocation7 + $0x1140] sm:$0xff]
    %v4421 = vld [vmem:[#allocation7 + $0x1148] sm:$0xff]
    %v4422 = vld [vmem:[#allocation7 + $0x1150] sm:$0xff]
    %v4423 = vld [vmem:[#allocation7 + $0x1158] sm:$0xff]
    %v4424 = vld [vmem:[#allocation7 + $0x1160] sm:$0xff]
    %v4425 = vld [vmem:[#allocation7 + $0x1168] sm:$0xff]
    %v4426 = vld [vmem:[#allocation7 + $0x1170] sm:$0xff]
    %v4427 = vld [vmem:[#allocation7 + $0x1178] sm:$0xff]
    %v4428 = vld [vmem:[#allocation7 + $0x1180] sm:$0xff]
    %v4429 = vld [vmem:[#allocation7 + $0x1188] sm:$0xff]
    %v4430 = vld [vmem:[#allocation7 + $0x1190] sm:$0xff]
    %v4431 = vld [vmem:[#allocation7 + $0x1198] sm:$0xff]
    %v4432 = vld [vmem:[#allocation7 + $0x11a0] sm:$0xff]
    %v4433 = vld [vmem:[#allocation7 + $0x11a8] sm:$0xff]
    %v4434 = vld [vmem:[#allocation7 + $0x11b0] sm:$0xff]
    %v4435 = vld [vmem:[#allocation7 + $0x11b8] sm:$0xff]
    %v4436 = vld [vmem:[#allocation7 + $0x11c0] sm:$0xff]
    %v4437 = vld [vmem:[#allocation7 + $0x11c8] sm:$0xff]
    %v4438 = vld [vmem:[#allocation7 + $0x11d0] sm:$0xff]
    %v4439 = vld [vmem:[#allocation7 + $0x11d8] sm:$0xff]
    %v4440 = vld [vmem:[#allocation7 + $0x11e0] sm:$0xff]
    %v4441 = vld [vmem:[#allocation7 + $0x11e8] sm:$0xff]
    %v4442 = vld [vmem:[#allocation7 + $0x11f0] sm:$0xff]
    %v4443 = vld [vmem:[#allocation7 + $0x11f8] sm:$0xff]
    %v4445 = vlaneseq
    %v4446 = vshrl.u32 %v4445, 7
    %v4447 = vsub.s32 0, %v4446
    %v4448 = vrot.slane %v2752, %v4447
    %v4449 = vlaneseq
    %v4450 = vshrl.u32 %v4449, 7
    %v4451 = vsub.s32 1, %v4450
    %v4452 = vrot.slane %v2752, %v4451
    %v4453 = vlaneseq
    %v4454 = vshrl.u32 %v4453, 7
    %v4455 = vsub.s32 2, %v4454
    %v4456 = vrot.slane %v2752, %v4455
    %v4457 = vlaneseq
    %v4458 = vshrl.u32 %v4457, 7
    %v4459 = vsub.s32 3, %v4458
    %v4460 = vrot.slane %v2752, %v4459
    %v4461 = vlaneseq
    %v4462 = vshrl.u32 %v4461, 7
    %v4463 = vsub.s32 4, %v4462
    %v4464 = vrot.slane %v2752, %v4463
    %v4465 = vlaneseq
    %v4466 = vshrl.u32 %v4465, 7
    %v4467 = vsub.s32 5, %v4466
    %v4468 = vrot.slane %v2752, %v4467
    %v4475 = vpack.i.b16 %v3826, %v3824
    %v4476 = vpack.i.b16 %v3827, %v3825
    %v4477 = vpack.i.b16 %v3830, %v3828
    %v4478 = vpack.i.b16 %v3831, %v3829
    %v4479 = vpack.i.b16 %v3834, %v3832
    %v4480 = vpack.i.b16 %v3835, %v3833
    %v4481 = vpack.i.b16 %v3838, %v3836
    %v4482 = vpack.i.b16 %v3839, %v3837
    %v4483 = vpack.i.b16 %v3842, %v3840
    %v4484 = vpack.i.b16 %v3843, %v3841
    %v4485 = vpack.i.b16 %v3846, %v3844
    %v4486 = vpack.i.b16 %v3847, %v3845
    %v4487 = vpack.i.b16 %v3850, %v3848
    %v4488 = vpack.i.b16 %v3851, %v3849
    %v4489 = vpack.i.b16 %v3854, %v3852
    %v4490 = vpack.i.b16 %v3855, %v3853
    %v4491 = vpack.i.b16 %v3858, %v3856
    %v4492 = vpack.i.b16 %v3859, %v3857
    %v4493 = vpack.i.b16 %v3862, %v3860
    %v4494 = vpack.i.b16 %v3863, %v3861
    %v4495 = vpack.i.b16 %v3866, %v3864
    %v4496 = vpack.i.b16 %v3867, %v3865
    %v4497 = vcombine.low %v4475, %v4477
    %v4498 = vcombine.high %v4475, %v4477
    %v4499 = vcombine.low %v4479, %v4481
    %v4500 = vcombine.high %v4479, %v4481
    %v4501 = vcombine.low %v4483, %v4485
    %v4502 = vcombine.high %v4483, %v4485
    %v4503 = vcombine.low %v4487, %v4489
    %v4504 = vcombine.high %v4487, %v4489
    %v4506 = vunpack.c.l.s4 1966171168
    %v4507 = vunpack.c.0.s8 %v4506
    %v4508 = vlaneseq
    %v4509 = vshrl.u32 %v4508, 7
    %v4510 = vsub.s32 %v4507, %v4509
    %v4511 = vrot.slane %v4497, %v4510
    %v4513 = vunpack.c.l.s4 1966171168
    %v4514 = vunpack.c.0.s8 %v4513
    %v4515 = vlaneseq
    %v4516 = vshrl.u32 %v4515, 7
    %v4517 = vsub.s32 %v4514, %v4516
    %v4518 = vrot.slane %v4498, %v4517
    %v4520 = vunpack.c.l.s4 1966171168
    %v4521 = vunpack.c.0.s8 %v4520
    %v4522 = vlaneseq
    %v4523 = vshrl.u32 %v4522, 7
    %v4524 = vsub.s32 %v4521, %v4523
    %v4525 = vrot.slane %v4499, %v4524
    %v4527 = vunpack.c.l.s4 1966171168
    %v4528 = vunpack.c.0.s8 %v4527
    %v4529 = vlaneseq
    %v4530 = vshrl.u32 %v4529, 7
    %v4531 = vsub.s32 %v4528, %v4530
    %v4532 = vrot.slane %v4500, %v4531
    %v4534 = vunpack.c.l.s4 1966171168
    %v4535 = vunpack.c.0.s8 %v4534
    %v4536 = vlaneseq
    %v4537 = vshrl.u32 %v4536, 7
    %v4538 = vsub.s32 %v4535, %v4537
    %v4539 = vrot.slane %v4501, %v4538
    %v4541 = vunpack.c.l.s4 1966171168
    %v4542 = vunpack.c.0.s8 %v4541
    %v4543 = vlaneseq
    %v4544 = vshrl.u32 %v4543, 7
    %v4545 = vsub.s32 %v4542, %v4544
    %v4546 = vrot.slane %v4502, %v4545
    %v4548 = vunpack.c.l.s4 1966171168
    %v4549 = vunpack.c.0.s8 %v4548
    %v4550 = vlaneseq
    %v4551 = vshrl.u32 %v4550, 7
    %v4552 = vsub.s32 %v4549, %v4551
    %v4553 = vrot.slane %v4503, %v4552
    %v4555 = vunpack.c.l.s4 1966171168
    %v4556 = vunpack.c.0.s8 %v4555
    %v4557 = vlaneseq
    %v4558 = vshrl.u32 %v4557, 7
    %v4559 = vsub.s32 %v4556, %v4558
    %v4560 = vrot.slane %v4504, %v4559
    %v4561 = vcombine.low %v4511, %v4525
    %v4562 = vcombine.high %v4511, %v4525
    %v4563 = vcombine.low %v4518, %v4532
    %v4564 = vcombine.high %v4518, %v4532
    %v4565 = vcombine.low %v4539, %v4553
    %v4566 = vcombine.high %v4539, %v4553
    %v4567 = vcombine.low %v4546, %v4560
    %v4568 = vcombine.high %v4546, %v4560
    %v4570 = vunpack.c.l.s4 1966171168
    %v4571 = vunpack.c.0.s8 %v4570
    %v4572 = vlaneseq
    %v4573 = vshrl.u32 %v4572, 7
    %v4574 = vsub.s32 %v4571, %v4573
    %v4575 = vrot.slane %v4561, %v4574
    %v4577 = vunpack.c.l.s4 1966171168
    %v4578 = vunpack.c.0.s8 %v4577
    %v4579 = vlaneseq
    %v4580 = vshrl.u32 %v4579, 7
    %v4581 = vsub.s32 %v4578, %v4580
    %v4582 = vrot.slane %v4563, %v4581
    %v4584 = vunpack.c.l.s4 1966171168
    %v4585 = vunpack.c.0.s8 %v4584
    %v4586 = vlaneseq
    %v4587 = vshrl.u32 %v4586, 7
    %v4588 = vsub.s32 %v4585, %v4587
    %v4589 = vrot.slane %v4562, %v4588
    %v4591 = vunpack.c.l.s4 1966171168
    %v4592 = vunpack.c.0.s8 %v4591
    %v4593 = vlaneseq
    %v4594 = vshrl.u32 %v4593, 7
    %v4595 = vsub.s32 %v4592, %v4594
    %v4596 = vrot.slane %v4564, %v4595
    %v4598 = vunpack.c.l.s4 1966171168
    %v4599 = vunpack.c.0.s8 %v4598
    %v4600 = vlaneseq
    %v4601 = vshrl.u32 %v4600, 7
    %v4602 = vsub.s32 %v4599, %v4601
    %v4603 = vrot.slane %v4565, %v4602
    %v4605 = vunpack.c.l.s4 1966171168
    %v4606 = vunpack.c.0.s8 %v4605
    %v4607 = vlaneseq
    %v4608 = vshrl.u32 %v4607, 7
    %v4609 = vsub.s32 %v4606, %v4608
    %v4610 = vrot.slane %v4567, %v4609
    %v4612 = vunpack.c.l.s4 1966171168
    %v4613 = vunpack.c.0.s8 %v4612
    %v4614 = vlaneseq
    %v4615 = vshrl.u32 %v4614, 7
    %v4616 = vsub.s32 %v4613, %v4615
    %v4617 = vrot.slane %v4566, %v4616
    %v4619 = vunpack.c.l.s4 1966171168
    %v4620 = vunpack.c.0.s8 %v4619
    %v4621 = vlaneseq
    %v4622 = vshrl.u32 %v4621, 7
    %v4623 = vsub.s32 %v4620, %v4622
    %v4624 = vrot.slane %v4568, %v4623
    %v4625 = vcombine.low %v4575, %v4603
    %v4626 = vcombine.high %v4575, %v4603
    %v4627 = vcombine.low %v4582, %v4610
    %v4628 = vcombine.high %v4582, %v4610
    %v4629 = vcombine.low %v4589, %v4617
    %v4630 = vcombine.high %v4589, %v4617
    %v4631 = vcombine.low %v4596, %v4624
    %v4632 = vcombine.high %v4596, %v4624
    %v4633 = vcombine.low %v4476, %v4478
    %v4634 = vcombine.low %v4480, %v4482
    %v4635 = vcombine.low %v4484, %v4486
    %v4636 = vcombine.low %v4488, %v4490
    %v4638 = vunpack.c.l.s4 1966171168
    %v4639 = vunpack.c.0.s8 %v4638
    %v4640 = vlaneseq
    %v4641 = vshrl.u32 %v4640, 7
    %v4642 = vsub.s32 %v4639, %v4641
    %v4643 = vrot.slane %v4633, %v4642
    %v4645 = vunpack.c.l.s4 1966171168
    %v4646 = vunpack.c.0.s8 %v4645
    %v4647 = vlaneseq
    %v4648 = vshrl.u32 %v4647, 7
    %v4649 = vsub.s32 %v4646, %v4648
    %v4650 = vrot.slane %v4634, %v4649
    %v4652 = vunpack.c.l.s4 1966171168
    %v4653 = vunpack.c.0.s8 %v4652
    %v4654 = vlaneseq
    %v4655 = vshrl.u32 %v4654, 7
    %v4656 = vsub.s32 %v4653, %v4655
    %v4657 = vrot.slane %v4635, %v4656
    %v4659 = vunpack.c.l.s4 1966171168
    %v4660 = vunpack.c.0.s8 %v4659
    %v4661 = vlaneseq
    %v4662 = vshrl.u32 %v4661, 7
    %v4663 = vsub.s32 %v4660, %v4662
    %v4664 = vrot.slane %v4636, %v4663
    %v4665 = vcombine.low %v4643, %v4650
    %v4666 = vcombine.high %v4643, %v4650
    %v4667 = vcombine.low %v4657, %v4664
    %v4668 = vcombine.high %v4657, %v4664
    %v4670 = vunpack.c.l.s4 1966171168
    %v4671 = vunpack.c.0.s8 %v4670
    %v4672 = vlaneseq
    %v4673 = vshrl.u32 %v4672, 7
    %v4674 = vsub.s32 %v4671, %v4673
    %v4675 = vrot.slane %v4665, %v4674
    %v4677 = vunpack.c.l.s4 1966171168
    %v4678 = vunpack.c.0.s8 %v4677
    %v4679 = vlaneseq
    %v4680 = vshrl.u32 %v4679, 7
    %v4681 = vsub.s32 %v4678, %v4680
    %v4682 = vrot.slane %v4666, %v4681
    %v4684 = vunpack.c.l.s4 1966171168
    %v4685 = vunpack.c.0.s8 %v4684
    %v4686 = vlaneseq
    %v4687 = vshrl.u32 %v4686, 7
    %v4688 = vsub.s32 %v4685, %v4687
    %v4689 = vrot.slane %v4667, %v4688
    %v4691 = vunpack.c.l.s4 1966171168
    %v4692 = vunpack.c.0.s8 %v4691
    %v4693 = vlaneseq
    %v4694 = vshrl.u32 %v4693, 7
    %v4695 = vsub.s32 %v4692, %v4694
    %v4696 = vrot.slane %v4668, %v4695
    %v4697 = vcombine.low %v4675, %v4689
    %v4698 = vcombine.high %v4675, %v4689
    %v4699 = vcombine.low %v4682, %v4696
    %v4700 = vcombine.high %v4682, %v4696
    %v4701 = vcombine.low %v4491, %v4493
    %v4702 = vcombine.high %v4491, %v4493
    %v4703 = vcombine.high %v4495, %v4495
    %v4705 = vunpack.c.l.s4 1966171168
    %v4706 = vunpack.c.0.s8 %v4705
    %v4707 = vlaneseq
    %v4708 = vshrl.u32 %v4707, 7
    %v4709 = vsub.s32 %v4706, %v4708
    %v4710 = vrot.slane %v4701, %v4709
    %v4712 = vunpack.c.l.s4 1966171168
    %v4713 = vunpack.c.0.s8 %v4712
    %v4714 = vlaneseq
    %v4715 = vshrl.u32 %v4714, 7
    %v4716 = vsub.s32 %v4713, %v4715
    %v4717 = vrot.slane %v4702, %v4716
    %v4719 = vunpack.c.l.s4 1966171168
    %v4720 = vunpack.c.0.s8 %v4719
    %v4721 = vlaneseq
    %v4722 = vshrl.u32 %v4721, 7
    %v4723 = vsub.s32 %v4720, %v4722
    %v4724 = vrot.slane %v4495, %v4723
    %v4726 = vunpack.c.l.s4 1966171168
    %v4727 = vunpack.c.0.s8 %v4726
    %v4728 = vlaneseq
    %v4729 = vshrl.u32 %v4728, 7
    %v4730 = vsub.s32 %v4727, %v4729
    %v4731 = vrot.slane %v4703, %v4730
    %v4732 = vcombine.low %v4710, %v4724
    %v4733 = vcombine.high %v4710, %v4724
    %v4734 = vcombine.low %v4717, %v4731
    %v4735 = vcombine.high %v4717, %v4731
    %v4737 = vunpack.c.l.s4 1966171168
    %v4738 = vunpack.c.0.s8 %v4737
    %v4739 = vlaneseq
    %v4740 = vshrl.u32 %v4739, 7
    %v4741 = vsub.s32 %v4738, %v4740
    %v4742 = vrot.slane %v4732, %v4741
    %v4744 = vunpack.c.l.s4 1966171168
    %v4745 = vunpack.c.0.s8 %v4744
    %v4746 = vlaneseq
    %v4747 = vshrl.u32 %v4746, 7
    %v4748 = vsub.s32 %v4745, %v4747
    %v4749 = vrot.slane %v4734, %v4748
    %v4751 = vunpack.c.l.s4 1966171168
    %v4752 = vunpack.c.0.s8 %v4751
    %v4753 = vlaneseq
    %v4754 = vshrl.u32 %v4753, 7
    %v4755 = vsub.s32 %v4752, %v4754
    %v4756 = vrot.slane %v4733, %v4755
    %v4758 = vunpack.c.l.s4 1966171168
    %v4759 = vunpack.c.0.s8 %v4758
    %v4760 = vlaneseq
    %v4761 = vshrl.u32 %v4760, 7
    %v4762 = vsub.s32 %v4759, %v4761
    %v4763 = vrot.slane %v4735, %v4762
    %v4764 = vcombine.high %v4742, %v4742
    %v4765 = vcombine.high %v4749, %v4749
    %v4766 = vcombine.high %v4756, %v4756
    %v4767 = vcombine.high %v4763, %v4763
    %v4768 = vcombine.low %v4492, %v4494
    %v4770 = vunpack.c.l.s4 1966171168
    %v4771 = vunpack.c.0.s8 %v4770
    %v4772 = vlaneseq
    %v4773 = vshrl.u32 %v4772, 7
    %v4774 = vsub.s32 %v4771, %v4773
    %v4775 = vrot.slane %v4768, %v4774
    %v4777 = vunpack.c.l.s4 1966171168
    %v4778 = vunpack.c.0.s8 %v4777
    %v4779 = vlaneseq
    %v4780 = vshrl.u32 %v4779, 7
    %v4781 = vsub.s32 %v4778, %v4780
    %v4782 = vrot.slane %v4496, %v4781
    %v4783 = vcombine.low %v4775, %v4782
    %v4784 = vcombine.high %v4775, %v4782
    %v4786 = vunpack.c.l.s4 1966171168
    %v4787 = vunpack.c.0.s8 %v4786
    %v4788 = vlaneseq
    %v4789 = vshrl.u32 %v4788, 7
    %v4790 = vsub.s32 %v4787, %v4789
    %v4791 = vrot.slane %v4783, %v4790
    %v4793 = vunpack.c.l.s4 1966171168
    %v4794 = vunpack.c.0.s8 %v4793
    %v4795 = vlaneseq
    %v4796 = vshrl.u32 %v4795, 7
    %v4797 = vsub.s32 %v4794, %v4796
    %v4798 = vrot.slane %v4784, %v4797
    %v4799 = vcombine.high %v4791, %v4791
    %v4800 = vcombine.high %v4798, %v4798
    %v5401 = vunpack.c.l.b16 %v3868
    %v5402 = vunpack.c.h.b16 %v3868
    %v5403 = vunpack.c.l.b16 %v3869
    %v5404 = vunpack.c.h.b16 %v3869
    %v5405 = vunpack.c.l.b16 %v3870
    %v5406 = vunpack.c.h.b16 %v3870
    %v5407 = vunpack.c.l.b16 %v3871
    %v5408 = vunpack.c.h.b16 %v3871
    %v5409 = vunpack.c.l.b16 %v3872
    %v5410 = vunpack.c.h.b16 %v3872
    %v5411 = vunpack.c.l.b16 %v3873
    %v5412 = vunpack.c.h.b16 %v3873
    %v5413 = vunpack.c.l.b16 %v3874
    %v5414 = vunpack.c.h.b16 %v3874
    %v5415 = vunpack.c.l.b16 %v3875
    %v5416 = vunpack.c.h.b16 %v3875
    %v5417 = vunpack.c.l.b16 %v3876
    %v5418 = vunpack.c.h.b16 %v3876
    %v5419 = vunpack.c.l.b16 %v3877
    %v5420 = vunpack.c.h.b16 %v3877
    %v5421 = vunpack.c.l.b16 %v3878
    %v5422 = vunpack.c.h.b16 %v3878
    %v5423 = vunpack.c.l.b16 %v3879
    %v5424 = vunpack.c.h.b16 %v3879
    %v5425 = vunpack.c.l.b16 %v3880
    %v5426 = vunpack.c.h.b16 %v3880
    %v5427 = vunpack.c.l.b16 %v3881
    %v5428 = vunpack.c.h.b16 %v3881
    %v5429 = vunpack.c.l.b16 %v3882
    %v5430 = vunpack.c.h.b16 %v3882
    %v5431 = vunpack.c.l.b16 %v3883
    %v5432 = vunpack.c.h.b16 %v3883
    %v5433 = vunpack.c.l.b16 %v3884
    %v5434 = vunpack.c.h.b16 %v3884
    %v5435 = vunpack.c.l.b16 %v3885
    %v5436 = vunpack.c.h.b16 %v3885
    %v5437 = vunpack.c.l.b16 %v3886
    %v5438 = vunpack.c.h.b16 %v3886
    %v5439 = vunpack.c.l.b16 %v3887
    %v5440 = vunpack.c.h.b16 %v3887
    %v5441 = vunpack.c.l.b16 %v3888
    %v5442 = vunpack.c.h.b16 %v3888
    %v5443 = vunpack.c.l.b16 %v3889
    %v5444 = vunpack.c.h.b16 %v3889
    %v5445 = vunpack.c.l.b16 %v3890
    %v5446 = vunpack.c.h.b16 %v3890
    %v5447 = vunpack.c.l.b16 %v3891
    %v5448 = vunpack.c.h.b16 %v3891
    %v5449 = vunpack.c.l.b16 %v3892
    %v5450 = vunpack.c.h.b16 %v3892
    %v5451 = vunpack.c.l.b16 %v3893
    %v5452 = vunpack.c.h.b16 %v3893
    %v5453 = vunpack.c.l.b16 %v3894
    %v5454 = vunpack.c.h.b16 %v3894
    %v5455 = vunpack.c.l.b16 %v3895
    %v5456 = vunpack.c.h.b16 %v3895
    %v5457 = vunpack.c.l.b16 %v3896
    %v5458 = vunpack.c.h.b16 %v3896
    %v5459 = vunpack.c.l.b16 %v3897
    %v5460 = vunpack.c.h.b16 %v3897
    %v5461 = vunpack.c.l.b16 %v3898
    %v5462 = vunpack.c.h.b16 %v3898
    %v5463 = vunpack.c.l.b16 %v3899
    %v5464 = vunpack.c.h.b16 %v3899
    %v5465 = vunpack.c.l.b16 %v3900
    %v5466 = vunpack.c.h.b16 %v3900
    %v5467 = vunpack.c.l.b16 %v3901
    %v5468 = vunpack.c.h.b16 %v3901
    %v5469 = vunpack.c.l.b16 %v3902
    %v5470 = vunpack.c.h.b16 %v3902
    %v5471 = vunpack.c.l.b16 %v3903
    %v5472 = vunpack.c.h.b16 %v3903
    %v5473 = vunpack.c.l.b16 %v3904
    %v5474 = vunpack.c.h.b16 %v3904
    %v5475 = vunpack.c.l.b16 %v3905
    %v5476 = vunpack.c.h.b16 %v3905
    %v5477 = vunpack.c.l.b16 %v3906
    %v5478 = vunpack.c.h.b16 %v3906
    %v5479 = vunpack.c.l.b16 %v3907
    %v5480 = vunpack.c.h.b16 %v3907
    %v5481 = vunpack.c.l.b16 %v3908
    %v5482 = vunpack.c.h.b16 %v3908
    %v5483 = vunpack.c.l.b16 %v3909
    %v5484 = vunpack.c.h.b16 %v3909
    %v5485 = vunpack.c.l.b16 %v3910
    %v5486 = vunpack.c.h.b16 %v3910
    %v5487 = vunpack.c.l.b16 %v3911
    %v5488 = vunpack.c.h.b16 %v3911
    %v5489 = vunpack.c.l.b16 %v3912
    %v5490 = vunpack.c.h.b16 %v3912
    %v5491 = vunpack.c.l.b16 %v3913
    %v5492 = vunpack.c.h.b16 %v3913
    %v5493 = vunpack.c.l.b16 %v3914
    %v5494 = vunpack.c.h.b16 %v3914
    %v5495 = vunpack.c.l.b16 %v3915
    %v5496 = vunpack.c.h.b16 %v3915
    %v5497 = vunpack.c.l.b16 %v3916
    %v5498 = vunpack.c.h.b16 %v3916
    %v5499 = vunpack.c.l.b16 %v3917
    %v5500 = vunpack.c.h.b16 %v3917
    %v5501 = vunpack.c.l.b16 %v3918
    %v5502 = vunpack.c.h.b16 %v3918
    %v5503 = vunpack.c.l.b16 %v3919
    %v5504 = vunpack.c.h.b16 %v3919
    %v5505 = vunpack.c.l.b16 %v3920
    %v5506 = vunpack.c.h.b16 %v3920
    %v5507 = vunpack.c.l.b16 %v3921
    %v5508 = vunpack.c.h.b16 %v3921
    %v5509 = vunpack.c.l.b16 %v3922
    %v5510 = vunpack.c.h.b16 %v3922
    %v5511 = vunpack.c.l.b16 %v3923
    %v5512 = vunpack.c.h.b16 %v3923
    %v5513 = vunpack.c.l.b16 %v3924
    %v5514 = vunpack.c.h.b16 %v3924
    %v5515 = vunpack.c.l.b16 %v3925
    %v5516 = vunpack.c.h.b16 %v3925
    %v5517 = vunpack.c.l.b16 %v3926
    %v5518 = vunpack.c.h.b16 %v3926
    %v5519 = vunpack.c.l.b16 %v3927
    %v5520 = vunpack.c.h.b16 %v3927
    %v5521 = vunpack.c.l.b16 %v3928
    %v5522 = vunpack.c.h.b16 %v3928
    %v5523 = vunpack.c.l.b16 %v3929
    %v5524 = vunpack.c.h.b16 %v3929
    %v5525 = vunpack.c.l.b16 %v3930
    %v5526 = vunpack.c.h.b16 %v3930
    %v5527 = vunpack.c.l.b16 %v3931
    %v5528 = vunpack.c.h.b16 %v3931
    %v5529 = vunpack.c.l.b16 %v3932
    %v5530 = vunpack.c.h.b16 %v3932
    %v5531 = vunpack.c.l.b16 %v3933
    %v5532 = vunpack.c.h.b16 %v3933
    %v5533 = vunpack.c.l.b16 %v3934
    %v5534 = vunpack.c.h.b16 %v3934
    %v5535 = vunpack.c.l.b16 %v3935
    %v5536 = vunpack.c.h.b16 %v3935
    %v5537 = vunpack.c.l.b16 %v3936
    %v5538 = vunpack.c.h.b16 %v3936
    %v5539 = vunpack.c.l.b16 %v3937
    %v5540 = vunpack.c.h.b16 %v3937
    %v5541 = vunpack.c.l.b16 %v3938
    %v5542 = vunpack.c.h.b16 %v3938
    %v5543 = vunpack.c.l.b16 %v3939
    %v5544 = vunpack.c.h.b16 %v3939
    %v5545 = vunpack.c.l.b16 %v3940
    %v5546 = vunpack.c.h.b16 %v3940
    %v5547 = vunpack.c.l.b16 %v3941
    %v5548 = vunpack.c.h.b16 %v3941
    %v5549 = vunpack.c.l.b16 %v3942
    %v5550 = vunpack.c.h.b16 %v3942
    %v5551 = vunpack.c.l.b16 %v3943
    %v5552 = vunpack.c.h.b16 %v3943
    %v5553 = vunpack.c.l.b16 %v3944
    %v5554 = vunpack.c.h.b16 %v3944
    %v5555 = vunpack.c.l.b16 %v3945
    %v5556 = vunpack.c.h.b16 %v3945
    %v5557 = vunpack.c.l.b16 %v3946
    %v5558 = vunpack.c.h.b16 %v3946
    %v5559 = vunpack.c.l.b16 %v3947
    %v5560 = vunpack.c.h.b16 %v3947
    %v5561 = vunpack.c.l.b16 %v3948
    %v5562 = vunpack.c.h.b16 %v3948
    %v5563 = vunpack.c.l.b16 %v3949
    %v5564 = vunpack.c.h.b16 %v3949
    %v5565 = vunpack.c.l.b16 %v3950
    %v5566 = vunpack.c.h.b16 %v3950
    %v5567 = vunpack.c.l.b16 %v3951
    %v5568 = vunpack.c.h.b16 %v3951
    %v5569 = vunpack.c.l.b16 %v3952
    %v5570 = vunpack.c.h.b16 %v3952
    %v5571 = vunpack.c.l.b16 %v3953
    %v5572 = vunpack.c.h.b16 %v3953
    %v5573 = vunpack.c.l.b16 %v3954
    %v5574 = vunpack.c.h.b16 %v3954
    %v5575 = vunpack.c.l.b16 %v3955
    %v5576 = vunpack.c.h.b16 %v3955
    %v5577 = vunpack.c.l.b16 %v3956
    %v5578 = vunpack.c.h.b16 %v3956
    %v5579 = vunpack.c.l.b16 %v3957
    %v5580 = vunpack.c.h.b16 %v3957
    %v5581 = vunpack.c.l.b16 %v3958
    %v5582 = vunpack.c.h.b16 %v3958
    %v5583 = vunpack.c.l.b16 %v3959
    %v5584 = vunpack.c.h.b16 %v3959
    %v5585 = vunpack.c.l.b16 %v3960
    %v5586 = vunpack.c.h.b16 %v3960
    %v5587 = vunpack.c.l.b16 %v3961
    %v5588 = vunpack.c.h.b16 %v3961
    %v5589 = vunpack.c.l.b16 %v3962
    %v5590 = vunpack.c.h.b16 %v3962
    %v5591 = vunpack.c.l.b16 %v3963
    %v5592 = vunpack.c.h.b16 %v3963
    %v5593 = vunpack.c.l.b16 %v3964
    %v5594 = vunpack.c.h.b16 %v3964
    %v5595 = vunpack.c.l.b16 %v3965
    %v5596 = vunpack.c.h.b16 %v3965
    %v5597 = vunpack.c.l.b16 %v3966
    %v5598 = vunpack.c.h.b16 %v3966
    %v5599 = vunpack.c.l.b16 %v3967
    %v5600 = vunpack.c.h.b16 %v3967
    %v5601 = vunpack.c.l.b16 %v3968
    %v5602 = vunpack.c.h.b16 %v3968
    %v5603 = vunpack.c.l.b16 %v3969
    %v5604 = vunpack.c.h.b16 %v3969
    %v5605 = vunpack.c.l.b16 %v3970
    %v5606 = vunpack.c.h.b16 %v3970
    %v5607 = vunpack.c.l.b16 %v3971
    %v5608 = vunpack.c.h.b16 %v3971
    %v5609 = vunpack.c.l.b16 %v3972
    %v5610 = vunpack.c.h.b16 %v3972
    %v5611 = vunpack.c.l.b16 %v3973
    %v5612 = vunpack.c.h.b16 %v3973
    %v5613 = vunpack.c.l.b16 %v3974
    %v5614 = vunpack.c.h.b16 %v3974
    %v5615 = vunpack.c.l.b16 %v3975
    %v5616 = vunpack.c.h.b16 %v3975
    %v5617 = vunpack.c.l.b16 %v3976
    %v5618 = vunpack.c.h.b16 %v3976
    %v5619 = vunpack.c.l.b16 %v3977
    %v5620 = vunpack.c.h.b16 %v3977
    %v5621 = vunpack.c.l.b16 %v3978
    %v5622 = vunpack.c.h.b16 %v3978
    %v5623 = vunpack.c.l.b16 %v3979
    %v5624 = vunpack.c.h.b16 %v3979
    %v5625 = vunpack.c.l.b16 %v3980
    %v5626 = vunpack.c.h.b16 %v3980
    %v5627 = vunpack.c.l.b16 %v3981
    %v5628 = vunpack.c.h.b16 %v3981
    %v5629 = vunpack.c.l.b16 %v3982
    %v5630 = vunpack.c.h.b16 %v3982
    %v5631 = vunpack.c.l.b16 %v3983
    %v5632 = vunpack.c.h.b16 %v3983
    %v5633 = vunpack.c.l.b16 %v3984
    %v5634 = vunpack.c.h.b16 %v3984
    %v5635 = vunpack.c.l.b16 %v3985
    %v5636 = vunpack.c.h.b16 %v3985
    %v5637 = vunpack.c.l.b16 %v3986
    %v5638 = vunpack.c.h.b16 %v3986
    %v5639 = vunpack.c.l.b16 %v3987
    %v5640 = vunpack.c.h.b16 %v3987
    %v5641 = vunpack.c.l.b16 %v3988
    %v5642 = vunpack.c.h.b16 %v3988
    %v5643 = vunpack.c.l.b16 %v3989
    %v5644 = vunpack.c.h.b16 %v3989
    %v5645 = vunpack.c.l.b16 %v3990
    %v5646 = vunpack.c.h.b16 %v3990
    %v5647 = vunpack.c.l.b16 %v3991
    %v5648 = vunpack.c.h.b16 %v3991
    %v5649 = vunpack.c.l.b16 %v3992
    %v5650 = vunpack.c.h.b16 %v3992
    %v5651 = vunpack.c.l.b16 %v3993
    %v5652 = vunpack.c.h.b16 %v3993
    %v5653 = vunpack.c.l.b16 %v3994
    %v5654 = vunpack.c.h.b16 %v3994
    %v5655 = vunpack.c.l.b16 %v3995
    %v5656 = vunpack.c.h.b16 %v3995
    %v5657 = vunpack.c.l.b16 %v3996
    %v5658 = vunpack.c.h.b16 %v3996
    %v5659 = vunpack.c.l.b16 %v3997
    %v5660 = vunpack.c.h.b16 %v3997
    %v5661 = vunpack.c.l.b16 %v3998
    %v5662 = vunpack.c.h.b16 %v3998
    %v5663 = vunpack.c.l.b16 %v3999
    %v5664 = vunpack.c.h.b16 %v3999
    %v5665 = vunpack.c.l.b16 %v4000
    %v5666 = vunpack.c.h.b16 %v4000
    %v5667 = vunpack.c.l.b16 %v4001
    %v5668 = vunpack.c.h.b16 %v4001
    %v5669 = vunpack.c.l.b16 %v4002
    %v5670 = vunpack.c.h.b16 %v4002
    %v5671 = vunpack.c.l.b16 %v4003
    %v5672 = vunpack.c.h.b16 %v4003
    %v5673 = vunpack.c.l.b16 %v4004
    %v5674 = vunpack.c.h.b16 %v4004
    %v5675 = vunpack.c.l.b16 %v4005
    %v5676 = vunpack.c.h.b16 %v4005
    %v5677 = vunpack.c.l.b16 %v4006
    %v5678 = vunpack.c.h.b16 %v4006
    %v5679 = vunpack.c.l.b16 %v4007
    %v5680 = vunpack.c.h.b16 %v4007
    %v5681 = vunpack.c.l.b16 %v4008
    %v5682 = vunpack.c.h.b16 %v4008
    %v5683 = vunpack.c.l.b16 %v4009
    %v5684 = vunpack.c.h.b16 %v4009
    %v5685 = vunpack.c.l.b16 %v4010
    %v5686 = vunpack.c.h.b16 %v4010
    %v5687 = vunpack.c.l.b16 %v4011
    %v5688 = vunpack.c.h.b16 %v4011
    %v5689 = vunpack.c.l.b16 %v4012
    %v5690 = vunpack.c.h.b16 %v4012
    %v5691 = vunpack.c.l.b16 %v4013
    %v5692 = vunpack.c.h.b16 %v4013
    %v5693 = vunpack.c.l.b16 %v4014
    %v5694 = vunpack.c.h.b16 %v4014
    %v5695 = vunpack.c.l.b16 %v4015
    %v5696 = vunpack.c.h.b16 %v4015
    %v5697 = vunpack.c.l.b16 %v4016
    %v5698 = vunpack.c.h.b16 %v4016
    %v5699 = vunpack.c.l.b16 %v4017
    %v5700 = vunpack.c.h.b16 %v4017
    %v5701 = vunpack.c.l.b16 %v4018
    %v5702 = vunpack.c.h.b16 %v4018
    %v5703 = vunpack.c.l.b16 %v4019
    %v5704 = vunpack.c.h.b16 %v4019
    %v5705 = vunpack.c.l.b16 %v4020
    %v5706 = vunpack.c.h.b16 %v4020
    %v5707 = vunpack.c.l.b16 %v4021
    %v5708 = vunpack.c.h.b16 %v4021
    %v5709 = vunpack.c.l.b16 %v4022
    %v5710 = vunpack.c.h.b16 %v4022
    %v5711 = vunpack.c.l.b16 %v4023
    %v5712 = vunpack.c.h.b16 %v4023
    %v5713 = vunpack.c.l.b16 %v4024
    %v5714 = vunpack.c.h.b16 %v4024
    %v5715 = vunpack.c.l.b16 %v4025
    %v5716 = vunpack.c.h.b16 %v4025
    %v5717 = vunpack.c.l.b16 %v4026
    %v5718 = vunpack.c.h.b16 %v4026
    %v5719 = vunpack.c.l.b16 %v4027
    %v5720 = vunpack.c.h.b16 %v4027
    %v5721 = vunpack.c.l.b16 %v4028
    %v5722 = vunpack.c.h.b16 %v4028
    %v5723 = vunpack.c.l.b16 %v4029
    %v5724 = vunpack.c.h.b16 %v4029
    %v5725 = vunpack.c.l.b16 %v4030
    %v5726 = vunpack.c.h.b16 %v4030
    %v5727 = vunpack.c.l.b16 %v4031
    %v5728 = vunpack.c.h.b16 %v4031
    %v5729 = vunpack.c.l.b16 %v4032
    %v5730 = vunpack.c.h.b16 %v4032
    %v5731 = vunpack.c.l.b16 %v4033
    %v5732 = vunpack.c.h.b16 %v4033
    %v5733 = vunpack.c.l.b16 %v4034
    %v5734 = vunpack.c.h.b16 %v4034
    %v5735 = vunpack.c.l.b16 %v4035
    %v5736 = vunpack.c.h.b16 %v4035
    %v5737 = vunpack.c.l.b16 %v4036
    %v5738 = vunpack.c.h.b16 %v4036
    %v5739 = vunpack.c.l.b16 %v4037
    %v5740 = vunpack.c.h.b16 %v4037
    %v5741 = vunpack.c.l.b16 %v4038
    %v5742 = vunpack.c.h.b16 %v4038
    %v5743 = vunpack.c.l.b16 %v4039
    %v5744 = vunpack.c.h.b16 %v4039
    %v5745 = vunpack.c.l.b16 %v4040
    %v5746 = vunpack.c.h.b16 %v4040
    %v5747 = vunpack.c.l.b16 %v4041
    %v5748 = vunpack.c.h.b16 %v4041
    %v5749 = vunpack.c.l.b16 %v4042
    %v5750 = vunpack.c.h.b16 %v4042
    %v5751 = vunpack.c.l.b16 %v4043
    %v5752 = vunpack.c.h.b16 %v4043
    %v5753 = vunpack.c.l.b16 %v4044
    %v5754 = vunpack.c.h.b16 %v4044
    %v5755 = vunpack.c.l.b16 %v4045
    %v5756 = vunpack.c.h.b16 %v4045
    %v5757 = vunpack.c.l.b16 %v4046
    %v5758 = vunpack.c.h.b16 %v4046
    %v5759 = vunpack.c.l.b16 %v4047
    %v5760 = vunpack.c.h.b16 %v4047
    %v5761 = vunpack.c.l.b16 %v4048
    %v5762 = vunpack.c.h.b16 %v4048
    %v5763 = vunpack.c.l.b16 %v4049
    %v5764 = vunpack.c.h.b16 %v4049
    %v5765 = vunpack.c.l.b16 %v4050
    %v5766 = vunpack.c.h.b16 %v4050
    %v5767 = vunpack.c.l.b16 %v4051
    %v5768 = vunpack.c.h.b16 %v4051
    %v5769 = vunpack.c.l.b16 %v4052
    %v5770 = vunpack.c.h.b16 %v4052
    %v5771 = vunpack.c.l.b16 %v4053
    %v5772 = vunpack.c.h.b16 %v4053
    %v5773 = vunpack.c.l.b16 %v4054
    %v5774 = vunpack.c.h.b16 %v4054
    %v5775 = vunpack.c.l.b16 %v4055
    %v5776 = vunpack.c.h.b16 %v4055
    %v5777 = vunpack.c.l.b16 %v4056
    %v5778 = vunpack.c.h.b16 %v4056
    %v5779 = vunpack.c.l.b16 %v4057
    %v5780 = vunpack.c.h.b16 %v4057
    %v5781 = vunpack.c.l.b16 %v4058
    %v5782 = vunpack.c.h.b16 %v4058
    %v5783 = vunpack.c.l.b16 %v4059
    %v5784 = vunpack.c.h.b16 %v4059
    %v5785 = vunpack.c.l.b16 %v4060
    %v5786 = vunpack.c.h.b16 %v4060
    %v5787 = vunpack.c.l.b16 %v4061
    %v5788 = vunpack.c.h.b16 %v4061
    %v5789 = vunpack.c.l.b16 %v4062
    %v5790 = vunpack.c.h.b16 %v4062
    %v5791 = vunpack.c.l.b16 %v4063
    %v5792 = vunpack.c.h.b16 %v4063
    %v5793 = vunpack.c.l.b16 %v4064
    %v5794 = vunpack.c.h.b16 %v4064
    %v5795 = vunpack.c.l.b16 %v4065
    %v5796 = vunpack.c.h.b16 %v4065
    %v5797 = vunpack.c.l.b16 %v4066
    %v5798 = vunpack.c.h.b16 %v4066
    %v5799 = vunpack.c.l.b16 %v4067
    %v5800 = vunpack.c.h.b16 %v4067
    %v5801 = vunpack.c.l.b16 %v4068
    %v5802 = vunpack.c.h.b16 %v4068
    %v5803 = vunpack.c.l.b16 %v4069
    %v5804 = vunpack.c.h.b16 %v4069
    %v5805 = vunpack.c.l.b16 %v4070
    %v5806 = vunpack.c.h.b16 %v4070
    %v5807 = vunpack.c.l.b16 %v4071
    %v5808 = vunpack.c.h.b16 %v4071
    %v5809 = vunpack.c.l.b16 %v4072
    %v5810 = vunpack.c.h.b16 %v4072
    %v5811 = vunpack.c.l.b16 %v4073
    %v5812 = vunpack.c.h.b16 %v4073
    %v5813 = vunpack.c.l.b16 %v4074
    %v5814 = vunpack.c.h.b16 %v4074
    %v5815 = vunpack.c.l.b16 %v4075
    %v5816 = vunpack.c.h.b16 %v4075
    %v5817 = vunpack.c.l.b16 %v4076
    %v5818 = vunpack.c.h.b16 %v4076
    %v5819 = vunpack.c.l.b16 %v4077
    %v5820 = vunpack.c.h.b16 %v4077
    %v5821 = vunpack.c.l.b16 %v4078
    %v5822 = vunpack.c.h.b16 %v4078
    %v5823 = vunpack.c.l.b16 %v4079
    %v5824 = vunpack.c.h.b16 %v4079
    %v5825 = vunpack.c.l.b16 %v4080
    %v5826 = vunpack.c.h.b16 %v4080
    %v5827 = vunpack.c.l.b16 %v4081
    %v5828 = vunpack.c.h.b16 %v4081
    %v5829 = vunpack.c.l.b16 %v4082
    %v5830 = vunpack.c.h.b16 %v4082
    %v5831 = vunpack.c.l.b16 %v4083
    %v5832 = vunpack.c.h.b16 %v4083
    %v5833 = vunpack.c.l.b16 %v4084
    %v5834 = vunpack.c.h.b16 %v4084
    %v5835 = vunpack.c.l.b16 %v4085
    %v5836 = vunpack.c.h.b16 %v4085
    %v5837 = vunpack.c.l.b16 %v4086
    %v5838 = vunpack.c.h.b16 %v4086
    %v5839 = vunpack.c.l.b16 %v4087
    %v5840 = vunpack.c.h.b16 %v4087
    %v5841 = vunpack.c.l.b16 %v4088
    %v5842 = vunpack.c.h.b16 %v4088
    %v5843 = vunpack.c.l.b16 %v4089
    %v5844 = vunpack.c.h.b16 %v4089
    %v5845 = vunpack.c.l.b16 %v4090
    %v5846 = vunpack.c.h.b16 %v4090
    %v5847 = vunpack.c.l.b16 %v4091
    %v5848 = vunpack.c.h.b16 %v4091
    %v5849 = vunpack.c.l.b16 %v4092
    %v5850 = vunpack.c.h.b16 %v4092
    %v5851 = vunpack.c.l.b16 %v4093
    %v5852 = vunpack.c.h.b16 %v4093
    %v5853 = vunpack.c.l.b16 %v4094
    %v5854 = vunpack.c.h.b16 %v4094
    %v5855 = vunpack.c.l.b16 %v4095
    %v5856 = vunpack.c.h.b16 %v4095
    %v5857 = vunpack.c.l.b16 %v4096
    %v5858 = vunpack.c.h.b16 %v4096
    %v5859 = vunpack.c.l.b16 %v4097
    %v5860 = vunpack.c.h.b16 %v4097
    %v5861 = vunpack.c.l.b16 %v4098
    %v5862 = vunpack.c.h.b16 %v4098
    %v5863 = vunpack.c.l.b16 %v4099
    %v5864 = vunpack.c.h.b16 %v4099
    %v5865 = vunpack.c.l.b16 %v4100
    %v5866 = vunpack.c.h.b16 %v4100
    %v5867 = vunpack.c.l.b16 %v4101
    %v5868 = vunpack.c.h.b16 %v4101
    %v5869 = vunpack.c.l.b16 %v4102
    %v5870 = vunpack.c.h.b16 %v4102
    %v5871 = vunpack.c.l.b16 %v4103
    %v5872 = vunpack.c.h.b16 %v4103
    %v5873 = vunpack.c.l.b16 %v4104
    %v5874 = vunpack.c.h.b16 %v4104
    %v5875 = vunpack.c.l.b16 %v4105
    %v5876 = vunpack.c.h.b16 %v4105
    %v5877 = vunpack.c.l.b16 %v4106
    %v5878 = vunpack.c.h.b16 %v4106
    %v5879 = vunpack.c.l.b16 %v4107
    %v5880 = vunpack.c.h.b16 %v4107
    %v5881 = vunpack.c.l.b16 %v4108
    %v5882 = vunpack.c.h.b16 %v4108
    %v5883 = vunpack.c.l.b16 %v4109
    %v5884 = vunpack.c.h.b16 %v4109
    %v5885 = vunpack.c.l.b16 %v4110
    %v5886 = vunpack.c.h.b16 %v4110
    %v5887 = vunpack.c.l.b16 %v4111
    %v5888 = vunpack.c.h.b16 %v4111
    %v5889 = vunpack.c.l.b16 %v4112
    %v5890 = vunpack.c.h.b16 %v4112
    %v5891 = vunpack.c.l.b16 %v4113
    %v5892 = vunpack.c.h.b16 %v4113
    %v5893 = vunpack.c.l.b16 %v4114
    %v5894 = vunpack.c.h.b16 %v4114
    %v5895 = vunpack.c.l.b16 %v4115
    %v5896 = vunpack.c.h.b16 %v4115
    %v5897 = vunpack.c.l.b16 %v4116
    %v5898 = vunpack.c.h.b16 %v4116
    %v5899 = vunpack.c.l.b16 %v4117
    %v5900 = vunpack.c.h.b16 %v4117
    %v5901 = vunpack.c.l.b16 %v4118
    %v5902 = vunpack.c.h.b16 %v4118
    %v5903 = vunpack.c.l.b16 %v4119
    %v5904 = vunpack.c.h.b16 %v4119
    %v5905 = vunpack.c.l.b16 %v4120
    %v5906 = vunpack.c.h.b16 %v4120
    %v5907 = vunpack.c.l.b16 %v4121
    %v5908 = vunpack.c.h.b16 %v4121
    %v5909 = vunpack.c.l.b16 %v4122
    %v5910 = vunpack.c.h.b16 %v4122
    %v5911 = vunpack.c.l.b16 %v4123
    %v5912 = vunpack.c.h.b16 %v4123
    %v5913 = vunpack.c.l.b16 %v4124
    %v5914 = vunpack.c.h.b16 %v4124
    %v5915 = vunpack.c.l.b16 %v4125
    %v5916 = vunpack.c.h.b16 %v4125
    %v5917 = vunpack.c.l.b16 %v4126
    %v5918 = vunpack.c.h.b16 %v4126
    %v5919 = vunpack.c.l.b16 %v4127
    %v5920 = vunpack.c.h.b16 %v4127
    %v5921 = vunpack.c.l.b16 %v4128
    %v5922 = vunpack.c.h.b16 %v4128
    %v5923 = vunpack.c.l.b16 %v4129
    %v5924 = vunpack.c.h.b16 %v4129
    %v5925 = vunpack.c.l.b16 %v4130
    %v5926 = vunpack.c.h.b16 %v4130
    %v5927 = vunpack.c.l.b16 %v4131
    %v5928 = vunpack.c.h.b16 %v4131
    %v5929 = vunpack.c.l.b16 %v4132
    %v5930 = vunpack.c.h.b16 %v4132
    %v5931 = vunpack.c.l.b16 %v4133
    %v5932 = vunpack.c.h.b16 %v4133
    %v5933 = vunpack.c.l.b16 %v4134
    %v5934 = vunpack.c.h.b16 %v4134
    %v5935 = vunpack.c.l.b16 %v4135
    %v5936 = vunpack.c.h.b16 %v4135
    %v5937 = vunpack.c.l.b16 %v4136
    %v5938 = vunpack.c.h.b16 %v4136
    %v5939 = vunpack.c.l.b16 %v4137
    %v5940 = vunpack.c.h.b16 %v4137
    %v5941 = vunpack.c.l.b16 %v4138
    %v5942 = vunpack.c.h.b16 %v4138
    %v5943 = vunpack.c.l.b16 %v4139
    %v5944 = vunpack.c.h.b16 %v4139
    %v5945 = vunpack.c.l.b16 %v4140
    %v5946 = vunpack.c.h.b16 %v4140
    %v5947 = vunpack.c.l.b16 %v4141
    %v5948 = vunpack.c.h.b16 %v4141
    %v5949 = vunpack.c.l.b16 %v4142
    %v5950 = vunpack.c.h.b16 %v4142
    %v5951 = vunpack.c.l.b16 %v4143
    %v5952 = vunpack.c.h.b16 %v4143
    %v5953 = vunpack.c.l.b16 %v4144
    %v5954 = vunpack.c.h.b16 %v4144
    %v5955 = vunpack.c.l.b16 %v4145
    %v5956 = vunpack.c.h.b16 %v4145
    %v5957 = vunpack.c.l.b16 %v4146
    %v5958 = vunpack.c.h.b16 %v4146
    %v5959 = vunpack.c.l.b16 %v4147
    %v5960 = vunpack.c.h.b16 %v4147
    %v5961 = vunpack.c.l.b16 %v4148
    %v5962 = vunpack.c.h.b16 %v4148
    %v5963 = vunpack.c.l.b16 %v4149
    %v5964 = vunpack.c.h.b16 %v4149
    %v5965 = vunpack.c.l.b16 %v4150
    %v5966 = vunpack.c.h.b16 %v4150
    %v5967 = vunpack.c.l.b16 %v4151
    %v5968 = vunpack.c.h.b16 %v4151
    %v5969 = vunpack.c.l.b16 %v4152
    %v5970 = vunpack.c.h.b16 %v4152
    %v5971 = vunpack.c.l.b16 %v4153
    %v5972 = vunpack.c.h.b16 %v4153
    %v5973 = vunpack.c.l.b16 %v4154
    %v5974 = vunpack.c.h.b16 %v4154
    %v5975 = vunpack.c.l.b16 %v4155
    %v5976 = vunpack.c.h.b16 %v4155
    %v5977 = vunpack.c.l.b16 %v4156
    %v5978 = vunpack.c.h.b16 %v4156
    %v5979 = vunpack.c.l.b16 %v4157
    %v5980 = vunpack.c.h.b16 %v4157
    %v5981 = vunpack.c.l.b16 %v4158
    %v5982 = vunpack.c.h.b16 %v4158
    %v5983 = vunpack.c.l.b16 %v4159
    %v5984 = vunpack.c.h.b16 %v4159
    %v5985 = vunpack.c.l.b16 %v4160
    %v5986 = vunpack.c.h.b16 %v4160
    %v5987 = vunpack.c.l.b16 %v4161
    %v5988 = vunpack.c.h.b16 %v4161
    %v5989 = vunpack.c.l.b16 %v4162
    %v5990 = vunpack.c.h.b16 %v4162
    %v5991 = vunpack.c.l.b16 %v4163
    %v5992 = vunpack.c.h.b16 %v4163
    %v5993 = vunpack.c.l.b16 %v4164
    %v5994 = vunpack.c.h.b16 %v4164
    %v5995 = vunpack.c.l.b16 %v4165
    %v5996 = vunpack.c.h.b16 %v4165
    %v5997 = vunpack.c.l.b16 %v4166
    %v5998 = vunpack.c.h.b16 %v4166
    %v5999 = vunpack.c.l.b16 %v4167
    %v6000 = vunpack.c.h.b16 %v4167
    %v6001 = vunpack.c.l.b16 %v4168
    %v6002 = vunpack.c.h.b16 %v4168
    %v6003 = vunpack.c.l.b16 %v4169
    %v6004 = vunpack.c.h.b16 %v4169
    %v6005 = vunpack.c.l.b16 %v4170
    %v6006 = vunpack.c.h.b16 %v4170
    %v6007 = vunpack.c.l.b16 %v4171
    %v6008 = vunpack.c.h.b16 %v4171
    %v6009 = vunpack.c.l.b16 %v4172
    %v6010 = vunpack.c.h.b16 %v4172
    %v6011 = vunpack.c.l.b16 %v4173
    %v6012 = vunpack.c.h.b16 %v4173
    %v6013 = vunpack.c.l.b16 %v4174
    %v6014 = vunpack.c.h.b16 %v4174
    %v6015 = vunpack.c.l.b16 %v4175
    %v6016 = vunpack.c.h.b16 %v4175
    %v6017 = vunpack.c.l.b16 %v4176
    %v6018 = vunpack.c.h.b16 %v4176
    %v6019 = vunpack.c.l.b16 %v4177
    %v6020 = vunpack.c.h.b16 %v4177
    %v6021 = vunpack.c.l.b16 %v4178
    %v6022 = vunpack.c.h.b16 %v4178
    %v6023 = vunpack.c.l.b16 %v4179
    %v6024 = vunpack.c.h.b16 %v4179
    %v6025 = vunpack.c.l.b16 %v4180
    %v6026 = vunpack.c.h.b16 %v4180
    %v6027 = vunpack.c.l.b16 %v4181
    %v6028 = vunpack.c.h.b16 %v4181
    %v6029 = vunpack.c.l.b16 %v4182
    %v6030 = vunpack.c.h.b16 %v4182
    %v6031 = vunpack.c.l.b16 %v4183
    %v6032 = vunpack.c.h.b16 %v4183
    %v6033 = vunpack.c.l.b16 %v4184
    %v6034 = vunpack.c.h.b16 %v4184
    %v6035 = vunpack.c.l.b16 %v4185
    %v6036 = vunpack.c.h.b16 %v4185
    %v6037 = vunpack.c.l.b16 %v4186
    %v6038 = vunpack.c.h.b16 %v4186
    %v6039 = vunpack.c.l.b16 %v4187
    %v6040 = vunpack.c.h.b16 %v4187
    %v6041 = vunpack.c.l.b16 %v4188
    %v6042 = vunpack.c.h.b16 %v4188
    %v6043 = vunpack.c.l.b16 %v4189
    %v6044 = vunpack.c.h.b16 %v4189
    %v6045 = vunpack.c.l.b16 %v4190
    %v6046 = vunpack.c.h.b16 %v4190
    %v6047 = vunpack.c.l.b16 %v4191
    %v6048 = vunpack.c.h.b16 %v4191
    %v6049 = vunpack.c.l.b16 %v4192
    %v6050 = vunpack.c.h.b16 %v4192
    %v6051 = vunpack.c.l.b16 %v4193
    %v6052 = vunpack.c.h.b16 %v4193
    %v6053 = vunpack.c.l.b16 %v4194
    %v6054 = vunpack.c.h.b16 %v4194
    %v6055 = vunpack.c.l.b16 %v4195
    %v6056 = vunpack.c.h.b16 %v4195
    %v6057 = vunpack.c.l.b16 %v4196
    %v6058 = vunpack.c.h.b16 %v4196
    %v6059 = vunpack.c.l.b16 %v4197
    %v6060 = vunpack.c.h.b16 %v4197
    %v6061 = vunpack.c.l.b16 %v4198
    %v6062 = vunpack.c.h.b16 %v4198
    %v6063 = vunpack.c.l.b16 %v4199
    %v6064 = vunpack.c.h.b16 %v4199
    %v6065 = vunpack.c.l.b16 %v4200
    %v6066 = vunpack.c.h.b16 %v4200
    %v6067 = vunpack.c.l.b16 %v4201
    %v6068 = vunpack.c.h.b16 %v4201
    %v6069 = vunpack.c.l.b16 %v4202
    %v6070 = vunpack.c.h.b16 %v4202
    %v6071 = vunpack.c.l.b16 %v4203
    %v6072 = vunpack.c.h.b16 %v4203
    %v6073 = vunpack.c.l.b16 %v4204
    %v6074 = vunpack.c.h.b16 %v4204
    %v6075 = vunpack.c.l.b16 %v4205
    %v6076 = vunpack.c.h.b16 %v4205
    %v6077 = vunpack.c.l.b16 %v4206
    %v6078 = vunpack.c.h.b16 %v4206
    %v6079 = vunpack.c.l.b16 %v4207
    %v6080 = vunpack.c.h.b16 %v4207
    %v6081 = vunpack.c.l.b16 %v4208
    %v6082 = vunpack.c.h.b16 %v4208
    %v6083 = vunpack.c.l.b16 %v4209
    %v6084 = vunpack.c.h.b16 %v4209
    %v6085 = vunpack.c.l.b16 %v4210
    %v6086 = vunpack.c.h.b16 %v4210
    %v6087 = vunpack.c.l.b16 %v4211
    %v6088 = vunpack.c.h.b16 %v4211
    %v6089 = vunpack.c.l.b16 %v4212
    %v6090 = vunpack.c.h.b16 %v4212
    %v6091 = vunpack.c.l.b16 %v4213
    %v6092 = vunpack.c.h.b16 %v4213
    %v6093 = vunpack.c.l.b16 %v4214
    %v6094 = vunpack.c.h.b16 %v4214
    %v6095 = vunpack.c.l.b16 %v4215
    %v6096 = vunpack.c.h.b16 %v4215
    %v6097 = vunpack.c.l.b16 %v4216
    %v6098 = vunpack.c.h.b16 %v4216
    %v6099 = vunpack.c.l.b16 %v4217
    %v6100 = vunpack.c.h.b16 %v4217
    %v6101 = vunpack.c.l.b16 %v4218
    %v6102 = vunpack.c.h.b16 %v4218
    %v6103 = vunpack.c.l.b16 %v4219
    %v6104 = vunpack.c.h.b16 %v4219
    %v6105 = vunpack.c.l.b16 %v4220
    %v6106 = vunpack.c.h.b16 %v4220
    %v6107 = vunpack.c.l.b16 %v4221
    %v6108 = vunpack.c.h.b16 %v4221
    %v6109 = vunpack.c.l.b16 %v4222
    %v6110 = vunpack.c.h.b16 %v4222
    %v6111 = vunpack.c.l.b16 %v4223
    %v6112 = vunpack.c.h.b16 %v4223
    %v6113 = vunpack.c.l.b16 %v4224
    %v6114 = vunpack.c.h.b16 %v4224
    %v6115 = vunpack.c.l.b16 %v4225
    %v6116 = vunpack.c.h.b16 %v4225
    %v6117 = vunpack.c.l.b16 %v4226
    %v6118 = vunpack.c.h.b16 %v4226
    %v6119 = vunpack.c.l.b16 %v4227
    %v6120 = vunpack.c.h.b16 %v4227
    %v6121 = vunpack.c.l.b16 %v4228
    %v6122 = vunpack.c.h.b16 %v4228
    %v6123 = vunpack.c.l.b16 %v4229
    %v6124 = vunpack.c.h.b16 %v4229
    %v6125 = vunpack.c.l.b16 %v4230
    %v6126 = vunpack.c.h.b16 %v4230
    %v6127 = vunpack.c.l.b16 %v4231
    %v6128 = vunpack.c.h.b16 %v4231
    %v6129 = vunpack.c.l.b16 %v4232
    %v6130 = vunpack.c.h.b16 %v4232
    %v6131 = vunpack.c.l.b16 %v4233
    %v6132 = vunpack.c.h.b16 %v4233
    %v6133 = vunpack.c.l.b16 %v4234
    %v6134 = vunpack.c.h.b16 %v4234
    %v6135 = vunpack.c.l.b16 %v4235
    %v6136 = vunpack.c.h.b16 %v4235
    %v6137 = vunpack.c.l.b16 %v4236
    %v6138 = vunpack.c.h.b16 %v4236
    %v6139 = vunpack.c.l.b16 %v4237
    %v6140 = vunpack.c.h.b16 %v4237
    %v6141 = vunpack.c.l.b16 %v4238
    %v6142 = vunpack.c.h.b16 %v4238
    %v6143 = vunpack.c.l.b16 %v4239
    %v6144 = vunpack.c.h.b16 %v4239
    %v6145 = vunpack.c.l.b16 %v4240
    %v6146 = vunpack.c.h.b16 %v4240
    %v6147 = vunpack.c.l.b16 %v4241
    %v6148 = vunpack.c.h.b16 %v4241
    %v6149 = vunpack.c.l.b16 %v4242
    %v6150 = vunpack.c.h.b16 %v4242
    %v6151 = vunpack.c.l.b16 %v4243
    %v6152 = vunpack.c.h.b16 %v4243
    %v6153 = vunpack.c.l.b16 %v4244
    %v6154 = vunpack.c.h.b16 %v4244
    %v6155 = vunpack.c.l.b16 %v4245
    %v6156 = vunpack.c.h.b16 %v4245
    %v6157 = vunpack.c.l.b16 %v4246
    %v6158 = vunpack.c.h.b16 %v4246
    %v6159 = vunpack.c.l.b16 %v4247
    %v6160 = vunpack.c.h.b16 %v4247
    %v6161 = vunpack.c.l.b16 %v4248
    %v6162 = vunpack.c.h.b16 %v4248
    %v6163 = vunpack.c.l.b16 %v4249
    %v6164 = vunpack.c.h.b16 %v4249
    %v6165 = vunpack.c.l.b16 %v4250
    %v6166 = vunpack.c.h.b16 %v4250
    %v6167 = vunpack.c.l.b16 %v4251
    %v6168 = vunpack.c.h.b16 %v4251
    %v6169 = vunpack.c.l.b16 %v4252
    %v6170 = vunpack.c.h.b16 %v4252
    %v6171 = vunpack.c.l.b16 %v4253
    %v6172 = vunpack.c.h.b16 %v4253
    %v6173 = vunpack.c.l.b16 %v4254
    %v6174 = vunpack.c.h.b16 %v4254
    %v6175 = vunpack.c.l.b16 %v4255
    %v6176 = vunpack.c.h.b16 %v4255
    %v6177 = vunpack.c.l.b16 %v4256
    %v6178 = vunpack.c.h.b16 %v4256
    %v6179 = vunpack.c.l.b16 %v4257
    %v6180 = vunpack.c.h.b16 %v4257
    %v6181 = vunpack.c.l.b16 %v4258
    %v6182 = vunpack.c.h.b16 %v4258
    %v6183 = vunpack.c.l.b16 %v4259
    %v6184 = vunpack.c.h.b16 %v4259
    %v6185 = vunpack.c.l.b16 %v4260
    %v6186 = vunpack.c.h.b16 %v4260
    %v6187 = vunpack.c.l.b16 %v4261
    %v6188 = vunpack.c.h.b16 %v4261
    %v6189 = vunpack.c.l.b16 %v4262
    %v6190 = vunpack.c.h.b16 %v4262
    %v6191 = vunpack.c.l.b16 %v4263
    %v6192 = vunpack.c.h.b16 %v4263
    %v6193 = vunpack.c.l.b16 %v4264
    %v6194 = vunpack.c.h.b16 %v4264
    %v6195 = vunpack.c.l.b16 %v4265
    %v6196 = vunpack.c.h.b16 %v4265
    %v6197 = vunpack.c.l.b16 %v4266
    %v6198 = vunpack.c.h.b16 %v4266
    %v6199 = vunpack.c.l.b16 %v4267
    %v6200 = vunpack.c.h.b16 %v4267
    %v6201 = vunpack.c.l.b16 %v4268
    %v6202 = vunpack.c.h.b16 %v4268
    %v6203 = vunpack.c.l.b16 %v4269
    %v6204 = vunpack.c.h.b16 %v4269
    %v6205 = vunpack.c.l.b16 %v4270
    %v6206 = vunpack.c.h.b16 %v4270
    %v6207 = vunpack.c.l.b16 %v4271
    %v6208 = vunpack.c.h.b16 %v4271
    %v6209 = vunpack.c.l.b16 %v4272
    %v6210 = vunpack.c.h.b16 %v4272
    %v6211 = vunpack.c.l.b16 %v4273
    %v6212 = vunpack.c.h.b16 %v4273
    %v6213 = vunpack.c.l.b16 %v4274
    %v6214 = vunpack.c.h.b16 %v4274
    %v6215 = vunpack.c.l.b16 %v4275
    %v6216 = vunpack.c.h.b16 %v4275
    %v6217 = vunpack.c.l.b16 %v4276
    %v6218 = vunpack.c.h.b16 %v4276
    %v6219 = vunpack.c.l.b16 %v4277
    %v6220 = vunpack.c.h.b16 %v4277
    %v6221 = vunpack.c.l.b16 %v4278
    %v6222 = vunpack.c.h.b16 %v4278
    %v6223 = vunpack.c.l.b16 %v4279
    %v6224 = vunpack.c.h.b16 %v4279
    %v6225 = vunpack.c.l.b16 %v4280
    %v6226 = vunpack.c.h.b16 %v4280
    %v6227 = vunpack.c.l.b16 %v4281
    %v6228 = vunpack.c.h.b16 %v4281
    %v6229 = vunpack.c.l.b16 %v4282
    %v6230 = vunpack.c.h.b16 %v4282
    %v6231 = vunpack.c.l.b16 %v4283
    %v6232 = vunpack.c.h.b16 %v4283
    %v6233 = vunpack.c.l.b16 %v4284
    %v6234 = vunpack.c.h.b16 %v4284
    %v6235 = vunpack.c.l.b16 %v4285
    %v6236 = vunpack.c.h.b16 %v4285
    %v6237 = vunpack.c.l.b16 %v4286
    %v6238 = vunpack.c.h.b16 %v4286
    %v6239 = vunpack.c.l.b16 %v4287
    %v6240 = vunpack.c.h.b16 %v4287
    %v6241 = vunpack.c.l.b16 %v4288
    %v6242 = vunpack.c.h.b16 %v4288
    %v6243 = vunpack.c.l.b16 %v4289
    %v6244 = vunpack.c.h.b16 %v4289
    %v6245 = vunpack.c.l.b16 %v4290
    %v6246 = vunpack.c.h.b16 %v4290
    %v6247 = vunpack.c.l.b16 %v4291
    %v6248 = vunpack.c.h.b16 %v4291
    %v6249 = vunpack.c.l.b16 %v4292
    %v6250 = vunpack.c.h.b16 %v4292
    %v6251 = vunpack.c.l.b16 %v4293
    %v6252 = vunpack.c.h.b16 %v4293
    %v6253 = vunpack.c.l.b16 %v4294
    %v6254 = vunpack.c.h.b16 %v4294
    %v6255 = vunpack.c.l.b16 %v4295
    %v6256 = vunpack.c.h.b16 %v4295
    %v6257 = vunpack.c.l.b16 %v4296
    %v6258 = vunpack.c.h.b16 %v4296
    %v6259 = vunpack.c.l.b16 %v4297
    %v6260 = vunpack.c.h.b16 %v4297
    %v6261 = vunpack.c.l.b16 %v4298
    %v6262 = vunpack.c.h.b16 %v4298
    %v6263 = vunpack.c.l.b16 %v4299
    %v6264 = vunpack.c.h.b16 %v4299
    %v6265 = vunpack.c.l.b16 %v4300
    %v6266 = vunpack.c.h.b16 %v4300
    %v6267 = vunpack.c.l.b16 %v4301
    %v6268 = vunpack.c.h.b16 %v4301
    %v6269 = vunpack.c.l.b16 %v4302
    %v6270 = vunpack.c.h.b16 %v4302
    %v6271 = vunpack.c.l.b16 %v4303
    %v6272 = vunpack.c.h.b16 %v4303
    %v6273 = vunpack.c.l.b16 %v4304
    %v6274 = vunpack.c.h.b16 %v4304
    %v6275 = vunpack.c.l.b16 %v4305
    %v6276 = vunpack.c.h.b16 %v4305
    %v6277 = vunpack.c.l.b16 %v4306
    %v6278 = vunpack.c.h.b16 %v4306
    %v6279 = vunpack.c.l.b16 %v4307
    %v6280 = vunpack.c.h.b16 %v4307
    %v6281 = vunpack.c.l.b16 %v4308
    %v6282 = vunpack.c.h.b16 %v4308
    %v6283 = vunpack.c.l.b16 %v4309
    %v6284 = vunpack.c.h.b16 %v4309
    %v6285 = vunpack.c.l.b16 %v4310
    %v6286 = vunpack.c.h.b16 %v4310
    %v6287 = vunpack.c.l.b16 %v4311
    %v6288 = vunpack.c.h.b16 %v4311
    %v6289 = vunpack.c.l.b16 %v4312
    %v6290 = vunpack.c.h.b16 %v4312
    %v6291 = vunpack.c.l.b16 %v4313
    %v6292 = vunpack.c.h.b16 %v4313
    %v6293 = vunpack.c.l.b16 %v4314
    %v6294 = vunpack.c.h.b16 %v4314
    %v6295 = vunpack.c.l.b16 %v4315
    %v6296 = vunpack.c.h.b16 %v4315
    %v6297 = vunpack.c.l.b16 %v4316
    %v6298 = vunpack.c.h.b16 %v4316
    %v6299 = vunpack.c.l.b16 %v4317
    %v6300 = vunpack.c.h.b16 %v4317
    %v6301 = vunpack.c.l.b16 %v4318
    %v6302 = vunpack.c.h.b16 %v4318
    %v6303 = vunpack.c.l.b16 %v4319
    %v6304 = vunpack.c.h.b16 %v4319
    %v6305 = vunpack.c.l.b16 %v4320
    %v6306 = vunpack.c.h.b16 %v4320
    %v6307 = vunpack.c.l.b16 %v4321
    %v6308 = vunpack.c.h.b16 %v4321
    %v6309 = vunpack.c.l.b16 %v4322
    %v6310 = vunpack.c.h.b16 %v4322
    %v6311 = vunpack.c.l.b16 %v4323
    %v6312 = vunpack.c.h.b16 %v4323
    %v6313 = vunpack.c.l.b16 %v4324
    %v6314 = vunpack.c.h.b16 %v4324
    %v6315 = vunpack.c.l.b16 %v4325
    %v6316 = vunpack.c.h.b16 %v4325
    %v6317 = vunpack.c.l.b16 %v4326
    %v6318 = vunpack.c.h.b16 %v4326
    %v6319 = vunpack.c.l.b16 %v4327
    %v6320 = vunpack.c.h.b16 %v4327
    %v6321 = vunpack.c.l.b16 %v4328
    %v6322 = vunpack.c.h.b16 %v4328
    %v6323 = vunpack.c.l.b16 %v4329
    %v6324 = vunpack.c.h.b16 %v4329
    %v6325 = vunpack.c.l.b16 %v4330
    %v6326 = vunpack.c.h.b16 %v4330
    %v6327 = vunpack.c.l.b16 %v4331
    %v6328 = vunpack.c.h.b16 %v4331
    %v6329 = vunpack.c.l.b16 %v4332
    %v6330 = vunpack.c.h.b16 %v4332
    %v6331 = vunpack.c.l.b16 %v4333
    %v6332 = vunpack.c.h.b16 %v4333
    %v6333 = vunpack.c.l.b16 %v4334
    %v6334 = vunpack.c.h.b16 %v4334
    %v6335 = vunpack.c.l.b16 %v4335
    %v6336 = vunpack.c.h.b16 %v4335
    %v6337 = vunpack.c.l.b16 %v4336
    %v6338 = vunpack.c.h.b16 %v4336
    %v6339 = vunpack.c.l.b16 %v4337
    %v6340 = vunpack.c.h.b16 %v4337
    %v6341 = vunpack.c.l.b16 %v4338
    %v6342 = vunpack.c.h.b16 %v4338
    %v6343 = vunpack.c.l.b16 %v4339
    %v6344 = vunpack.c.h.b16 %v4339
    %v6345 = vunpack.c.l.b16 %v4340
    %v6346 = vunpack.c.h.b16 %v4340
    %v6347 = vunpack.c.l.b16 %v4341
    %v6348 = vunpack.c.h.b16 %v4341
    %v6349 = vunpack.c.l.b16 %v4342
    %v6350 = vunpack.c.h.b16 %v4342
    %v6351 = vunpack.c.l.b16 %v4343
    %v6352 = vunpack.c.h.b16 %v4343
    %v6353 = vunpack.c.l.b16 %v4344
    %v6354 = vunpack.c.h.b16 %v4344
    %v6355 = vunpack.c.l.b16 %v4345
    %v6356 = vunpack.c.h.b16 %v4345
    %v6357 = vunpack.c.l.b16 %v4346
    %v6358 = vunpack.c.h.b16 %v4346
    %v6359 = vunpack.c.l.b16 %v4347
    %v6360 = vunpack.c.h.b16 %v4347
    %v6361 = vunpack.c.l.b16 %v4348
    %v6362 = vunpack.c.h.b16 %v4348
    %v6363 = vunpack.c.l.b16 %v4349
    %v6364 = vunpack.c.h.b16 %v4349
    %v6365 = vunpack.c.l.b16 %v4350
    %v6366 = vunpack.c.h.b16 %v4350
    %v6367 = vunpack.c.l.b16 %v4351
    %v6368 = vunpack.c.h.b16 %v4351
    %v6369 = vunpack.c.l.b16 %v4352
    %v6370 = vunpack.c.h.b16 %v4352
    %v6371 = vunpack.c.l.b16 %v4353
    %v6372 = vunpack.c.h.b16 %v4353
    %v6373 = vunpack.c.l.b16 %v4354
    %v6374 = vunpack.c.h.b16 %v4354
    %v6375 = vunpack.c.l.b16 %v4355
    %v6376 = vunpack.c.h.b16 %v4355
    %v6377 = vunpack.c.l.b16 %v4356
    %v6378 = vunpack.c.h.b16 %v4356
    %v6379 = vunpack.c.l.b16 %v4357
    %v6380 = vunpack.c.h.b16 %v4357
    %v6381 = vunpack.c.l.b16 %v4358
    %v6382 = vunpack.c.h.b16 %v4358
    %v6383 = vunpack.c.l.b16 %v4359
    %v6384 = vunpack.c.h.b16 %v4359
    %v6385 = vunpack.c.l.b16 %v4360
    %v6386 = vunpack.c.h.b16 %v4360
    %v6387 = vunpack.c.l.b16 %v4361
    %v6388 = vunpack.c.h.b16 %v4361
    %v6389 = vunpack.c.l.b16 %v4362
    %v6390 = vunpack.c.h.b16 %v4362
    %v6391 = vunpack.c.l.b16 %v4363
    %v6392 = vunpack.c.h.b16 %v4363
    %v6393 = vunpack.c.l.b16 %v4364
    %v6394 = vunpack.c.h.b16 %v4364
    %v6395 = vunpack.c.l.b16 %v4365
    %v6396 = vunpack.c.h.b16 %v4365
    %v6397 = vunpack.c.l.b16 %v4366
    %v6398 = vunpack.c.h.b16 %v4366
    %v6399 = vunpack.c.l.b16 %v4367
    %v6400 = vunpack.c.h.b16 %v4367
    %v6401 = vunpack.c.l.b16 %v4368
    %v6402 = vunpack.c.h.b16 %v4368
    %v6403 = vunpack.c.l.b16 %v4369
    %v6404 = vunpack.c.h.b16 %v4369
    %v6405 = vunpack.c.l.b16 %v4370
    %v6406 = vunpack.c.h.b16 %v4370
    %v6407 = vunpack.c.l.b16 %v4371
    %v6408 = vunpack.c.h.b16 %v4371
    %v6409 = vunpack.c.l.b16 %v4372
    %v6410 = vunpack.c.h.b16 %v4372
    %v6411 = vunpack.c.l.b16 %v4373
    %v6412 = vunpack.c.h.b16 %v4373
    %v6413 = vunpack.c.l.b16 %v4374
    %v6414 = vunpack.c.h.b16 %v4374
    %v6415 = vunpack.c.l.b16 %v4375
    %v6416 = vunpack.c.h.b16 %v4375
    %v6417 = vunpack.c.l.b16 %v4376
    %v6418 = vunpack.c.h.b16 %v4376
    %v6419 = vunpack.c.l.b16 %v4377
    %v6420 = vunpack.c.h.b16 %v4377
    %v6421 = vunpack.c.l.b16 %v4378
    %v6422 = vunpack.c.h.b16 %v4378
    %v6423 = vunpack.c.l.b16 %v4379
    %v6424 = vunpack.c.h.b16 %v4379
    %v6425 = vunpack.c.l.b16 %v4380
    %v6426 = vunpack.c.h.b16 %v4380
    %v6427 = vunpack.c.l.b16 %v4381
    %v6428 = vunpack.c.h.b16 %v4381
    %v6429 = vunpack.c.l.b16 %v4382
    %v6430 = vunpack.c.h.b16 %v4382
    %v6431 = vunpack.c.l.b16 %v4383
    %v6432 = vunpack.c.h.b16 %v4383
    %v6433 = vunpack.c.l.b16 %v4384
    %v6434 = vunpack.c.h.b16 %v4384
    %v6435 = vunpack.c.l.b16 %v4385
    %v6436 = vunpack.c.h.b16 %v4385
    %v6437 = vunpack.c.l.b16 %v4386
    %v6438 = vunpack.c.h.b16 %v4386
    %v6439 = vunpack.c.l.b16 %v4387
    %v6440 = vunpack.c.h.b16 %v4387
    %v6441 = vunpack.c.l.b16 %v4388
    %v6442 = vunpack.c.h.b16 %v4388
    %v6443 = vunpack.c.l.b16 %v4389
    %v6444 = vunpack.c.h.b16 %v4389
    %v6445 = vunpack.c.l.b16 %v4390
    %v6446 = vunpack.c.h.b16 %v4390
    %v6447 = vunpack.c.l.b16 %v4391
    %v6448 = vunpack.c.h.b16 %v4391
    %v6449 = vunpack.c.l.b16 %v4392
    %v6450 = vunpack.c.h.b16 %v4392
    %v6451 = vunpack.c.l.b16 %v4393
    %v6452 = vunpack.c.h.b16 %v4393
    %v6453 = vunpack.c.l.b16 %v4394
    %v6454 = vunpack.c.h.b16 %v4394
    %v6455 = vunpack.c.l.b16 %v4395
    %v6456 = vunpack.c.h.b16 %v4395
    %v6457 = vunpack.c.l.b16 %v4396
    %v6458 = vunpack.c.h.b16 %v4396
    %v6459 = vunpack.c.l.b16 %v4397
    %v6460 = vunpack.c.h.b16 %v4397
    %v6461 = vunpack.c.l.b16 %v4398
    %v6462 = vunpack.c.h.b16 %v4398
    %v6463 = vunpack.c.l.b16 %v4399
    %v6464 = vunpack.c.h.b16 %v4399
    %v6465 = vunpack.c.l.b16 %v4400
    %v6466 = vunpack.c.h.b16 %v4400
    %v6467 = vunpack.c.l.b16 %v4401
    %v6468 = vunpack.c.h.b16 %v4401
    %v6469 = vunpack.c.l.b16 %v4402
    %v6470 = vunpack.c.h.b16 %v4402
    %v6471 = vunpack.c.l.b16 %v4403
    %v6472 = vunpack.c.h.b16 %v4403
    %v6473 = vunpack.c.l.b16 %v4404
    %v6474 = vunpack.c.h.b16 %v4404
    %v6475 = vunpack.c.l.b16 %v4405
    %v6476 = vunpack.c.h.b16 %v4405
    %v6477 = vunpack.c.l.b16 %v4406
    %v6478 = vunpack.c.h.b16 %v4406
    %v6479 = vunpack.c.l.b16 %v4407
    %v6480 = vunpack.c.h.b16 %v4407
    %v6481 = vunpack.c.l.b16 %v4408
    %v6482 = vunpack.c.h.b16 %v4408
    %v6483 = vunpack.c.l.b16 %v4409
    %v6484 = vunpack.c.h.b16 %v4409
    %v6485 = vunpack.c.l.b16 %v4410
    %v6486 = vunpack.c.h.b16 %v4410
    %v6487 = vunpack.c.l.b16 %v4411
    %v6488 = vunpack.c.h.b16 %v4411
    %v6489 = vunpack.c.l.b16 %v4412
    %v6490 = vunpack.c.h.b16 %v4412
    %v6491 = vunpack.c.l.b16 %v4413
    %v6492 = vunpack.c.h.b16 %v4413
    %v6493 = vunpack.c.l.b16 %v4414
    %v6494 = vunpack.c.h.b16 %v4414
    %v6495 = vunpack.c.l.b16 %v4415
    %v6496 = vunpack.c.h.b16 %v4415
    %v6497 = vunpack.c.l.b16 %v4416
    %v6498 = vunpack.c.h.b16 %v4416
    %v6499 = vunpack.c.l.b16 %v4417
    %v6500 = vunpack.c.h.b16 %v4417
    %v6501 = vunpack.c.l.b16 %v4418
    %v6502 = vunpack.c.h.b16 %v4418
    %v6503 = vunpack.c.l.b16 %v4419
    %v6504 = vunpack.c.h.b16 %v4419
    %v6505 = vunpack.c.l.b16 %v4420
    %v6506 = vunpack.c.h.b16 %v4420
    %v6507 = vunpack.c.l.b16 %v4421
    %v6508 = vunpack.c.h.b16 %v4421
    %v6509 = vunpack.c.l.b16 %v4422
    %v6510 = vunpack.c.h.b16 %v4422
    %v6511 = vunpack.c.l.b16 %v4423
    %v6512 = vunpack.c.h.b16 %v4423
    %v6513 = vunpack.c.l.b16 %v4424
    %v6514 = vunpack.c.h.b16 %v4424
    %v6515 = vunpack.c.l.b16 %v4425
    %v6516 = vunpack.c.h.b16 %v4425
    %v6517 = vunpack.c.l.b16 %v4426
    %v6518 = vunpack.c.h.b16 %v4426
    %v6519 = vunpack.c.l.b16 %v4427
    %v6520 = vunpack.c.h.b16 %v4427
    %v6521 = vunpack.c.l.b16 %v4428
    %v6522 = vunpack.c.h.b16 %v4428
    %v6523 = vunpack.c.l.b16 %v4429
    %v6524 = vunpack.c.h.b16 %v4429
    %v6525 = vunpack.c.l.b16 %v4430
    %v6526 = vunpack.c.h.b16 %v4430
    %v6527 = vunpack.c.l.b16 %v4431
    %v6528 = vunpack.c.h.b16 %v4431
    %v6529 = vunpack.c.l.b16 %v4432
    %v6530 = vunpack.c.h.b16 %v4432
    %v6531 = vunpack.c.l.b16 %v4433
    %v6532 = vunpack.c.h.b16 %v4433
    %v6533 = vunpack.c.l.b16 %v4434
    %v6534 = vunpack.c.h.b16 %v4434
    %v6535 = vunpack.c.l.b16 %v4435
    %v6536 = vunpack.c.h.b16 %v4435
    %v6537 = vunpack.c.l.b16 %v4436
    %v6538 = vunpack.c.h.b16 %v4436
    %v6539 = vunpack.c.l.b16 %v4437
    %v6540 = vunpack.c.h.b16 %v4437
    %v6541 = vunpack.c.l.b16 %v4438
    %v6542 = vunpack.c.h.b16 %v4438
    %v6543 = vunpack.c.l.b16 %v4439
    %v6544 = vunpack.c.h.b16 %v4439
    %v6545 = vunpack.c.l.b16 %v4440
    %v6546 = vunpack.c.h.b16 %v4440
    %v6547 = vunpack.c.l.b16 %v4441
    %v6548 = vunpack.c.h.b16 %v4441
    %v6549 = vunpack.c.l.b16 %v4442
    %v6550 = vunpack.c.h.b16 %v4442
    %v6551 = vunpack.c.l.b16 %v4443
    %v6552 = vunpack.c.h.b16 %v4443
    %v6553 = vpack.c.b16 %v5407, %v5401
    %v6554 = vpack.c.b16 %v5408, %v5402
    %v6555 = vpack.c.b16 %v5409, %v5403
    %v6556 = vpack.c.b16 %v5410, %v5404
    %v6557 = vpack.c.b16 %v5411, %v5405
    %v6558 = vpack.c.b16 %v5412, %v5406
    %v6559 = vpack.c.b16 %v5419, %v5413
    %v6560 = vpack.c.b16 %v5420, %v5414
    %v6561 = vpack.c.b16 %v5421, %v5415
    %v6562 = vpack.c.b16 %v5422, %v5416
    %v6563 = vpack.c.b16 %v5423, %v5417
    %v6564 = vpack.c.b16 %v5424, %v5418
    %v6565 = vpack.c.b16 %v5431, %v5425
    %v6566 = vpack.c.b16 %v5432, %v5426
    %v6567 = vpack.c.b16 %v5433, %v5427
    %v6568 = vpack.c.b16 %v5434, %v5428
    %v6569 = vpack.c.b16 %v5435, %v5429
    %v6570 = vpack.c.b16 %v5436, %v5430
    %v6571 = vpack.c.b16 %v5443, %v5437
    %v6572 = vpack.c.b16 %v5444, %v5438
    %v6573 = vpack.c.b16 %v5445, %v5439
    %v6574 = vpack.c.b16 %v5446, %v5440
    %v6575 = vpack.c.b16 %v5447, %v5441
    %v6576 = vpack.c.b16 %v5448, %v5442
    %v6577 = vpack.c.b16 %v5455, %v5449
    %v6578 = vpack.c.b16 %v5456, %v5450
    %v6579 = vpack.c.b16 %v5457, %v5451
    %v6580 = vpack.c.b16 %v5458, %v5452
    %v6581 = vpack.c.b16 %v5459, %v5453
    %v6582 = vpack.c.b16 %v5460, %v5454
    %v6583 = vpack.c.b16 %v5467, %v5461
    %v6584 = vpack.c.b16 %v5468, %v5462
    %v6585 = vpack.c.b16 %v5469, %v5463
    %v6586 = vpack.c.b16 %v5470, %v5464
    %v6587 = vpack.c.b16 %v5471, %v5465
    %v6588 = vpack.c.b16 %v5472, %v5466
    %v6589 = vpack.c.b16 %v5479, %v5473
    %v6590 = vpack.c.b16 %v5480, %v5474
    %v6591 = vpack.c.b16 %v5481, %v5475
    %v6592 = vpack.c.b16 %v5482, %v5476
    %v6593 = vpack.c.b16 %v5483, %v5477
    %v6594 = vpack.c.b16 %v5484, %v5478
    %v6595 = vpack.c.b16 %v5491, %v5485
    %v6596 = vpack.c.b16 %v5492, %v5486
    %v6597 = vpack.c.b16 %v5493, %v5487
    %v6598 = vpack.c.b16 %v5494, %v5488
    %v6599 = vpack.c.b16 %v5495, %v5489
    %v6600 = vpack.c.b16 %v5496, %v5490
    %v6601 = vpack.c.b16 %v5503, %v5497
    %v6602 = vpack.c.b16 %v5504, %v5498
    %v6603 = vpack.c.b16 %v5505, %v5499
    %v6604 = vpack.c.b16 %v5506, %v5500
    %v6605 = vpack.c.b16 %v5507, %v5501
    %v6606 = vpack.c.b16 %v5508, %v5502
    %v6607 = vpack.c.b16 %v5515, %v5509
    %v6608 = vpack.c.b16 %v5516, %v5510
    %v6609 = vpack.c.b16 %v5517, %v5511
    %v6610 = vpack.c.b16 %v5518, %v5512
    %v6611 = vpack.c.b16 %v5519, %v5513
    %v6612 = vpack.c.b16 %v5520, %v5514
    %v6613 = vpack.c.b16 %v5527, %v5521
    %v6614 = vpack.c.b16 %v5528, %v5522
    %v6615 = vpack.c.b16 %v5529, %v5523
    %v6616 = vpack.c.b16 %v5530, %v5524
    %v6617 = vpack.c.b16 %v5531, %v5525
    %v6618 = vpack.c.b16 %v5532, %v5526
    %v6619 = vpack.c.b16 %v5539, %v5533
    %v6620 = vpack.c.b16 %v5540, %v5534
    %v6621 = vpack.c.b16 %v5541, %v5535
    %v6622 = vpack.c.b16 %v5542, %v5536
    %v6623 = vpack.c.b16 %v5543, %v5537
    %v6624 = vpack.c.b16 %v5544, %v5538
    %v6625 = vpack.c.b16 %v5551, %v5545
    %v6626 = vpack.c.b16 %v5552, %v5546
    %v6627 = vpack.c.b16 %v5553, %v5547
    %v6628 = vpack.c.b16 %v5554, %v5548
    %v6629 = vpack.c.b16 %v5555, %v5549
    %v6630 = vpack.c.b16 %v5556, %v5550
    %v6631 = vpack.c.b16 %v5563, %v5557
    %v6632 = vpack.c.b16 %v5564, %v5558
    %v6633 = vpack.c.b16 %v5565, %v5559
    %v6634 = vpack.c.b16 %v5566, %v5560
    %v6635 = vpack.c.b16 %v5567, %v5561
    %v6636 = vpack.c.b16 %v5568, %v5562
    %v6637 = vpack.c.b16 %v5575, %v5569
    %v6638 = vpack.c.b16 %v5576, %v5570
    %v6639 = vpack.c.b16 %v5577, %v5571
    %v6640 = vpack.c.b16 %v5578, %v5572
    %v6641 = vpack.c.b16 %v5579, %v5573
    %v6642 = vpack.c.b16 %v5580, %v5574
    %v6643 = vpack.c.b16 %v5587, %v5581
    %v6644 = vpack.c.b16 %v5588, %v5582
    %v6645 = vpack.c.b16 %v5589, %v5583
    %v6646 = vpack.c.b16 %v5590, %v5584
    %v6647 = vpack.c.b16 %v5591, %v5585
    %v6648 = vpack.c.b16 %v5592, %v5586
    %v6649 = vpack.c.b16 %v5599, %v5593
    %v6650 = vpack.c.b16 %v5600, %v5594
    %v6651 = vpack.c.b16 %v5601, %v5595
    %v6652 = vpack.c.b16 %v5602, %v5596
    %v6653 = vpack.c.b16 %v5603, %v5597
    %v6654 = vpack.c.b16 %v5604, %v5598
    %v6655 = vpack.c.b16 %v5611, %v5605
    %v6656 = vpack.c.b16 %v5612, %v5606
    %v6657 = vpack.c.b16 %v5613, %v5607
    %v6658 = vpack.c.b16 %v5614, %v5608
    %v6659 = vpack.c.b16 %v5615, %v5609
    %v6660 = vpack.c.b16 %v5616, %v5610
    %v6661 = vpack.c.b16 %v5623, %v5617
    %v6662 = vpack.c.b16 %v5624, %v5618
    %v6663 = vpack.c.b16 %v5625, %v5619
    %v6664 = vpack.c.b16 %v5626, %v5620
    %v6665 = vpack.c.b16 %v5627, %v5621
    %v6666 = vpack.c.b16 %v5628, %v5622
    %v6667 = vpack.c.b16 %v5635, %v5629
    %v6668 = vpack.c.b16 %v5636, %v5630
    %v6669 = vpack.c.b16 %v5637, %v5631
    %v6670 = vpack.c.b16 %v5638, %v5632
    %v6671 = vpack.c.b16 %v5639, %v5633
    %v6672 = vpack.c.b16 %v5640, %v5634
    %v6673 = vpack.c.b16 %v5647, %v5641
    %v6674 = vpack.c.b16 %v5648, %v5642
    %v6675 = vpack.c.b16 %v5649, %v5643
    %v6676 = vpack.c.b16 %v5650, %v5644
    %v6677 = vpack.c.b16 %v5651, %v5645
    %v6678 = vpack.c.b16 %v5652, %v5646
    %v6679 = vpack.c.b16 %v5659, %v5653
    %v6680 = vpack.c.b16 %v5660, %v5654
    %v6681 = vpack.c.b16 %v5661, %v5655
    %v6682 = vpack.c.b16 %v5662, %v5656
    %v6683 = vpack.c.b16 %v5663, %v5657
    %v6684 = vpack.c.b16 %v5664, %v5658
    %v6685 = vpack.c.b16 %v5671, %v5665
    %v6686 = vpack.c.b16 %v5672, %v5666
    %v6687 = vpack.c.b16 %v5673, %v5667
    %v6688 = vpack.c.b16 %v5674, %v5668
    %v6689 = vpack.c.b16 %v5675, %v5669
    %v6690 = vpack.c.b16 %v5676, %v5670
    %v6691 = vpack.c.b16 %v5683, %v5677
    %v6692 = vpack.c.b16 %v5684, %v5678
    %v6693 = vpack.c.b16 %v5685, %v5679
    %v6694 = vpack.c.b16 %v5686, %v5680
    %v6695 = vpack.c.b16 %v5687, %v5681
    %v6696 = vpack.c.b16 %v5688, %v5682
    %v6697 = vpack.c.b16 %v5695, %v5689
    %v6698 = vpack.c.b16 %v5696, %v5690
    %v6699 = vpack.c.b16 %v5697, %v5691
    %v6700 = vpack.c.b16 %v5698, %v5692
    %v6701 = vpack.c.b16 %v5699, %v5693
    %v6702 = vpack.c.b16 %v5700, %v5694
    %v6703 = vpack.c.b16 %v5707, %v5701
    %v6704 = vpack.c.b16 %v5708, %v5702
    %v6705 = vpack.c.b16 %v5709, %v5703
    %v6706 = vpack.c.b16 %v5710, %v5704
    %v6707 = vpack.c.b16 %v5711, %v5705
    %v6708 = vpack.c.b16 %v5712, %v5706
    %v6709 = vpack.c.b16 %v5719, %v5713
    %v6710 = vpack.c.b16 %v5720, %v5714
    %v6711 = vpack.c.b16 %v5721, %v5715
    %v6712 = vpack.c.b16 %v5722, %v5716
    %v6713 = vpack.c.b16 %v5723, %v5717
    %v6714 = vpack.c.b16 %v5724, %v5718
    %v6715 = vpack.c.b16 %v5731, %v5725
    %v6716 = vpack.c.b16 %v5732, %v5726
    %v6717 = vpack.c.b16 %v5733, %v5727
    %v6718 = vpack.c.b16 %v5734, %v5728
    %v6719 = vpack.c.b16 %v5735, %v5729
    %v6720 = vpack.c.b16 %v5736, %v5730
    %v6721 = vpack.c.b16 %v5743, %v5737
    %v6722 = vpack.c.b16 %v5744, %v5738
    %v6723 = vpack.c.b16 %v5745, %v5739
    %v6724 = vpack.c.b16 %v5746, %v5740
    %v6725 = vpack.c.b16 %v5747, %v5741
    %v6726 = vpack.c.b16 %v5748, %v5742
    %v6727 = vpack.c.b16 %v5755, %v5749
    %v6728 = vpack.c.b16 %v5756, %v5750
    %v6729 = vpack.c.b16 %v5757, %v5751
    %v6730 = vpack.c.b16 %v5758, %v5752
    %v6731 = vpack.c.b16 %v5759, %v5753
    %v6732 = vpack.c.b16 %v5760, %v5754
    %v6733 = vpack.c.b16 %v5767, %v5761
    %v6734 = vpack.c.b16 %v5768, %v5762
    %v6735 = vpack.c.b16 %v5769, %v5763
    %v6736 = vpack.c.b16 %v5770, %v5764
    %v6737 = vpack.c.b16 %v5771, %v5765
    %v6738 = vpack.c.b16 %v5772, %v5766
    %v6739 = vpack.c.b16 %v5779, %v5773
    %v6740 = vpack.c.b16 %v5780, %v5774
    %v6741 = vpack.c.b16 %v5781, %v5775
    %v6742 = vpack.c.b16 %v5782, %v5776
    %v6743 = vpack.c.b16 %v5783, %v5777
    %v6744 = vpack.c.b16 %v5784, %v5778
    %v6745 = vpack.c.b16 %v5791, %v5785
    %v6746 = vpack.c.b16 %v5792, %v5786
    %v6747 = vpack.c.b16 %v5793, %v5787
    %v6748 = vpack.c.b16 %v5794, %v5788
    %v6749 = vpack.c.b16 %v5795, %v5789
    %v6750 = vpack.c.b16 %v5796, %v5790
    %v6751 = vpack.c.b16 %v5803, %v5797
    %v6752 = vpack.c.b16 %v5804, %v5798
    %v6753 = vpack.c.b16 %v5805, %v5799
    %v6754 = vpack.c.b16 %v5806, %v5800
    %v6755 = vpack.c.b16 %v5807, %v5801
    %v6756 = vpack.c.b16 %v5808, %v5802
    %v6757 = vpack.c.b16 %v5815, %v5809
    %v6758 = vpack.c.b16 %v5816, %v5810
    %v6759 = vpack.c.b16 %v5817, %v5811
    %v6760 = vpack.c.b16 %v5818, %v5812
    %v6761 = vpack.c.b16 %v5819, %v5813
    %v6762 = vpack.c.b16 %v5820, %v5814
    %v6763 = vpack.c.b16 %v5827, %v5821
    %v6764 = vpack.c.b16 %v5828, %v5822
    %v6765 = vpack.c.b16 %v5829, %v5823
    %v6766 = vpack.c.b16 %v5830, %v5824
    %v6767 = vpack.c.b16 %v5831, %v5825
    %v6768 = vpack.c.b16 %v5832, %v5826
    %v6769 = vpack.c.b16 %v5839, %v5833
    %v6770 = vpack.c.b16 %v5840, %v5834
    %v6771 = vpack.c.b16 %v5841, %v5835
    %v6772 = vpack.c.b16 %v5842, %v5836
    %v6773 = vpack.c.b16 %v5843, %v5837
    %v6774 = vpack.c.b16 %v5844, %v5838
    %v6775 = vpack.c.b16 %v5851, %v5845
    %v6776 = vpack.c.b16 %v5852, %v5846
    %v6777 = vpack.c.b16 %v5853, %v5847
    %v6778 = vpack.c.b16 %v5854, %v5848
    %v6779 = vpack.c.b16 %v5855, %v5849
    %v6780 = vpack.c.b16 %v5856, %v5850
    %v6781 = vpack.c.b16 %v5863, %v5857
    %v6782 = vpack.c.b16 %v5864, %v5858
    %v6783 = vpack.c.b16 %v5865, %v5859
    %v6784 = vpack.c.b16 %v5866, %v5860
    %v6785 = vpack.c.b16 %v5867, %v5861
    %v6786 = vpack.c.b16 %v5868, %v5862
    %v6787 = vpack.c.b16 %v5875, %v5869
    %v6788 = vpack.c.b16 %v5876, %v5870
    %v6789 = vpack.c.b16 %v5877, %v5871
    %v6790 = vpack.c.b16 %v5878, %v5872
    %v6791 = vpack.c.b16 %v5879, %v5873
    %v6792 = vpack.c.b16 %v5880, %v5874
    %v6793 = vpack.c.b16 %v5887, %v5881
    %v6794 = vpack.c.b16 %v5888, %v5882
    %v6795 = vpack.c.b16 %v5889, %v5883
    %v6796 = vpack.c.b16 %v5890, %v5884
    %v6797 = vpack.c.b16 %v5891, %v5885
    %v6798 = vpack.c.b16 %v5892, %v5886
    %v6799 = vpack.c.b16 %v5899, %v5893
    %v6800 = vpack.c.b16 %v5900, %v5894
    %v6801 = vpack.c.b16 %v5901, %v5895
    %v6802 = vpack.c.b16 %v5902, %v5896
    %v6803 = vpack.c.b16 %v5903, %v5897
    %v6804 = vpack.c.b16 %v5904, %v5898
    %v6805 = vpack.c.b16 %v5911, %v5905
    %v6806 = vpack.c.b16 %v5912, %v5906
    %v6807 = vpack.c.b16 %v5913, %v5907
    %v6808 = vpack.c.b16 %v5914, %v5908
    %v6809 = vpack.c.b16 %v5915, %v5909
    %v6810 = vpack.c.b16 %v5916, %v5910
    %v6811 = vpack.c.b16 %v5923, %v5917
    %v6812 = vpack.c.b16 %v5924, %v5918
    %v6813 = vpack.c.b16 %v5925, %v5919
    %v6814 = vpack.c.b16 %v5926, %v5920
    %v6815 = vpack.c.b16 %v5927, %v5921
    %v6816 = vpack.c.b16 %v5928, %v5922
    %v6817 = vpack.c.b16 %v5935, %v5929
    %v6818 = vpack.c.b16 %v5936, %v5930
    %v6819 = vpack.c.b16 %v5937, %v5931
    %v6820 = vpack.c.b16 %v5938, %v5932
    %v6821 = vpack.c.b16 %v5939, %v5933
    %v6822 = vpack.c.b16 %v5940, %v5934
    %v6823 = vpack.c.b16 %v5947, %v5941
    %v6824 = vpack.c.b16 %v5948, %v5942
    %v6825 = vpack.c.b16 %v5949, %v5943
    %v6826 = vpack.c.b16 %v5950, %v5944
    %v6827 = vpack.c.b16 %v5951, %v5945
    %v6828 = vpack.c.b16 %v5952, %v5946
    %v6829 = vpack.c.b16 %v5959, %v5953
    %v6830 = vpack.c.b16 %v5960, %v5954
    %v6831 = vpack.c.b16 %v5961, %v5955
    %v6832 = vpack.c.b16 %v5962, %v5956
    %v6833 = vpack.c.b16 %v5963, %v5957
    %v6834 = vpack.c.b16 %v5964, %v5958
    %v6835 = vpack.c.b16 %v5971, %v5965
    %v6836 = vpack.c.b16 %v5972, %v5966
    %v6837 = vpack.c.b16 %v5973, %v5967
    %v6838 = vpack.c.b16 %v5974, %v5968
    %v6839 = vpack.c.b16 %v5975, %v5969
    %v6840 = vpack.c.b16 %v5976, %v5970
    %v6841 = vpack.c.b16 %v5983, %v5977
    %v6842 = vpack.c.b16 %v5984, %v5978
    %v6843 = vpack.c.b16 %v5985, %v5979
    %v6844 = vpack.c.b16 %v5986, %v5980
    %v6845 = vpack.c.b16 %v5987, %v5981
    %v6846 = vpack.c.b16 %v5988, %v5982
    %v6847 = vpack.c.b16 %v5995, %v5989
    %v6848 = vpack.c.b16 %v5996, %v5990
    %v6849 = vpack.c.b16 %v5997, %v5991
    %v6850 = vpack.c.b16 %v5998, %v5992
    %v6851 = vpack.c.b16 %v5999, %v5993
    %v6852 = vpack.c.b16 %v6000, %v5994
    %v6853 = vpack.c.b16 %v6007, %v6001
    %v6854 = vpack.c.b16 %v6008, %v6002
    %v6855 = vpack.c.b16 %v6009, %v6003
    %v6856 = vpack.c.b16 %v6010, %v6004
    %v6857 = vpack.c.b16 %v6011, %v6005
    %v6858 = vpack.c.b16 %v6012, %v6006
    %v6859 = vpack.c.b16 %v6019, %v6013
    %v6860 = vpack.c.b16 %v6020, %v6014
    %v6861 = vpack.c.b16 %v6021, %v6015
    %v6862 = vpack.c.b16 %v6022, %v6016
    %v6863 = vpack.c.b16 %v6023, %v6017
    %v6864 = vpack.c.b16 %v6024, %v6018
    %v6865 = vpack.c.b16 %v6031, %v6025
    %v6866 = vpack.c.b16 %v6032, %v6026
    %v6867 = vpack.c.b16 %v6033, %v6027
    %v6868 = vpack.c.b16 %v6034, %v6028
    %v6869 = vpack.c.b16 %v6035, %v6029
    %v6870 = vpack.c.b16 %v6036, %v6030
    %v6871 = vpack.c.b16 %v6043, %v6037
    %v6872 = vpack.c.b16 %v6044, %v6038
    %v6873 = vpack.c.b16 %v6045, %v6039
    %v6874 = vpack.c.b16 %v6046, %v6040
    %v6875 = vpack.c.b16 %v6047, %v6041
    %v6876 = vpack.c.b16 %v6048, %v6042
    %v6877 = vpack.c.b16 %v6055, %v6049
    %v6878 = vpack.c.b16 %v6056, %v6050
    %v6879 = vpack.c.b16 %v6057, %v6051
    %v6880 = vpack.c.b16 %v6058, %v6052
    %v6881 = vpack.c.b16 %v6059, %v6053
    %v6882 = vpack.c.b16 %v6060, %v6054
    %v6883 = vpack.c.b16 %v6067, %v6061
    %v6884 = vpack.c.b16 %v6068, %v6062
    %v6885 = vpack.c.b16 %v6069, %v6063
    %v6886 = vpack.c.b16 %v6070, %v6064
    %v6887 = vpack.c.b16 %v6071, %v6065
    %v6888 = vpack.c.b16 %v6072, %v6066
    %v6889 = vpack.c.b16 %v6079, %v6073
    %v6890 = vpack.c.b16 %v6080, %v6074
    %v6891 = vpack.c.b16 %v6081, %v6075
    %v6892 = vpack.c.b16 %v6082, %v6076
    %v6893 = vpack.c.b16 %v6083, %v6077
    %v6894 = vpack.c.b16 %v6084, %v6078
    %v6895 = vpack.c.b16 %v6091, %v6085
    %v6896 = vpack.c.b16 %v6092, %v6086
    %v6897 = vpack.c.b16 %v6093, %v6087
    %v6898 = vpack.c.b16 %v6094, %v6088
    %v6899 = vpack.c.b16 %v6095, %v6089
    %v6900 = vpack.c.b16 %v6096, %v6090
    %v6901 = vpack.c.b16 %v6103, %v6097
    %v6902 = vpack.c.b16 %v6104, %v6098
    %v6903 = vpack.c.b16 %v6105, %v6099
    %v6904 = vpack.c.b16 %v6106, %v6100
    %v6905 = vpack.c.b16 %v6107, %v6101
    %v6906 = vpack.c.b16 %v6108, %v6102
    %v6907 = vpack.c.b16 %v6115, %v6109
    %v6908 = vpack.c.b16 %v6116, %v6110
    %v6909 = vpack.c.b16 %v6117, %v6111
    %v6910 = vpack.c.b16 %v6118, %v6112
    %v6911 = vpack.c.b16 %v6119, %v6113
    %v6912 = vpack.c.b16 %v6120, %v6114
    %v6913 = vpack.c.b16 %v6127, %v6121
    %v6914 = vpack.c.b16 %v6128, %v6122
    %v6915 = vpack.c.b16 %v6129, %v6123
    %v6916 = vpack.c.b16 %v6130, %v6124
    %v6917 = vpack.c.b16 %v6131, %v6125
    %v6918 = vpack.c.b16 %v6132, %v6126
    %v6919 = vpack.c.b16 %v6139, %v6133
    %v6920 = vpack.c.b16 %v6140, %v6134
    %v6921 = vpack.c.b16 %v6141, %v6135
    %v6922 = vpack.c.b16 %v6142, %v6136
    %v6923 = vpack.c.b16 %v6143, %v6137
    %v6924 = vpack.c.b16 %v6144, %v6138
    %v6925 = vpack.c.b16 %v6151, %v6145
    %v6926 = vpack.c.b16 %v6152, %v6146
    %v6927 = vpack.c.b16 %v6153, %v6147
    %v6928 = vpack.c.b16 %v6154, %v6148
    %v6929 = vpack.c.b16 %v6155, %v6149
    %v6930 = vpack.c.b16 %v6156, %v6150
    %v6931 = vpack.c.b16 %v6163, %v6157
    %v6932 = vpack.c.b16 %v6164, %v6158
    %v6933 = vpack.c.b16 %v6165, %v6159
    %v6934 = vpack.c.b16 %v6166, %v6160
    %v6935 = vpack.c.b16 %v6167, %v6161
    %v6936 = vpack.c.b16 %v6168, %v6162
    %v6937 = vpack.c.b16 %v6175, %v6169
    %v6938 = vpack.c.b16 %v6176, %v6170
    %v6939 = vpack.c.b16 %v6177, %v6171
    %v6940 = vpack.c.b16 %v6178, %v6172
    %v6941 = vpack.c.b16 %v6179, %v6173
    %v6942 = vpack.c.b16 %v6180, %v6174
    %v6943 = vpack.c.b16 %v6187, %v6181
    %v6944 = vpack.c.b16 %v6188, %v6182
    %v6945 = vpack.c.b16 %v6189, %v6183
    %v6946 = vpack.c.b16 %v6190, %v6184
    %v6947 = vpack.c.b16 %v6191, %v6185
    %v6948 = vpack.c.b16 %v6192, %v6186
    %v6949 = vpack.c.b16 %v6199, %v6193
    %v6950 = vpack.c.b16 %v6200, %v6194
    %v6951 = vpack.c.b16 %v6201, %v6195
    %v6952 = vpack.c.b16 %v6202, %v6196
    %v6953 = vpack.c.b16 %v6203, %v6197
    %v6954 = vpack.c.b16 %v6204, %v6198
    %v6955 = vpack.c.b16 %v6211, %v6205
    %v6956 = vpack.c.b16 %v6212, %v6206
    %v6957 = vpack.c.b16 %v6213, %v6207
    %v6958 = vpack.c.b16 %v6214, %v6208
    %v6959 = vpack.c.b16 %v6215, %v6209
    %v6960 = vpack.c.b16 %v6216, %v6210
    %v6961 = vpack.c.b16 %v6223, %v6217
    %v6962 = vpack.c.b16 %v6224, %v6218
    %v6963 = vpack.c.b16 %v6225, %v6219
    %v6964 = vpack.c.b16 %v6226, %v6220
    %v6965 = vpack.c.b16 %v6227, %v6221
    %v6966 = vpack.c.b16 %v6228, %v6222
    %v6967 = vpack.c.b16 %v6235, %v6229
    %v6968 = vpack.c.b16 %v6236, %v6230
    %v6969 = vpack.c.b16 %v6237, %v6231
    %v6970 = vpack.c.b16 %v6238, %v6232
    %v6971 = vpack.c.b16 %v6239, %v6233
    %v6972 = vpack.c.b16 %v6240, %v6234
    %v6973 = vpack.c.b16 %v6247, %v6241
    %v6974 = vpack.c.b16 %v6248, %v6242
    %v6975 = vpack.c.b16 %v6249, %v6243
    %v6976 = vpack.c.b16 %v6250, %v6244
    %v6977 = vpack.c.b16 %v6251, %v6245
    %v6978 = vpack.c.b16 %v6252, %v6246
    %v6979 = vpack.c.b16 %v6259, %v6253
    %v6980 = vpack.c.b16 %v6260, %v6254
    %v6981 = vpack.c.b16 %v6261, %v6255
    %v6982 = vpack.c.b16 %v6262, %v6256
    %v6983 = vpack.c.b16 %v6263, %v6257
    %v6984 = vpack.c.b16 %v6264, %v6258
    %v6985 = vpack.c.b16 %v6271, %v6265
    %v6986 = vpack.c.b16 %v6272, %v6266
    %v6987 = vpack.c.b16 %v6273, %v6267
    %v6988 = vpack.c.b16 %v6274, %v6268
    %v6989 = vpack.c.b16 %v6275, %v6269
    %v6990 = vpack.c.b16 %v6276, %v6270
    %v6991 = vpack.c.b16 %v6283, %v6277
    %v6992 = vpack.c.b16 %v6284, %v6278
    %v6993 = vpack.c.b16 %v6285, %v6279
    %v6994 = vpack.c.b16 %v6286, %v6280
    %v6995 = vpack.c.b16 %v6287, %v6281
    %v6996 = vpack.c.b16 %v6288, %v6282
    %v6997 = vpack.c.b16 %v6295, %v6289
    %v6998 = vpack.c.b16 %v6296, %v6290
    %v6999 = vpack.c.b16 %v6297, %v6291
    %v7000 = vpack.c.b16 %v6298, %v6292
    %v7001 = vpack.c.b16 %v6299, %v6293
    %v7002 = vpack.c.b16 %v6300, %v6294
    %v7003 = vpack.c.b16 %v6307, %v6301
    %v7004 = vpack.c.b16 %v6308, %v6302
    %v7005 = vpack.c.b16 %v6309, %v6303
    %v7006 = vpack.c.b16 %v6310, %v6304
    %v7007 = vpack.c.b16 %v6311, %v6305
    %v7008 = vpack.c.b16 %v6312, %v6306
    %v7009 = vpack.c.b16 %v6319, %v6313
    %v7010 = vpack.c.b16 %v6320, %v6314
    %v7011 = vpack.c.b16 %v6321, %v6315
    %v7012 = vpack.c.b16 %v6322, %v6316
    %v7013 = vpack.c.b16 %v6323, %v6317
    %v7014 = vpack.c.b16 %v6324, %v6318
    %v7015 = vpack.c.b16 %v6331, %v6325
    %v7016 = vpack.c.b16 %v6332, %v6326
    %v7017 = vpack.c.b16 %v6333, %v6327
    %v7018 = vpack.c.b16 %v6334, %v6328
    %v7019 = vpack.c.b16 %v6335, %v6329
    %v7020 = vpack.c.b16 %v6336, %v6330
    %v7021 = vpack.c.b16 %v6343, %v6337
    %v7022 = vpack.c.b16 %v6344, %v6338
    %v7023 = vpack.c.b16 %v6345, %v6339
    %v7024 = vpack.c.b16 %v6346, %v6340
    %v7025 = vpack.c.b16 %v6347, %v6341
    %v7026 = vpack.c.b16 %v6348, %v6342
    %v7027 = vpack.c.b16 %v6355, %v6349
    %v7028 = vpack.c.b16 %v6356, %v6350
    %v7029 = vpack.c.b16 %v6357, %v6351
    %v7030 = vpack.c.b16 %v6358, %v6352
    %v7031 = vpack.c.b16 %v6359, %v6353
    %v7032 = vpack.c.b16 %v6360, %v6354
    %v7033 = vpack.c.b16 %v6367, %v6361
    %v7034 = vpack.c.b16 %v6368, %v6362
    %v7035 = vpack.c.b16 %v6369, %v6363
    %v7036 = vpack.c.b16 %v6370, %v6364
    %v7037 = vpack.c.b16 %v6371, %v6365
    %v7038 = vpack.c.b16 %v6372, %v6366
    %v7039 = vpack.c.b16 %v6379, %v6373
    %v7040 = vpack.c.b16 %v6380, %v6374
    %v7041 = vpack.c.b16 %v6381, %v6375
    %v7042 = vpack.c.b16 %v6382, %v6376
    %v7043 = vpack.c.b16 %v6383, %v6377
    %v7044 = vpack.c.b16 %v6384, %v6378
    %v7045 = vpack.c.b16 %v6391, %v6385
    %v7046 = vpack.c.b16 %v6392, %v6386
    %v7047 = vpack.c.b16 %v6393, %v6387
    %v7048 = vpack.c.b16 %v6394, %v6388
    %v7049 = vpack.c.b16 %v6395, %v6389
    %v7050 = vpack.c.b16 %v6396, %v6390
    %v7051 = vpack.c.b16 %v6403, %v6397
    %v7052 = vpack.c.b16 %v6404, %v6398
    %v7053 = vpack.c.b16 %v6405, %v6399
    %v7054 = vpack.c.b16 %v6406, %v6400
    %v7055 = vpack.c.b16 %v6407, %v6401
    %v7056 = vpack.c.b16 %v6408, %v6402
    %v7057 = vpack.c.b16 %v6415, %v6409
    %v7058 = vpack.c.b16 %v6416, %v6410
    %v7059 = vpack.c.b16 %v6417, %v6411
    %v7060 = vpack.c.b16 %v6418, %v6412
    %v7061 = vpack.c.b16 %v6419, %v6413
    %v7062 = vpack.c.b16 %v6420, %v6414
    %v7063 = vpack.c.b16 %v6427, %v6421
    %v7064 = vpack.c.b16 %v6428, %v6422
    %v7065 = vpack.c.b16 %v6429, %v6423
    %v7066 = vpack.c.b16 %v6430, %v6424
    %v7067 = vpack.c.b16 %v6431, %v6425
    %v7068 = vpack.c.b16 %v6432, %v6426
    %v7069 = vpack.c.b16 %v6439, %v6433
    %v7070 = vpack.c.b16 %v6440, %v6434
    %v7071 = vpack.c.b16 %v6441, %v6435
    %v7072 = vpack.c.b16 %v6442, %v6436
    %v7073 = vpack.c.b16 %v6443, %v6437
    %v7074 = vpack.c.b16 %v6444, %v6438
    %v7075 = vpack.c.b16 %v6451, %v6445
    %v7076 = vpack.c.b16 %v6452, %v6446
    %v7077 = vpack.c.b16 %v6453, %v6447
    %v7078 = vpack.c.b16 %v6454, %v6448
    %v7079 = vpack.c.b16 %v6455, %v6449
    %v7080 = vpack.c.b16 %v6456, %v6450
    %v7081 = vpack.c.b16 %v6463, %v6457
    %v7082 = vpack.c.b16 %v6464, %v6458
    %v7083 = vpack.c.b16 %v6465, %v6459
    %v7084 = vpack.c.b16 %v6466, %v6460
    %v7085 = vpack.c.b16 %v6467, %v6461
    %v7086 = vpack.c.b16 %v6468, %v6462
    %v7087 = vpack.c.b16 %v6475, %v6469
    %v7088 = vpack.c.b16 %v6476, %v6470
    %v7089 = vpack.c.b16 %v6477, %v6471
    %v7090 = vpack.c.b16 %v6478, %v6472
    %v7091 = vpack.c.b16 %v6479, %v6473
    %v7092 = vpack.c.b16 %v6480, %v6474
    %v7093 = vpack.c.b16 %v6487, %v6481
    %v7094 = vpack.c.b16 %v6488, %v6482
    %v7095 = vpack.c.b16 %v6489, %v6483
    %v7096 = vpack.c.b16 %v6490, %v6484
    %v7097 = vpack.c.b16 %v6491, %v6485
    %v7098 = vpack.c.b16 %v6492, %v6486
    %v7099 = vpack.c.b16 %v6499, %v6493
    %v7100 = vpack.c.b16 %v6500, %v6494
    %v7101 = vpack.c.b16 %v6501, %v6495
    %v7102 = vpack.c.b16 %v6502, %v6496
    %v7103 = vpack.c.b16 %v6503, %v6497
    %v7104 = vpack.c.b16 %v6504, %v6498
    %v7105 = vpack.c.b16 %v6511, %v6505
    %v7106 = vpack.c.b16 %v6512, %v6506
    %v7107 = vpack.c.b16 %v6513, %v6507
    %v7108 = vpack.c.b16 %v6514, %v6508
    %v7109 = vpack.c.b16 %v6515, %v6509
    %v7110 = vpack.c.b16 %v6516, %v6510
    %v7111 = vpack.c.b16 %v6523, %v6517
    %v7112 = vpack.c.b16 %v6524, %v6518
    %v7113 = vpack.c.b16 %v6525, %v6519
    %v7114 = vpack.c.b16 %v6526, %v6520
    %v7115 = vpack.c.b16 %v6527, %v6521
    %v7116 = vpack.c.b16 %v6528, %v6522
    %v7117 = vpack.c.b16 %v6535, %v6529
    %v7118 = vpack.c.b16 %v6536, %v6530
    %v7119 = vpack.c.b16 %v6537, %v6531
    %v7120 = vpack.c.b16 %v6538, %v6532
    %v7121 = vpack.c.b16 %v6539, %v6533
    %v7122 = vpack.c.b16 %v6540, %v6534
    %v7123 = vpack.c.b16 %v6547, %v6541
    %v7124 = vpack.c.b16 %v6548, %v6542
    %v7125 = vpack.c.b16 %v6549, %v6543
    %v7126 = vpack.c.b16 %v6550, %v6544
    %v7127 = vpack.c.b16 %v6551, %v6545
    %v7128 = vpack.c.b16 %v6552, %v6546
    %7705 = vmatprep.subr.bf16.mxu0 %v6596
    %7706 = vmatpush1.bf16.msra.mxu0 %v6595
    %7707 = vmatprep.subr.bf16.mxu0 %v6590
    %7708 = vmatpush1.bf16.msra.mxu0 %v6589
    %7709 = vmatprep.subr.bf16.mxu0 %v6584
    %7710 = vmatpush1.bf16.msra.mxu0 %v6583
    %7711 = vmatprep.subr.bf16.mxu0 %v6578
    %7712 = vmatpush1.bf16.msra.mxu0 %v6577
    %7713 = vmatprep.subr.bf16.mxu0 %v6572
    %7714 = vmatpush1.bf16.msra.mxu0 %v6571
    %7715 = vmatprep.subr.bf16.mxu0 %v6566
    %7716 = vmatpush1.bf16.msra.mxu0 %v6565
    %7717 = vmatprep.subr.bf16.mxu0 %v6560
    %7718 = vmatpush1.bf16.msra.mxu0 %v6559
    %7719 = vmatprep.subr.bf16.mxu0 %v6554
    %7720 = vmatpush1.bf16.msra.mxu0 %v6553
    %7721 = vmatprep.subr.bf16.mxu0 %v6644
    %7722 = vmatpush2.bf16.msra.mxu0 %v6643
    %7723 = vmatprep.subr.bf16.mxu0 %v6638
    %7724 = vmatpush2.bf16.msra.mxu0 %v6637
    %7725 = vmatprep.subr.bf16.mxu0 %v6632
    %7726 = vmatpush2.bf16.msra.mxu0 %v6631
    %7727 = vmatprep.subr.bf16.mxu0 %v6626
    %7728 = vmatpush2.bf16.msra.mxu0 %v6625
    %7729 = vmatprep.subr.bf16.mxu0 %v6620
    %7730 = vmatpush2.bf16.msra.mxu0 %v6619
    %7731 = vmatprep.subr.bf16.mxu0 %v6614
    %7732 = vmatpush2.bf16.msra.mxu0 %v6613
    %7733 = vmatprep.subr.bf16.mxu0 %v6608
    %7734 = vmatpush2.bf16.msra.mxu0 %v6607
    %7735 = vmatprep.subr.bf16.mxu0 %v6602
    %7736 = vmatpush2.bf16.msra.mxu0 %v6601
    %7737 = vmatprep.mubr.bf16.mxu0 %v4629
    %7738 = vmatmul.mubr.bf16.gmra.mxu0 %v4625
    %v7739 = vpop.f32.mrf.mxu0
    %v7740 = vadd.f32 %v4448, %v7739
    %v7741 = vpop.f32.mrf.mxu0
    %v7742 = vadd.f32 %v4452, %v7741
    %v7743 = vpop.f32.mrf.mxu0
    %v7744 = vadd.f32 %v4448, %v7743
    %v7745 = vpop.f32.mrf.mxu0
    %v7746 = vadd.f32 %v4452, %v7745
    %7747 = vmatprep.mubr.bf16.mxu0 %v4756
    %7748 = vmatmul.mubr.bf16.gmra.mxu0 %v4742
    %v7749 = vpop.f32.mrf.mxu0
    %v7750 = vadd.f32 %v4448, %v7749
    %v7751 = vpop.f32.mrf.mxu0
    %v7752 = vadd.f32 %v4452, %v7751
    %v7753 = vpop.f32.mrf.mxu0
    %v7754 = vpop.f32.mrf.mxu0
    %7755 = vdwg.mxu0
    %7756 = vmatprep.subr.bf16.mxu0 %v6692
    %7757 = vmatpush1.bf16.msra.mxu0 %v6691
    %7758 = vmatprep.subr.bf16.mxu0 %v6686
    %7759 = vmatpush1.bf16.msra.mxu0 %v6685
    %7760 = vmatprep.subr.bf16.mxu0 %v6680
    %7761 = vmatpush1.bf16.msra.mxu0 %v6679
    %7762 = vmatprep.subr.bf16.mxu0 %v6674
    %7763 = vmatpush1.bf16.msra.mxu0 %v6673
    %7764 = vmatprep.subr.bf16.mxu0 %v6668
    %7765 = vmatpush1.bf16.msra.mxu0 %v6667
    %7766 = vmatprep.subr.bf16.mxu0 %v6662
    %7767 = vmatpush1.bf16.msra.mxu0 %v6661
    %7768 = vmatprep.subr.bf16.mxu0 %v6656
    %7769 = vmatpush1.bf16.msra.mxu0 %v6655
    %7770 = vmatprep.subr.bf16.mxu0 %v6650
    %7771 = vmatpush1.bf16.msra.mxu0 %v6649
    %7772 = vmatprep.subr.bf16.mxu0 %v6740
    %7773 = vmatpush2.bf16.msra.mxu0 %v6739
    %7774 = vmatprep.subr.bf16.mxu0 %v6734
    %7775 = vmatpush2.bf16.msra.mxu0 %v6733
    %7776 = vmatprep.subr.bf16.mxu0 %v6728
    %7777 = vmatpush2.bf16.msra.mxu0 %v6727
    %7778 = vmatprep.subr.bf16.mxu0 %v6722
    %7779 = vmatpush2.bf16.msra.mxu0 %v6721
    %7780 = vmatprep.subr.bf16.mxu0 %v6716
    %7781 = vmatpush2.bf16.msra.mxu0 %v6715
    %7782 = vmatprep.subr.bf16.mxu0 %v6710
    %7783 = vmatpush2.bf16.msra.mxu0 %v6709
    %7784 = vmatprep.subr.bf16.mxu0 %v6704
    %7785 = vmatpush2.bf16.msra.mxu0 %v6703
    %7786 = vmatprep.subr.bf16.mxu0 %v6698
    %7787 = vmatpush2.bf16.msra.mxu0 %v6697
    %7788 = vmatprep.mubr.bf16.mxu0 %v4630
    %7789 = vmatmul.mubr.bf16.gmra.mxu0 %v4626
    %v7790 = vpop.f32.mrf.mxu0
    %v7791 = vadd.f32 %v7740, %v7790
    %v7792 = vpop.f32.mrf.mxu0
    %v7793 = vadd.f32 %v7742, %v7792
    %v7794 = vpop.f32.mrf.mxu0
    %v7795 = vadd.f32 %v7744, %v7794
    %v7796 = vpop.f32.mrf.mxu0
    %v7797 = vadd.f32 %v7746, %v7796
    %7798 = vmatprep.mubr.bf16.mxu0 %v4766
    %7799 = vmatmul.mubr.bf16.gmra.mxu0 %v4764
    %v7800 = vpop.f32.mrf.mxu0
    %v7801 = vadd.f32 %v7750, %v7800
    %v7802 = vpop.f32.mrf.mxu0
    %v7803 = vadd.f32 %v7752, %v7802
    %v7804 = vpop.f32.mrf.mxu0
    %v7805 = vpop.f32.mrf.mxu0
    %7806 = vdwg.mxu0
    %7807 = vmatprep.subr.bf16.mxu0 %v6788
    %7808 = vmatpush1.bf16.msra.mxu0 %v6787
    %7809 = vmatprep.subr.bf16.mxu0 %v6782
    %7810 = vmatpush1.bf16.msra.mxu0 %v6781
    %7811 = vmatprep.subr.bf16.mxu0 %v6776
    %7812 = vmatpush1.bf16.msra.mxu0 %v6775
    %7813 = vmatprep.subr.bf16.mxu0 %v6770
    %7814 = vmatpush1.bf16.msra.mxu0 %v6769
    %7815 = vmatprep.subr.bf16.mxu0 %v6764
    %7816 = vmatpush1.bf16.msra.mxu0 %v6763
    %7817 = vmatprep.subr.bf16.mxu0 %v6758
    %7818 = vmatpush1.bf16.msra.mxu0 %v6757
    %7819 = vmatprep.subr.bf16.mxu0 %v6752
    %7820 = vmatpush1.bf16.msra.mxu0 %v6751
    %7821 = vmatprep.subr.bf16.mxu0 %v6746
    %7822 = vmatpush1.bf16.msra.mxu0 %v6745
    %7823 = vmatprep.subr.bf16.mxu0 %v6836
    %7824 = vmatpush2.bf16.msra.mxu0 %v6835
    %7825 = vmatprep.subr.bf16.mxu0 %v6830
    %7826 = vmatpush2.bf16.msra.mxu0 %v6829
    %7827 = vmatprep.subr.bf16.mxu0 %v6824
    %7828 = vmatpush2.bf16.msra.mxu0 %v6823
    %7829 = vmatprep.subr.bf16.mxu0 %v6818
    %7830 = vmatpush2.bf16.msra.mxu0 %v6817
    %7831 = vmatprep.subr.bf16.mxu0 %v6812
    %7832 = vmatpush2.bf16.msra.mxu0 %v6811
    %7833 = vmatprep.subr.bf16.mxu0 %v6806
    %7834 = vmatpush2.bf16.msra.mxu0 %v6805
    %7835 = vmatprep.subr.bf16.mxu0 %v6800
    %7836 = vmatpush2.bf16.msra.mxu0 %v6799
    %7837 = vmatprep.subr.bf16.mxu0 %v6794
    %7838 = vmatpush2.bf16.msra.mxu0 %v6793
    %7839 = vmatprep.mubr.bf16.mxu0 %v4631
    %7840 = vmatmul.mubr.bf16.gmra.mxu0 %v4627
    %v7841 = vpop.f32.mrf.mxu0
    %v7842 = vadd.f32 %v7791, %v7841
    %v7843 = vpop.f32.mrf.mxu0
    %v7844 = vadd.f32 %v7793, %v7843
    %v7845 = vpop.f32.mrf.mxu0
    %v7846 = vadd.f32 %v7795, %v7845
    %v7847 = vpop.f32.mrf.mxu0
    %v7848 = vadd.f32 %v7797, %v7847
    %7849 = vmatprep.mubr.bf16.mxu0 %v4763
    %7850 = vmatmul.mubr.bf16.gmra.mxu0 %v4749
    %v7851 = vpop.f32.mrf.mxu0
    %v7852 = vadd.f32 %v7801, %v7851
    %v7853 = vpop.f32.mrf.mxu0
    %v7854 = vadd.f32 %v7803, %v7853
    %v7855 = vpop.f32.mrf.mxu0
    %v7856 = vpop.f32.mrf.mxu0
    %7857 = vdwg.mxu0
    %7858 = vmatprep.subr.bf16.mxu0 %v6884
    %7859 = vmatpush1.bf16.msra.mxu0 %v6883
    %7860 = vmatprep.subr.bf16.mxu0 %v6878
    %7861 = vmatpush1.bf16.msra.mxu0 %v6877
    %7862 = vmatprep.subr.bf16.mxu0 %v6872
    %7863 = vmatpush1.bf16.msra.mxu0 %v6871
    %7864 = vmatprep.subr.bf16.mxu0 %v6866
    %7865 = vmatpush1.bf16.msra.mxu0 %v6865
    %7866 = vmatprep.subr.bf16.mxu0 %v6860
    %7867 = vmatpush1.bf16.msra.mxu0 %v6859
    %7868 = vmatprep.subr.bf16.mxu0 %v6854
    %7869 = vmatpush1.bf16.msra.mxu0 %v6853
    %7870 = vmatprep.subr.bf16.mxu0 %v6848
    %7871 = vmatpush1.bf16.msra.mxu0 %v6847
    %7872 = vmatprep.subr.bf16.mxu0 %v6842
    %7873 = vmatpush1.bf16.msra.mxu0 %v6841
    %7874 = vmatprep.subr.bf16.mxu0 %v6932
    %7875 = vmatpush2.bf16.msra.mxu0 %v6931
    %7876 = vmatprep.subr.bf16.mxu0 %v6926
    %7877 = vmatpush2.bf16.msra.mxu0 %v6925
    %7878 = vmatprep.subr.bf16.mxu0 %v6920
    %7879 = vmatpush2.bf16.msra.mxu0 %v6919
    %7880 = vmatprep.subr.bf16.mxu0 %v6914
    %7881 = vmatpush2.bf16.msra.mxu0 %v6913
    %7882 = vmatprep.subr.bf16.mxu0 %v6908
    %7883 = vmatpush2.bf16.msra.mxu0 %v6907
    %7884 = vmatprep.subr.bf16.mxu0 %v6902
    %7885 = vmatpush2.bf16.msra.mxu0 %v6901
    %7886 = vmatprep.subr.bf16.mxu0 %v6896
    %7887 = vmatpush2.bf16.msra.mxu0 %v6895
    %7888 = vmatprep.subr.bf16.mxu0 %v6890
    %7889 = vmatpush2.bf16.msra.mxu0 %v6889
    %7890 = vmatprep.mubr.bf16.mxu0 %v4632
    %7891 = vmatmul.mubr.bf16.gmra.mxu0 %v4628
    %v7892 = vpop.f32.mrf.mxu0
    %v7893 = vadd.f32 %v7842, %v7892
    %v7894 = vpop.f32.mrf.mxu0
    %v7895 = vadd.f32 %v7844, %v7894
    %v7896 = vpop.f32.mrf.mxu0
    %v7897 = vadd.f32 %v7846, %v7896
    %v7898 = vpop.f32.mrf.mxu0
    %v7899 = vadd.f32 %v7848, %v7898
    %7900 = vmatprep.mubr.bf16.mxu0 %v4767
    %7901 = vmatmul.mubr.bf16.gmra.mxu0 %v4765
    %v7902 = vpop.f32.mrf.mxu0
    %v7903 = vadd.f32 %v7852, %v7902
    %v7904 = vpop.f32.mrf.mxu0
    %v7905 = vadd.f32 %v7854, %v7904
    %v7906 = vpop.f32.mrf.mxu0
    %v7907 = vpop.f32.mrf.mxu0
    %7908 = vdwg.mxu0
    %7909 = vmatprep.subr.bf16.mxu0 %v6980
    %7910 = vmatpush1.bf16.msra.mxu0 %v6979
    %7911 = vmatprep.subr.bf16.mxu0 %v6974
    %7912 = vmatpush1.bf16.msra.mxu0 %v6973
    %7913 = vmatprep.subr.bf16.mxu0 %v6968
    %7914 = vmatpush1.bf16.msra.mxu0 %v6967
    %7915 = vmatprep.subr.bf16.mxu0 %v6962
    %7916 = vmatpush1.bf16.msra.mxu0 %v6961
    %7917 = vmatprep.subr.bf16.mxu0 %v6956
    %7918 = vmatpush1.bf16.msra.mxu0 %v6955
    %7919 = vmatprep.subr.bf16.mxu0 %v6950
    %7920 = vmatpush1.bf16.msra.mxu0 %v6949
    %7921 = vmatprep.subr.bf16.mxu0 %v6944
    %7922 = vmatpush1.bf16.msra.mxu0 %v6943
    %7923 = vmatprep.subr.bf16.mxu0 %v6938
    %7924 = vmatpush1.bf16.msra.mxu0 %v6937
    %7925 = vmatprep.subr.bf16.mxu0 %v7028
    %7926 = vmatpush2.bf16.msra.mxu0 %v7027
    %7927 = vmatprep.subr.bf16.mxu0 %v7022
    %7928 = vmatpush2.bf16.msra.mxu0 %v7021
    %7929 = vmatprep.subr.bf16.mxu0 %v7016
    %7930 = vmatpush2.bf16.msra.mxu0 %v7015
    %7931 = vmatprep.subr.bf16.mxu0 %v7010
    %7932 = vmatpush2.bf16.msra.mxu0 %v7009
    %7933 = vmatprep.subr.bf16.mxu0 %v7004
    %7934 = vmatpush2.bf16.msra.mxu0 %v7003
    %7935 = vmatprep.subr.bf16.mxu0 %v6998
    %7936 = vmatpush2.bf16.msra.mxu0 %v6997
    %7937 = vmatprep.subr.bf16.mxu0 %v6992
    %7938 = vmatpush2.bf16.msra.mxu0 %v6991
    %7939 = vmatprep.subr.bf16.mxu0 %v6986
    %7940 = vmatpush2.bf16.msra.mxu0 %v6985
    %7941 = vmatprep.mubr.bf16.mxu0 %v4699
    %7942 = vmatmul.mubr.bf16.gmra.mxu0 %v4697
    %v7943 = vpop.f32.mrf.mxu0
    %v7944 = vadd.f32 %v7893, %v7943
    %v7945 = vpop.f32.mrf.mxu0
    %v7946 = vadd.f32 %v7895, %v7945
    %v7947 = vpop.f32.mrf.mxu0
    %v7948 = vadd.f32 %v7897, %v7947
    %v7949 = vpop.f32.mrf.mxu0
    %v7950 = vadd.f32 %v7899, %v7949
    %7951 = vmatprep.mubr.bf16.mxu0 %v4798
    %7952 = vmatmul.mubr.bf16.gmra.mxu0 %v4791
    %v7953 = vpop.f32.mrf.mxu0
    %v7954 = vadd.f32 %v7903, %v7953
    %v7955 = vpop.f32.mrf.mxu0
    %v7956 = vadd.f32 %v7905, %v7955
    %v7957 = vpop.f32.mrf.mxu0
    %v7958 = vpop.f32.mrf.mxu0
    %7959 = vdwg.mxu0
    %7960 = vmatprep.subr.bf16.mxu0 %v7076
    %7961 = vmatpush1.bf16.msra.mxu0 %v7075
    %7962 = vmatprep.subr.bf16.mxu0 %v7070
    %7963 = vmatpush1.bf16.msra.mxu0 %v7069
    %7964 = vmatprep.subr.bf16.mxu0 %v7064
    %7965 = vmatpush1.bf16.msra.mxu0 %v7063
    %7966 = vmatprep.subr.bf16.mxu0 %v7058
    %7967 = vmatpush1.bf16.msra.mxu0 %v7057
    %7968 = vmatprep.subr.bf16.mxu0 %v7052
    %7969 = vmatpush1.bf16.msra.mxu0 %v7051
    %7970 = vmatprep.subr.bf16.mxu0 %v7046
    %7971 = vmatpush1.bf16.msra.mxu0 %v7045
    %7972 = vmatprep.subr.bf16.mxu0 %v7040
    %7973 = vmatpush1.bf16.msra.mxu0 %v7039
    %7974 = vmatprep.subr.bf16.mxu0 %v7034
    %7975 = vmatpush1.bf16.msra.mxu0 %v7033
    %7976 = vmatprep.subr.bf16.mxu0 %v7124
    %7977 = vmatpush2.bf16.msra.mxu0 %v7123
    %7978 = vmatprep.subr.bf16.mxu0 %v7118
    %7979 = vmatpush2.bf16.msra.mxu0 %v7117
    %7980 = vmatprep.subr.bf16.mxu0 %v7112
    %7981 = vmatpush2.bf16.msra.mxu0 %v7111
    %7982 = vmatprep.subr.bf16.mxu0 %v7106
    %7983 = vmatpush2.bf16.msra.mxu0 %v7105
    %7984 = vmatprep.subr.bf16.mxu0 %v7100
    %7985 = vmatpush2.bf16.msra.mxu0 %v7099
    %7986 = vmatprep.subr.bf16.mxu0 %v7094
    %7987 = vmatpush2.bf16.msra.mxu0 %v7093
    %7988 = vmatprep.subr.bf16.mxu0 %v7088
    %7989 = vmatpush2.bf16.msra.mxu0 %v7087
    %7990 = vmatprep.subr.bf16.mxu0 %v7082
    %7991 = vmatpush2.bf16.msra.mxu0 %v7081
    %7992 = vmatprep.mubr.bf16.mxu0 %v4700
    %7993 = vmatmul.mubr.bf16.gmra.mxu0 %v4698
    %v7994 = vpop.f32.mrf.mxu0
    %v7995 = vadd.f32 %v7944, %v7994
    %v7996 = vpop.f32.mrf.mxu0
    %v7997 = vadd.f32 %v7946, %v7996
    %v7998 = vpop.f32.mrf.mxu0
    %v7999 = vadd.f32 %v7948, %v7998
    %v8000 = vpop.f32.mrf.mxu0
    %v8001 = vadd.f32 %v7950, %v8000
    %8002 = vmatprep.mubr.bf16.mxu0 %v4800
    %8003 = vmatmul.mubr.bf16.gmra.mxu0 %v4799
    %v8004 = vpop.f32.mrf.mxu0
    %v8005 = vadd.f32 %v7954, %v8004
    %v8006 = vpop.f32.mrf.mxu0
    %v8007 = vadd.f32 %v7956, %v8006
    %v8008 = vpop.f32.mrf.mxu0
    %v8009 = vpop.f32.mrf.mxu0
    %8010 = vdwg.mxu0
    %8011 = vmatprep.subr.bf16.mxu0 %v6598
    %8012 = vmatpush1.bf16.msra.mxu0 %v6597
    %8013 = vmatprep.subr.bf16.mxu0 %v6592
    %8014 = vmatpush1.bf16.msra.mxu0 %v6591
    %8015 = vmatprep.subr.bf16.mxu0 %v6586
    %8016 = vmatpush1.bf16.msra.mxu0 %v6585
    %8017 = vmatprep.subr.bf16.mxu0 %v6580
    %8018 = vmatpush1.bf16.msra.mxu0 %v6579
    %8019 = vmatprep.subr.bf16.mxu0 %v6574
    %8020 = vmatpush1.bf16.msra.mxu0 %v6573
    %8021 = vmatprep.subr.bf16.mxu0 %v6568
    %8022 = vmatpush1.bf16.msra.mxu0 %v6567
    %8023 = vmatprep.subr.bf16.mxu0 %v6562
    %8024 = vmatpush1.bf16.msra.mxu0 %v6561
    %8025 = vmatprep.subr.bf16.mxu0 %v6556
    %8026 = vmatpush1.bf16.msra.mxu0 %v6555
    %8027 = vmatprep.subr.bf16.mxu0 %v6646
    %8028 = vmatpush2.bf16.msra.mxu0 %v6645
    %8029 = vmatprep.subr.bf16.mxu0 %v6640
    %8030 = vmatpush2.bf16.msra.mxu0 %v6639
    %8031 = vmatprep.subr.bf16.mxu0 %v6634
    %8032 = vmatpush2.bf16.msra.mxu0 %v6633
    %8033 = vmatprep.subr.bf16.mxu0 %v6628
    %8034 = vmatpush2.bf16.msra.mxu0 %v6627
    %8035 = vmatprep.subr.bf16.mxu0 %v6622
    %8036 = vmatpush2.bf16.msra.mxu0 %v6621
    %8037 = vmatprep.subr.bf16.mxu0 %v6616
    %8038 = vmatpush2.bf16.msra.mxu0 %v6615
    %8039 = vmatprep.subr.bf16.mxu0 %v6610
    %8040 = vmatpush2.bf16.msra.mxu0 %v6609
    %8041 = vmatprep.subr.bf16.mxu0 %v6604
    %8042 = vmatpush2.bf16.msra.mxu0 %v6603
    %8043 = vmatprep.mubr.bf16.mxu0 %v4629
    %8044 = vmatmul.mubr.bf16.gmra.mxu0 %v4625
    %v8045 = vpop.f32.mrf.mxu0
    %v8046 = vadd.f32 %v4456, %v8045
    %v8047 = vpop.f32.mrf.mxu0
    %v8048 = vadd.f32 %v4460, %v8047
    %v8049 = vpop.f32.mrf.mxu0
    %v8050 = vadd.f32 %v4456, %v8049
    %v8051 = vpop.f32.mrf.mxu0
    %v8052 = vadd.f32 %v4460, %v8051
    %8053 = vmatprep.mubr.bf16.mxu0 %v4756
    %8054 = vmatmul.mubr.bf16.gmra.mxu0 %v4742
    %v8055 = vpop.f32.mrf.mxu0
    %v8056 = vadd.f32 %v4456, %v8055
    %v8057 = vpop.f32.mrf.mxu0
    %v8058 = vadd.f32 %v4460, %v8057
    %v8059 = vpop.f32.mrf.mxu0
    %v8060 = vpop.f32.mrf.mxu0
    %8061 = vdwg.mxu0
    %8062 = vmatprep.subr.bf16.mxu0 %v6694
    %8063 = vmatpush1.bf16.msra.mxu0 %v6693
    %8064 = vmatprep.subr.bf16.mxu0 %v6688
    %8065 = vmatpush1.bf16.msra.mxu0 %v6687
    %8066 = vmatprep.subr.bf16.mxu0 %v6682
    %8067 = vmatpush1.bf16.msra.mxu0 %v6681
    %8068 = vmatprep.subr.bf16.mxu0 %v6676
    %8069 = vmatpush1.bf16.msra.mxu0 %v6675
    %8070 = vmatprep.subr.bf16.mxu0 %v6670
    %8071 = vmatpush1.bf16.msra.mxu0 %v6669
    %8072 = vmatprep.subr.bf16.mxu0 %v6664
    %8073 = vmatpush1.bf16.msra.mxu0 %v6663
    %8074 = vmatprep.subr.bf16.mxu0 %v6658
    %8075 = vmatpush1.bf16.msra.mxu0 %v6657
    %8076 = vmatprep.subr.bf16.mxu0 %v6652
    %8077 = vmatpush1.bf16.msra.mxu0 %v6651
    %8078 = vmatprep.subr.bf16.mxu0 %v6742
    %8079 = vmatpush2.bf16.msra.mxu0 %v6741
    %8080 = vmatprep.subr.bf16.mxu0 %v6736
    %8081 = vmatpush2.bf16.msra.mxu0 %v6735
    %8082 = vmatprep.subr.bf16.mxu0 %v6730
    %8083 = vmatpush2.bf16.msra.mxu0 %v6729
    %8084 = vmatprep.subr.bf16.mxu0 %v6724
    %8085 = vmatpush2.bf16.msra.mxu0 %v6723
    %8086 = vmatprep.subr.bf16.mxu0 %v6718
    %8087 = vmatpush2.bf16.msra.mxu0 %v6717
    %8088 = vmatprep.subr.bf16.mxu0 %v6712
    %8089 = vmatpush2.bf16.msra.mxu0 %v6711
    %8090 = vmatprep.subr.bf16.mxu0 %v6706
    %8091 = vmatpush2.bf16.msra.mxu0 %v6705
    %8092 = vmatprep.subr.bf16.mxu0 %v6700
    %8093 = vmatpush2.bf16.msra.mxu0 %v6699
    %8094 = vmatprep.mubr.bf16.mxu0 %v4630
    %8095 = vmatmul.mubr.bf16.gmra.mxu0 %v4626
    %v8096 = vpop.f32.mrf.mxu0
    %v8097 = vadd.f32 %v8046, %v8096
    %v8098 = vpop.f32.mrf.mxu0
    %v8099 = vadd.f32 %v8048, %v8098
    %v8100 = vpop.f32.mrf.mxu0
    %v8101 = vadd.f32 %v8050, %v8100
    %v8102 = vpop.f32.mrf.mxu0
    %v8103 = vadd.f32 %v8052, %v8102
    %8104 = vmatprep.mubr.bf16.mxu0 %v4766
    %8105 = vmatmul.mubr.bf16.gmra.mxu0 %v4764
    %v8106 = vpop.f32.mrf.mxu0
    %v8107 = vadd.f32 %v8056, %v8106
    %v8108 = vpop.f32.mrf.mxu0
    %v8109 = vadd.f32 %v8058, %v8108
    %v8110 = vpop.f32.mrf.mxu0
    %v8111 = vpop.f32.mrf.mxu0
    %8112 = vdwg.mxu0
    %8113 = vmatprep.subr.bf16.mxu0 %v6790
    %8114 = vmatpush1.bf16.msra.mxu0 %v6789
    %8115 = vmatprep.subr.bf16.mxu0 %v6784
    %8116 = vmatpush1.bf16.msra.mxu0 %v6783
    %8117 = vmatprep.subr.bf16.mxu0 %v6778
    %8118 = vmatpush1.bf16.msra.mxu0 %v6777
    %8119 = vmatprep.subr.bf16.mxu0 %v6772
    %8120 = vmatpush1.bf16.msra.mxu0 %v6771
    %8121 = vmatprep.subr.bf16.mxu0 %v6766
    %8122 = vmatpush1.bf16.msra.mxu0 %v6765
    %8123 = vmatprep.subr.bf16.mxu0 %v6760
    %8124 = vmatpush1.bf16.msra.mxu0 %v6759
    %8125 = vmatprep.subr.bf16.mxu0 %v6754
    %8126 = vmatpush1.bf16.msra.mxu0 %v6753
    %8127 = vmatprep.subr.bf16.mxu0 %v6748
    %8128 = vmatpush1.bf16.msra.mxu0 %v6747
    %8129 = vmatprep.subr.bf16.mxu0 %v6838
    %8130 = vmatpush2.bf16.msra.mxu0 %v6837
    %8131 = vmatprep.subr.bf16.mxu0 %v6832
    %8132 = vmatpush2.bf16.msra.mxu0 %v6831
    %8133 = vmatprep.subr.bf16.mxu0 %v6826
    %8134 = vmatpush2.bf16.msra.mxu0 %v6825
    %8135 = vmatprep.subr.bf16.mxu0 %v6820
    %8136 = vmatpush2.bf16.msra.mxu0 %v6819
    %8137 = vmatprep.subr.bf16.mxu0 %v6814
    %8138 = vmatpush2.bf16.msra.mxu0 %v6813
    %8139 = vmatprep.subr.bf16.mxu0 %v6808
    %8140 = vmatpush2.bf16.msra.mxu0 %v6807
    %8141 = vmatprep.subr.bf16.mxu0 %v6802
    %8142 = vmatpush2.bf16.msra.mxu0 %v6801
    %8143 = vmatprep.subr.bf16.mxu0 %v6796
    %8144 = vmatpush2.bf16.msra.mxu0 %v6795
    %8145 = vmatprep.mubr.bf16.mxu0 %v4631
    %8146 = vmatmul.mubr.bf16.gmra.mxu0 %v4627
    %v8147 = vpop.f32.mrf.mxu0
    %v8148 = vadd.f32 %v8097, %v8147
    %v8149 = vpop.f32.mrf.mxu0
    %v8150 = vadd.f32 %v8099, %v8149
    %v8151 = vpop.f32.mrf.mxu0
    %v8152 = vadd.f32 %v8101, %v8151
    %v8153 = vpop.f32.mrf.mxu0
    %v8154 = vadd.f32 %v8103, %v8153
    %8155 = vmatprep.mubr.bf16.mxu0 %v4763
    %8156 = vmatmul.mubr.bf16.gmra.mxu0 %v4749
    %v8157 = vpop.f32.mrf.mxu0
    %v8158 = vadd.f32 %v8107, %v8157
    %v8159 = vpop.f32.mrf.mxu0
    %v8160 = vadd.f32 %v8109, %v8159
    %v8161 = vpop.f32.mrf.mxu0
    %v8162 = vpop.f32.mrf.mxu0
    %8163 = vdwg.mxu0
    %8164 = vmatprep.subr.bf16.mxu0 %v6886
    %8165 = vmatpush1.bf16.msra.mxu0 %v6885
    %8166 = vmatprep.subr.bf16.mxu0 %v6880
    %8167 = vmatpush1.bf16.msra.mxu0 %v6879
    %8168 = vmatprep.subr.bf16.mxu0 %v6874
    %8169 = vmatpush1.bf16.msra.mxu0 %v6873
    %8170 = vmatprep.subr.bf16.mxu0 %v6868
    %8171 = vmatpush1.bf16.msra.mxu0 %v6867
    %8172 = vmatprep.subr.bf16.mxu0 %v6862
    %8173 = vmatpush1.bf16.msra.mxu0 %v6861
    %8174 = vmatprep.subr.bf16.mxu0 %v6856
    %8175 = vmatpush1.bf16.msra.mxu0 %v6855
    %8176 = vmatprep.subr.bf16.mxu0 %v6850
    %8177 = vmatpush1.bf16.msra.mxu0 %v6849
    %8178 = vmatprep.subr.bf16.mxu0 %v6844
    %8179 = vmatpush1.bf16.msra.mxu0 %v6843
    %8180 = vmatprep.subr.bf16.mxu0 %v6934
    %8181 = vmatpush2.bf16.msra.mxu0 %v6933
    %8182 = vmatprep.subr.bf16.mxu0 %v6928
    %8183 = vmatpush2.bf16.msra.mxu0 %v6927
    %8184 = vmatprep.subr.bf16.mxu0 %v6922
    %8185 = vmatpush2.bf16.msra.mxu0 %v6921
    %8186 = vmatprep.subr.bf16.mxu0 %v6916
    %8187 = vmatpush2.bf16.msra.mxu0 %v6915
    %8188 = vmatprep.subr.bf16.mxu0 %v6910
    %8189 = vmatpush2.bf16.msra.mxu0 %v6909
    %8190 = vmatprep.subr.bf16.mxu0 %v6904
    %8191 = vmatpush2.bf16.msra.mxu0 %v6903
    %8192 = vmatprep.subr.bf16.mxu0 %v6898
    %8193 = vmatpush2.bf16.msra.mxu0 %v6897
    %8194 = vmatprep.subr.bf16.mxu0 %v6892
    %8195 = vmatpush2.bf16.msra.mxu0 %v6891
    %8196 = vmatprep.mubr.bf16.mxu0 %v4632
    %8197 = vmatmul.mubr.bf16.gmra.mxu0 %v4628
    %v8198 = vpop.f32.mrf.mxu0
    %v8199 = vadd.f32 %v8148, %v8198
    %v8200 = vpop.f32.mrf.mxu0
    %v8201 = vadd.f32 %v8150, %v8200
    %v8202 = vpop.f32.mrf.mxu0
    %v8203 = vadd.f32 %v8152, %v8202
    %v8204 = vpop.f32.mrf.mxu0
    %v8205 = vadd.f32 %v8154, %v8204
    %8206 = vmatprep.mubr.bf16.mxu0 %v4767
    %8207 = vmatmul.mubr.bf16.gmra.mxu0 %v4765
    %v8208 = vpop.f32.mrf.mxu0
    %v8209 = vadd.f32 %v8158, %v8208
    %v8210 = vpop.f32.mrf.mxu0
    %v8211 = vadd.f32 %v8160, %v8210
    %v8212 = vpop.f32.mrf.mxu0
    %v8213 = vpop.f32.mrf.mxu0
    %8214 = vdwg.mxu0
    %8215 = vmatprep.subr.bf16.mxu0 %v6982
    %8216 = vmatpush1.bf16.msra.mxu0 %v6981
    %8217 = vmatprep.subr.bf16.mxu0 %v6976
    %8218 = vmatpush1.bf16.msra.mxu0 %v6975
    %8219 = vmatprep.subr.bf16.mxu0 %v6970
    %8220 = vmatpush1.bf16.msra.mxu0 %v6969
    %8221 = vmatprep.subr.bf16.mxu0 %v6964
    %8222 = vmatpush1.bf16.msra.mxu0 %v6963
    %8223 = vmatprep.subr.bf16.mxu0 %v6958
    %8224 = vmatpush1.bf16.msra.mxu0 %v6957
    %8225 = vmatprep.subr.bf16.mxu0 %v6952
    %8226 = vmatpush1.bf16.msra.mxu0 %v6951
    %8227 = vmatprep.subr.bf16.mxu0 %v6946
    %8228 = vmatpush1.bf16.msra.mxu0 %v6945
    %8229 = vmatprep.subr.bf16.mxu0 %v6940
    %8230 = vmatpush1.bf16.msra.mxu0 %v6939
    %8231 = vmatprep.subr.bf16.mxu0 %v7030
    %8232 = vmatpush2.bf16.msra.mxu0 %v7029
    %8233 = vmatprep.subr.bf16.mxu0 %v7024
    %8234 = vmatpush2.bf16.msra.mxu0 %v7023
    %8235 = vmatprep.subr.bf16.mxu0 %v7018
    %8236 = vmatpush2.bf16.msra.mxu0 %v7017
    %8237 = vmatprep.subr.bf16.mxu0 %v7012
    %8238 = vmatpush2.bf16.msra.mxu0 %v7011
    %8239 = vmatprep.subr.bf16.mxu0 %v7006
    %8240 = vmatpush2.bf16.msra.mxu0 %v7005
    %8241 = vmatprep.subr.bf16.mxu0 %v7000
    %8242 = vmatpush2.bf16.msra.mxu0 %v6999
    %8243 = vmatprep.subr.bf16.mxu0 %v6994
    %8244 = vmatpush2.bf16.msra.mxu0 %v6993
    %8245 = vmatprep.subr.bf16.mxu0 %v6988
    %8246 = vmatpush2.bf16.msra.mxu0 %v6987
    %8247 = vmatprep.mubr.bf16.mxu0 %v4699
    %8248 = vmatmul.mubr.bf16.gmra.mxu0 %v4697
    %v8249 = vpop.f32.mrf.mxu0
    %v8250 = vadd.f32 %v8199, %v8249
    %v8251 = vpop.f32.mrf.mxu0
    %v8252 = vadd.f32 %v8201, %v8251
    %v8253 = vpop.f32.mrf.mxu0
    %v8254 = vadd.f32 %v8203, %v8253
    %v8255 = vpop.f32.mrf.mxu0
    %v8256 = vadd.f32 %v8205, %v8255
    %8257 = vmatprep.mubr.bf16.mxu0 %v4798
    %8258 = vmatmul.mubr.bf16.gmra.mxu0 %v4791
    %v8259 = vpop.f32.mrf.mxu0
    %v8260 = vadd.f32 %v8209, %v8259
    %v8261 = vpop.f32.mrf.mxu0
    %v8262 = vadd.f32 %v8211, %v8261
    %v8263 = vpop.f32.mrf.mxu0
    %v8264 = vpop.f32.mrf.mxu0
    %8265 = vdwg.mxu0
    %8266 = vmatprep.subr.bf16.mxu0 %v7078
    %8267 = vmatpush1.bf16.msra.mxu0 %v7077
    %8268 = vmatprep.subr.bf16.mxu0 %v7072
    %8269 = vmatpush1.bf16.msra.mxu0 %v7071
    %8270 = vmatprep.subr.bf16.mxu0 %v7066
    %8271 = vmatpush1.bf16.msra.mxu0 %v7065
    %8272 = vmatprep.subr.bf16.mxu0 %v7060
    %8273 = vmatpush1.bf16.msra.mxu0 %v7059
    %8274 = vmatprep.subr.bf16.mxu0 %v7054
    %8275 = vmatpush1.bf16.msra.mxu0 %v7053
    %8276 = vmatprep.subr.bf16.mxu0 %v7048
    %8277 = vmatpush1.bf16.msra.mxu0 %v7047
    %8278 = vmatprep.subr.bf16.mxu0 %v7042
    %8279 = vmatpush1.bf16.msra.mxu0 %v7041
    %8280 = vmatprep.subr.bf16.mxu0 %v7036
    %8281 = vmatpush1.bf16.msra.mxu0 %v7035
    %8282 = vmatprep.subr.bf16.mxu0 %v7126
    %8283 = vmatpush2.bf16.msra.mxu0 %v7125
    %8284 = vmatprep.subr.bf16.mxu0 %v7120
    %8285 = vmatpush2.bf16.msra.mxu0 %v7119
    %8286 = vmatprep.subr.bf16.mxu0 %v7114
    %8287 = vmatpush2.bf16.msra.mxu0 %v7113
    %8288 = vmatprep.subr.bf16.mxu0 %v7108
    %8289 = vmatpush2.bf16.msra.mxu0 %v7107
    %8290 = vmatprep.subr.bf16.mxu0 %v7102
    %8291 = vmatpush2.bf16.msra.mxu0 %v7101
    %8292 = vmatprep.subr.bf16.mxu0 %v7096
    %8293 = vmatpush2.bf16.msra.mxu0 %v7095
    %8294 = vmatprep.subr.bf16.mxu0 %v7090
    %8295 = vmatpush2.bf16.msra.mxu0 %v7089
    %8296 = vmatprep.subr.bf16.mxu0 %v7084
    %8297 = vmatpush2.bf16.msra.mxu0 %v7083
    %8298 = vmatprep.mubr.bf16.mxu0 %v4700
    %8299 = vmatmul.mubr.bf16.gmra.mxu0 %v4698
    %v8300 = vpop.f32.mrf.mxu0
    %v8301 = vadd.f32 %v8250, %v8300
    %v8302 = vpop.f32.mrf.mxu0
    %v8303 = vadd.f32 %v8252, %v8302
    %v8304 = vpop.f32.mrf.mxu0
    %v8305 = vadd.f32 %v8254, %v8304
    %v8306 = vpop.f32.mrf.mxu0
    %v8307 = vadd.f32 %v8256, %v8306
    %8308 = vmatprep.mubr.bf16.mxu0 %v4800
    %8309 = vmatmul.mubr.bf16.gmra.mxu0 %v4799
    %v8310 = vpop.f32.mrf.mxu0
    %v8311 = vadd.f32 %v8260, %v8310
    %v8312 = vpop.f32.mrf.mxu0
    %v8313 = vadd.f32 %v8262, %v8312
    %v8314 = vpop.f32.mrf.mxu0
    %v8315 = vpop.f32.mrf.mxu0
    %8316 = vdwg.mxu0
    %8317 = vmatprep.subr.bf16.mxu0 %v6600
    %8318 = vmatpush1.bf16.msra.mxu0 %v6599
    %8319 = vmatprep.subr.bf16.mxu0 %v6594
    %8320 = vmatpush1.bf16.msra.mxu0 %v6593
    %8321 = vmatprep.subr.bf16.mxu0 %v6588
    %8322 = vmatpush1.bf16.msra.mxu0 %v6587
    %8323 = vmatprep.subr.bf16.mxu0 %v6582
    %8324 = vmatpush1.bf16.msra.mxu0 %v6581
    %8325 = vmatprep.subr.bf16.mxu0 %v6576
    %8326 = vmatpush1.bf16.msra.mxu0 %v6575
    %8327 = vmatprep.subr.bf16.mxu0 %v6570
    %8328 = vmatpush1.bf16.msra.mxu0 %v6569
    %8329 = vmatprep.subr.bf16.mxu0 %v6564
    %8330 = vmatpush1.bf16.msra.mxu0 %v6563
    %8331 = vmatprep.subr.bf16.mxu0 %v6558
    %8332 = vmatpush1.bf16.msra.mxu0 %v6557
    %8333 = vmatprep.subr.bf16.mxu0 %v6648
    %8334 = vmatpush2.bf16.msra.mxu0 %v6647
    %8335 = vmatprep.subr.bf16.mxu0 %v6642
    %8336 = vmatpush2.bf16.msra.mxu0 %v6641
    %8337 = vmatprep.subr.bf16.mxu0 %v6636
    %8338 = vmatpush2.bf16.msra.mxu0 %v6635
    %8339 = vmatprep.subr.bf16.mxu0 %v6630
    %8340 = vmatpush2.bf16.msra.mxu0 %v6629
    %8341 = vmatprep.subr.bf16.mxu0 %v6624
    %8342 = vmatpush2.bf16.msra.mxu0 %v6623
    %8343 = vmatprep.subr.bf16.mxu0 %v6618
    %8344 = vmatpush2.bf16.msra.mxu0 %v6617
    %8345 = vmatprep.subr.bf16.mxu0 %v6612
    %8346 = vmatpush2.bf16.msra.mxu0 %v6611
    %8347 = vmatprep.subr.bf16.mxu0 %v6606
    %8348 = vmatpush2.bf16.msra.mxu0 %v6605
    %8349 = vmatprep.mubr.bf16.mxu0 %v4629
    %8350 = vmatmul.mubr.bf16.gmra.mxu0 %v4625
    %v8351 = vpop.f32.mrf.mxu0
    %v8352 = vadd.f32 %v4464, %v8351
    %v8353 = vpop.f32.mrf.mxu0
    %v8354 = vadd.f32 %v4468, %v8353
    %v8355 = vpop.f32.mrf.mxu0
    %v8356 = vadd.f32 %v4464, %v8355
    %v8357 = vpop.f32.mrf.mxu0
    %v8358 = vadd.f32 %v4468, %v8357
    %8359 = vmatprep.mubr.bf16.mxu0 %v4756
    %8360 = vmatmul.mubr.bf16.gmra.mxu0 %v4742
    %v8361 = vpop.f32.mrf.mxu0
    %v8362 = vadd.f32 %v4464, %v8361
    %v8363 = vpop.f32.mrf.mxu0
    %v8364 = vadd.f32 %v4468, %v8363
    %v8365 = vpop.f32.mrf.mxu0
    %v8366 = vpop.f32.mrf.mxu0
    %8367 = vdwg.mxu0
    %8368 = vmatprep.subr.bf16.mxu0 %v6696
    %8369 = vmatpush1.bf16.msra.mxu0 %v6695
    %8370 = vmatprep.subr.bf16.mxu0 %v6690
    %8371 = vmatpush1.bf16.msra.mxu0 %v6689
    %8372 = vmatprep.subr.bf16.mxu0 %v6684
    %8373 = vmatpush1.bf16.msra.mxu0 %v6683
    %8374 = vmatprep.subr.bf16.mxu0 %v6678
    %8375 = vmatpush1.bf16.msra.mxu0 %v6677
    %8376 = vmatprep.subr.bf16.mxu0 %v6672
    %8377 = vmatpush1.bf16.msra.mxu0 %v6671
    %8378 = vmatprep.subr.bf16.mxu0 %v6666
    %8379 = vmatpush1.bf16.msra.mxu0 %v6665
    %8380 = vmatprep.subr.bf16.mxu0 %v6660
    %8381 = vmatpush1.bf16.msra.mxu0 %v6659
    %8382 = vmatprep.subr.bf16.mxu0 %v6654
    %8383 = vmatpush1.bf16.msra.mxu0 %v6653
    %8384 = vmatprep.subr.bf16.mxu0 %v6744
    %8385 = vmatpush2.bf16.msra.mxu0 %v6743
    %8386 = vmatprep.subr.bf16.mxu0 %v6738
    %8387 = vmatpush2.bf16.msra.mxu0 %v6737
    %8388 = vmatprep.subr.bf16.mxu0 %v6732
    %8389 = vmatpush2.bf16.msra.mxu0 %v6731
    %8390 = vmatprep.subr.bf16.mxu0 %v6726
    %8391 = vmatpush2.bf16.msra.mxu0 %v6725
    %8392 = vmatprep.subr.bf16.mxu0 %v6720
    %8393 = vmatpush2.bf16.msra.mxu0 %v6719
    %8394 = vmatprep.subr.bf16.mxu0 %v6714
    %8395 = vmatpush2.bf16.msra.mxu0 %v6713
    %8396 = vmatprep.subr.bf16.mxu0 %v6708
    %8397 = vmatpush2.bf16.msra.mxu0 %v6707
    %8398 = vmatprep.subr.bf16.mxu0 %v6702
    %8399 = vmatpush2.bf16.msra.mxu0 %v6701
    %8400 = vmatprep.mubr.bf16.mxu0 %v4630
    %8401 = vmatmul.mubr.bf16.gmra.mxu0 %v4626
    %v8402 = vpop.f32.mrf.mxu0
    %v8403 = vadd.f32 %v8352, %v8402
    %v8404 = vpop.f32.mrf.mxu0
    %v8405 = vadd.f32 %v8354, %v8404
    %v8406 = vpop.f32.mrf.mxu0
    %v8407 = vadd.f32 %v8356, %v8406
    %v8408 = vpop.f32.mrf.mxu0
    %v8409 = vadd.f32 %v8358, %v8408
    %8410 = vmatprep.mubr.bf16.mxu0 %v4766
    %8411 = vmatmul.mubr.bf16.gmra.mxu0 %v4764
    %v8412 = vpop.f32.mrf.mxu0
    %v8413 = vadd.f32 %v8362, %v8412
    %v8414 = vpop.f32.mrf.mxu0
    %v8415 = vadd.f32 %v8364, %v8414
    %v8416 = vpop.f32.mrf.mxu0
    %v8417 = vpop.f32.mrf.mxu0
    %8418 = vdwg.mxu0
    %8419 = vmatprep.subr.bf16.mxu0 %v6792
    %8420 = vmatpush1.bf16.msra.mxu0 %v6791
    %8421 = vmatprep.subr.bf16.mxu0 %v6786
    %8422 = vmatpush1.bf16.msra.mxu0 %v6785
    %8423 = vmatprep.subr.bf16.mxu0 %v6780
    %8424 = vmatpush1.bf16.msra.mxu0 %v6779
    %8425 = vmatprep.subr.bf16.mxu0 %v6774
    %8426 = vmatpush1.bf16.msra.mxu0 %v6773
    %8427 = vmatprep.subr.bf16.mxu0 %v6768
    %8428 = vmatpush1.bf16.msra.mxu0 %v6767
    %8429 = vmatprep.subr.bf16.mxu0 %v6762
    %8430 = vmatpush1.bf16.msra.mxu0 %v6761
    %8431 = vmatprep.subr.bf16.mxu0 %v6756
    %8432 = vmatpush1.bf16.msra.mxu0 %v6755
    %8433 = vmatprep.subr.bf16.mxu0 %v6750
    %8434 = vmatpush1.bf16.msra.mxu0 %v6749
    %8435 = vmatprep.subr.bf16.mxu0 %v6840
    %8436 = vmatpush2.bf16.msra.mxu0 %v6839
    %8437 = vmatprep.subr.bf16.mxu0 %v6834
    %8438 = vmatpush2.bf16.msra.mxu0 %v6833
    %8439 = vmatprep.subr.bf16.mxu0 %v6828
    %8440 = vmatpush2.bf16.msra.mxu0 %v6827
    %8441 = vmatprep.subr.bf16.mxu0 %v6822
    %8442 = vmatpush2.bf16.msra.mxu0 %v6821
    %8443 = vmatprep.subr.bf16.mxu0 %v6816
    %8444 = vmatpush2.bf16.msra.mxu0 %v6815
    %8445 = vmatprep.subr.bf16.mxu0 %v6810
    %8446 = vmatpush2.bf16.msra.mxu0 %v6809
    %8447 = vmatprep.subr.bf16.mxu0 %v6804
    %8448 = vmatpush2.bf16.msra.mxu0 %v6803
    %8449 = vmatprep.subr.bf16.mxu0 %v6798
    %8450 = vmatpush2.bf16.msra.mxu0 %v6797
    %8451 = vmatprep.mubr.bf16.mxu0 %v4631
    %8452 = vmatmul.mubr.bf16.gmra.mxu0 %v4627
    %v8453 = vpop.f32.mrf.mxu0
    %v8454 = vadd.f32 %v8403, %v8453
    %v8455 = vpop.f32.mrf.mxu0
    %v8456 = vadd.f32 %v8405, %v8455
    %v8457 = vpop.f32.mrf.mxu0
    %v8458 = vadd.f32 %v8407, %v8457
    %v8459 = vpop.f32.mrf.mxu0
    %v8460 = vadd.f32 %v8409, %v8459
    %8461 = vmatprep.mubr.bf16.mxu0 %v4763
    %8462 = vmatmul.mubr.bf16.gmra.mxu0 %v4749
    %v8463 = vpop.f32.mrf.mxu0
    %v8464 = vadd.f32 %v8413, %v8463
    %v8465 = vpop.f32.mrf.mxu0
    %v8466 = vadd.f32 %v8415, %v8465
    %v8467 = vpop.f32.mrf.mxu0
    %v8468 = vpop.f32.mrf.mxu0
    %8469 = vdwg.mxu0
    %8470 = vmatprep.subr.bf16.mxu0 %v6888
    %8471 = vmatpush1.bf16.msra.mxu0 %v6887
    %8472 = vmatprep.subr.bf16.mxu0 %v6882
    %8473 = vmatpush1.bf16.msra.mxu0 %v6881
    %8474 = vmatprep.subr.bf16.mxu0 %v6876
    %8475 = vmatpush1.bf16.msra.mxu0 %v6875
    %8476 = vmatprep.subr.bf16.mxu0 %v6870
    %8477 = vmatpush1.bf16.msra.mxu0 %v6869
    %8478 = vmatprep.subr.bf16.mxu0 %v6864
    %8479 = vmatpush1.bf16.msra.mxu0 %v6863
    %8480 = vmatprep.subr.bf16.mxu0 %v6858
    %8481 = vmatpush1.bf16.msra.mxu0 %v6857
    %8482 = vmatprep.subr.bf16.mxu0 %v6852
    %8483 = vmatpush1.bf16.msra.mxu0 %v6851
    %8484 = vmatprep.subr.bf16.mxu0 %v6846
    %8485 = vmatpush1.bf16.msra.mxu0 %v6845
    %8486 = vmatprep.subr.bf16.mxu0 %v6936
    %8487 = vmatpush2.bf16.msra.mxu0 %v6935
    %8488 = vmatprep.subr.bf16.mxu0 %v6930
    %8489 = vmatpush2.bf16.msra.mxu0 %v6929
    %8490 = vmatprep.subr.bf16.mxu0 %v6924
    %8491 = vmatpush2.bf16.msra.mxu0 %v6923
    %8492 = vmatprep.subr.bf16.mxu0 %v6918
    %8493 = vmatpush2.bf16.msra.mxu0 %v6917
    %8494 = vmatprep.subr.bf16.mxu0 %v6912
    %8495 = vmatpush2.bf16.msra.mxu0 %v6911
    %8496 = vmatprep.subr.bf16.mxu0 %v6906
    %8497 = vmatpush2.bf16.msra.mxu0 %v6905
    %8498 = vmatprep.subr.bf16.mxu0 %v6900
    %8499 = vmatpush2.bf16.msra.mxu0 %v6899
    %8500 = vmatprep.subr.bf16.mxu0 %v6894
    %8501 = vmatpush2.bf16.msra.mxu0 %v6893
    %8502 = vmatprep.mubr.bf16.mxu0 %v4632
    %8503 = vmatmul.mubr.bf16.gmra.mxu0 %v4628
    %v8504 = vpop.f32.mrf.mxu0
    %v8505 = vadd.f32 %v8454, %v8504
    %v8506 = vpop.f32.mrf.mxu0
    %v8507 = vadd.f32 %v8456, %v8506
    %v8508 = vpop.f32.mrf.mxu0
    %v8509 = vadd.f32 %v8458, %v8508
    %v8510 = vpop.f32.mrf.mxu0
    %v8511 = vadd.f32 %v8460, %v8510
    %8512 = vmatprep.mubr.bf16.mxu0 %v4767
    %8513 = vmatmul.mubr.bf16.gmra.mxu0 %v4765
    %v8514 = vpop.f32.mrf.mxu0
    %v8515 = vadd.f32 %v8464, %v8514
    %v8516 = vpop.f32.mrf.mxu0
    %v8517 = vadd.f32 %v8466, %v8516
    %v8518 = vpop.f32.mrf.mxu0
    %v8519 = vpop.f32.mrf.mxu0
    %8520 = vdwg.mxu0
    %8521 = vmatprep.subr.bf16.mxu0 %v6984
    %8522 = vmatpush1.bf16.msra.mxu0 %v6983
    %8523 = vmatprep.subr.bf16.mxu0 %v6978
    %8524 = vmatpush1.bf16.msra.mxu0 %v6977
    %8525 = vmatprep.subr.bf16.mxu0 %v6972
    %8526 = vmatpush1.bf16.msra.mxu0 %v6971
    %8527 = vmatprep.subr.bf16.mxu0 %v6966
    %8528 = vmatpush1.bf16.msra.mxu0 %v6965
    %8529 = vmatprep.subr.bf16.mxu0 %v6960
    %8530 = vmatpush1.bf16.msra.mxu0 %v6959
    %8531 = vmatprep.subr.bf16.mxu0 %v6954
    %8532 = vmatpush1.bf16.msra.mxu0 %v6953
    %8533 = vmatprep.subr.bf16.mxu0 %v6948
    %8534 = vmatpush1.bf16.msra.mxu0 %v6947
    %8535 = vmatprep.subr.bf16.mxu0 %v6942
    %8536 = vmatpush1.bf16.msra.mxu0 %v6941
    %8537 = vmatprep.subr.bf16.mxu0 %v7032
    %8538 = vmatpush2.bf16.msra.mxu0 %v7031
    %8539 = vmatprep.subr.bf16.mxu0 %v7026
    %8540 = vmatpush2.bf16.msra.mxu0 %v7025
    %8541 = vmatprep.subr.bf16.mxu0 %v7020
    %8542 = vmatpush2.bf16.msra.mxu0 %v7019
    %8543 = vmatprep.subr.bf16.mxu0 %v7014
    %8544 = vmatpush2.bf16.msra.mxu0 %v7013
    %8545 = vmatprep.subr.bf16.mxu0 %v7008
    %8546 = vmatpush2.bf16.msra.mxu0 %v7007
    %8547 = vmatprep.subr.bf16.mxu0 %v7002
    %8548 = vmatpush2.bf16.msra.mxu0 %v7001
    %8549 = vmatprep.subr.bf16.mxu0 %v6996
    %8550 = vmatpush2.bf16.msra.mxu0 %v6995
    %8551 = vmatprep.subr.bf16.mxu0 %v6990
    %8552 = vmatpush2.bf16.msra.mxu0 %v6989
    %8553 = vmatprep.mubr.bf16.mxu0 %v4699
    %8554 = vmatmul.mubr.bf16.gmra.mxu0 %v4697
    %v8555 = vpop.f32.mrf.mxu0
    %v8556 = vadd.f32 %v8505, %v8555
    %v8557 = vpop.f32.mrf.mxu0
    %v8558 = vadd.f32 %v8507, %v8557
    %v8559 = vpop.f32.mrf.mxu0
    %v8560 = vadd.f32 %v8509, %v8559
    %v8561 = vpop.f32.mrf.mxu0
    %v8562 = vadd.f32 %v8511, %v8561
    %8563 = vmatprep.mubr.bf16.mxu0 %v4798
    %8564 = vmatmul.mubr.bf16.gmra.mxu0 %v4791
    %v8565 = vpop.f32.mrf.mxu0
    %v8566 = vadd.f32 %v8515, %v8565
    %v8567 = vpop.f32.mrf.mxu0
    %v8568 = vadd.f32 %v8517, %v8567
    %v8569 = vpop.f32.mrf.mxu0
    %v8570 = vpop.f32.mrf.mxu0
    %8571 = vdwg.mxu0
    %8572 = vmatprep.subr.bf16.mxu0 %v7080
    %8573 = vmatpush1.bf16.msra.mxu0 %v7079
    %8574 = vmatprep.subr.bf16.mxu0 %v7074
    %8575 = vmatpush1.bf16.msra.mxu0 %v7073
    %8576 = vmatprep.subr.bf16.mxu0 %v7068
    %8577 = vmatpush1.bf16.msra.mxu0 %v7067
    %8578 = vmatprep.subr.bf16.mxu0 %v7062
    %8579 = vmatpush1.bf16.msra.mxu0 %v7061
    %8580 = vmatprep.subr.bf16.mxu0 %v7056
    %8581 = vmatpush1.bf16.msra.mxu0 %v7055
    %8582 = vmatprep.subr.bf16.mxu0 %v7050
    %8583 = vmatpush1.bf16.msra.mxu0 %v7049
    %8584 = vmatprep.subr.bf16.mxu0 %v7044
    %8585 = vmatpush1.bf16.msra.mxu0 %v7043
    %8586 = vmatprep.subr.bf16.mxu0 %v7038
    %8587 = vmatpush1.bf16.msra.mxu0 %v7037
    %8588 = vmatprep.subr.bf16.mxu0 %v7128
    %8589 = vmatpush2.bf16.msra.mxu0 %v7127
    %8590 = vmatprep.subr.bf16.mxu0 %v7122
    %8591 = vmatpush2.bf16.msra.mxu0 %v7121
    %8592 = vmatprep.subr.bf16.mxu0 %v7116
    %8593 = vmatpush2.bf16.msra.mxu0 %v7115
    %8594 = vmatprep.subr.bf16.mxu0 %v7110
    %8595 = vmatpush2.bf16.msra.mxu0 %v7109
    %8596 = vmatprep.subr.bf16.mxu0 %v7104
    %8597 = vmatpush2.bf16.msra.mxu0 %v7103
    %8598 = vmatprep.subr.bf16.mxu0 %v7098
    %8599 = vmatpush2.bf16.msra.mxu0 %v7097
    %8600 = vmatprep.subr.bf16.mxu0 %v7092
    %8601 = vmatpush2.bf16.msra.mxu0 %v7091
    %8602 = vmatprep.subr.bf16.mxu0 %v7086
    %8603 = vmatpush2.bf16.msra.mxu0 %v7085
    %8604 = vmatprep.mubr.bf16.mxu0 %v4700
    %8605 = vmatmul.mubr.bf16.gmra.mxu0 %v4698
    %v8606 = vpop.f32.mrf.mxu0
    %v8607 = vadd.f32 %v8556, %v8606
    %v8608 = vpop.f32.mrf.mxu0
    %v8609 = vadd.f32 %v8558, %v8608
    %v8610 = vpop.f32.mrf.mxu0
    %v8611 = vadd.f32 %v8560, %v8610
    %v8612 = vpop.f32.mrf.mxu0
    %v8613 = vadd.f32 %v8562, %v8612
    %8614 = vmatprep.mubr.bf16.mxu0 %v4800
    %8615 = vmatmul.mubr.bf16.gmra.mxu0 %v4799
    %v8616 = vpop.f32.mrf.mxu0
    %v8617 = vadd.f32 %v8566, %v8616
    %v8618 = vpop.f32.mrf.mxu0
    %v8619 = vadd.f32 %v8568, %v8618
    %v8620 = vpop.f32.mrf.mxu0
    %v8621 = vpop.f32.mrf.mxu0
    %8622 = vdwg.mxu0
    %v8623 = vmax.f32 %v7995, 0.0
    %v8624 = vmax.f32 %v7997, 0.0
    %v8625 = vmax.f32 %v8301, 0.0
    %v8626 = vmax.f32 %v8303, 0.0
    %v8627 = vmax.f32 %v8607, 0.0
    %v8628 = vmax.f32 %v8609, 0.0
    %v8629 = vmax.f32 %v7999, 0.0
    %v8630 = vmax.f32 %v8001, 0.0
    %v8631 = vmax.f32 %v8305, 0.0
    %v8632 = vmax.f32 %v8307, 0.0
    %v8633 = vmax.f32 %v8611, 0.0
    %v8634 = vmax.f32 %v8613, 0.0
    %v8635 = vmax.f32 %v8005, 0.0
    %v8636 = vmax.f32 %v8007, 0.0
    %v8637 = vmax.f32 %v8311, 0.0
    %v8638 = vmax.f32 %v8313, 0.0
    %v8639 = vmax.f32 %v8617, 0.0
    %v8640 = vmax.f32 %v8619, 0.0
    %v8659 = vcombine.low %v8623, %v8624
    %v8660 = vcombine.high %v8623, %v8624
    %v8661 = vcombine.low %v8625, %v8626
    %v8662 = vcombine.high %v8625, %v8626
    %v8663 = vcombine.low %v8627, %v8628
    %v8664 = vcombine.high %v8627, %v8628
    %v8666 = vunpack.c.l.s4 1966171168
    %v8667 = vunpack.c.0.s8 %v8666
    %v8668 = vlaneseq
    %v8669 = vshrl.u32 %v8668, 7
    %v8670 = vsub.s32 %v8667, %v8669
    %v8671 = vrot.slane %v8659, %v8670
    %v8673 = vunpack.c.l.s4 1966171168
    %v8674 = vunpack.c.0.s8 %v8673
    %v8675 = vlaneseq
    %v8676 = vshrl.u32 %v8675, 7
    %v8677 = vsub.s32 %v8674, %v8676
    %v8678 = vrot.slane %v8660, %v8677
    %v8680 = vunpack.c.l.s4 1966171168
    %v8681 = vunpack.c.0.s8 %v8680
    %v8682 = vlaneseq
    %v8683 = vshrl.u32 %v8682, 7
    %v8684 = vsub.s32 %v8681, %v8683
    %v8685 = vrot.slane %v8661, %v8684
    %v8687 = vunpack.c.l.s4 1966171168
    %v8688 = vunpack.c.0.s8 %v8687
    %v8689 = vlaneseq
    %v8690 = vshrl.u32 %v8689, 7
    %v8691 = vsub.s32 %v8688, %v8690
    %v8692 = vrot.slane %v8662, %v8691
    %v8694 = vunpack.c.l.s4 1966171168
    %v8695 = vunpack.c.0.s8 %v8694
    %v8696 = vlaneseq
    %v8697 = vshrl.u32 %v8696, 7
    %v8698 = vsub.s32 %v8695, %v8697
    %v8699 = vrot.slane %v8663, %v8698
    %v8701 = vunpack.c.l.s4 1966171168
    %v8702 = vunpack.c.0.s8 %v8701
    %v8703 = vlaneseq
    %v8704 = vshrl.u32 %v8703, 7
    %v8705 = vsub.s32 %v8702, %v8704
    %v8706 = vrot.slane %v8664, %v8705
    %v8707 = vcombine.low %v8671, %v8685
    %v8708 = vcombine.high %v8671, %v8685
    %v8709 = vcombine.low %v8678, %v8692
    %v8710 = vcombine.high %v8678, %v8692
    %v8711 = vcombine.high %v8699, %v8699
    %v8712 = vcombine.high %v8706, %v8706
    %v8714 = vunpack.c.l.s4 1966171168
    %v8715 = vunpack.c.0.s8 %v8714
    %v8716 = vlaneseq
    %v8717 = vshrl.u32 %v8716, 7
    %v8718 = vsub.s32 %v8715, %v8717
    %v8719 = vrot.slane %v8707, %v8718
    %v8721 = vunpack.c.l.s4 1966171168
    %v8722 = vunpack.c.0.s8 %v8721
    %v8723 = vlaneseq
    %v8724 = vshrl.u32 %v8723, 7
    %v8725 = vsub.s32 %v8722, %v8724
    %v8726 = vrot.slane %v8709, %v8725
    %v8728 = vunpack.c.l.s4 1966171168
    %v8729 = vunpack.c.0.s8 %v8728
    %v8730 = vlaneseq
    %v8731 = vshrl.u32 %v8730, 7
    %v8732 = vsub.s32 %v8729, %v8731
    %v8733 = vrot.slane %v8708, %v8732
    %v8735 = vunpack.c.l.s4 1966171168
    %v8736 = vunpack.c.0.s8 %v8735
    %v8737 = vlaneseq
    %v8738 = vshrl.u32 %v8737, 7
    %v8739 = vsub.s32 %v8736, %v8738
    %v8740 = vrot.slane %v8710, %v8739
    %v8742 = vunpack.c.l.s4 1966171168
    %v8743 = vunpack.c.0.s8 %v8742
    %v8744 = vlaneseq
    %v8745 = vshrl.u32 %v8744, 7
    %v8746 = vsub.s32 %v8743, %v8745
    %v8747 = vrot.slane %v8699, %v8746
    %v8749 = vunpack.c.l.s4 1966171168
    %v8750 = vunpack.c.0.s8 %v8749
    %v8751 = vlaneseq
    %v8752 = vshrl.u32 %v8751, 7
    %v8753 = vsub.s32 %v8750, %v8752
    %v8754 = vrot.slane %v8706, %v8753
    %v8756 = vunpack.c.l.s4 1966171168
    %v8757 = vunpack.c.0.s8 %v8756
    %v8758 = vlaneseq
    %v8759 = vshrl.u32 %v8758, 7
    %v8760 = vsub.s32 %v8757, %v8759
    %v8761 = vrot.slane %v8711, %v8760
    %v8763 = vunpack.c.l.s4 1966171168
    %v8764 = vunpack.c.0.s8 %v8763
    %v8765 = vlaneseq
    %v8766 = vshrl.u32 %v8765, 7
    %v8767 = vsub.s32 %v8764, %v8766
    %v8768 = vrot.slane %v8712, %v8767
    %v8769 = vcombine.low %v8719, %v8747
    %v8770 = vcombine.high %v8719, %v8747
    %v8771 = vcombine.low %v8726, %v8754
    %v8772 = vcombine.high %v8726, %v8754
    %v8773 = vcombine.low %v8733, %v8761
    %v8774 = vcombine.high %v8733, %v8761
    %v8775 = vcombine.low %v8740, %v8768
    %v8776 = vcombine.high %v8740, %v8768
    %v8777 = vcombine.low %v8629, %v8630
    %v8778 = vcombine.high %v8629, %v8630
    %v8779 = vcombine.low %v8631, %v8632
    %v8780 = vcombine.high %v8631, %v8632
    %v8781 = vcombine.low %v8633, %v8634
    %v8782 = vcombine.high %v8633, %v8634
    %v8784 = vunpack.c.l.s4 1966171168
    %v8785 = vunpack.c.0.s8 %v8784
    %v8786 = vlaneseq
    %v8787 = vshrl.u32 %v8786, 7
    %v8788 = vsub.s32 %v8785, %v8787
    %v8789 = vrot.slane %v8777, %v8788
    %v8791 = vunpack.c.l.s4 1966171168
    %v8792 = vunpack.c.0.s8 %v8791
    %v8793 = vlaneseq
    %v8794 = vshrl.u32 %v8793, 7
    %v8795 = vsub.s32 %v8792, %v8794
    %v8796 = vrot.slane %v8778, %v8795
    %v8798 = vunpack.c.l.s4 1966171168
    %v8799 = vunpack.c.0.s8 %v8798
    %v8800 = vlaneseq
    %v8801 = vshrl.u32 %v8800, 7
    %v8802 = vsub.s32 %v8799, %v8801
    %v8803 = vrot.slane %v8779, %v8802
    %v8805 = vunpack.c.l.s4 1966171168
    %v8806 = vunpack.c.0.s8 %v8805
    %v8807 = vlaneseq
    %v8808 = vshrl.u32 %v8807, 7
    %v8809 = vsub.s32 %v8806, %v8808
    %v8810 = vrot.slane %v8780, %v8809
    %v8812 = vunpack.c.l.s4 1966171168
    %v8813 = vunpack.c.0.s8 %v8812
    %v8814 = vlaneseq
    %v8815 = vshrl.u32 %v8814, 7
    %v8816 = vsub.s32 %v8813, %v8815
    %v8817 = vrot.slane %v8781, %v8816
    %v8819 = vunpack.c.l.s4 1966171168
    %v8820 = vunpack.c.0.s8 %v8819
    %v8821 = vlaneseq
    %v8822 = vshrl.u32 %v8821, 7
    %v8823 = vsub.s32 %v8820, %v8822
    %v8824 = vrot.slane %v8782, %v8823
    %v8825 = vcombine.low %v8789, %v8803
    %v8826 = vcombine.high %v8789, %v8803
    %v8827 = vcombine.low %v8796, %v8810
    %v8828 = vcombine.high %v8796, %v8810
    %v8829 = vcombine.high %v8817, %v8817
    %v8830 = vcombine.high %v8824, %v8824
    %v8832 = vunpack.c.l.s4 1966171168
    %v8833 = vunpack.c.0.s8 %v8832
    %v8834 = vlaneseq
    %v8835 = vshrl.u32 %v8834, 7
    %v8836 = vsub.s32 %v8833, %v8835
    %v8837 = vrot.slane %v8825, %v8836
    %v8839 = vunpack.c.l.s4 1966171168
    %v8840 = vunpack.c.0.s8 %v8839
    %v8841 = vlaneseq
    %v8842 = vshrl.u32 %v8841, 7
    %v8843 = vsub.s32 %v8840, %v8842
    %v8844 = vrot.slane %v8827, %v8843
    %v8846 = vunpack.c.l.s4 1966171168
    %v8847 = vunpack.c.0.s8 %v8846
    %v8848 = vlaneseq
    %v8849 = vshrl.u32 %v8848, 7
    %v8850 = vsub.s32 %v8847, %v8849
    %v8851 = vrot.slane %v8826, %v8850
    %v8853 = vunpack.c.l.s4 1966171168
    %v8854 = vunpack.c.0.s8 %v8853
    %v8855 = vlaneseq
    %v8856 = vshrl.u32 %v8855, 7
    %v8857 = vsub.s32 %v8854, %v8856
    %v8858 = vrot.slane %v8828, %v8857
    %v8860 = vunpack.c.l.s4 1966171168
    %v8861 = vunpack.c.0.s8 %v8860
    %v8862 = vlaneseq
    %v8863 = vshrl.u32 %v8862, 7
    %v8864 = vsub.s32 %v8861, %v8863
    %v8865 = vrot.slane %v8817, %v8864
    %v8867 = vunpack.c.l.s4 1966171168
    %v8868 = vunpack.c.0.s8 %v8867
    %v8869 = vlaneseq
    %v8870 = vshrl.u32 %v8869, 7
    %v8871 = vsub.s32 %v8868, %v8870
    %v8872 = vrot.slane %v8824, %v8871
    %v8874 = vunpack.c.l.s4 1966171168
    %v8875 = vunpack.c.0.s8 %v8874
    %v8876 = vlaneseq
    %v8877 = vshrl.u32 %v8876, 7
    %v8878 = vsub.s32 %v8875, %v8877
    %v8879 = vrot.slane %v8829, %v8878
    %v8881 = vunpack.c.l.s4 1966171168
    %v8882 = vunpack.c.0.s8 %v8881
    %v8883 = vlaneseq
    %v8884 = vshrl.u32 %v8883, 7
    %v8885 = vsub.s32 %v8882, %v8884
    %v8886 = vrot.slane %v8830, %v8885
    %v8887 = vcombine.low %v8837, %v8865
    %v8888 = vcombine.low %v8844, %v8872
    %v8889 = vcombine.high %v8844, %v8872
    %v8890 = vcombine.low %v8851, %v8879
    %v8891 = vcombine.high %v8851, %v8879
    %v8892 = vcombine.low %v8858, %v8886
    %v8893 = vcombine.high %v8858, %v8886
    %v8894 = vcombine.low %v8635, %v8636
    %v8895 = vcombine.high %v8635, %v8636
    %v8896 = vcombine.low %v8637, %v8638
    %v8897 = vcombine.high %v8637, %v8638
    %v8898 = vcombine.low %v8639, %v8640
    %v8899 = vcombine.high %v8639, %v8640
    %v8901 = vunpack.c.l.s4 1966171168
    %v8902 = vunpack.c.0.s8 %v8901
    %v8903 = vlaneseq
    %v8904 = vshrl.u32 %v8903, 7
    %v8905 = vsub.s32 %v8902, %v8904
    %v8906 = vrot.slane %v8894, %v8905
    %v8908 = vunpack.c.l.s4 1966171168
    %v8909 = vunpack.c.0.s8 %v8908
    %v8910 = vlaneseq
    %v8911 = vshrl.u32 %v8910, 7
    %v8912 = vsub.s32 %v8909, %v8911
    %v8913 = vrot.slane %v8895, %v8912
    %v8915 = vunpack.c.l.s4 1966171168
    %v8916 = vunpack.c.0.s8 %v8915
    %v8917 = vlaneseq
    %v8918 = vshrl.u32 %v8917, 7
    %v8919 = vsub.s32 %v8916, %v8918
    %v8920 = vrot.slane %v8896, %v8919
    %v8922 = vunpack.c.l.s4 1966171168
    %v8923 = vunpack.c.0.s8 %v8922
    %v8924 = vlaneseq
    %v8925 = vshrl.u32 %v8924, 7
    %v8926 = vsub.s32 %v8923, %v8925
    %v8927 = vrot.slane %v8897, %v8926
    %v8929 = vunpack.c.l.s4 1966171168
    %v8930 = vunpack.c.0.s8 %v8929
    %v8931 = vlaneseq
    %v8932 = vshrl.u32 %v8931, 7
    %v8933 = vsub.s32 %v8930, %v8932
    %v8934 = vrot.slane %v8898, %v8933
    %v8936 = vunpack.c.l.s4 1966171168
    %v8937 = vunpack.c.0.s8 %v8936
    %v8938 = vlaneseq
    %v8939 = vshrl.u32 %v8938, 7
    %v8940 = vsub.s32 %v8937, %v8939
    %v8941 = vrot.slane %v8899, %v8940
    %v8942 = vcombine.low %v8906, %v8920
    %v8943 = vcombine.high %v8906, %v8920
    %v8944 = vcombine.low %v8913, %v8927
    %v8945 = vcombine.high %v8934, %v8934
    %v8947 = vunpack.c.l.s4 1966171168
    %v8948 = vunpack.c.0.s8 %v8947
    %v8949 = vlaneseq
    %v8950 = vshrl.u32 %v8949, 7
    %v8951 = vsub.s32 %v8948, %v8950
    %v8952 = vrot.slane %v8942, %v8951
    %v8954 = vunpack.c.l.s4 1966171168
    %v8955 = vunpack.c.0.s8 %v8954
    %v8956 = vlaneseq
    %v8957 = vshrl.u32 %v8956, 7
    %v8958 = vsub.s32 %v8955, %v8957
    %v8959 = vrot.slane %v8944, %v8958
    %v8961 = vunpack.c.l.s4 1966171168
    %v8962 = vunpack.c.0.s8 %v8961
    %v8963 = vlaneseq
    %v8964 = vshrl.u32 %v8963, 7
    %v8965 = vsub.s32 %v8962, %v8964
    %v8966 = vrot.slane %v8943, %v8965
    %v8968 = vunpack.c.l.s4 1966171168
    %v8969 = vunpack.c.0.s8 %v8968
    %v8970 = vlaneseq
    %v8971 = vshrl.u32 %v8970, 7
    %v8972 = vsub.s32 %v8969, %v8971
    %v8973 = vrot.slane %v8934, %v8972
    %v8975 = vunpack.c.l.s4 1966171168
    %v8976 = vunpack.c.0.s8 %v8975
    %v8977 = vlaneseq
    %v8978 = vshrl.u32 %v8977, 7
    %v8979 = vsub.s32 %v8976, %v8978
    %v8980 = vrot.slane %v8941, %v8979
    %v8982 = vunpack.c.l.s4 1966171168
    %v8983 = vunpack.c.0.s8 %v8982
    %v8984 = vlaneseq
    %v8985 = vshrl.u32 %v8984, 7
    %v8986 = vsub.s32 %v8983, %v8985
    %v8987 = vrot.slane %v8945, %v8986
    %v8988 = vcombine.low %v8952, %v8973
    %v8989 = vcombine.high %v8952, %v8973
    %v8990 = vcombine.low %v8959, %v8980
    %v8991 = vcombine.low %v8966, %v8987
    %v8992 = vcombine.high %v8966, %v8987
    %v9013 = vmax.f32 %v8769, %v8773
    %v9014 = vmax.f32 %v8770, %v8774
    %v9015 = vmax.f32 %v8771, %v8775
    %v9016 = vmax.f32 %v8772, %v8776
    %v9017 = vmax.f32 %v8887, %v8890
    %v9018 = vmax.f32 %v8891, %v8888
    %v9019 = vmax.f32 %v8892, %v8889
    %v9020 = vmax.f32 %v8893, %v8988
    %v9021 = vmax.f32 %v8991, %v8989
    %v9022 = vmax.f32 %v8992, %v8990
    %v9033 = vrot.slane %v9013, 3
    %v9034 = vrot.slane %v9014, 3
    %v9035 = vrot.slane %v9015, 3
    %v9036 = vrot.slane %v9016, 3
    %v9037 = vrot.slane %v9017, 3
    %v9038 = vrot.slane %v9018, 3
    %v9039 = vrot.slane %v9019, 3
    %v9040 = vrot.slane %v9020, 3
    %v9041 = vrot.slane %v9021, 3
    %v9042 = vrot.slane %v9022, 3
    %v9053 = vmax.f32 %v9013, %v9033
    %v9054 = vmax.f32 %v9014, %v9034
    %v9055 = vmax.f32 %v9015, %v9035
    %v9056 = vmax.f32 %v9016, %v9036
    %v9057 = vmax.f32 %v9017, %v9037
    %v9058 = vmax.f32 %v9018, %v9038
    %v9059 = vmax.f32 %v9019, %v9039
    %v9060 = vmax.f32 %v9020, %v9040
    %v9061 = vmax.f32 %v9021, %v9041
    %v9062 = vmax.f32 %v9022, %v9042
    %v9073 = vlaneseq
    %v9074 = vshrl.u32 %v9073, 7
    %v9075 = vsub.s32 0, %v9074
    %v9076 = vrot.slane %v9053, %v9075
    %v9077 = vlaneseq
    %v9078 = vshrl.u32 %v9077, 7
    %v9079 = vsub.s32 1, %v9078
    %v9080 = vrot.slane %v9053, %v9079
    %v9081 = vlaneseq
    %v9082 = vshrl.u32 %v9081, 7
    %v9083 = vsub.s32 2, %v9082
    %v9084 = vrot.slane %v9053, %v9083
    %v9085 = vlaneseq
    %v9086 = vshrl.u32 %v9085, 7
    %v9087 = vsub.s32 0, %v9086
    %v9088 = vrot.slane %v9054, %v9087
    %v9089 = vlaneseq
    %v9090 = vshrl.u32 %v9089, 7
    %v9091 = vsub.s32 1, %v9090
    %v9092 = vrot.slane %v9054, %v9091
    %v9093 = vlaneseq
    %v9094 = vshrl.u32 %v9093, 7
    %v9095 = vsub.s32 2, %v9094
    %v9096 = vrot.slane %v9054, %v9095
    %v9097 = vlaneseq
    %v9098 = vshrl.u32 %v9097, 7
    %v9099 = vsub.s32 0, %v9098
    %v9100 = vrot.slane %v9055, %v9099
    %v9101 = vlaneseq
    %v9102 = vshrl.u32 %v9101, 7
    %v9103 = vsub.s32 1, %v9102
    %v9104 = vrot.slane %v9055, %v9103
    %v9105 = vlaneseq
    %v9106 = vshrl.u32 %v9105, 7
    %v9107 = vsub.s32 2, %v9106
    %v9108 = vrot.slane %v9055, %v9107
    %v9109 = vlaneseq
    %v9110 = vshrl.u32 %v9109, 7
    %v9111 = vsub.s32 0, %v9110
    %v9112 = vrot.slane %v9056, %v9111
    %v9113 = vlaneseq
    %v9114 = vshrl.u32 %v9113, 7
    %v9115 = vsub.s32 1, %v9114
    %v9116 = vrot.slane %v9056, %v9115
    %v9117 = vlaneseq
    %v9118 = vshrl.u32 %v9117, 7
    %v9119 = vsub.s32 2, %v9118
    %v9120 = vrot.slane %v9056, %v9119
    %v9121 = vlaneseq
    %v9122 = vshrl.u32 %v9121, 7
    %v9123 = vsub.s32 0, %v9122
    %v9124 = vrot.slane %v9057, %v9123
    %v9125 = vlaneseq
    %v9126 = vshrl.u32 %v9125, 7
    %v9127 = vsub.s32 1, %v9126
    %v9128 = vrot.slane %v9057, %v9127
    %v9129 = vlaneseq
    %v9130 = vshrl.u32 %v9129, 7
    %v9131 = vsub.s32 2, %v9130
    %v9132 = vrot.slane %v9057, %v9131
    %v9133 = vlaneseq
    %v9134 = vshrl.u32 %v9133, 7
    %v9135 = vsub.s32 0, %v9134
    %v9136 = vrot.slane %v9058, %v9135
    %v9137 = vlaneseq
    %v9138 = vshrl.u32 %v9137, 7
    %v9139 = vsub.s32 1, %v9138
    %v9140 = vrot.slane %v9058, %v9139
    %v9141 = vlaneseq
    %v9142 = vshrl.u32 %v9141, 7
    %v9143 = vsub.s32 2, %v9142
    %v9144 = vrot.slane %v9058, %v9143
    %v9145 = vlaneseq
    %v9146 = vshrl.u32 %v9145, 7
    %v9147 = vsub.s32 0, %v9146
    %v9148 = vrot.slane %v9059, %v9147
    %v9149 = vlaneseq
    %v9150 = vshrl.u32 %v9149, 7
    %v9151 = vsub.s32 1, %v9150
    %v9152 = vrot.slane %v9059, %v9151
    %v9153 = vlaneseq
    %v9154 = vshrl.u32 %v9153, 7
    %v9155 = vsub.s32 2, %v9154
    %v9156 = vrot.slane %v9059, %v9155
    %v9157 = vlaneseq
    %v9158 = vshrl.u32 %v9157, 7
    %v9159 = vsub.s32 0, %v9158
    %v9160 = vrot.slane %v9060, %v9159
    %v9161 = vlaneseq
    %v9162 = vshrl.u32 %v9161, 7
    %v9163 = vsub.s32 1, %v9162
    %v9164 = vrot.slane %v9060, %v9163
    %v9165 = vlaneseq
    %v9166 = vshrl.u32 %v9165, 7
    %v9167 = vsub.s32 2, %v9166
    %v9168 = vrot.slane %v9060, %v9167
    %v9169 = vlaneseq
    %v9170 = vshrl.u32 %v9169, 7
    %v9171 = vsub.s32 0, %v9170
    %v9172 = vrot.slane %v9061, %v9171
    %v9173 = vlaneseq
    %v9174 = vshrl.u32 %v9173, 7
    %v9175 = vsub.s32 1, %v9174
    %v9176 = vrot.slane %v9061, %v9175
    %v9177 = vlaneseq
    %v9178 = vshrl.u32 %v9177, 7
    %v9179 = vsub.s32 2, %v9178
    %v9180 = vrot.slane %v9061, %v9179
    %v9181 = vlaneseq
    %v9182 = vshrl.u32 %v9181, 7
    %v9183 = vsub.s32 0, %v9182
    %v9184 = vrot.slane %v9062, %v9183
    %v9185 = vlaneseq
    %v9186 = vshrl.u32 %v9185, 7
    %v9187 = vsub.s32 1, %v9186
    %v9188 = vrot.slane %v9062, %v9187
    %v9189 = vlaneseq
    %v9190 = vshrl.u32 %v9189, 7
    %v9191 = vsub.s32 2, %v9190
    %v9192 = vrot.slane %v9062, %v9191
    %v9223 = vpack.c.bf16 %v9076, %v9076
    %v9224 = vpack.c.bf16 %v9080, %v9080
    %v9225 = vpack.c.bf16 %v9084, %v9084
    %v9226 = vpack.c.bf16 %v9088, %v9088
    %v9227 = vpack.c.bf16 %v9092, %v9092
    %v9228 = vpack.c.bf16 %v9096, %v9096
    %v9229 = vpack.c.bf16 %v9100, %v9100
    %v9230 = vpack.c.bf16 %v9104, %v9104
    %v9231 = vpack.c.bf16 %v9108, %v9108
    %v9232 = vpack.c.bf16 %v9112, %v9112
    %v9233 = vpack.c.bf16 %v9116, %v9116
    %v9234 = vpack.c.bf16 %v9120, %v9120
    %v9235 = vpack.c.bf16 %v9124, %v9124
    %v9236 = vpack.c.bf16 %v9128, %v9128
    %v9237 = vpack.c.bf16 %v9132, %v9132
    %v9238 = vpack.c.bf16 %v9136, %v9136
    %v9239 = vpack.c.bf16 %v9140, %v9140
    %v9240 = vpack.c.bf16 %v9144, %v9144
    %v9241 = vpack.c.bf16 %v9148, %v9148
    %v9242 = vpack.c.bf16 %v9152, %v9152
    %v9243 = vpack.c.bf16 %v9156, %v9156
    %v9244 = vpack.c.bf16 %v9160, %v9160
    %v9245 = vpack.c.bf16 %v9164, %v9164
    %v9246 = vpack.c.bf16 %v9168, %v9168
    %v9247 = vpack.c.bf16 %v9172, %v9172
    %v9248 = vpack.c.bf16 %v9176, %v9176
    %v9249 = vpack.c.bf16 %v9180, %v9180
    %v9250 = vpack.c.bf16 %v9184, %v9184
    %v9251 = vpack.c.bf16 %v9188, %v9188
    %v9252 = vpack.c.bf16 %v9192, %v9192
    %v9253 = vld [vmem:[#allocation11] sm:$0x3]
    %v9272 = vunpack.c.l.b16 %v9223
    %v9273 = vunpack.c.l.b16 %v9224
    %v9274 = vunpack.c.l.b16 %v9225
    %v9275 = vunpack.c.l.b16 %v9226
    %v9276 = vunpack.c.l.b16 %v9227
    %v9277 = vunpack.c.l.b16 %v9228
    %v9278 = vunpack.c.l.b16 %v9229
    %v9279 = vunpack.c.l.b16 %v9230
    %v9280 = vunpack.c.l.b16 %v9231
    %v9281 = vunpack.c.l.b16 %v9238
    %v9282 = vunpack.c.l.b16 %v9239
    %v9283 = vunpack.c.l.b16 %v9240
    %v9284 = vunpack.c.l.b16 %v9241
    %v9285 = vunpack.c.l.b16 %v9242
    %v9286 = vunpack.c.l.b16 %v9243
    %v9287 = vunpack.c.l.b16 %v9244
    %v9288 = vunpack.c.l.b16 %v9245
    %v9289 = vunpack.c.l.b16 %v9246
    %v9290 = vrot.slane %v9275, 7
    %v9291 = vsel %vm2930, %v9290, %v9272
    %v9292 = vrot.slane %v9278, 6
    %v9293 = vsel %vm2933, %v9292, %v9291
    %v9294 = vrot.slane %v9276, 7
    %v9295 = vsel %vm2930, %v9294, %v9273
    %v9296 = vrot.slane %v9279, 6
    %v9297 = vsel %vm2933, %v9296, %v9295
    %v9298 = vrot.slane %v9277, 7
    %v9299 = vsel %vm2930, %v9298, %v9274
    %v9300 = vrot.slane %v9280, 6
    %v9301 = vsel %vm2933, %v9300, %v9299
    %v9302 = vrot.slane %v9284, 7
    %v9303 = vsel %vm2930, %v9302, %v9281
    %v9304 = vrot.slane %v9287, 6
    %v9305 = vsel %vm2933, %v9304, %v9303
    %v9306 = vrot.slane %v9285, 7
    %v9307 = vsel %vm2930, %v9306, %v9282
    %v9308 = vrot.slane %v9288, 6
    %v9309 = vsel %vm2933, %v9308, %v9307
    %v9310 = vrot.slane %v9286, 7
    %v9311 = vsel %vm2930, %v9310, %v9283
    %v9312 = vrot.slane %v9289, 6
    %v9313 = vsel %vm2933, %v9312, %v9311
    %v9314 = vpack.c.b16 %v9293, %v9293
    %v9315 = vpack.c.b16 %v9297, %v9297
    %v9316 = vpack.c.b16 %v9301, %v9301
    %v9317 = vpack.c.b16 %v9305, %v9305
    %v9318 = vpack.c.b16 %v9309, %v9309
    %v9319 = vpack.c.b16 %v9313, %v9313
    %v9326 = vunpack.c.l.b16 %v9232
    %v9327 = vunpack.c.l.b16 %v9233
    %v9328 = vunpack.c.l.b16 %v9234
    %v9329 = vunpack.c.l.b16 %v9247
    %v9330 = vunpack.c.l.b16 %v9248
    %v9331 = vunpack.c.l.b16 %v9249
    %v9332 = vrot.slane %v9278, 7
    %v9333 = vsel %vm2930, %v9332, %v9275
    %v9334 = vrot.slane %v9326, 6
    %v9335 = vsel %vm2933, %v9334, %v9333
    %v9336 = vrot.slane %v9279, 7
    %v9337 = vsel %vm2930, %v9336, %v9276
    %v9338 = vrot.slane %v9327, 6
    %v9339 = vsel %vm2933, %v9338, %v9337
    %v9340 = vrot.slane %v9280, 7
    %v9341 = vsel %vm2930, %v9340, %v9277
    %v9342 = vrot.slane %v9328, 6
    %v9343 = vsel %vm2933, %v9342, %v9341
    %v9344 = vrot.slane %v9287, 7
    %v9345 = vsel %vm2930, %v9344, %v9284
    %v9346 = vrot.slane %v9329, 6
    %v9347 = vsel %vm2933, %v9346, %v9345
    %v9348 = vrot.slane %v9288, 7
    %v9349 = vsel %vm2930, %v9348, %v9285
    %v9350 = vrot.slane %v9330, 6
    %v9351 = vsel %vm2933, %v9350, %v9349
    %v9352 = vrot.slane %v9289, 7
    %v9353 = vsel %vm2930, %v9352, %v9286
    %v9354 = vrot.slane %v9331, 6
    %v9355 = vsel %vm2933, %v9354, %v9353
    %v9356 = vpack.c.b16 %v9335, %v9335
    %v9357 = vpack.c.b16 %v9339, %v9339
    %v9358 = vpack.c.b16 %v9343, %v9343
    %v9359 = vpack.c.b16 %v9347, %v9347
    %v9360 = vpack.c.b16 %v9351, %v9351
    %v9361 = vpack.c.b16 %v9355, %v9355
    %v9368 = vunpack.c.l.b16 %v9235
    %v9369 = vunpack.c.l.b16 %v9236
    %v9370 = vunpack.c.l.b16 %v9237
    %v9371 = vunpack.c.l.b16 %v9250
    %v9372 = vunpack.c.l.b16 %v9251
    %v9373 = vunpack.c.l.b16 %v9252
    %v9374 = vrot.slane %v9326, 7
    %v9375 = vsel %vm2930, %v9374, %v9278
    %v9376 = vrot.slane %v9368, 6
    %v9377 = vsel %vm2933, %v9376, %v9375
    %v9378 = vrot.slane %v9327, 7
    %v9379 = vsel %vm2930, %v9378, %v9279
    %v9380 = vrot.slane %v9369, 6
    %v9381 = vsel %vm2933, %v9380, %v9379
    %v9382 = vrot.slane %v9328, 7
    %v9383 = vsel %vm2930, %v9382, %v9280
    %v9384 = vrot.slane %v9370, 6
    %v9385 = vsel %vm2933, %v9384, %v9383
    %v9386 = vrot.slane %v9329, 7
    %v9387 = vsel %vm2930, %v9386, %v9287
    %v9388 = vrot.slane %v9371, 6
    %v9389 = vsel %vm2933, %v9388, %v9387
    %v9390 = vrot.slane %v9330, 7
    %v9391 = vsel %vm2930, %v9390, %v9288
    %v9392 = vrot.slane %v9372, 6
    %v9393 = vsel %vm2933, %v9392, %v9391
    %v9394 = vrot.slane %v9331, 7
    %v9395 = vsel %vm2930, %v9394, %v9289
    %v9396 = vrot.slane %v9373, 6
    %v9397 = vsel %vm2933, %v9396, %v9395
    %v9398 = vpack.c.b16 %v9377, %v9377
    %v9399 = vpack.c.b16 %v9381, %v9381
    %v9400 = vpack.c.b16 %v9385, %v9385
    %v9401 = vpack.c.b16 %v9389, %v9389
    %v9402 = vpack.c.b16 %v9393, %v9393
    %v9403 = vpack.c.b16 %v9397, %v9397
    %v9404 = vcombine.low %v9314, %v9315
    %v9405 = vcombine.low %v9316, %v9356
    %v9406 = vcombine.low %v9357, %v9358
    %v9407 = vcombine.low %v9398, %v9399
    %v9409 = vunpack.c.l.s4 1966171168
    %v9410 = vunpack.c.0.s8 %v9409
    %v9411 = vlaneseq
    %v9412 = vshrl.u32 %v9411, 7
    %v9413 = vsub.s32 %v9410, %v9412
    %v9414 = vrot.slane %v9404, %v9413
    %v9416 = vunpack.c.l.s4 1966171168
    %v9417 = vunpack.c.0.s8 %v9416
    %v9418 = vlaneseq
    %v9419 = vshrl.u32 %v9418, 7
    %v9420 = vsub.s32 %v9417, %v9419
    %v9421 = vrot.slane %v9405, %v9420
    %v9423 = vunpack.c.l.s4 1966171168
    %v9424 = vunpack.c.0.s8 %v9423
    %v9425 = vlaneseq
    %v9426 = vshrl.u32 %v9425, 7
    %v9427 = vsub.s32 %v9424, %v9426
    %v9428 = vrot.slane %v9406, %v9427
    %v9430 = vunpack.c.l.s4 1966171168
    %v9431 = vunpack.c.0.s8 %v9430
    %v9432 = vlaneseq
    %v9433 = vshrl.u32 %v9432, 7
    %v9434 = vsub.s32 %v9431, %v9433
    %v9435 = vrot.slane %v9407, %v9434
    %v9436 = vcombine.low %v9414, %v9421
    %v9437 = vcombine.high %v9414, %v9421
    %v9438 = vcombine.low %v9428, %v9435
    %v9439 = vcombine.high %v9428, %v9435
    %v9441 = vunpack.c.l.s4 1966171168
    %v9442 = vunpack.c.0.s8 %v9441
    %v9443 = vlaneseq
    %v9444 = vshrl.u32 %v9443, 7
    %v9445 = vsub.s32 %v9442, %v9444
    %v9446 = vrot.slane %v9436, %v9445
    %v9448 = vunpack.c.l.s4 1966171168
    %v9449 = vunpack.c.0.s8 %v9448
    %v9450 = vlaneseq
    %v9451 = vshrl.u32 %v9450, 7
    %v9452 = vsub.s32 %v9449, %v9451
    %v9453 = vrot.slane %v9437, %v9452
    %v9455 = vunpack.c.l.s4 1966171168
    %v9456 = vunpack.c.0.s8 %v9455
    %v9457 = vlaneseq
    %v9458 = vshrl.u32 %v9457, 7
    %v9459 = vsub.s32 %v9456, %v9458
    %v9460 = vrot.slane %v9438, %v9459
    %v9462 = vunpack.c.l.s4 1966171168
    %v9463 = vunpack.c.0.s8 %v9462
    %v9464 = vlaneseq
    %v9465 = vshrl.u32 %v9464, 7
    %v9466 = vsub.s32 %v9463, %v9465
    %v9467 = vrot.slane %v9439, %v9466
    %v9468 = vcombine.low %v9446, %v9460
    %v9469 = vcombine.low %v9453, %v9467
    %v9471 = vunpack.c.l.s4 1966171168
    %v9472 = vunpack.c.0.s8 %v9471
    %v9473 = vlaneseq
    %v9474 = vshrl.u32 %v9473, 7
    %v9475 = vsub.s32 %v9472, %v9474
    %v9476 = vrot.slane %v9400, %v9475
    %v9477 = vcombine.high %v9476, %v9476
    %v9479 = vunpack.c.l.s4 1966171168
    %v9480 = vunpack.c.0.s8 %v9479
    %v9481 = vlaneseq
    %v9482 = vshrl.u32 %v9481, 7
    %v9483 = vsub.s32 %v9480, %v9482
    %v9484 = vrot.slane %v9476, %v9483
    %v9486 = vunpack.c.l.s4 1966171168
    %v9487 = vunpack.c.0.s8 %v9486
    %v9488 = vlaneseq
    %v9489 = vshrl.u32 %v9488, 7
    %v9490 = vsub.s32 %v9487, %v9489
    %v9491 = vrot.slane %v9477, %v9490
    %v9492 = vcombine.low %v9317, %v9318
    %v9493 = vcombine.low %v9319, %v9359
    %v9494 = vcombine.low %v9360, %v9361
    %v9495 = vcombine.low %v9401, %v9402
    %v9497 = vunpack.c.l.s4 1966171168
    %v9498 = vunpack.c.0.s8 %v9497
    %v9499 = vlaneseq
    %v9500 = vshrl.u32 %v9499, 7
    %v9501 = vsub.s32 %v9498, %v9500
    %v9502 = vrot.slane %v9492, %v9501
    %v9504 = vunpack.c.l.s4 1966171168
    %v9505 = vunpack.c.0.s8 %v9504
    %v9506 = vlaneseq
    %v9507 = vshrl.u32 %v9506, 7
    %v9508 = vsub.s32 %v9505, %v9507
    %v9509 = vrot.slane %v9493, %v9508
    %v9511 = vunpack.c.l.s4 1966171168
    %v9512 = vunpack.c.0.s8 %v9511
    %v9513 = vlaneseq
    %v9514 = vshrl.u32 %v9513, 7
    %v9515 = vsub.s32 %v9512, %v9514
    %v9516 = vrot.slane %v9494, %v9515
    %v9518 = vunpack.c.l.s4 1966171168
    %v9519 = vunpack.c.0.s8 %v9518
    %v9520 = vlaneseq
    %v9521 = vshrl.u32 %v9520, 7
    %v9522 = vsub.s32 %v9519, %v9521
    %v9523 = vrot.slane %v9495, %v9522
    %v9524 = vcombine.low %v9502, %v9509
    %v9525 = vcombine.high %v9502, %v9509
    %v9526 = vcombine.low %v9516, %v9523
    %v9527 = vcombine.high %v9516, %v9523
    %v9529 = vunpack.c.l.s4 1966171168
    %v9530 = vunpack.c.0.s8 %v9529
    %v9531 = vlaneseq
    %v9532 = vshrl.u32 %v9531, 7
    %v9533 = vsub.s32 %v9530, %v9532
    %v9534 = vrot.slane %v9524, %v9533
    %v9536 = vunpack.c.l.s4 1966171168
    %v9537 = vunpack.c.0.s8 %v9536
    %v9538 = vlaneseq
    %v9539 = vshrl.u32 %v9538, 7
    %v9540 = vsub.s32 %v9537, %v9539
    %v9541 = vrot.slane %v9525, %v9540
    %v9543 = vunpack.c.l.s4 1966171168
    %v9544 = vunpack.c.0.s8 %v9543
    %v9545 = vlaneseq
    %v9546 = vshrl.u32 %v9545, 7
    %v9547 = vsub.s32 %v9544, %v9546
    %v9548 = vrot.slane %v9526, %v9547
    %v9550 = vunpack.c.l.s4 1966171168
    %v9551 = vunpack.c.0.s8 %v9550
    %v9552 = vlaneseq
    %v9553 = vshrl.u32 %v9552, 7
    %v9554 = vsub.s32 %v9551, %v9553
    %v9555 = vrot.slane %v9527, %v9554
    %v9556 = vcombine.low %v9534, %v9548
    %v9557 = vcombine.low %v9541, %v9555
    %v9559 = vunpack.c.l.s4 1966171168
    %v9560 = vunpack.c.0.s8 %v9559
    %v9561 = vlaneseq
    %v9562 = vshrl.u32 %v9561, 7
    %v9563 = vsub.s32 %v9560, %v9562
    %v9564 = vrot.slane %v9403, %v9563
    %v9565 = vcombine.high %v9564, %v9564
    %v9567 = vunpack.c.l.s4 1966171168
    %v9568 = vunpack.c.0.s8 %v9567
    %v9569 = vlaneseq
    %v9570 = vshrl.u32 %v9569, 7
    %v9571 = vsub.s32 %v9568, %v9570
    %v9572 = vrot.slane %v9564, %v9571
    %v9574 = vunpack.c.l.s4 1966171168
    %v9575 = vunpack.c.0.s8 %v9574
    %v9576 = vlaneseq
    %v9577 = vshrl.u32 %v9576, 7
    %v9578 = vsub.s32 %v9575, %v9577
    %v9579 = vrot.slane %v9565, %v9578
    %v9580 = vunpack.i.l.s16 %v9468
    %v9581 = vunpack.i.l.s16 %v9484
    %v9582 = vunpack.i.h.s16 %v9468
    %v9583 = vunpack.i.h.s16 %v9484
    %v9584 = vunpack.i.l.s16 %v9469
    %v9585 = vunpack.i.l.s16 %v9491
    %v9586 = vunpack.i.l.s16 %v9556
    %v9587 = vunpack.i.l.s16 %v9572
    %v9588 = vunpack.i.h.s16 %v9556
    %v9589 = vunpack.i.h.s16 %v9572
    %v9590 = vunpack.i.l.s16 %v9557
    %v9591 = vunpack.i.l.s16 %v9579
    %v9592 = vld [vmem:[#allocation10] sm:$0xff]
    %v9593 = vld [vmem:[#allocation10 + $0x8] sm:$0xff]
    %v9594 = vld [vmem:[#allocation10 + $0x10] sm:$0xff]
    %v9595 = vld [vmem:[#allocation10 + $0x18] sm:$0xff]
    %v9596 = vld [vmem:[#allocation10 + $0x20] sm:$0xff]
    %v9597 = vld [vmem:[#allocation10 + $0x28] sm:$0xff]
    %v9598 = vld [vmem:[#allocation10 + $0x30] sm:$0xff]
    %v9599 = vld [vmem:[#allocation10 + $0x38] sm:$0xff]
    %v9600 = vld [vmem:[#allocation10 + $0x40] sm:$0xff]
    %v9601 = vld [vmem:[#allocation10 + $0x48] sm:$0xff]
    %v9602 = vld [vmem:[#allocation10 + $0x50] sm:$0xff]
    %v9603 = vld [vmem:[#allocation10 + $0x58] sm:$0xff]
    %v9604 = vld [vmem:[#allocation10 + $0x60] sm:$0xff]
    %v9605 = vld [vmem:[#allocation10 + $0x68] sm:$0xff]
    %v9606 = vld [vmem:[#allocation10 + $0x70] sm:$0xff]
    %v9607 = vld [vmem:[#allocation10 + $0x78] sm:$0xff]
    %v9608 = vld [vmem:[#allocation10 + $0x80] sm:$0xff]
    %v9609 = vld [vmem:[#allocation10 + $0x88] sm:$0xff]
    %v9610 = vld [vmem:[#allocation10 + $0x90] sm:$0xff]
    %v9611 = vld [vmem:[#allocation10 + $0x98] sm:$0xff]
    %v9612 = vld [vmem:[#allocation10 + $0xa0] sm:$0xff]
    %v9613 = vld [vmem:[#allocation10 + $0xa8] sm:$0xff]
    %v9614 = vld [vmem:[#allocation10 + $0xb0] sm:$0xff]
    %v9615 = vld [vmem:[#allocation10 + $0xb8] sm:$0xff]
    %v9616 = vld [vmem:[#allocation10 + $0xc0] sm:$0xff]
    %v9617 = vld [vmem:[#allocation10 + $0xc8] sm:$0xff]
    %v9618 = vld [vmem:[#allocation10 + $0xd0] sm:$0xff]
    %v9619 = vld [vmem:[#allocation10 + $0xd8] sm:$0xff]
    %v9620 = vld [vmem:[#allocation10 + $0xe0] sm:$0xff]
    %v9621 = vld [vmem:[#allocation10 + $0xe8] sm:$0xff]
    %v9622 = vld [vmem:[#allocation10 + $0xf0] sm:$0xff]
    %v9623 = vld [vmem:[#allocation10 + $0xf8] sm:$0xff]
    %v9624 = vld [vmem:[#allocation10 + $0x100] sm:$0xff]
    %v9625 = vld [vmem:[#allocation10 + $0x108] sm:$0xff]
    %v9626 = vld [vmem:[#allocation10 + $0x110] sm:$0xff]
    %v9627 = vld [vmem:[#allocation10 + $0x118] sm:$0xff]
    %v9628 = vld [vmem:[#allocation10 + $0x120] sm:$0xff]
    %v9629 = vld [vmem:[#allocation10 + $0x128] sm:$0xff]
    %v9630 = vld [vmem:[#allocation10 + $0x130] sm:$0xff]
    %v9631 = vld [vmem:[#allocation10 + $0x138] sm:$0xff]
    %v9632 = vld [vmem:[#allocation10 + $0x140] sm:$0xff]
    %v9633 = vld [vmem:[#allocation10 + $0x148] sm:$0xff]
    %v9634 = vld [vmem:[#allocation10 + $0x150] sm:$0xff]
    %v9635 = vld [vmem:[#allocation10 + $0x158] sm:$0xff]
    %v9636 = vld [vmem:[#allocation10 + $0x160] sm:$0xff]
    %v9637 = vld [vmem:[#allocation10 + $0x168] sm:$0xff]
    %v9638 = vld [vmem:[#allocation10 + $0x170] sm:$0xff]
    %v9639 = vld [vmem:[#allocation10 + $0x178] sm:$0xff]
    %v9640 = vld [vmem:[#allocation10 + $0x180] sm:$0xff]
    %v9641 = vld [vmem:[#allocation10 + $0x188] sm:$0xff]
    %v9642 = vld [vmem:[#allocation10 + $0x190] sm:$0xff]
    %v9643 = vld [vmem:[#allocation10 + $0x198] sm:$0xff]
    %v9644 = vld [vmem:[#allocation10 + $0x1a0] sm:$0xff]
    %v9645 = vld [vmem:[#allocation10 + $0x1a8] sm:$0xff]
    %v9646 = vld [vmem:[#allocation10 + $0x1b0] sm:$0xff]
    %v9647 = vld [vmem:[#allocation10 + $0x1b8] sm:$0xff]
    %v9648 = vld [vmem:[#allocation10 + $0x1c0] sm:$0xff]
    %v9649 = vld [vmem:[#allocation10 + $0x1c8] sm:$0xff]
    %v9650 = vld [vmem:[#allocation10 + $0x1d0] sm:$0xff]
    %v9651 = vld [vmem:[#allocation10 + $0x1d8] sm:$0xff]
    %v9652 = vld [vmem:[#allocation10 + $0x1e0] sm:$0xff]
    %v9653 = vld [vmem:[#allocation10 + $0x1e8] sm:$0xff]
    %v9654 = vld [vmem:[#allocation10 + $0x1f0] sm:$0xff]
    %v9655 = vld [vmem:[#allocation10 + $0x1f8] sm:$0xff]
    %v9656 = vld [vmem:[#allocation10 + $0x200] sm:$0xff]
    %v9657 = vld [vmem:[#allocation10 + $0x208] sm:$0xff]
    %v9658 = vld [vmem:[#allocation10 + $0x210] sm:$0xff]
    %v9659 = vld [vmem:[#allocation10 + $0x218] sm:$0xff]
    %v9660 = vld [vmem:[#allocation10 + $0x220] sm:$0xff]
    %v9661 = vld [vmem:[#allocation10 + $0x228] sm:$0xff]
    %v9662 = vld [vmem:[#allocation10 + $0x230] sm:$0xff]
    %v9663 = vld [vmem:[#allocation10 + $0x238] sm:$0xff]
    %v9664 = vld [vmem:[#allocation10 + $0x240] sm:$0xff]
    %v9665 = vld [vmem:[#allocation10 + $0x248] sm:$0xff]
    %v9666 = vld [vmem:[#allocation10 + $0x250] sm:$0xff]
    %v9667 = vld [vmem:[#allocation10 + $0x258] sm:$0xff]
    %v9668 = vld [vmem:[#allocation10 + $0x260] sm:$0xff]
    %v9669 = vld [vmem:[#allocation10 + $0x268] sm:$0xff]
    %v9670 = vld [vmem:[#allocation10 + $0x270] sm:$0xff]
    %v9671 = vld [vmem:[#allocation10 + $0x278] sm:$0xff]
    %v9672 = vld [vmem:[#allocation10 + $0x280] sm:$0xff]
    %v9673 = vld [vmem:[#allocation10 + $0x288] sm:$0xff]
    %v9674 = vld [vmem:[#allocation10 + $0x290] sm:$0xff]
    %v9675 = vld [vmem:[#allocation10 + $0x298] sm:$0xff]
    %v9676 = vld [vmem:[#allocation10 + $0x2a0] sm:$0xff]
    %v9677 = vld [vmem:[#allocation10 + $0x2a8] sm:$0xff]
    %v9678 = vld [vmem:[#allocation10 + $0x2b0] sm:$0xff]
    %v9679 = vld [vmem:[#allocation10 + $0x2b8] sm:$0xff]
    %v9680 = vld [vmem:[#allocation10 + $0x2c0] sm:$0xff]
    %v9681 = vld [vmem:[#allocation10 + $0x2c8] sm:$0xff]
    %v9682 = vld [vmem:[#allocation10 + $0x2d0] sm:$0xff]
    %v9683 = vld [vmem:[#allocation10 + $0x2d8] sm:$0xff]
    %v9684 = vld [vmem:[#allocation10 + $0x2e0] sm:$0xff]
    %v9685 = vld [vmem:[#allocation10 + $0x2e8] sm:$0xff]
    %v9686 = vld [vmem:[#allocation10 + $0x2f0] sm:$0xff]
    %v9687 = vld [vmem:[#allocation10 + $0x2f8] sm:$0xff]
    %v9688 = vld [vmem:[#allocation10 + $0x300] sm:$0xff]
    %v9689 = vld [vmem:[#allocation10 + $0x308] sm:$0xff]
    %v9690 = vld [vmem:[#allocation10 + $0x310] sm:$0xff]
    %v9691 = vld [vmem:[#allocation10 + $0x318] sm:$0xff]
    %v9692 = vld [vmem:[#allocation10 + $0x320] sm:$0xff]
    %v9693 = vld [vmem:[#allocation10 + $0x328] sm:$0xff]
    %v9694 = vld [vmem:[#allocation10 + $0x330] sm:$0xff]
    %v9695 = vld [vmem:[#allocation10 + $0x338] sm:$0xff]
    %v9696 = vld [vmem:[#allocation10 + $0x340] sm:$0xff]
    %v9697 = vld [vmem:[#allocation10 + $0x348] sm:$0xff]
    %v9698 = vld [vmem:[#allocation10 + $0x350] sm:$0xff]
    %v9699 = vld [vmem:[#allocation10 + $0x358] sm:$0xff]
    %v9700 = vld [vmem:[#allocation10 + $0x360] sm:$0xff]
    %v9701 = vld [vmem:[#allocation10 + $0x368] sm:$0xff]
    %v9702 = vld [vmem:[#allocation10 + $0x370] sm:$0xff]
    %v9703 = vld [vmem:[#allocation10 + $0x378] sm:$0xff]
    %v9704 = vld [vmem:[#allocation10 + $0x380] sm:$0xff]
    %v9705 = vld [vmem:[#allocation10 + $0x388] sm:$0xff]
    %v9706 = vld [vmem:[#allocation10 + $0x390] sm:$0xff]
    %v9707 = vld [vmem:[#allocation10 + $0x398] sm:$0xff]
    %v9708 = vld [vmem:[#allocation10 + $0x3a0] sm:$0xff]
    %v9709 = vld [vmem:[#allocation10 + $0x3a8] sm:$0xff]
    %v9710 = vld [vmem:[#allocation10 + $0x3b0] sm:$0xff]
    %v9711 = vld [vmem:[#allocation10 + $0x3b8] sm:$0xff]
    %v9712 = vld [vmem:[#allocation10 + $0x3c0] sm:$0xff]
    %v9713 = vld [vmem:[#allocation10 + $0x3c8] sm:$0xff]
    %v9714 = vld [vmem:[#allocation10 + $0x3d0] sm:$0xff]
    %v9715 = vld [vmem:[#allocation10 + $0x3d8] sm:$0xff]
    %v9716 = vld [vmem:[#allocation10 + $0x3e0] sm:$0xff]
    %v9717 = vld [vmem:[#allocation10 + $0x3e8] sm:$0xff]
    %v9718 = vld [vmem:[#allocation10 + $0x3f0] sm:$0xff]
    %v9719 = vld [vmem:[#allocation10 + $0x3f8] sm:$0xff]
    %v9720 = vld [vmem:[#allocation10 + $0x400] sm:$0xff]
    %v9721 = vld [vmem:[#allocation10 + $0x408] sm:$0xff]
    %v9722 = vld [vmem:[#allocation10 + $0x410] sm:$0xff]
    %v9723 = vld [vmem:[#allocation10 + $0x418] sm:$0xff]
    %v9724 = vld [vmem:[#allocation10 + $0x420] sm:$0xff]
    %v9725 = vld [vmem:[#allocation10 + $0x428] sm:$0xff]
    %v9726 = vld [vmem:[#allocation10 + $0x430] sm:$0xff]
    %v9727 = vld [vmem:[#allocation10 + $0x438] sm:$0xff]
    %v9728 = vld [vmem:[#allocation10 + $0x440] sm:$0xff]
    %v9729 = vld [vmem:[#allocation10 + $0x448] sm:$0xff]
    %v9730 = vld [vmem:[#allocation10 + $0x450] sm:$0xff]
    %v9731 = vld [vmem:[#allocation10 + $0x458] sm:$0xff]
    %v9732 = vld [vmem:[#allocation10 + $0x460] sm:$0xff]
    %v9733 = vld [vmem:[#allocation10 + $0x468] sm:$0xff]
    %v9734 = vld [vmem:[#allocation10 + $0x470] sm:$0xff]
    %v9735 = vld [vmem:[#allocation10 + $0x478] sm:$0xff]
    %v9737 = vlaneseq
    %v9738 = vshrl.u32 %v9737, 7
    %v9739 = vsub.s32 0, %v9738
    %v9740 = vrot.slane %v9253, %v9739
    %v9741 = vlaneseq
    %v9742 = vshrl.u32 %v9741, 7
    %v9743 = vsub.s32 1, %v9742
    %v9744 = vrot.slane %v9253, %v9743
    %v9747 = vpack.i.b16 %v9582, %v9580
    %v9748 = vpack.i.b16 %v9583, %v9581
    %v9749 = vpack.i.b16 %v9586, %v9584
    %v9750 = vpack.i.b16 %v9587, %v9585
    %v9751 = vpack.i.b16 %v9590, %v9588
    %v9752 = vpack.i.b16 %v9591, %v9589
    %v9753 = vcombine.low %v9747, %v9749
    %v9754 = vcombine.high %v9747, %v9749
    %v9755 = vcombine.high %v9751, %v9751
    %v9757 = vunpack.c.l.s4 1966171168
    %v9758 = vunpack.c.0.s8 %v9757
    %v9759 = vlaneseq
    %v9760 = vshrl.u32 %v9759, 7
    %v9761 = vsub.s32 %v9758, %v9760
    %v9762 = vrot.slane %v9753, %v9761
    %v9764 = vunpack.c.l.s4 1966171168
    %v9765 = vunpack.c.0.s8 %v9764
    %v9766 = vlaneseq
    %v9767 = vshrl.u32 %v9766, 7
    %v9768 = vsub.s32 %v9765, %v9767
    %v9769 = vrot.slane %v9754, %v9768
    %v9771 = vunpack.c.l.s4 1966171168
    %v9772 = vunpack.c.0.s8 %v9771
    %v9773 = vlaneseq
    %v9774 = vshrl.u32 %v9773, 7
    %v9775 = vsub.s32 %v9772, %v9774
    %v9776 = vrot.slane %v9751, %v9775
    %v9778 = vunpack.c.l.s4 1966171168
    %v9779 = vunpack.c.0.s8 %v9778
    %v9780 = vlaneseq
    %v9781 = vshrl.u32 %v9780, 7
    %v9782 = vsub.s32 %v9779, %v9781
    %v9783 = vrot.slane %v9755, %v9782
    %v9784 = vcombine.low %v9762, %v9776
    %v9785 = vcombine.high %v9762, %v9776
    %v9786 = vcombine.low %v9769, %v9783
    %v9787 = vcombine.high %v9769, %v9783
    %v9789 = vunpack.c.l.s4 1966171168
    %v9790 = vunpack.c.0.s8 %v9789
    %v9791 = vlaneseq
    %v9792 = vshrl.u32 %v9791, 7
    %v9793 = vsub.s32 %v9790, %v9792
    %v9794 = vrot.slane %v9784, %v9793
    %v9796 = vunpack.c.l.s4 1966171168
    %v9797 = vunpack.c.0.s8 %v9796
    %v9798 = vlaneseq
    %v9799 = vshrl.u32 %v9798, 7
    %v9800 = vsub.s32 %v9797, %v9799
    %v9801 = vrot.slane %v9786, %v9800
    %v9803 = vunpack.c.l.s4 1966171168
    %v9804 = vunpack.c.0.s8 %v9803
    %v9805 = vlaneseq
    %v9806 = vshrl.u32 %v9805, 7
    %v9807 = vsub.s32 %v9804, %v9806
    %v9808 = vrot.slane %v9785, %v9807
    %v9810 = vunpack.c.l.s4 1966171168
    %v9811 = vunpack.c.0.s8 %v9810
    %v9812 = vlaneseq
    %v9813 = vshrl.u32 %v9812, 7
    %v9814 = vsub.s32 %v9811, %v9813
    %v9815 = vrot.slane %v9787, %v9814
    %v9816 = vcombine.high %v9794, %v9794
    %v9817 = vcombine.high %v9801, %v9801
    %v9818 = vcombine.high %v9808, %v9808
    %v9819 = vcombine.high %v9815, %v9815
    %v9820 = vcombine.low %v9748, %v9750
    %v9822 = vunpack.c.l.s4 1966171168
    %v9823 = vunpack.c.0.s8 %v9822
    %v9824 = vlaneseq
    %v9825 = vshrl.u32 %v9824, 7
    %v9826 = vsub.s32 %v9823, %v9825
    %v9827 = vrot.slane %v9820, %v9826
    %v9829 = vunpack.c.l.s4 1966171168
    %v9830 = vunpack.c.0.s8 %v9829
    %v9831 = vlaneseq
    %v9832 = vshrl.u32 %v9831, 7
    %v9833 = vsub.s32 %v9830, %v9832
    %v9834 = vrot.slane %v9752, %v9833
    %v9835 = vcombine.low %v9827, %v9834
    %v9837 = vunpack.c.l.s4 1966171168
    %v9838 = vunpack.c.0.s8 %v9837
    %v9839 = vlaneseq
    %v9840 = vshrl.u32 %v9839, 7
    %v9841 = vsub.s32 %v9838, %v9840
    %v9842 = vrot.slane %v9835, %v9841
    %v9996 = vunpack.c.l.b16 %v9592
    %v9997 = vunpack.c.h.b16 %v9592
    %v9998 = vunpack.c.l.b16 %v9593
    %v9999 = vunpack.c.h.b16 %v9593
    %v10000 = vunpack.c.l.b16 %v9594
    %v10001 = vunpack.c.h.b16 %v9594
    %v10002 = vunpack.c.l.b16 %v9595
    %v10003 = vunpack.c.h.b16 %v9595
    %v10004 = vunpack.c.l.b16 %v9596
    %v10005 = vunpack.c.h.b16 %v9596
    %v10006 = vunpack.c.l.b16 %v9597
    %v10007 = vunpack.c.h.b16 %v9597
    %v10008 = vunpack.c.l.b16 %v9598
    %v10009 = vunpack.c.h.b16 %v9598
    %v10010 = vunpack.c.l.b16 %v9599
    %v10011 = vunpack.c.h.b16 %v9599
    %v10012 = vunpack.c.l.b16 %v9600
    %v10013 = vunpack.c.h.b16 %v9600
    %v10014 = vunpack.c.l.b16 %v9601
    %v10015 = vunpack.c.h.b16 %v9601
    %v10016 = vunpack.c.l.b16 %v9602
    %v10017 = vunpack.c.h.b16 %v9602
    %v10018 = vunpack.c.l.b16 %v9603
    %v10019 = vunpack.c.h.b16 %v9603
    %v10020 = vunpack.c.l.b16 %v9604
    %v10021 = vunpack.c.h.b16 %v9604
    %v10022 = vunpack.c.l.b16 %v9605
    %v10023 = vunpack.c.h.b16 %v9605
    %v10024 = vunpack.c.l.b16 %v9606
    %v10025 = vunpack.c.h.b16 %v9606
    %v10026 = vunpack.c.l.b16 %v9607
    %v10027 = vunpack.c.h.b16 %v9607
    %v10028 = vunpack.c.l.b16 %v9608
    %v10029 = vunpack.c.h.b16 %v9608
    %v10030 = vunpack.c.l.b16 %v9609
    %v10031 = vunpack.c.h.b16 %v9609
    %v10032 = vunpack.c.l.b16 %v9610
    %v10033 = vunpack.c.h.b16 %v9610
    %v10034 = vunpack.c.l.b16 %v9611
    %v10035 = vunpack.c.h.b16 %v9611
    %v10036 = vunpack.c.l.b16 %v9612
    %v10037 = vunpack.c.h.b16 %v9612
    %v10038 = vunpack.c.l.b16 %v9613
    %v10039 = vunpack.c.h.b16 %v9613
    %v10040 = vunpack.c.l.b16 %v9614
    %v10041 = vunpack.c.h.b16 %v9614
    %v10042 = vunpack.c.l.b16 %v9615
    %v10043 = vunpack.c.h.b16 %v9615
    %v10044 = vunpack.c.l.b16 %v9616
    %v10045 = vunpack.c.h.b16 %v9616
    %v10046 = vunpack.c.l.b16 %v9617
    %v10047 = vunpack.c.h.b16 %v9617
    %v10048 = vunpack.c.l.b16 %v9618
    %v10049 = vunpack.c.h.b16 %v9618
    %v10050 = vunpack.c.l.b16 %v9619
    %v10051 = vunpack.c.h.b16 %v9619
    %v10052 = vunpack.c.l.b16 %v9620
    %v10053 = vunpack.c.h.b16 %v9620
    %v10054 = vunpack.c.l.b16 %v9621
    %v10055 = vunpack.c.h.b16 %v9621
    %v10056 = vunpack.c.l.b16 %v9622
    %v10057 = vunpack.c.h.b16 %v9622
    %v10058 = vunpack.c.l.b16 %v9623
    %v10059 = vunpack.c.h.b16 %v9623
    %v10060 = vunpack.c.l.b16 %v9624
    %v10061 = vunpack.c.h.b16 %v9624
    %v10062 = vunpack.c.l.b16 %v9625
    %v10063 = vunpack.c.h.b16 %v9625
    %v10064 = vunpack.c.l.b16 %v9626
    %v10065 = vunpack.c.h.b16 %v9626
    %v10066 = vunpack.c.l.b16 %v9627
    %v10067 = vunpack.c.h.b16 %v9627
    %v10068 = vunpack.c.l.b16 %v9628
    %v10069 = vunpack.c.h.b16 %v9628
    %v10070 = vunpack.c.l.b16 %v9629
    %v10071 = vunpack.c.h.b16 %v9629
    %v10072 = vunpack.c.l.b16 %v9630
    %v10073 = vunpack.c.h.b16 %v9630
    %v10074 = vunpack.c.l.b16 %v9631
    %v10075 = vunpack.c.h.b16 %v9631
    %v10076 = vunpack.c.l.b16 %v9632
    %v10077 = vunpack.c.h.b16 %v9632
    %v10078 = vunpack.c.l.b16 %v9633
    %v10079 = vunpack.c.h.b16 %v9633
    %v10080 = vunpack.c.l.b16 %v9634
    %v10081 = vunpack.c.h.b16 %v9634
    %v10082 = vunpack.c.l.b16 %v9635
    %v10083 = vunpack.c.h.b16 %v9635
    %v10084 = vunpack.c.l.b16 %v9636
    %v10085 = vunpack.c.h.b16 %v9636
    %v10086 = vunpack.c.l.b16 %v9637
    %v10087 = vunpack.c.h.b16 %v9637
    %v10088 = vunpack.c.l.b16 %v9638
    %v10089 = vunpack.c.h.b16 %v9638
    %v10090 = vunpack.c.l.b16 %v9639
    %v10091 = vunpack.c.h.b16 %v9639
    %v10092 = vunpack.c.l.b16 %v9640
    %v10093 = vunpack.c.h.b16 %v9640
    %v10094 = vunpack.c.l.b16 %v9641
    %v10095 = vunpack.c.h.b16 %v9641
    %v10096 = vunpack.c.l.b16 %v9642
    %v10097 = vunpack.c.h.b16 %v9642
    %v10098 = vunpack.c.l.b16 %v9643
    %v10099 = vunpack.c.h.b16 %v9643
    %v10100 = vunpack.c.l.b16 %v9644
    %v10101 = vunpack.c.h.b16 %v9644
    %v10102 = vunpack.c.l.b16 %v9645
    %v10103 = vunpack.c.h.b16 %v9645
    %v10104 = vunpack.c.l.b16 %v9646
    %v10105 = vunpack.c.h.b16 %v9646
    %v10106 = vunpack.c.l.b16 %v9647
    %v10107 = vunpack.c.h.b16 %v9647
    %v10108 = vunpack.c.l.b16 %v9648
    %v10109 = vunpack.c.h.b16 %v9648
    %v10110 = vunpack.c.l.b16 %v9649
    %v10111 = vunpack.c.h.b16 %v9649
    %v10112 = vunpack.c.l.b16 %v9650
    %v10113 = vunpack.c.h.b16 %v9650
    %v10114 = vunpack.c.l.b16 %v9651
    %v10115 = vunpack.c.h.b16 %v9651
    %v10116 = vunpack.c.l.b16 %v9652
    %v10117 = vunpack.c.h.b16 %v9652
    %v10118 = vunpack.c.l.b16 %v9653
    %v10119 = vunpack.c.h.b16 %v9653
    %v10120 = vunpack.c.l.b16 %v9654
    %v10121 = vunpack.c.h.b16 %v9654
    %v10122 = vunpack.c.l.b16 %v9655
    %v10123 = vunpack.c.h.b16 %v9655
    %v10124 = vunpack.c.l.b16 %v9656
    %v10125 = vunpack.c.h.b16 %v9656
    %v10126 = vunpack.c.l.b16 %v9657
    %v10127 = vunpack.c.h.b16 %v9657
    %v10128 = vunpack.c.l.b16 %v9658
    %v10129 = vunpack.c.h.b16 %v9658
    %v10130 = vunpack.c.l.b16 %v9659
    %v10131 = vunpack.c.h.b16 %v9659
    %v10132 = vunpack.c.l.b16 %v9660
    %v10133 = vunpack.c.h.b16 %v9660
    %v10134 = vunpack.c.l.b16 %v9661
    %v10135 = vunpack.c.h.b16 %v9661
    %v10136 = vunpack.c.l.b16 %v9662
    %v10137 = vunpack.c.h.b16 %v9662
    %v10138 = vunpack.c.l.b16 %v9663
    %v10139 = vunpack.c.h.b16 %v9663
    %v10140 = vunpack.c.l.b16 %v9664
    %v10141 = vunpack.c.h.b16 %v9664
    %v10142 = vunpack.c.l.b16 %v9665
    %v10143 = vunpack.c.h.b16 %v9665
    %v10144 = vunpack.c.l.b16 %v9666
    %v10145 = vunpack.c.h.b16 %v9666
    %v10146 = vunpack.c.l.b16 %v9667
    %v10147 = vunpack.c.h.b16 %v9667
    %v10148 = vunpack.c.l.b16 %v9668
    %v10149 = vunpack.c.h.b16 %v9668
    %v10150 = vunpack.c.l.b16 %v9669
    %v10151 = vunpack.c.h.b16 %v9669
    %v10152 = vunpack.c.l.b16 %v9670
    %v10153 = vunpack.c.h.b16 %v9670
    %v10154 = vunpack.c.l.b16 %v9671
    %v10155 = vunpack.c.h.b16 %v9671
    %v10156 = vunpack.c.l.b16 %v9672
    %v10157 = vunpack.c.h.b16 %v9672
    %v10158 = vunpack.c.l.b16 %v9673
    %v10159 = vunpack.c.h.b16 %v9673
    %v10160 = vunpack.c.l.b16 %v9674
    %v10161 = vunpack.c.h.b16 %v9674
    %v10162 = vunpack.c.l.b16 %v9675
    %v10163 = vunpack.c.h.b16 %v9675
    %v10164 = vunpack.c.l.b16 %v9676
    %v10165 = vunpack.c.h.b16 %v9676
    %v10166 = vunpack.c.l.b16 %v9677
    %v10167 = vunpack.c.h.b16 %v9677
    %v10168 = vunpack.c.l.b16 %v9678
    %v10169 = vunpack.c.h.b16 %v9678
    %v10170 = vunpack.c.l.b16 %v9679
    %v10171 = vunpack.c.h.b16 %v9679
    %v10172 = vunpack.c.l.b16 %v9680
    %v10173 = vunpack.c.h.b16 %v9680
    %v10174 = vunpack.c.l.b16 %v9681
    %v10175 = vunpack.c.h.b16 %v9681
    %v10176 = vunpack.c.l.b16 %v9682
    %v10177 = vunpack.c.h.b16 %v9682
    %v10178 = vunpack.c.l.b16 %v9683
    %v10179 = vunpack.c.h.b16 %v9683
    %v10180 = vunpack.c.l.b16 %v9684
    %v10181 = vunpack.c.h.b16 %v9684
    %v10182 = vunpack.c.l.b16 %v9685
    %v10183 = vunpack.c.h.b16 %v9685
    %v10184 = vunpack.c.l.b16 %v9686
    %v10185 = vunpack.c.h.b16 %v9686
    %v10186 = vunpack.c.l.b16 %v9687
    %v10187 = vunpack.c.h.b16 %v9687
    %v10188 = vunpack.c.l.b16 %v9688
    %v10189 = vunpack.c.h.b16 %v9688
    %v10190 = vunpack.c.l.b16 %v9689
    %v10191 = vunpack.c.h.b16 %v9689
    %v10192 = vunpack.c.l.b16 %v9690
    %v10193 = vunpack.c.h.b16 %v9690
    %v10194 = vunpack.c.l.b16 %v9691
    %v10195 = vunpack.c.h.b16 %v9691
    %v10196 = vunpack.c.l.b16 %v9692
    %v10197 = vunpack.c.h.b16 %v9692
    %v10198 = vunpack.c.l.b16 %v9693
    %v10199 = vunpack.c.h.b16 %v9693
    %v10200 = vunpack.c.l.b16 %v9694
    %v10201 = vunpack.c.h.b16 %v9694
    %v10202 = vunpack.c.l.b16 %v9695
    %v10203 = vunpack.c.h.b16 %v9695
    %v10204 = vunpack.c.l.b16 %v9696
    %v10205 = vunpack.c.h.b16 %v9696
    %v10206 = vunpack.c.l.b16 %v9697
    %v10207 = vunpack.c.h.b16 %v9697
    %v10208 = vunpack.c.l.b16 %v9698
    %v10209 = vunpack.c.h.b16 %v9698
    %v10210 = vunpack.c.l.b16 %v9699
    %v10211 = vunpack.c.h.b16 %v9699
    %v10212 = vunpack.c.l.b16 %v9700
    %v10213 = vunpack.c.h.b16 %v9700
    %v10214 = vunpack.c.l.b16 %v9701
    %v10215 = vunpack.c.h.b16 %v9701
    %v10216 = vunpack.c.l.b16 %v9702
    %v10217 = vunpack.c.h.b16 %v9702
    %v10218 = vunpack.c.l.b16 %v9703
    %v10219 = vunpack.c.h.b16 %v9703
    %v10220 = vunpack.c.l.b16 %v9704
    %v10221 = vunpack.c.h.b16 %v9704
    %v10222 = vunpack.c.l.b16 %v9705
    %v10223 = vunpack.c.h.b16 %v9705
    %v10224 = vunpack.c.l.b16 %v9706
    %v10225 = vunpack.c.h.b16 %v9706
    %v10226 = vunpack.c.l.b16 %v9707
    %v10227 = vunpack.c.h.b16 %v9707
    %v10228 = vunpack.c.l.b16 %v9708
    %v10229 = vunpack.c.h.b16 %v9708
    %v10230 = vunpack.c.l.b16 %v9709
    %v10231 = vunpack.c.h.b16 %v9709
    %v10232 = vunpack.c.l.b16 %v9710
    %v10233 = vunpack.c.h.b16 %v9710
    %v10234 = vunpack.c.l.b16 %v9711
    %v10235 = vunpack.c.h.b16 %v9711
    %v10236 = vunpack.c.l.b16 %v9712
    %v10237 = vunpack.c.h.b16 %v9712
    %v10238 = vunpack.c.l.b16 %v9713
    %v10239 = vunpack.c.h.b16 %v9713
    %v10240 = vunpack.c.l.b16 %v9714
    %v10241 = vunpack.c.h.b16 %v9714
    %v10242 = vunpack.c.l.b16 %v9715
    %v10243 = vunpack.c.h.b16 %v9715
    %v10244 = vunpack.c.l.b16 %v9716
    %v10245 = vunpack.c.h.b16 %v9716
    %v10246 = vunpack.c.l.b16 %v9717
    %v10247 = vunpack.c.h.b16 %v9717
    %v10248 = vunpack.c.l.b16 %v9718
    %v10249 = vunpack.c.h.b16 %v9718
    %v10250 = vunpack.c.l.b16 %v9719
    %v10251 = vunpack.c.h.b16 %v9719
    %v10252 = vunpack.c.l.b16 %v9720
    %v10253 = vunpack.c.h.b16 %v9720
    %v10254 = vunpack.c.l.b16 %v9721
    %v10255 = vunpack.c.h.b16 %v9721
    %v10256 = vunpack.c.l.b16 %v9722
    %v10257 = vunpack.c.h.b16 %v9722
    %v10258 = vunpack.c.l.b16 %v9723
    %v10259 = vunpack.c.h.b16 %v9723
    %v10260 = vunpack.c.l.b16 %v9724
    %v10261 = vunpack.c.h.b16 %v9724
    %v10262 = vunpack.c.l.b16 %v9725
    %v10263 = vunpack.c.h.b16 %v9725
    %v10264 = vunpack.c.l.b16 %v9726
    %v10265 = vunpack.c.h.b16 %v9726
    %v10266 = vunpack.c.l.b16 %v9727
    %v10267 = vunpack.c.h.b16 %v9727
    %v10268 = vunpack.c.l.b16 %v9728
    %v10269 = vunpack.c.h.b16 %v9728
    %v10270 = vunpack.c.l.b16 %v9729
    %v10271 = vunpack.c.h.b16 %v9729
    %v10272 = vunpack.c.l.b16 %v9730
    %v10273 = vunpack.c.h.b16 %v9730
    %v10274 = vunpack.c.l.b16 %v9731
    %v10275 = vunpack.c.h.b16 %v9731
    %v10276 = vunpack.c.l.b16 %v9732
    %v10277 = vunpack.c.h.b16 %v9732
    %v10278 = vunpack.c.l.b16 %v9733
    %v10279 = vunpack.c.h.b16 %v9733
    %v10280 = vunpack.c.l.b16 %v9734
    %v10281 = vunpack.c.h.b16 %v9734
    %v10282 = vunpack.c.l.b16 %v9735
    %v10283 = vunpack.c.h.b16 %v9735
    %v10284 = vpack.c.b16 %v9998, %v9996
    %v10285 = vpack.c.b16 %v9999, %v9997
    %v10286 = vpack.c.b16 %v10002, %v10000
    %v10287 = vpack.c.b16 %v10003, %v10001
    %v10288 = vpack.c.b16 %v10006, %v10004
    %v10289 = vpack.c.b16 %v10007, %v10005
    %v10290 = vpack.c.b16 %v10010, %v10008
    %v10291 = vpack.c.b16 %v10011, %v10009
    %v10292 = vpack.c.b16 %v10014, %v10012
    %v10293 = vpack.c.b16 %v10015, %v10013
    %v10294 = vpack.c.b16 %v10018, %v10016
    %v10295 = vpack.c.b16 %v10019, %v10017
    %v10296 = vpack.c.b16 %v10022, %v10020
    %v10297 = vpack.c.b16 %v10023, %v10021
    %v10298 = vpack.c.b16 %v10026, %v10024
    %v10299 = vpack.c.b16 %v10027, %v10025
    %v10300 = vpack.c.b16 %v10030, %v10028
    %v10301 = vpack.c.b16 %v10031, %v10029
    %v10302 = vpack.c.b16 %v10034, %v10032
    %v10303 = vpack.c.b16 %v10035, %v10033
    %v10304 = vpack.c.b16 %v10038, %v10036
    %v10305 = vpack.c.b16 %v10039, %v10037
    %v10306 = vpack.c.b16 %v10042, %v10040
    %v10307 = vpack.c.b16 %v10043, %v10041
    %v10308 = vpack.c.b16 %v10046, %v10044
    %v10309 = vpack.c.b16 %v10047, %v10045
    %v10310 = vpack.c.b16 %v10050, %v10048
    %v10311 = vpack.c.b16 %v10051, %v10049
    %v10312 = vpack.c.b16 %v10054, %v10052
    %v10313 = vpack.c.b16 %v10055, %v10053
    %v10314 = vpack.c.b16 %v10058, %v10056
    %v10315 = vpack.c.b16 %v10059, %v10057
    %v10316 = vpack.c.b16 %v10062, %v10060
    %v10317 = vpack.c.b16 %v10063, %v10061
    %v10318 = vpack.c.b16 %v10066, %v10064
    %v10319 = vpack.c.b16 %v10067, %v10065
    %v10320 = vpack.c.b16 %v10070, %v10068
    %v10321 = vpack.c.b16 %v10071, %v10069
    %v10322 = vpack.c.b16 %v10074, %v10072
    %v10323 = vpack.c.b16 %v10075, %v10073
    %v10324 = vpack.c.b16 %v10078, %v10076
    %v10325 = vpack.c.b16 %v10079, %v10077
    %v10326 = vpack.c.b16 %v10082, %v10080
    %v10327 = vpack.c.b16 %v10083, %v10081
    %v10328 = vpack.c.b16 %v10086, %v10084
    %v10329 = vpack.c.b16 %v10087, %v10085
    %v10330 = vpack.c.b16 %v10090, %v10088
    %v10331 = vpack.c.b16 %v10091, %v10089
    %v10332 = vpack.c.b16 %v10094, %v10092
    %v10333 = vpack.c.b16 %v10095, %v10093
    %v10334 = vpack.c.b16 %v10098, %v10096
    %v10335 = vpack.c.b16 %v10099, %v10097
    %v10336 = vpack.c.b16 %v10102, %v10100
    %v10337 = vpack.c.b16 %v10103, %v10101
    %v10338 = vpack.c.b16 %v10106, %v10104
    %v10339 = vpack.c.b16 %v10107, %v10105
    %v10340 = vpack.c.b16 %v10110, %v10108
    %v10341 = vpack.c.b16 %v10111, %v10109
    %v10342 = vpack.c.b16 %v10114, %v10112
    %v10343 = vpack.c.b16 %v10115, %v10113
    %v10344 = vpack.c.b16 %v10118, %v10116
    %v10345 = vpack.c.b16 %v10119, %v10117
    %v10346 = vpack.c.b16 %v10122, %v10120
    %v10347 = vpack.c.b16 %v10123, %v10121
    %v10348 = vpack.c.b16 %v10126, %v10124
    %v10349 = vpack.c.b16 %v10127, %v10125
    %v10350 = vpack.c.b16 %v10130, %v10128
    %v10351 = vpack.c.b16 %v10131, %v10129
    %v10352 = vpack.c.b16 %v10134, %v10132
    %v10353 = vpack.c.b16 %v10135, %v10133
    %v10354 = vpack.c.b16 %v10138, %v10136
    %v10355 = vpack.c.b16 %v10139, %v10137
    %v10356 = vpack.c.b16 %v10142, %v10140
    %v10357 = vpack.c.b16 %v10143, %v10141
    %v10358 = vpack.c.b16 %v10146, %v10144
    %v10359 = vpack.c.b16 %v10147, %v10145
    %v10360 = vpack.c.b16 %v10150, %v10148
    %v10361 = vpack.c.b16 %v10151, %v10149
    %v10362 = vpack.c.b16 %v10154, %v10152
    %v10363 = vpack.c.b16 %v10155, %v10153
    %v10364 = vpack.c.b16 %v10158, %v10156
    %v10365 = vpack.c.b16 %v10159, %v10157
    %v10366 = vpack.c.b16 %v10162, %v10160
    %v10367 = vpack.c.b16 %v10163, %v10161
    %v10368 = vpack.c.b16 %v10166, %v10164
    %v10369 = vpack.c.b16 %v10167, %v10165
    %v10370 = vpack.c.b16 %v10170, %v10168
    %v10371 = vpack.c.b16 %v10171, %v10169
    %v10372 = vpack.c.b16 %v10174, %v10172
    %v10373 = vpack.c.b16 %v10175, %v10173
    %v10374 = vpack.c.b16 %v10178, %v10176
    %v10375 = vpack.c.b16 %v10179, %v10177
    %v10376 = vpack.c.b16 %v10182, %v10180
    %v10377 = vpack.c.b16 %v10183, %v10181
    %v10378 = vpack.c.b16 %v10186, %v10184
    %v10379 = vpack.c.b16 %v10187, %v10185
    %v10380 = vpack.c.b16 %v10190, %v10188
    %v10381 = vpack.c.b16 %v10191, %v10189
    %v10382 = vpack.c.b16 %v10194, %v10192
    %v10383 = vpack.c.b16 %v10195, %v10193
    %v10384 = vpack.c.b16 %v10198, %v10196
    %v10385 = vpack.c.b16 %v10199, %v10197
    %v10386 = vpack.c.b16 %v10202, %v10200
    %v10387 = vpack.c.b16 %v10203, %v10201
    %v10388 = vpack.c.b16 %v10206, %v10204
    %v10389 = vpack.c.b16 %v10207, %v10205
    %v10390 = vpack.c.b16 %v10210, %v10208
    %v10391 = vpack.c.b16 %v10211, %v10209
    %v10392 = vpack.c.b16 %v10214, %v10212
    %v10393 = vpack.c.b16 %v10215, %v10213
    %v10394 = vpack.c.b16 %v10218, %v10216
    %v10395 = vpack.c.b16 %v10219, %v10217
    %v10396 = vpack.c.b16 %v10222, %v10220
    %v10397 = vpack.c.b16 %v10223, %v10221
    %v10398 = vpack.c.b16 %v10226, %v10224
    %v10399 = vpack.c.b16 %v10227, %v10225
    %v10400 = vpack.c.b16 %v10230, %v10228
    %v10401 = vpack.c.b16 %v10231, %v10229
    %v10402 = vpack.c.b16 %v10234, %v10232
    %v10403 = vpack.c.b16 %v10235, %v10233
    %v10404 = vpack.c.b16 %v10238, %v10236
    %v10405 = vpack.c.b16 %v10239, %v10237
    %v10406 = vpack.c.b16 %v10242, %v10240
    %v10407 = vpack.c.b16 %v10243, %v10241
    %v10408 = vpack.c.b16 %v10246, %v10244
    %v10409 = vpack.c.b16 %v10247, %v10245
    %v10410 = vpack.c.b16 %v10250, %v10248
    %v10411 = vpack.c.b16 %v10251, %v10249
    %v10412 = vpack.c.b16 %v10254, %v10252
    %v10413 = vpack.c.b16 %v10255, %v10253
    %v10414 = vpack.c.b16 %v10258, %v10256
    %v10415 = vpack.c.b16 %v10259, %v10257
    %v10416 = vpack.c.b16 %v10262, %v10260
    %v10417 = vpack.c.b16 %v10263, %v10261
    %v10418 = vpack.c.b16 %v10266, %v10264
    %v10419 = vpack.c.b16 %v10267, %v10265
    %v10420 = vpack.c.b16 %v10270, %v10268
    %v10421 = vpack.c.b16 %v10271, %v10269
    %v10422 = vpack.c.b16 %v10274, %v10272
    %v10423 = vpack.c.b16 %v10275, %v10273
    %v10424 = vpack.c.b16 %v10278, %v10276
    %v10425 = vpack.c.b16 %v10279, %v10277
    %v10426 = vpack.c.b16 %v10282, %v10280
    %v10427 = vpack.c.b16 %v10283, %v10281
    %10572 = vmatprep.subr.bf16.mxu0 %v10299
    %10573 = vmatpush1.bf16.msra.mxu0 %v10298
    %10574 = vmatprep.subr.bf16.mxu0 %v10297
    %10575 = vmatpush1.bf16.msra.mxu0 %v10296
    %10576 = vmatprep.subr.bf16.mxu0 %v10295
    %10577 = vmatpush1.bf16.msra.mxu0 %v10294
    %10578 = vmatprep.subr.bf16.mxu0 %v10293
    %10579 = vmatpush1.bf16.msra.mxu0 %v10292
    %10580 = vmatprep.subr.bf16.mxu0 %v10291
    %10581 = vmatpush1.bf16.msra.mxu0 %v10290
    %10582 = vmatprep.subr.bf16.mxu0 %v10289
    %10583 = vmatpush1.bf16.msra.mxu0 %v10288
    %10584 = vmatprep.subr.bf16.mxu0 %v10287
    %10585 = vmatpush1.bf16.msra.mxu0 %v10286
    %10586 = vmatprep.subr.bf16.mxu0 %v10285
    %10587 = vmatpush1.bf16.msra.mxu0 %v10284
    %10588 = vmatprep.subr.bf16.mxu0 %v10315
    %10589 = vmatpush2.bf16.msra.mxu0 %v10314
    %10590 = vmatprep.subr.bf16.mxu0 %v10313
    %10591 = vmatpush2.bf16.msra.mxu0 %v10312
    %10592 = vmatprep.subr.bf16.mxu0 %v10311
    %10593 = vmatpush2.bf16.msra.mxu0 %v10310
    %10594 = vmatprep.subr.bf16.mxu0 %v10309
    %10595 = vmatpush2.bf16.msra.mxu0 %v10308
    %10596 = vmatprep.subr.bf16.mxu0 %v10307
    %10597 = vmatpush2.bf16.msra.mxu0 %v10306
    %10598 = vmatprep.subr.bf16.mxu0 %v10305
    %10599 = vmatpush2.bf16.msra.mxu0 %v10304
    %10600 = vmatprep.subr.bf16.mxu0 %v10303
    %10601 = vmatpush2.bf16.msra.mxu0 %v10302
    %10602 = vmatprep.subr.bf16.mxu0 %v10301
    %10603 = vmatpush2.bf16.msra.mxu0 %v10300
    %10604 = vmatprep.mubr.bf16.mxu0 %v9808
    %10605 = vmatmul.mubr.bf16.gmra.mxu0 %v9794
    %v10606 = vpop.f32.mrf.mxu0
    %v10607 = vadd.f32 %v9740, %v10606
    %v10608 = vpop.f32.mrf.mxu0
    %v10609 = vadd.f32 %v9744, %v10608
    %v10610 = vpop.f32.mrf.mxu0
    %v10611 = vpop.f32.mrf.mxu0
    %10612 = vdwg.mxu0
    %10613 = vmatprep.subr.bf16.mxu0 %v10331
    %10614 = vmatpush1.bf16.msra.mxu0 %v10330
    %10615 = vmatprep.subr.bf16.mxu0 %v10329
    %10616 = vmatpush1.bf16.msra.mxu0 %v10328
    %10617 = vmatprep.subr.bf16.mxu0 %v10327
    %10618 = vmatpush1.bf16.msra.mxu0 %v10326
    %10619 = vmatprep.subr.bf16.mxu0 %v10325
    %10620 = vmatpush1.bf16.msra.mxu0 %v10324
    %10621 = vmatprep.subr.bf16.mxu0 %v10323
    %10622 = vmatpush1.bf16.msra.mxu0 %v10322
    %10623 = vmatprep.subr.bf16.mxu0 %v10321
    %10624 = vmatpush1.bf16.msra.mxu0 %v10320
    %10625 = vmatprep.subr.bf16.mxu0 %v10319
    %10626 = vmatpush1.bf16.msra.mxu0 %v10318
    %10627 = vmatprep.subr.bf16.mxu0 %v10317
    %10628 = vmatpush1.bf16.msra.mxu0 %v10316
    %10629 = vmatprep.subr.bf16.mxu0 %v10347
    %10630 = vmatpush2.bf16.msra.mxu0 %v10346
    %10631 = vmatprep.subr.bf16.mxu0 %v10345
    %10632 = vmatpush2.bf16.msra.mxu0 %v10344
    %10633 = vmatprep.subr.bf16.mxu0 %v10343
    %10634 = vmatpush2.bf16.msra.mxu0 %v10342
    %10635 = vmatprep.subr.bf16.mxu0 %v10341
    %10636 = vmatpush2.bf16.msra.mxu0 %v10340
    %10637 = vmatprep.subr.bf16.mxu0 %v10339
    %10638 = vmatpush2.bf16.msra.mxu0 %v10338
    %10639 = vmatprep.subr.bf16.mxu0 %v10337
    %10640 = vmatpush2.bf16.msra.mxu0 %v10336
    %10641 = vmatprep.subr.bf16.mxu0 %v10335
    %10642 = vmatpush2.bf16.msra.mxu0 %v10334
    %10643 = vmatprep.subr.bf16.mxu0 %v10333
    %10644 = vmatpush2.bf16.msra.mxu0 %v10332
    %10645 = vmatprep.mubr.bf16.mxu0 %v9818
    %10646 = vmatmul.mubr.bf16.gmra.mxu0 %v9816
    %v10647 = vpop.f32.mrf.mxu0
    %v10648 = vadd.f32 %v10607, %v10647
    %v10649 = vpop.f32.mrf.mxu0
    %v10650 = vadd.f32 %v10609, %v10649
    %v10651 = vpop.f32.mrf.mxu0
    %v10652 = vpop.f32.mrf.mxu0
    %10653 = vdwg.mxu0
    %10654 = vmatprep.subr.bf16.mxu0 %v10363
    %10655 = vmatpush1.bf16.msra.mxu0 %v10362
    %10656 = vmatprep.subr.bf16.mxu0 %v10361
    %10657 = vmatpush1.bf16.msra.mxu0 %v10360
    %10658 = vmatprep.subr.bf16.mxu0 %v10359
    %10659 = vmatpush1.bf16.msra.mxu0 %v10358
    %10660 = vmatprep.subr.bf16.mxu0 %v10357
    %10661 = vmatpush1.bf16.msra.mxu0 %v10356
    %10662 = vmatprep.subr.bf16.mxu0 %v10355
    %10663 = vmatpush1.bf16.msra.mxu0 %v10354
    %10664 = vmatprep.subr.bf16.mxu0 %v10353
    %10665 = vmatpush1.bf16.msra.mxu0 %v10352
    %10666 = vmatprep.subr.bf16.mxu0 %v10351
    %10667 = vmatpush1.bf16.msra.mxu0 %v10350
    %10668 = vmatprep.subr.bf16.mxu0 %v10349
    %10669 = vmatpush1.bf16.msra.mxu0 %v10348
    %10670 = vmatprep.subr.bf16.mxu0 %v10379
    %10671 = vmatpush2.bf16.msra.mxu0 %v10378
    %10672 = vmatprep.subr.bf16.mxu0 %v10377
    %10673 = vmatpush2.bf16.msra.mxu0 %v10376
    %10674 = vmatprep.subr.bf16.mxu0 %v10375
    %10675 = vmatpush2.bf16.msra.mxu0 %v10374
    %10676 = vmatprep.subr.bf16.mxu0 %v10373
    %10677 = vmatpush2.bf16.msra.mxu0 %v10372
    %10678 = vmatprep.subr.bf16.mxu0 %v10371
    %10679 = vmatpush2.bf16.msra.mxu0 %v10370
    %10680 = vmatprep.subr.bf16.mxu0 %v10369
    %10681 = vmatpush2.bf16.msra.mxu0 %v10368
    %10682 = vmatprep.subr.bf16.mxu0 %v10367
    %10683 = vmatpush2.bf16.msra.mxu0 %v10366
    %10684 = vmatprep.subr.bf16.mxu0 %v10365
    %10685 = vmatpush2.bf16.msra.mxu0 %v10364
    %10686 = vmatprep.mubr.bf16.mxu0 %v9815
    %10687 = vmatmul.mubr.bf16.gmra.mxu0 %v9801
    %v10688 = vpop.f32.mrf.mxu0
    %v10689 = vadd.f32 %v10648, %v10688
    %v10690 = vpop.f32.mrf.mxu0
    %v10691 = vadd.f32 %v10650, %v10690
    %v10692 = vpop.f32.mrf.mxu0
    %v10693 = vpop.f32.mrf.mxu0
    %10694 = vdwg.mxu0
    %10695 = vmatprep.subr.bf16.mxu0 %v10395
    %10696 = vmatpush1.bf16.msra.mxu0 %v10394
    %10697 = vmatprep.subr.bf16.mxu0 %v10393
    %10698 = vmatpush1.bf16.msra.mxu0 %v10392
    %10699 = vmatprep.subr.bf16.mxu0 %v10391
    %10700 = vmatpush1.bf16.msra.mxu0 %v10390
    %10701 = vmatprep.subr.bf16.mxu0 %v10389
    %10702 = vmatpush1.bf16.msra.mxu0 %v10388
    %10703 = vmatprep.subr.bf16.mxu0 %v10387
    %10704 = vmatpush1.bf16.msra.mxu0 %v10386
    %10705 = vmatprep.subr.bf16.mxu0 %v10385
    %10706 = vmatpush1.bf16.msra.mxu0 %v10384
    %10707 = vmatprep.subr.bf16.mxu0 %v10383
    %10708 = vmatpush1.bf16.msra.mxu0 %v10382
    %10709 = vmatprep.subr.bf16.mxu0 %v10381
    %10710 = vmatpush1.bf16.msra.mxu0 %v10380
    %10711 = vmatprep.subr.bf16.mxu0 %v10411
    %10712 = vmatpush2.bf16.msra.mxu0 %v10410
    %10713 = vmatprep.subr.bf16.mxu0 %v10409
    %10714 = vmatpush2.bf16.msra.mxu0 %v10408
    %10715 = vmatprep.subr.bf16.mxu0 %v10407
    %10716 = vmatpush2.bf16.msra.mxu0 %v10406
    %10717 = vmatprep.subr.bf16.mxu0 %v10405
    %10718 = vmatpush2.bf16.msra.mxu0 %v10404
    %10719 = vmatprep.subr.bf16.mxu0 %v10403
    %10720 = vmatpush2.bf16.msra.mxu0 %v10402
    %10721 = vmatprep.subr.bf16.mxu0 %v10401
    %10722 = vmatpush2.bf16.msra.mxu0 %v10400
    %10723 = vmatprep.subr.bf16.mxu0 %v10399
    %10724 = vmatpush2.bf16.msra.mxu0 %v10398
    %10725 = vmatprep.subr.bf16.mxu0 %v10397
    %10726 = vmatpush2.bf16.msra.mxu0 %v10396
    %10727 = vmatprep.mubr.bf16.mxu0 %v9819
    %10728 = vmatmul.mubr.bf16.gmra.mxu0 %v9817
    %v10729 = vpop.f32.mrf.mxu0
    %v10730 = vadd.f32 %v10689, %v10729
    %v10731 = vpop.f32.mrf.mxu0
    %v10732 = vadd.f32 %v10691, %v10731
    %v10733 = vpop.f32.mrf.mxu0
    %v10734 = vpop.f32.mrf.mxu0
    %10735 = vdwg.mxu0
    %10736 = vmatprep.subr.bf16.mxu0 %v10427
    %10737 = vmatpush1.bf16.msra.mxu0 %v10426
    %10738 = vmatprep.subr.bf16.mxu0 %v10425
    %10739 = vmatpush1.bf16.msra.mxu0 %v10424
    %10740 = vmatprep.subr.bf16.mxu0 %v10423
    %10741 = vmatpush1.bf16.msra.mxu0 %v10422
    %10742 = vmatprep.subr.bf16.mxu0 %v10421
    %10743 = vmatpush1.bf16.msra.mxu0 %v10420
    %10744 = vmatprep.subr.bf16.mxu0 %v10419
    %10745 = vmatpush1.bf16.msra.mxu0 %v10418
    %10746 = vmatprep.subr.bf16.mxu0 %v10417
    %10747 = vmatpush1.bf16.msra.mxu0 %v10416
    %10748 = vmatprep.subr.bf16.mxu0 %v10415
    %10749 = vmatpush1.bf16.msra.mxu0 %v10414
    %10750 = vmatprep.subr.bf16.mxu0 %v10413
    %10751 = vmatpush1.bf16.msra.mxu0 %v10412
    %10752 = vmatprep.subr.bf16.mxu0 0
    %10753 = vmatpush2.bf16.msra.mxu0 0
    %10754 = vmatprep.subr.bf16.mxu0 0
    %10755 = vmatpush2.bf16.msra.mxu0 0
    %10756 = vmatprep.subr.bf16.mxu0 0
    %10757 = vmatpush2.bf16.msra.mxu0 0
    %10758 = vmatprep.subr.bf16.mxu0 0
    %10759 = vmatpush2.bf16.msra.mxu0 0
    %10760 = vmatprep.subr.bf16.mxu0 0
    %10761 = vmatpush2.bf16.msra.mxu0 0
    %10762 = vmatprep.subr.bf16.mxu0 0
    %10763 = vmatpush2.bf16.msra.mxu0 0
    %10764 = vmatprep.subr.bf16.mxu0 0
    %10765 = vmatpush2.bf16.msra.mxu0 0
    %10766 = vmatprep.subr.bf16.mxu0 0
    %10767 = vmatpush2.bf16.msra.mxu0 0
    %10768 = vmatprep.mubr.bf16.mxu0 0
    %10769 = vmatmul.mubr.bf16.gmra.mxu0 %v9842
    %v10770 = vpop.f32.mrf.mxu0
    %v10771 = vadd.f32 %v10730, %v10770
    %v10772 = vpop.f32.mrf.mxu0
    %v10773 = vadd.f32 %v10732, %v10772
    %v10774 = vpop.f32.mrf.mxu0
    %v10775 = vpop.f32.mrf.mxu0
    %10776 = vdwg.mxu0
    %v10777 = vmax.f32 %v10771, 0.0
    %v10778 = vmax.f32 %v10773, 0.0
    %v10781 = vcombine.low %v10777, %v10778
    %v10782 = vcombine.high %v10777, %v10778
    %v10784 = vunpack.c.l.s4 1966171168
    %v10785 = vunpack.c.0.s8 %v10784
    %v10786 = vlaneseq
    %v10787 = vshrl.u32 %v10786, 7
    %v10788 = vsub.s32 %v10785, %v10787
    %v10789 = vrot.slane %v10781, %v10788
    %v10791 = vunpack.c.l.s4 1966171168
    %v10792 = vunpack.c.0.s8 %v10791
    %v10793 = vlaneseq
    %v10794 = vshrl.u32 %v10793, 7
    %v10795 = vsub.s32 %v10792, %v10794
    %v10796 = vrot.slane %v10782, %v10795
    %v10797 = vcombine.high %v10789, %v10789
    %v10799 = vunpack.c.l.s4 1966171168
    %v10800 = vunpack.c.0.s8 %v10799
    %v10801 = vlaneseq
    %v10802 = vshrl.u32 %v10801, 7
    %v10803 = vsub.s32 %v10800, %v10802
    %v10804 = vrot.slane %v10789, %v10803
    %v10806 = vunpack.c.l.s4 1966171168
    %v10807 = vunpack.c.0.s8 %v10806
    %v10808 = vlaneseq
    %v10809 = vshrl.u32 %v10808, 7
    %v10810 = vsub.s32 %v10807, %v10809
    %v10811 = vrot.slane %v10796, %v10810
    %v10813 = vunpack.c.l.s4 1966171168
    %v10814 = vunpack.c.0.s8 %v10813
    %v10815 = vlaneseq
    %v10816 = vshrl.u32 %v10815, 7
    %v10817 = vsub.s32 %v10814, %v10816
    %v10818 = vrot.slane %v10797, %v10817
    %v10819 = vcombine.high %v10818, %v10818
    %v10824 = vmax.f32 %v10804, %v10818
    %v10825 = vmax.f32 %v10819, %v10811
    %v10828 = vrot.slane %v10824, 1
    %v10829 = vrot.slane %v10825, 1
    %v10832 = vmax.f32 %v10824, %v10828
    %v10833 = vmax.f32 %v10825, %v10829
    %v10834 = vpack.c.bf16 %v10832, %v10832
    %v10835 = vpack.c.bf16 %v10833, %v10833
    %v10836 = vld [vmem:[#allocation13] sm:$0xff]
    %v10837 = vld [vmem:[#allocation13 + $0x8] sm:$0xff]
    %v10838 = vld [vmem:[#allocation13 + $0x10] sm:$0xf]
    %v10839 = vld [vmem:[#allocation13 + $0x14] sm:$0xff]
    %v10840 = vld [vmem:[#allocation13 + $0x1c] sm:$0xff]
    %v10841 = vld [vmem:[#allocation13 + $0x24] sm:$0xf]
    %v10842 = vld [vmem:[#allocation13 + $0x28] sm:$0xff]
    %v10843 = vld [vmem:[#allocation13 + $0x30] sm:$0xff]
    %v10844 = vld [vmem:[#allocation13 + $0x38] sm:$0xf]
    %v10845 = vld [vmem:[#allocation13 + $0x3c] sm:$0xff]
    %v10846 = vld [vmem:[#allocation13 + $0x44] sm:$0xff]
    %v10847 = vld [vmem:[#allocation13 + $0x4c] sm:$0xf]
    %v10848 = vld [vmem:[#allocation13 + $0x50] sm:$0xff]
    %v10849 = vld [vmem:[#allocation13 + $0x58] sm:$0xff]
    %v10850 = vld [vmem:[#allocation13 + $0x60] sm:$0xf]
    %v10851 = vld [vmem:[#allocation13 + $0x64] sm:$0xff]
    %v10852 = vld [vmem:[#allocation13 + $0x6c] sm:$0xff]
    %v10853 = vld [vmem:[#allocation13 + $0x74] sm:$0xf]
    %v10854 = vld [vmem:[#allocation13 + $0x78] sm:$0xff]
    %v10855 = vld [vmem:[#allocation13 + $0x80] sm:$0xff]
    %v10856 = vld [vmem:[#allocation13 + $0x88] sm:$0xf]
    %v10857 = vld [vmem:[#allocation13 + $0x8c] sm:$0xff]
    %v10858 = vld [vmem:[#allocation13 + $0x94] sm:$0xff]
    %v10859 = vld [vmem:[#allocation13 + $0x9c] sm:$0xf]
    %v10860 = vld [vmem:[#allocation13 + $0xa0] sm:$0xff]
    %v10861 = vld [vmem:[#allocation13 + $0xa8] sm:$0xff]
    %v10862 = vld [vmem:[#allocation13 + $0xb0] sm:$0xf]
    %v10863 = vld [vmem:[#allocation13 + $0xb4] sm:$0xff]
    %v10864 = vld [vmem:[#allocation13 + $0xbc] sm:$0xff]
    %v10865 = vld [vmem:[#allocation13 + $0xc4] sm:$0xf]
    %v10866 = vld [vmem:[#allocation13 + $0xc8] sm:$0xff]
    %v10867 = vld [vmem:[#allocation13 + $0xd0] sm:$0xff]
    %v10868 = vld [vmem:[#allocation13 + $0xd8] sm:$0xf]
    %v10869 = vld [vmem:[#allocation13 + $0xdc] sm:$0xff]
    %v10870 = vld [vmem:[#allocation13 + $0xe4] sm:$0xff]
    %v10871 = vld [vmem:[#allocation13 + $0xec] sm:$0xf]
    %v10872 = vld [vmem:[#allocation13 + $0xf0] sm:$0xff]
    %v10873 = vld [vmem:[#allocation13 + $0xf8] sm:$0xff]
    %v10874 = vld [vmem:[#allocation13 + $0x100] sm:$0xf]
    %v10875 = vld [vmem:[#allocation13 + $0x104] sm:$0xff]
    %v10876 = vld [vmem:[#allocation13 + $0x10c] sm:$0xff]
    %v10877 = vld [vmem:[#allocation13 + $0x114] sm:$0xf]
    %v10878 = vld [vmem:[#allocation13 + $0x118] sm:$0xff]
    %v10879 = vld [vmem:[#allocation13 + $0x120] sm:$0xff]
    %v10880 = vld [vmem:[#allocation13 + $0x128] sm:$0xf]
    %v10881 = vld [vmem:[#allocation13 + $0x12c] sm:$0xff]
    %v10882 = vld [vmem:[#allocation13 + $0x134] sm:$0xff]
    %v10883 = vld [vmem:[#allocation13 + $0x13c] sm:$0xf]
    %v10884 = vld [vmem:[#allocation14] sm:$0x1f]
    %v10886 = vlaneseq
    %v10887 = vshrl.u32 %v10886, 7
    %v10888 = vsub.s32 0, %v10887
    %v10889 = vrot.slane %v10884, %v10888
    %v10890 = vlaneseq
    %v10891 = vshrl.u32 %v10890, 7
    %v10892 = vsub.s32 1, %v10891
    %v10893 = vrot.slane %v10884, %v10892
    %v10894 = vlaneseq
    %v10895 = vshrl.u32 %v10894, 7
    %v10896 = vsub.s32 2, %v10895
    %v10897 = vrot.slane %v10884, %v10896
    %v10898 = vlaneseq
    %v10899 = vshrl.u32 %v10898, 7
    %v10900 = vsub.s32 3, %v10899
    %v10901 = vrot.slane %v10884, %v10900
    %v10902 = vlaneseq
    %v10903 = vshrl.u32 %v10902, 7
    %v10904 = vsub.s32 4, %v10903
    %v10905 = vrot.slane %v10884, %v10904
    %v10913 = vunpack.c.l.b16 %v10834
    %v10914 = vunpack.c.l.b16 %v10835
    %v10915 = vrot.slane %v10914, 7
    %v10916 = vsel %vm2930, %v10915, %v10913
    %v10917 = vpack.c.b16 %v10916, %v10916
    %v10967 = vunpack.c.l.b16 %v10836
    %v10968 = vunpack.c.h.b16 %v10836
    %v10969 = vunpack.c.l.b16 %v10837
    %v10970 = vunpack.c.h.b16 %v10837
    %v10971 = vunpack.c.l.b16 %v10838
    %v10972 = vunpack.c.l.b16 %v10839
    %v10973 = vunpack.c.h.b16 %v10839
    %v10974 = vunpack.c.l.b16 %v10840
    %v10975 = vunpack.c.h.b16 %v10840
    %v10976 = vunpack.c.l.b16 %v10841
    %v10977 = vunpack.c.l.b16 %v10842
    %v10978 = vunpack.c.h.b16 %v10842
    %v10979 = vunpack.c.l.b16 %v10843
    %v10980 = vunpack.c.h.b16 %v10843
    %v10981 = vunpack.c.l.b16 %v10844
    %v10982 = vunpack.c.l.b16 %v10845
    %v10983 = vunpack.c.h.b16 %v10845
    %v10984 = vunpack.c.l.b16 %v10846
    %v10985 = vunpack.c.h.b16 %v10846
    %v10986 = vunpack.c.l.b16 %v10847
    %v10987 = vunpack.c.l.b16 %v10848
    %v10988 = vunpack.c.h.b16 %v10848
    %v10989 = vunpack.c.l.b16 %v10849
    %v10990 = vunpack.c.h.b16 %v10849
    %v10991 = vunpack.c.l.b16 %v10850
    %v10992 = vunpack.c.l.b16 %v10851
    %v10993 = vunpack.c.h.b16 %v10851
    %v10994 = vunpack.c.l.b16 %v10852
    %v10995 = vunpack.c.h.b16 %v10852
    %v10996 = vunpack.c.l.b16 %v10853
    %v10997 = vunpack.c.l.b16 %v10854
    %v10998 = vunpack.c.h.b16 %v10854
    %v10999 = vunpack.c.l.b16 %v10855
    %v11000 = vunpack.c.h.b16 %v10855
    %v11001 = vunpack.c.l.b16 %v10856
    %v11002 = vunpack.c.l.b16 %v10857
    %v11003 = vunpack.c.h.b16 %v10857
    %v11004 = vunpack.c.l.b16 %v10858
    %v11005 = vunpack.c.h.b16 %v10858
    %v11006 = vunpack.c.l.b16 %v10859
    %v11007 = vunpack.c.l.b16 %v10860
    %v11008 = vunpack.c.h.b16 %v10860
    %v11009 = vunpack.c.l.b16 %v10861
    %v11010 = vunpack.c.h.b16 %v10861
    %v11011 = vunpack.c.l.b16 %v10862
    %v11012 = vunpack.c.l.b16 %v10863
    %v11013 = vunpack.c.h.b16 %v10863
    %v11014 = vunpack.c.l.b16 %v10864
    %v11015 = vunpack.c.h.b16 %v10864
    %v11016 = vunpack.c.l.b16 %v10865
    %v11017 = vunpack.c.l.b16 %v10866
    %v11018 = vunpack.c.h.b16 %v10866
    %v11019 = vunpack.c.l.b16 %v10867
    %v11020 = vunpack.c.h.b16 %v10867
    %v11021 = vunpack.c.l.b16 %v10868
    %v11022 = vunpack.c.l.b16 %v10869
    %v11023 = vunpack.c.h.b16 %v10869
    %v11024 = vunpack.c.l.b16 %v10870
    %v11025 = vunpack.c.h.b16 %v10870
    %v11026 = vunpack.c.l.b16 %v10871
    %v11027 = vunpack.c.l.b16 %v10872
    %v11028 = vunpack.c.h.b16 %v10872
    %v11029 = vunpack.c.l.b16 %v10873
    %v11030 = vunpack.c.h.b16 %v10873
    %v11031 = vunpack.c.l.b16 %v10874
    %v11032 = vunpack.c.l.b16 %v10875
    %v11033 = vunpack.c.h.b16 %v10875
    %v11034 = vunpack.c.l.b16 %v10876
    %v11035 = vunpack.c.h.b16 %v10876
    %v11036 = vunpack.c.l.b16 %v10877
    %v11037 = vunpack.c.l.b16 %v10878
    %v11038 = vunpack.c.h.b16 %v10878
    %v11039 = vunpack.c.l.b16 %v10879
    %v11040 = vunpack.c.h.b16 %v10879
    %v11041 = vunpack.c.l.b16 %v10880
    %v11042 = vunpack.c.l.b16 %v10881
    %v11043 = vunpack.c.h.b16 %v10881
    %v11044 = vunpack.c.l.b16 %v10882
    %v11045 = vunpack.c.h.b16 %v10882
    %v11046 = vunpack.c.l.b16 %v10883
    %v11047 = vpack.c.b16 %v10972, %v10967
    %v11048 = vpack.c.b16 %v10973, %v10968
    %v11049 = vpack.c.b16 %v10974, %v10969
    %v11050 = vpack.c.b16 %v10975, %v10970
    %v11051 = vpack.c.b16 %v10976, %v10971
    %v11052 = vpack.c.b16 %v10982, %v10977
    %v11053 = vpack.c.b16 %v10983, %v10978
    %v11054 = vpack.c.b16 %v10984, %v10979
    %v11055 = vpack.c.b16 %v10985, %v10980
    %v11056 = vpack.c.b16 %v10986, %v10981
    %v11057 = vpack.c.b16 %v10992, %v10987
    %v11058 = vpack.c.b16 %v10993, %v10988
    %v11059 = vpack.c.b16 %v10994, %v10989
    %v11060 = vpack.c.b16 %v10995, %v10990
    %v11061 = vpack.c.b16 %v10996, %v10991
    %v11062 = vpack.c.b16 %v11002, %v10997
    %v11063 = vpack.c.b16 %v11003, %v10998
    %v11064 = vpack.c.b16 %v11004, %v10999
    %v11065 = vpack.c.b16 %v11005, %v11000
    %v11066 = vpack.c.b16 %v11006, %v11001
    %v11067 = vpack.c.b16 %v11012, %v11007
    %v11068 = vpack.c.b16 %v11013, %v11008
    %v11069 = vpack.c.b16 %v11014, %v11009
    %v11070 = vpack.c.b16 %v11015, %v11010
    %v11071 = vpack.c.b16 %v11016, %v11011
    %v11072 = vpack.c.b16 %v11022, %v11017
    %v11073 = vpack.c.b16 %v11023, %v11018
    %v11074 = vpack.c.b16 %v11024, %v11019
    %v11075 = vpack.c.b16 %v11025, %v11020
    %v11076 = vpack.c.b16 %v11026, %v11021
    %v11077 = vpack.c.b16 %v11032, %v11027
    %v11078 = vpack.c.b16 %v11033, %v11028
    %v11079 = vpack.c.b16 %v11034, %v11029
    %v11080 = vpack.c.b16 %v11035, %v11030
    %v11081 = vpack.c.b16 %v11036, %v11031
    %v11082 = vpack.c.b16 %v11042, %v11037
    %v11083 = vpack.c.b16 %v11043, %v11038
    %v11084 = vpack.c.b16 %v11044, %v11039
    %v11085 = vpack.c.b16 %v11045, %v11040
    %v11086 = vpack.c.b16 %v11046, %v11041
    %11127 = vmatprep.subr.bf16.mxu0 %v11083
    %11128 = vmatpush1.bf16.msra.mxu0 %v11082
    %11129 = vmatprep.subr.bf16.mxu0 %v11078
    %11130 = vmatpush1.bf16.msra.mxu0 %v11077
    %11131 = vmatprep.subr.bf16.mxu0 %v11073
    %11132 = vmatpush1.bf16.msra.mxu0 %v11072
    %11133 = vmatprep.subr.bf16.mxu0 %v11068
    %11134 = vmatpush1.bf16.msra.mxu0 %v11067
    %11135 = vmatprep.subr.bf16.mxu0 %v11063
    %11136 = vmatpush1.bf16.msra.mxu0 %v11062
    %11137 = vmatprep.subr.bf16.mxu0 %v11058
    %11138 = vmatpush1.bf16.msra.mxu0 %v11057
    %11139 = vmatprep.subr.bf16.mxu0 %v11053
    %11140 = vmatpush1.bf16.msra.mxu0 %v11052
    %11141 = vmatprep.subr.bf16.mxu0 %v11048
    %11142 = vmatpush1.bf16.msra.mxu0 %v11047
    %11143 = vmatprep.subr.bf16.mxu0 0
    %11144 = vmatpush2.bf16.msra.mxu0 0
    %11145 = vmatprep.subr.bf16.mxu0 0
    %11146 = vmatpush2.bf16.msra.mxu0 0
    %11147 = vmatprep.subr.bf16.mxu0 0
    %11148 = vmatpush2.bf16.msra.mxu0 0
    %11149 = vmatprep.subr.bf16.mxu0 0
    %11150 = vmatpush2.bf16.msra.mxu0 0
    %11151 = vmatprep.subr.bf16.mxu0 0
    %11152 = vmatpush2.bf16.msra.mxu0 0
    %11153 = vmatprep.subr.bf16.mxu0 0
    %11154 = vmatpush2.bf16.msra.mxu0 0
    %11155 = vmatprep.subr.bf16.mxu0 0
    %11156 = vmatpush2.bf16.msra.mxu0 0
    %11157 = vmatprep.subr.bf16.mxu0 0
    %11158 = vmatpush2.bf16.msra.mxu0 0
    %11159 = vmatprep.mubr.bf16.mxu0 0
    %11160 = vmatmul.mubr.bf16.gmra.mxu0 %v10917
    %v11161 = vpop.f32.mrf.mxu0
    %v11162 = vadd.f32 %v10889, %v11161
    %v11163 = vpop.f32.mrf.mxu0
    %v11164 = vadd.f32 %v10893, %v11163
    %v11165 = vpop.f32.mrf.mxu0
    %v11166 = vpop.f32.mrf.mxu0
    %11167 = vdwg.mxu0
    %11168 = vmatprep.subr.bf16.mxu0 %v11085
    %11169 = vmatpush1.bf16.msra.mxu0 %v11084
    %11170 = vmatprep.subr.bf16.mxu0 %v11080
    %11171 = vmatpush1.bf16.msra.mxu0 %v11079
    %11172 = vmatprep.subr.bf16.mxu0 %v11075
    %11173 = vmatpush1.bf16.msra.mxu0 %v11074
    %11174 = vmatprep.subr.bf16.mxu0 %v11070
    %11175 = vmatpush1.bf16.msra.mxu0 %v11069
    %11176 = vmatprep.subr.bf16.mxu0 %v11065
    %11177 = vmatpush1.bf16.msra.mxu0 %v11064
    %11178 = vmatprep.subr.bf16.mxu0 %v11060
    %11179 = vmatpush1.bf16.msra.mxu0 %v11059
    %11180 = vmatprep.subr.bf16.mxu0 %v11055
    %11181 = vmatpush1.bf16.msra.mxu0 %v11054
    %11182 = vmatprep.subr.bf16.mxu0 %v11050
    %11183 = vmatpush1.bf16.msra.mxu0 %v11049
    %11184 = vmatprep.subr.bf16.mxu0 0
    %11185 = vmatpush2.bf16.msra.mxu0 0
    %11186 = vmatprep.subr.bf16.mxu0 0
    %11187 = vmatpush2.bf16.msra.mxu0 0
    %11188 = vmatprep.subr.bf16.mxu0 0
    %11189 = vmatpush2.bf16.msra.mxu0 0
    %11190 = vmatprep.subr.bf16.mxu0 0
    %11191 = vmatpush2.bf16.msra.mxu0 0
    %11192 = vmatprep.subr.bf16.mxu0 0
    %11193 = vmatpush2.bf16.msra.mxu0 0
    %11194 = vmatprep.subr.bf16.mxu0 0
    %11195 = vmatpush2.bf16.msra.mxu0 0
    %11196 = vmatprep.subr.bf16.mxu0 0
    %11197 = vmatpush2.bf16.msra.mxu0 0
    %11198 = vmatprep.subr.bf16.mxu0 0
    %11199 = vmatpush2.bf16.msra.mxu0 0
    %11200 = vmatprep.mubr.bf16.mxu0 0
    %11201 = vmatmul.mubr.bf16.gmra.mxu0 %v10917
    %v11202 = vpop.f32.mrf.mxu0
    %v11203 = vadd.f32 %v10897, %v11202
    %v11204 = vpop.f32.mrf.mxu0
    %v11205 = vadd.f32 %v10901, %v11204
    %v11206 = vpop.f32.mrf.mxu0
    %v11207 = vpop.f32.mrf.mxu0
    %11208 = vdwg.mxu0
    %11209 = vmatprep.subr.bf16.mxu0 0
    %11210 = vmatpush1.bf16.msra.mxu0 %v11086
    %11211 = vmatprep.subr.bf16.mxu0 0
    %11212 = vmatpush1.bf16.msra.mxu0 %v11081
    %11213 = vmatprep.subr.bf16.mxu0 0
    %11214 = vmatpush1.bf16.msra.mxu0 %v11076
    %11215 = vmatprep.subr.bf16.mxu0 0
    %11216 = vmatpush1.bf16.msra.mxu0 %v11071
    %11217 = vmatprep.subr.bf16.mxu0 0
    %11218 = vmatpush1.bf16.msra.mxu0 %v11066
    %11219 = vmatprep.subr.bf16.mxu0 0
    %11220 = vmatpush1.bf16.msra.mxu0 %v11061
    %11221 = vmatprep.subr.bf16.mxu0 0
    %11222 = vmatpush1.bf16.msra.mxu0 %v11056
    %11223 = vmatprep.subr.bf16.mxu0 0
    %11224 = vmatpush1.bf16.msra.mxu0 %v11051
    %11225 = vmatprep.subr.bf16.mxu0 0
    %11226 = vmatpush2.bf16.msra.mxu0 0
    %11227 = vmatprep.subr.bf16.mxu0 0
    %11228 = vmatpush2.bf16.msra.mxu0 0
    %11229 = vmatprep.subr.bf16.mxu0 0
    %11230 = vmatpush2.bf16.msra.mxu0 0
    %11231 = vmatprep.subr.bf16.mxu0 0
    %11232 = vmatpush2.bf16.msra.mxu0 0
    %11233 = vmatprep.subr.bf16.mxu0 0
    %11234 = vmatpush2.bf16.msra.mxu0 0
    %11235 = vmatprep.subr.bf16.mxu0 0
    %11236 = vmatpush2.bf16.msra.mxu0 0
    %11237 = vmatprep.subr.bf16.mxu0 0
    %11238 = vmatpush2.bf16.msra.mxu0 0
    %11239 = vmatprep.subr.bf16.mxu0 0
    %11240 = vmatpush2.bf16.msra.mxu0 0
    %11241 = vmatprep.mubr.bf16.mxu0 0
    %11242 = vmatmul.mubr.bf16.gmra.mxu0 %v10917
    %v11243 = vpop.f32.mrf.mxu0
    %v11244 = vadd.f32 %v10905, %v11243
    %v11245 = vpop.f32.mrf.mxu0
    %v11246 = vpop.f32.mrf.mxu0
    %v11247 = vpop.f32.mrf.mxu0
    %11248 = vdwg.mxu0
    %v11249 = vmax.f32 %v11162, 0.0
    %v11250 = vmax.f32 %v11164, 0.0
    %v11251 = vmax.f32 %v11203, 0.0
    %v11252 = vmax.f32 %v11205, 0.0
    %v11253 = vmax.f32 %v11244, 0.0
    %v11254 = vpack.c.bf16 %v11249, %v11249
    %v11255 = vpack.c.bf16 %v11250, %v11250
    %v11256 = vpack.c.bf16 %v11251, %v11251
    %v11257 = vpack.c.bf16 %v11252, %v11252
    %v11258 = vpack.c.bf16 %v11253, %v11253
    %v11259 = vld [vmem:[#allocation16] sm:$0xf]
    %v11260 = vld [vmem:[#allocation16 + $0x4] sm:$0xf]
    %v11261 = vld [vmem:[#allocation16 + $0x8] sm:$0xf]
    %v11262 = vld [vmem:[#allocation16 + $0xc] sm:$0xf]
    %v11263 = vld [vmem:[#allocation16 + $0x10] sm:$0xf]
    %v11264 = vld [vmem:[#allocation16 + $0x14] sm:$0xf]
    %v11265 = vld [vmem:[#allocation16 + $0x18] sm:$0xf]
    %v11266 = vld [vmem:[#allocation16 + $0x1c] sm:$0xf]
    %v11267 = vld [vmem:[#allocation16 + $0x20] sm:$0xf]
    %v11268 = vld [vmem:[#allocation16 + $0x24] sm:$0xf]
    %v11269 = vld [vmem:[#allocation16 + $0x28] sm:$0xf]
    %v11270 = vld [vmem:[#allocation16 + $0x2c] sm:$0xf]
    %v11271 = vld [vmem:[#allocation16 + $0x30] sm:$0xf]
    %v11272 = vld [vmem:[#allocation16 + $0x34] sm:$0xf]
    %v11273 = vld [vmem:[#allocation16 + $0x38] sm:$0xf]
    %v11274 = vld [vmem:[#allocation16 + $0x3c] sm:$0xf]
    %v11275 = vld [vmem:[#allocation16 + $0x40] sm:$0xf]
    %v11276 = vld [vmem:[#allocation16 + $0x44] sm:$0xf]
    %v11277 = vld [vmem:[#allocation16 + $0x48] sm:$0xf]
    %v11278 = vld [vmem:[#allocation16 + $0x4c] sm:$0xf]
    %v11279 = vld [vmem:[#allocation16 + $0x50] sm:$0xf]
    %v11280 = vld [vmem:[#allocation16 + $0x54] sm:$0xf]
    %v11281 = vld [vmem:[#allocation16 + $0x58] sm:$0xf]
    %v11282 = vld [vmem:[#allocation16 + $0x5c] sm:$0xf]
    %v11283 = vld [vmem:[#allocation16 + $0x60] sm:$0xf]
    %v11284 = vld [vmem:[#allocation16 + $0x64] sm:$0xf]
    %v11285 = vld [vmem:[#allocation16 + $0x68] sm:$0xf]
    %v11286 = vld [vmem:[#allocation16 + $0x6c] sm:$0xf]
    %v11287 = vld [vmem:[#allocation16 + $0x70] sm:$0xf]
    %v11288 = vld [vmem:[#allocation16 + $0x74] sm:$0xf]
    %v11289 = vld [vmem:[#allocation16 + $0x78] sm:$0xf]
    %v11290 = vld [vmem:[#allocation16 + $0x7c] sm:$0xf]
    %v11291 = vld [vmem:[#allocation16 + $0x80] sm:$0xf]
    %v11292 = vld [vmem:[#allocation16 + $0x84] sm:$0xf]
    %v11293 = vld [vmem:[#allocation16 + $0x88] sm:$0xf]
    %v11294 = vld [vmem:[#allocation16 + $0x8c] sm:$0xf]
    %v11295 = vld [vmem:[#allocation16 + $0x90] sm:$0xf]
    %v11296 = vld [vmem:[#allocation16 + $0x94] sm:$0xf]
    %v11297 = vld [vmem:[#allocation16 + $0x98] sm:$0xf]
    %v11298 = vld [vmem:[#allocation16 + $0x9c] sm:$0xf]
    %v11299 = vld [vmem:[#allocation16 + $0xa0] sm:$0xf]
    %v11300 = vld [vmem:[#allocation16 + $0xa4] sm:$0xf]
    %v11301 = vld [vmem:[#allocation16 + $0xa8] sm:$0xf]
    %v11302 = vld [vmem:[#allocation16 + $0xac] sm:$0xf]
    %v11303 = vld [vmem:[#allocation16 + $0xb0] sm:$0xf]
    %v11304 = vld [vmem:[#allocation16 + $0xb4] sm:$0xf]
    %v11305 = vld [vmem:[#allocation16 + $0xb8] sm:$0xf]
    %v11306 = vld [vmem:[#allocation16 + $0xbc] sm:$0xf]
    %v11307 = vld [vmem:[#allocation16 + $0xc0] sm:$0xf]
    %v11308 = vld [vmem:[#allocation16 + $0xc4] sm:$0xf]
    %v11309 = vld [vmem:[#allocation16 + $0xc8] sm:$0xf]
    %v11310 = vld [vmem:[#allocation16 + $0xcc] sm:$0xf]
    %v11311 = vld [vmem:[#allocation16 + $0xd0] sm:$0xf]
    %v11312 = vld [vmem:[#allocation16 + $0xd4] sm:$0xf]
    %v11313 = vld [vmem:[#allocation16 + $0xd8] sm:$0xf]
    %v11314 = vld [vmem:[#allocation16 + $0xdc] sm:$0xf]
    %v11315 = vld [vmem:[#allocation16 + $0xe0] sm:$0xf]
    %v11316 = vld [vmem:[#allocation16 + $0xe4] sm:$0xf]
    %v11317 = vld [vmem:[#allocation16 + $0xe8] sm:$0xf]
    %v11318 = vld [vmem:[#allocation16 + $0xec] sm:$0xf]
    %v11319 = vld [vmem:[#allocation16 + $0xf0] sm:$0xf]
    %v11320 = vld [vmem:[#allocation16 + $0xf4] sm:$0xf]
    %v11321 = vld [vmem:[#allocation16 + $0xf8] sm:$0xf]
    %v11322 = vld [vmem:[#allocation16 + $0xfc] sm:$0xf]
    %v11323 = vld [vmem:[#allocation16 + $0x100] sm:$0xf]
    %v11324 = vld [vmem:[#allocation16 + $0x104] sm:$0xf]
    %v11325 = vld [vmem:[#allocation16 + $0x108] sm:$0xf]
    %v11326 = vld [vmem:[#allocation16 + $0x10c] sm:$0xf]
    %v11327 = vld [vmem:[#allocation16 + $0x110] sm:$0xf]
    %v11328 = vld [vmem:[#allocation16 + $0x114] sm:$0xf]
    %v11329 = vld [vmem:[#allocation16 + $0x118] sm:$0xf]
    %v11330 = vld [vmem:[#allocation16 + $0x11c] sm:$0xf]
    %v11331 = vld [vmem:[#allocation16 + $0x120] sm:$0xf]
    %v11332 = vld [vmem:[#allocation16 + $0x124] sm:$0xf]
    %v11333 = vld [vmem:[#allocation16 + $0x128] sm:$0xf]
    %v11334 = vld [vmem:[#allocation16 + $0x12c] sm:$0xf]
    %v11335 = vld [vmem:[#allocation16 + $0x130] sm:$0xf]
    %v11336 = vld [vmem:[#allocation16 + $0x134] sm:$0xf]
    %v11337 = vld [vmem:[#allocation16 + $0x138] sm:$0xf]
    %v11338 = vld [vmem:[#allocation16 + $0x13c] sm:$0xf]
    %v11339 = vld [vmem:[#allocation17] sm:$0x1]
    %v11341 = vlaneseq
    %v11342 = vshrl.u32 %v11341, 7
    %v11343 = vsub.s32 0, %v11342
    %v11344 = vrot.slane %v11339, %v11343
    %v11426 = vunpack.c.l.b16 %v11259
    %v11427 = vunpack.c.l.b16 %v11260
    %v11428 = vunpack.c.l.b16 %v11261
    %v11429 = vunpack.c.l.b16 %v11262
    %v11430 = vunpack.c.l.b16 %v11263
    %v11431 = vunpack.c.l.b16 %v11264
    %v11432 = vunpack.c.l.b16 %v11265
    %v11433 = vunpack.c.l.b16 %v11266
    %v11434 = vunpack.c.l.b16 %v11267
    %v11435 = vunpack.c.l.b16 %v11268
    %v11436 = vunpack.c.l.b16 %v11269
    %v11437 = vunpack.c.l.b16 %v11270
    %v11438 = vunpack.c.l.b16 %v11271
    %v11439 = vunpack.c.l.b16 %v11272
    %v11440 = vunpack.c.l.b16 %v11273
    %v11441 = vunpack.c.l.b16 %v11274
    %v11442 = vunpack.c.l.b16 %v11275
    %v11443 = vunpack.c.l.b16 %v11276
    %v11444 = vunpack.c.l.b16 %v11277
    %v11445 = vunpack.c.l.b16 %v11278
    %v11446 = vunpack.c.l.b16 %v11279
    %v11447 = vunpack.c.l.b16 %v11280
    %v11448 = vunpack.c.l.b16 %v11281
    %v11449 = vunpack.c.l.b16 %v11282
    %v11450 = vunpack.c.l.b16 %v11283
    %v11451 = vunpack.c.l.b16 %v11284
    %v11452 = vunpack.c.l.b16 %v11285
    %v11453 = vunpack.c.l.b16 %v11286
    %v11454 = vunpack.c.l.b16 %v11287
    %v11455 = vunpack.c.l.b16 %v11288
    %v11456 = vunpack.c.l.b16 %v11289
    %v11457 = vunpack.c.l.b16 %v11290
    %v11458 = vunpack.c.l.b16 %v11291
    %v11459 = vunpack.c.l.b16 %v11292
    %v11460 = vunpack.c.l.b16 %v11293
    %v11461 = vunpack.c.l.b16 %v11294
    %v11462 = vunpack.c.l.b16 %v11295
    %v11463 = vunpack.c.l.b16 %v11296
    %v11464 = vunpack.c.l.b16 %v11297
    %v11465 = vunpack.c.l.b16 %v11298
    %v11466 = vunpack.c.l.b16 %v11299
    %v11467 = vunpack.c.l.b16 %v11300
    %v11468 = vunpack.c.l.b16 %v11301
    %v11469 = vunpack.c.l.b16 %v11302
    %v11470 = vunpack.c.l.b16 %v11303
    %v11471 = vunpack.c.l.b16 %v11304
    %v11472 = vunpack.c.l.b16 %v11305
    %v11473 = vunpack.c.l.b16 %v11306
    %v11474 = vunpack.c.l.b16 %v11307
    %v11475 = vunpack.c.l.b16 %v11308
    %v11476 = vunpack.c.l.b16 %v11309
    %v11477 = vunpack.c.l.b16 %v11310
    %v11478 = vunpack.c.l.b16 %v11311
    %v11479 = vunpack.c.l.b16 %v11312
    %v11480 = vunpack.c.l.b16 %v11313
    %v11481 = vunpack.c.l.b16 %v11314
    %v11482 = vunpack.c.l.b16 %v11315
    %v11483 = vunpack.c.l.b16 %v11316
    %v11484 = vunpack.c.l.b16 %v11317
    %v11485 = vunpack.c.l.b16 %v11318
    %v11486 = vunpack.c.l.b16 %v11319
    %v11487 = vunpack.c.l.b16 %v11320
    %v11488 = vunpack.c.l.b16 %v11321
    %v11489 = vunpack.c.l.b16 %v11322
    %v11490 = vunpack.c.l.b16 %v11323
    %v11491 = vunpack.c.l.b16 %v11324
    %v11492 = vunpack.c.l.b16 %v11325
    %v11493 = vunpack.c.l.b16 %v11326
    %v11494 = vunpack.c.l.b16 %v11327
    %v11495 = vunpack.c.l.b16 %v11328
    %v11496 = vunpack.c.l.b16 %v11329
    %v11497 = vunpack.c.l.b16 %v11330
    %v11498 = vunpack.c.l.b16 %v11331
    %v11499 = vunpack.c.l.b16 %v11332
    %v11500 = vunpack.c.l.b16 %v11333
    %v11501 = vunpack.c.l.b16 %v11334
    %v11502 = vunpack.c.l.b16 %v11335
    %v11503 = vunpack.c.l.b16 %v11336
    %v11504 = vunpack.c.l.b16 %v11337
    %v11505 = vunpack.c.l.b16 %v11338
    %v11506 = vpack.c.b16 %v11427, %v11426
    %v11507 = vpack.c.b16 %v11429, %v11428
    %v11508 = vpack.c.b16 %v11431, %v11430
    %v11509 = vpack.c.b16 %v11433, %v11432
    %v11510 = vpack.c.b16 %v11435, %v11434
    %v11511 = vpack.c.b16 %v11437, %v11436
    %v11512 = vpack.c.b16 %v11439, %v11438
    %v11513 = vpack.c.b16 %v11441, %v11440
    %v11514 = vpack.c.b16 %v11443, %v11442
    %v11515 = vpack.c.b16 %v11445, %v11444
    %v11516 = vpack.c.b16 %v11447, %v11446
    %v11517 = vpack.c.b16 %v11449, %v11448
    %v11518 = vpack.c.b16 %v11451, %v11450
    %v11519 = vpack.c.b16 %v11453, %v11452
    %v11520 = vpack.c.b16 %v11455, %v11454
    %v11521 = vpack.c.b16 %v11457, %v11456
    %v11522 = vpack.c.b16 %v11459, %v11458
    %v11523 = vpack.c.b16 %v11461, %v11460
    %v11524 = vpack.c.b16 %v11463, %v11462
    %v11525 = vpack.c.b16 %v11465, %v11464
    %v11526 = vpack.c.b16 %v11467, %v11466
    %v11527 = vpack.c.b16 %v11469, %v11468
    %v11528 = vpack.c.b16 %v11471, %v11470
    %v11529 = vpack.c.b16 %v11473, %v11472
    %v11530 = vpack.c.b16 %v11475, %v11474
    %v11531 = vpack.c.b16 %v11477, %v11476
    %v11532 = vpack.c.b16 %v11479, %v11478
    %v11533 = vpack.c.b16 %v11481, %v11480
    %v11534 = vpack.c.b16 %v11483, %v11482
    %v11535 = vpack.c.b16 %v11485, %v11484
    %v11536 = vpack.c.b16 %v11487, %v11486
    %v11537 = vpack.c.b16 %v11489, %v11488
    %v11538 = vpack.c.b16 %v11491, %v11490
    %v11539 = vpack.c.b16 %v11493, %v11492
    %v11540 = vpack.c.b16 %v11495, %v11494
    %v11541 = vpack.c.b16 %v11497, %v11496
    %v11542 = vpack.c.b16 %v11499, %v11498
    %v11543 = vpack.c.b16 %v11501, %v11500
    %v11544 = vpack.c.b16 %v11503, %v11502
    %v11545 = vpack.c.b16 %v11505, %v11504
    %11586 = vmatprep.subr.bf16.mxu0 0
    %11587 = vmatpush1.bf16.msra.mxu0 %v11513
    %11588 = vmatprep.subr.bf16.mxu0 0
    %11589 = vmatpush1.bf16.msra.mxu0 %v11512
    %11590 = vmatprep.subr.bf16.mxu0 0
    %11591 = vmatpush1.bf16.msra.mxu0 %v11511
    %11592 = vmatprep.subr.bf16.mxu0 0
    %11593 = vmatpush1.bf16.msra.mxu0 %v11510
    %11594 = vmatprep.subr.bf16.mxu0 0
    %11595 = vmatpush1.bf16.msra.mxu0 %v11509
    %11596 = vmatprep.subr.bf16.mxu0 0
    %11597 = vmatpush1.bf16.msra.mxu0 %v11508
    %11598 = vmatprep.subr.bf16.mxu0 0
    %11599 = vmatpush1.bf16.msra.mxu0 %v11507
    %11600 = vmatprep.subr.bf16.mxu0 0
    %11601 = vmatpush1.bf16.msra.mxu0 %v11506
    %11602 = vmatprep.subr.bf16.mxu0 0
    %11603 = vmatpush2.bf16.msra.mxu0 %v11521
    %11604 = vmatprep.subr.bf16.mxu0 0
    %11605 = vmatpush2.bf16.msra.mxu0 %v11520
    %11606 = vmatprep.subr.bf16.mxu0 0
    %11607 = vmatpush2.bf16.msra.mxu0 %v11519
    %11608 = vmatprep.subr.bf16.mxu0 0
    %11609 = vmatpush2.bf16.msra.mxu0 %v11518
    %11610 = vmatprep.subr.bf16.mxu0 0
    %11611 = vmatpush2.bf16.msra.mxu0 %v11517
    %11612 = vmatprep.subr.bf16.mxu0 0
    %11613 = vmatpush2.bf16.msra.mxu0 %v11516
    %11614 = vmatprep.subr.bf16.mxu0 0
    %11615 = vmatpush2.bf16.msra.mxu0 %v11515
    %11616 = vmatprep.subr.bf16.mxu0 0
    %11617 = vmatpush2.bf16.msra.mxu0 %v11514
    %11618 = vmatprep.mubr.bf16.mxu0 %v11255
    %11619 = vmatmul.mubr.bf16.gmra.mxu0 %v11254
    %v11620 = vpop.f32.mrf.mxu0
    %v11621 = vadd.f32 %v11344, %v11620
    %v11622 = vpop.f32.mrf.mxu0
    %v11623 = vpop.f32.mrf.mxu0
    %v11624 = vpop.f32.mrf.mxu0
    %11625 = vdwg.mxu0
    %11626 = vmatprep.subr.bf16.mxu0 0
    %11627 = vmatpush1.bf16.msra.mxu0 %v11529
    %11628 = vmatprep.subr.bf16.mxu0 0
    %11629 = vmatpush1.bf16.msra.mxu0 %v11528
    %11630 = vmatprep.subr.bf16.mxu0 0
    %11631 = vmatpush1.bf16.msra.mxu0 %v11527
    %11632 = vmatprep.subr.bf16.mxu0 0
    %11633 = vmatpush1.bf16.msra.mxu0 %v11526
    %11634 = vmatprep.subr.bf16.mxu0 0
    %11635 = vmatpush1.bf16.msra.mxu0 %v11525
    %11636 = vmatprep.subr.bf16.mxu0 0
    %11637 = vmatpush1.bf16.msra.mxu0 %v11524
    %11638 = vmatprep.subr.bf16.mxu0 0
    %11639 = vmatpush1.bf16.msra.mxu0 %v11523
    %11640 = vmatprep.subr.bf16.mxu0 0
    %11641 = vmatpush1.bf16.msra.mxu0 %v11522
    %11642 = vmatprep.subr.bf16.mxu0 0
    %11643 = vmatpush2.bf16.msra.mxu0 %v11537
    %11644 = vmatprep.subr.bf16.mxu0 0
    %11645 = vmatpush2.bf16.msra.mxu0 %v11536
    %11646 = vmatprep.subr.bf16.mxu0 0
    %11647 = vmatpush2.bf16.msra.mxu0 %v11535
    %11648 = vmatprep.subr.bf16.mxu0 0
    %11649 = vmatpush2.bf16.msra.mxu0 %v11534
    %11650 = vmatprep.subr.bf16.mxu0 0
    %11651 = vmatpush2.bf16.msra.mxu0 %v11533
    %11652 = vmatprep.subr.bf16.mxu0 0
    %11653 = vmatpush2.bf16.msra.mxu0 %v11532
    %11654 = vmatprep.subr.bf16.mxu0 0
    %11655 = vmatpush2.bf16.msra.mxu0 %v11531
    %11656 = vmatprep.subr.bf16.mxu0 0
    %11657 = vmatpush2.bf16.msra.mxu0 %v11530
    %11658 = vmatprep.mubr.bf16.mxu0 %v11257
    %11659 = vmatmul.mubr.bf16.gmra.mxu0 %v11256
    %v11660 = vpop.f32.mrf.mxu0
    %v11661 = vadd.f32 %v11621, %v11660
    %v11662 = vpop.f32.mrf.mxu0
    %v11663 = vpop.f32.mrf.mxu0
    %v11664 = vpop.f32.mrf.mxu0
    %11665 = vdwg.mxu0
    %11666 = vmatprep.subr.bf16.mxu0 0
    %11667 = vmatpush1.bf16.msra.mxu0 %v11545
    %11668 = vmatprep.subr.bf16.mxu0 0
    %11669 = vmatpush1.bf16.msra.mxu0 %v11544
    %11670 = vmatprep.subr.bf16.mxu0 0
    %11671 = vmatpush1.bf16.msra.mxu0 %v11543
    %11672 = vmatprep.subr.bf16.mxu0 0
    %11673 = vmatpush1.bf16.msra.mxu0 %v11542
    %11674 = vmatprep.subr.bf16.mxu0 0
    %11675 = vmatpush1.bf16.msra.mxu0 %v11541
    %11676 = vmatprep.subr.bf16.mxu0 0
    %11677 = vmatpush1.bf16.msra.mxu0 %v11540
    %11678 = vmatprep.subr.bf16.mxu0 0
    %11679 = vmatpush1.bf16.msra.mxu0 %v11539
    %11680 = vmatprep.subr.bf16.mxu0 0
    %11681 = vmatpush1.bf16.msra.mxu0 %v11538
    %11682 = vmatprep.subr.bf16.mxu0 0
    %11683 = vmatpush2.bf16.msra.mxu0 0
    %11684 = vmatprep.subr.bf16.mxu0 0
    %11685 = vmatpush2.bf16.msra.mxu0 0
    %11686 = vmatprep.subr.bf16.mxu0 0
    %11687 = vmatpush2.bf16.msra.mxu0 0
    %11688 = vmatprep.subr.bf16.mxu0 0
    %11689 = vmatpush2.bf16.msra.mxu0 0
    %11690 = vmatprep.subr.bf16.mxu0 0
    %11691 = vmatpush2.bf16.msra.mxu0 0
    %11692 = vmatprep.subr.bf16.mxu0 0
    %11693 = vmatpush2.bf16.msra.mxu0 0
    %11694 = vmatprep.subr.bf16.mxu0 0
    %11695 = vmatpush2.bf16.msra.mxu0 0
    %11696 = vmatprep.subr.bf16.mxu0 0
    %11697 = vmatpush2.bf16.msra.mxu0 0
    %11698 = vmatprep.mubr.bf16.mxu0 0
    %11699 = vmatmul.mubr.bf16.gmra.mxu0 %v11258
    %v11700 = vpop.f32.mrf.mxu0
    %v11701 = vadd.f32 %v11661, %v11700
    %v11702 = vpop.f32.mrf.mxu0
    %v11703 = vpop.f32.mrf.mxu0
    %v11704 = vpop.f32.mrf.mxu0
    %11705 = vdwg.mxu0
    %11706 = vst [vmem:[#allocation19] sm:$0x3] %v11701
    // Predicated region
    $region86: #{cnn_forward.1} parent=1 // pred_check
      _
    $region87: #{cnn_forward.1} parent=1 // pred_check_branch
      %11708 = sbr.rel (0) target = $region89
    $region88: #{cnn_forward.1} parent=1 // pred_region
      %s11710 = ssub.s32 32, 32
      %11711 = vsyncadd [#allocation4], %s11710
      %s11713 = sshll.u32 [#allocation19], 4
      %s11714 = int_to_ptr.vmem [resolvable:$true] %s11713
      %11716 = dma.vmem_to_hbm [thread:$0]  %s11714, 32, %s11, [#allocation4]
    $region89: #{cnn_forward.1} parent=1 // pred_fallthru
      _
    // Predicated region
    $region90: #{cnn_forward.1} parent=1 // pred_check
      _
    $region91: #{cnn_forward.1} parent=1 // pred_check_branch
      %11718 = sbr.rel (0) target = $region93
    $region92: #{cnn_forward.1} parent=1 // pred_region
      %11719 = dma.done [#allocation4], 32
    $region93: #{cnn_forward.1} parent=1 // pred_fallthru
      _
    %11720 = vsyncpa [#allocation3], 1
    %11721 = vsyncpa [#allocation6], 1
    %11722 = vsyncpa [#allocation9], 1
    %11723 = vsyncpa [#allocation12], 1
    %11724 = vsyncpa [#allocation15], 1
    %11725 = vsyncpa [#allocation18], 1
    %11726 = vsyncpa [#allocation4], 1

</llo_original>
